<compile_context>
chip_gen: v7x
topology: tpu7x:2x2x1
jax: 0.10.0
libtpu: 0.0.40
codegen_flags: <defaults>
</compile_context>

<pallas_src>
import functools

import jax
import jax.numpy as jnp
from jax.experimental import pallas as pl
from jax.experimental.pallas import tpu as pltpu

_NEG_SLOPE = 0.2
_BN_EPS = 1e-5


def _round_up(x, m):
    return ((x + m - 1) // m) * m


_VMEM_LIMIT_CACHE = None


def _vmem_limit():
    """Per-generation scoped-VMEM limit: 96 MiB on 128 MiB parts, ~48 MiB on v7x (64 MiB)."""
    global _VMEM_LIMIT_CACHE
    if _VMEM_LIMIT_CACHE is None:
        cap = 128 * 1024 * 1024
        try:
            cap = int(getattr(pltpu.get_tpu_info(), "vmem_capacity_bytes", cap))
        except Exception:
            pass
        _VMEM_LIMIT_CACHE = min(96 * 1024 * 1024, (cap * 3) // 4)
    return _VMEM_LIMIT_CACHE


def _resident_spec(shape, index_map):
    """BlockSpec for grid-invariant operands (weights / bias): single-buffered."""
    try:
        return pl.BlockSpec(shape, index_map, pipeline_mode=pl.Buffered(1))
    except Exception:  # older jax without pipeline_mode support
        return pl.BlockSpec(shape, index_map)


# ---------------------------------------------------------------------------
# Pallas kernels
# ---------------------------------------------------------------------------
def _conv_accum(x_ref, w_ref, *, keff, ws, l_out):
    """Shifted-matmul conv over a flattened (Hs*Ws, Cin_eff) image resident in VMEM.

    For kernel offset (a, b) the A operand is the contiguous row window starting at flat
    index a*Ws + b.  Output rows whose flat column >= ow are 'wrap-around' garbage and are
    masked / discarded by the caller, so no im2col and no in-kernel reshapes are required.
    """
    cp = w_ref.shape[-1]
    acc = jnp.zeros((l_out, cp), jnp.float32)
    for a in range(keff):
        for b in range(keff):
            sl = x_ref[0, pl.ds(a * ws + b, l_out), :]           # (l_out, cin_eff) bf16
            acc = acc + jnp.dot(sl, w_ref[a * keff + b],
                                preferred_element_type=jnp.float32)
    return acc


def _valid_mask(shape, ws, ow):
    """Rows of the flat conv output whose column-within-padded-width is a real output col."""
    col = jax.lax.broadcasted_iota(jnp.int32, shape, 0) % ws
    return col < ow


def _conv_bias_lrelu_kernel(x_ref, w_ref, b_ref, o_ref, *, keff, ws, l_out):
    acc = _conv_accum(x_ref, w_ref, keff=keff, ws=ws, l_out=l_out)
    acc = acc + b_ref[...]
    acc = jnp.where(acc >= 0.0, acc, _NEG_SLOPE * acc)
    o_ref[0] = acc.astype(o_ref.dtype)


def _conv_stats_kernel(x_ref, w_ref, o_ref, s_ref, *, keff, ws, ow, l_out):
    acc = _conv_accum(x_ref, w_ref, keff=keff, ws=ws, l_out=l_out)
    o_ref[0] = acc.astype(o_ref.dtype)                           # raw f32 conv output
    valid = _valid_mask(acc.shape, ws, ow)
    av = jnp.where(valid, acc, 0.0)
    s1 = jnp.sum(av, axis=0, keepdims=True)                      # per-channel sum
    s2 = jnp.sum(av * av, axis=0, keepdims=True)                 # per-channel sum of squares
    s_ref[0] = jnp.concatenate([s1, s2], axis=0)                 # (2, Cp)


def _conv_bce_kernel(x_ref, w_ref, o_ref, *, keff, ws, ow, l_out, n_real):
    acc = _conv_accum(x_ref, w_ref, keff=keff, ws=ws, l_out=l_out)
    # Padded weight lanes are exactly zero, so summing lanes recovers the single logit column
    # and shrinks the transcendental (EUP) work from 128 lanes to 1.
    logits = jnp.sum(acc, axis=1, keepdims=True)                 # (l_out, 1)
    valid = _valid_mask(logits.shape, ws, ow)
    absx = jnp.abs(logits)
    log_term = jnp.log1p(jnp.exp(-absx))
    is_real = pl.program_id(0) < n_real
    # real (target 1) -> softplus(-x); fake (target 0) -> softplus(x)
    hinge = jnp.where(is_real, jnp.maximum(-logits, 0.0), jnp.maximum(logits, 0.0))
    sp = hinge + log_term
    total = jnp.sum(jnp.where(valid, sp, 0.0))
    o_ref[...] = jnp.zeros((1, 1, 128), jnp.float32) + total


def _l1_sum_kernel(x_ref, y_ref, o_ref, acc_ref):
    j = pl.program_id(1)

    @pl.when(j == 0)
    def _init():
        acc_ref[...] = jnp.zeros_like(acc_ref)

    acc_ref[...] += jnp.sum(jnp.abs(x_ref[0] - y_ref[0]), axis=0, keepdims=True)

    @pl.when(j == pl.num_programs(1) - 1)
    def _fin():
        o_ref[0] = acc_ref[...]


def _kl_sum_kernel(m_ref, lv_ref, o_ref, acc_ref):
    j = pl.program_id(1)

    @pl.when(j == 0)
    def _init():
        acc_ref[...] = jnp.zeros_like(acc_ref)

    m = m_ref[0]
    lv = lv_ref[0]
    term = -0.5 * (1.0 + lv - m * m - jnp.exp(lv))               # zero padding contributes 0
    acc_ref[...] += jnp.sum(term, axis=0, keepdims=True)

    @pl.when(j == pl.num_programs(1) - 1)
    def _fin():
        o_ref[0] = acc_ref[...]


# ---------------------------------------------------------------------------
# Pallas wrappers
# ---------------------------------------------------------------------------
def _conv_call(x_flat, w3, bias=None, *, mode, ws, ow, l_out, keff, n_real=0):
    nb, hw, ce = x_flat.shape
    ksq, _, cp = w3.shape
    x_spec = pl.BlockSpec((1, hw, ce), lambda n: (n, 0, 0))
    w_spec = _resident_spec((ksq, ce, cp), lambda n: (0, 0, 0))
    flops = 2 * nb * l_out * ksq * ce * cp
    bytes_acc = x_flat.size * 2 + w3.size * 2 + nb * l_out * cp * 4
    cparams = pltpu.CompilerParams(dimension_semantics=("parallel",),
                                   vmem_limit_bytes=_vmem_limit())

    if mode == "bias_lrelu":
        kern = functools.partial(_conv_bias_lrelu_kernel, keff=keff, ws=ws, l_out=l_out)
        return pl.pallas_call(
            kern,
            out_shape=jax.ShapeDtypeStruct((nb, l_out, cp), jnp.bfloat16),
            grid=(nb,),
            in_specs=[x_spec, w_spec, _resident_spec((1, cp), lambda n: (0, 0))],
            out_specs=pl.BlockSpec((1, l_out, cp), lambda n: (n, 0, 0)),
            compiler_params=cparams,
            cost_estimate=pl.CostEstimate(flops=flops, transcendentals=0,
                                          bytes_accessed=bytes_acc),
        )(x_flat, w3, bias)

    if mode == "stats":
        kern = functools.partial(_conv_stats_kernel, keff=keff, ws=ws, ow=ow, l_out=l_out)
        return pl.pallas_call(
            kern,
            out_shape=(jax.ShapeDtypeStruct((nb, l_out, cp), jnp.float32),
                       jax.ShapeDtypeStruct((nb, 2, cp), jnp.float32)),
            grid=(nb,),
            in_specs=[x_spec, w_spec],
            out_specs=(pl.BlockSpec((1, l_out, cp), lambda n: (n, 0, 0)),
                       pl.BlockSpec((1, 2, cp), lambda n: (n, 0, 0))),
            compiler_params=cparams,
            cost_estimate=pl.CostEstimate(flops=flops, transcendentals=0,
                                          bytes_accessed=bytes_acc),
        )(x_flat, w3)

    kern = functools.partial(_conv_bce_kernel, keff=keff, ws=ws, ow=ow, l_out=l_out,
                             n_real=n_real)
    return pl.pallas_call(
        kern,
        out_shape=jax.ShapeDtypeStruct((nb, 1, 128), jnp.float32),
        grid=(nb,),
        in_specs=[x_spec, w_spec],
        out_specs=pl.BlockSpec((1, 1, 128), lambda n: (n, 0, 0)),
        compiler_params=cparams,
        cost_estimate=pl.CostEstimate(flops=flops, transcendentals=2 * l_out,
                                      bytes_accessed=bytes_acc),
    )(x_flat, w3)


def _grid_sum(kernel, *arrays):
    """Sum-reduce over flat arrays; 2-way 'parallel' leading axis so v7x can use both TCs."""
    n = arrays[0].size
    rows = -(-n // 128)
    tr = min(2048, _round_up(rows, 8))             # up to 1 MiB f32 per grid step per input
    rows_half = _round_up(-(-rows // 2), tr)
    mats = []
    for a in arrays:
        flat = a.reshape(-1).astype(jnp.float32)
        flat = jnp.pad(flat, (0, 2 * rows_half * 128 - n))
        mats.append(flat.reshape(2, rows_half, 128))
    out = pl.pallas_call(
        kernel,
        out_shape=jax.ShapeDtypeStruct((2, 1, 128), jnp.float32),
        grid=(2, rows_half // tr),
        in_specs=[pl.BlockSpec((1, tr, 128), lambda c, j: (c, j, 0))] * len(mats),
        out_specs=pl.BlockSpec((1, 1, 128), lambda c, j: (c, 0, 0)),
        scratch_shapes=[pltpu.VMEM((1, 128), jnp.float32)],
        compiler_params=pltpu.CompilerParams(
            dimension_semantics=("parallel", "arbitrary"),
            vmem_limit_bytes=_vmem_limit()),
    )(*mats)
    return jnp.sum(out)


def abs_diff_mean(x, y):
    return _grid_sum(_l1_sum_kernel, x, y) / x.size


def kl_div_mean(mean, log_var):
    return _grid_sum(_kl_sum_kernel, mean, log_var) / mean.size


# ---------------------------------------------------------------------------
# NlayerDiscriminator (PatchGAN) glue: prep passes fuse in XLA (single HBM pass each)
# ---------------------------------------------------------------------------
def _prep_activation(act_nhwc, stride):
    """(NB, H, W, C) -> flattened padded (NB, Hs*Ws, Ce) bf16.  stride-2 layers are turned
    into stride-1 convs with keff=2 via space-to-depth (Ce = 4C)."""
    x = jnp.pad(act_nhwc, ((0, 0), (1, 1), (1, 1), (0, 0)))
    nb, hp, wp, c = x.shape
    if stride == 2:
        hp2, wp2 = _round_up(hp, 2), _round_up(wp, 2)
        x = jnp.pad(x, ((0, 0), (0, hp2 - hp), (0, wp2 - wp), (0, 0)))
        x = x.reshape(nb, hp2 // 2, 2, wp2 // 2, 2, c)
        x = x.transpose(0, 1, 3, 2, 4, 5).reshape(nb, hp2 // 2, wp2 // 2, 4 * c)
        hp, wp = hp2 // 2, wp2 // 2
    return x.reshape(nb, hp * wp, x.shape[-1]).astype(jnp.bfloat16), hp, wp


def _prep_weight(w, stride, cout_pad):
    """PyTorch OIHW (Cout, Cin, 4, 4) -> (keff^2, Cin_eff, cout_pad) bf16, offset-major."""
    cout, cin, _, _ = w.shape
    wt = jnp.transpose(w, (2, 3, 1, 0))                          # (kh, kw, cin, cout)
    wt = jnp.pad(wt, ((0, 0), (0, 0), (0, 0), (0, cout_pad - cout)))
    if stride == 2:
        wt = wt.reshape(2, 2, 2, 2, cin, cout_pad)               # (a, di, b, dj, cin, co)
        wt = wt.transpose(0, 2, 1, 3, 4, 5)                      # (a, b, di, dj, cin, co)
        wt = wt.reshape(4, 4 * cin, cout_pad)
    else:
        wt = wt.reshape(16, cin, cout_pad)
    return wt.astype(jnp.bfloat16)


def _unflatten_output(y_flat, oh, ow, ws, cout):
    nb, l_out, cp = y_flat.shape
    y = jnp.pad(y_flat, ((0, 0), (0, oh * ws - l_out), (0, 0)))
    return y.reshape(nb, oh, ws, cp)[:, :, :ow, :cout]


def _kaiming_normal(key, shape):
    # kaiming_normal_ with nonlinearity='linear' (gain=1), fan_in mode.
    fan_in = shape[1] * shape[2] * shape[3]
    return jax.random.normal(key, shape, jnp.float32) / jnp.sqrt(float(fan_in))


def init_discriminator(key, input_channels=3, num_filters=64, num_layers=3):
    """Returns (weights_pytree, static_config_tuple)."""
    keys = jax.random.split(key, num_layers + 2)
    weights, config = [], []
    weights.append(dict(w=_kaiming_normal(keys[0], (num_filters, input_channels, 4, 4)),
                        b=jnp.zeros((num_filters,), jnp.float32)))
    config.append(dict(stride=2, bias=True, bn=False, act=True))
    nf = num_filters
    out_f = num_filters
    for n in range(1, num_layers):
        out_f = num_filters * min(2 ** n, 8)
        weights.append(dict(w=_kaiming_normal(keys[n], (out_f, nf, 4, 4)), b=None))
        config.append(dict(stride=2, bias=False, bn=True, act=True))
        nf = out_f
    final_f = num_filters * min(2 ** num_layers, 8)
    weights.append(dict(w=_kaiming_normal(keys[num_layers], (final_f, out_f, 4, 4)), b=None))
    config.append(dict(stride=1, bias=False, bn=True, act=True))
    weights.append(dict(w=_kaiming_normal(keys[num_layers + 1], (1, final_f, 4, 4)) * 0.1,
                        b=None))
    config.append(dict(stride=1, bias=False, bn=False, act=False))
    return weights, tuple(config)


def discriminator_bce(weights, config, x_real, x_fake):
    """PatchGAN forward on real and fake batches (batched through the same conv kernels,
    BN statistics kept per group to match separate PyTorch forwards), final conv fused
    with the BCE-with-logits reductions."""
    assert x_real.shape == x_fake.shape, "real/fake batches must match for the fused BCE"
    b = x_real.shape[0]
    x = jnp.concatenate([x_real, x_fake], axis=0)                # (2B, C, H, W)
    act = jnp.transpose(x, (0, 2, 3, 1))                         # NHWC, done once
    n_layers = len(weights)

    for li in range(n_layers):
        w = weights[li]['w']
        bias = weights[li]['b']
        cfg = config[li]
        stride = cfg['stride']
        cout = w.shape[0]
        h, wd = act.shape[1], act.shape[2]
        oh = (h + 2 - 4) // stride + 1
        ow = (wd + 2 - 4) // stride + 1
        keff = 2 if stride == 2 else 4
        cp = _round_up(cout, 128)

        x_flat, _, ws = _prep_activation(act, stride)
        w3 = _prep_weight(w, stride, cp)
        l_out = (oh - 1) * ws + ow

        if li == n_layers - 1:
            sums = _conv_call(x_flat, w3, mode="bce", ws=ws, ow=ow, l_out=l_out,
                              keff=keff, n_real=b)
            per_sample = sums[:, 0, 0]
            denom = float(b * oh * ow)
            real_loss = jnp.sum(per_sample[:b]) / denom
            fake_loss = jnp.sum(per_sample[b:]) / denom
            return real_loss, fake_loss

        if cfg['bn']:
            y_flat, stats = _conv_call(x_flat, w3, mode="stats", ws=ws, ow=ow,
                                       l_out=l_out, keff=keff)
            # Training-mode BatchNorm statistics from the f32 accumulator, computed per
            # group (real vs fake) to match PyTorch's two separate discriminator passes.
            cnt = float(b * oh * ow)
            s1 = stats[:, 0, :cout]
            s2 = stats[:, 1, :cout]
            s1g = jnp.stack([jnp.sum(s1[:b], 0), jnp.sum(s1[b:], 0)])     # (2, cout)
            s2g = jnp.stack([jnp.sum(s2[:b], 0), jnp.sum(s2[b:], 0)])
            mean = s1g / cnt
            var = jnp.maximum(s2g / cnt - mean * mean, 0.0)
            inv_std = jax.lax.rsqrt(var + _BN_EPS)
            scale = jnp.repeat(inv_std, b, axis=0)                        # (2B, cout)
            shift = jnp.repeat(-mean * inv_std, b, axis=0)
            # Normalize + LeakyReLU in f32, fused by XLA into the next layer's prep pass.
            y = _unflatten_output(y_flat, oh, ow, ws, cout)
            y = y * scale[:, None, None, :] + shift[:, None, None, :]
            act = jnp.where(y >= 0.0, y, _NEG_SLOPE * y)
        else:
            b2d = jnp.pad(bias, (0, cp - cout)).reshape(1, cp).astype(jnp.float32)
            y_flat = _conv_call(x_flat, w3, b2d, mode="bias_lrelu", ws=ws, ow=ow,
                                l_out=l_out, keff=keff)
            act = _unflatten_output(y_flat, oh, ow, ws, cout)

    raise AssertionError("unreachable")


# ---------------------------------------------------------------------------
# AutoEncoderLoss forward
# ---------------------------------------------------------------------------
def autoencoder_loss(outputs, batch, last_layer, log_var_param, disc_weights,
                     *, disc_config, input_key='image', kl_divergence_weight=1.0,
                     lpips_weight=0.25, discriminator_weight=0.5):
    losses = {}
    x_recon = outputs['x_recon']
    target = batch[input_key]

    # --- L1 reconstruction loss (gridded, 2-core Pallas reduction) ---
    ae_mean = abs_diff_mean(x_recon, target)
    num_output_elements = x_recon[0].size
    losses['ae_loss'] = ae_mean

    # TODO(synk): LPIPS requires a pretrained VGG16 perceptual net; lpips_loss is identically 0.
    lpips_mean = jnp.asarray(0.0, jnp.float32)
    losses['lpips_loss'] = lpips_mean

    # --- NLL loss (scalar log_var so the mean factors through) ---
    rec_mean = ae_mean + lpips_weight * lpips_mean
    nll_loss = rec_mean / jnp.exp(log_var_param) + log_var_param + 2.0
    losses['nll_loss'] = nll_loss
    losses['output_variance'] = jnp.exp(log_var_param)

    # --- PatchGAN discriminator (GradientScalingLayer is identity in the forward pass) ---
    real_loss, fake_loss = discriminator_bce(disc_weights, disc_config, target, x_recon)
    losses['disc_real_loss'] = real_loss
    losses['disc_fake_loss'] = fake_loss
    losses['disc_loss'] = 0.5 * (real_loss + fake_loss)

    # TODO(synk): adaptive discriminator weight needs autograd of nll/fake losses w.r.t.
    # last_layer through the decoder graph; not expressible in this pure forward pass.
    losses['disc_weight'] = jnp.asarray(discriminator_weight, jnp.float32)
    losses['nll_grads_norm'] = jnp.asarray(0.0, jnp.float32)
    losses['disc_grads_norm'] = jnp.asarray(0.0, jnp.float32)

    # --- KL divergence (gridded, 2-core Pallas reduction) ---
    mean = outputs['mean']
    log_var = outputs['log_var']
    kl_mean = kl_div_mean(mean, log_var)
    losses['kl_div_loss'] = kl_mean
    num_latent_elements = mean[0].size
    dimensionality_weight = num_latent_elements / num_output_elements

    total = nll_loss + kl_divergence_weight * dimensionality_weight * kl_mean
    total = total + losses['disc_loss']
    losses['total'] = total
    return losses


# ---------------------------------------------------------------------------
# main
# ---------------------------------------------------------------------------
if __name__ == "__main__":
    key = jax.random.PRNGKey(0)
    k1, k2, k3, k4, k5, k6 = jax.random.split(key, 6)

    # small but discriminator-compatible shapes (>= 32x32 spatial needed for 5 conv layers)
    B, C, H, W = 2, 3, 32, 32
    CL, HL, WL = 4, 8, 8

    x_recon = 0.5 * jax.random.normal(k1, (B, C, H, W), jnp.float32)
    image = 0.5 * jax.random.normal(k2, (B, C, H, W), jnp.float32)
    latent_mean = 0.1 * jax.random.normal(k3, (B, CL, HL, WL), jnp.float32)
    latent_log_var = 0.1 * jax.random.normal(k4, (B, CL, HL, WL), jnp.float32)
    last_layer = jax.random.normal(k5, (C, 16, 3, 3), jnp.float32)  # unused (see TODO)

    log_var_param = jnp.asarray(0.0, jnp.float32)  # learn_log_var init (log_var_init=0.0)
    disc_weights, disc_config = init_discriminator(k6, input_channels=C,
                                                   num_filters=8, num_layers=3)

    loss_fn = jax.jit(functools.partial(
        autoencoder_loss,
        disc_config=disc_config,        # static Python metadata
        input_key='image',
        kl_divergence_weight=1.0,
        lpips_weight=0.25,
        discriminator_weight=0.5,
    ))

    losses = loss_fn(
        {'x_recon': x_recon, 'mean': latent_mean, 'log_var': latent_log_var},
        {'image': image},
        last_layer,
        log_var_param,
        disc_weights,
    )
    losses = jax.tree_util.tree_map(jax.block_until_ready, losses)

    for name in ('ae_loss', 'nll_loss', 'disc_real_loss', 'disc_fake_loss',
                 'disc_loss', 'kl_div_loss', 'total'):
        assert jnp.isfinite(losses[name]), name
    print("KERNEL_OK")
</pallas_src>

<mosaic_0001>
module attributes {stable_mosaic.version = 11 : i64} {
  func.func @_conv_bias_lrelu_kernel(%arg0: i32, %arg1: memref<1x289x12xbf16, #tpu.memory_space<vmem>>, %arg2: memref<4x12x128xbf16, #tpu.memory_space<vmem>>, %arg3: memref<1x128xf32, #tpu.memory_space<vmem>>, %arg4: memref<1x271x128xbf16, #tpu.memory_space<vmem>>) attributes {dimension_semantics = [#tpu.dimension_semantics<parallel>], iteration_bounds = array<i64: 4>, scalar_prefetch = 0 : i64, scratch_operands = 0 : i64, tpu.core_type = #tpu.core_type<tc>, window_params = [{transform_indices = @transform_0, window_bounds = array<i64: 1, 289, 12>}, {pipeline_mode = #tpu.pipeline_mode<synchronous>, transform_indices = @transform_1, window_bounds = array<i64: 4, 12, 128>}, {pipeline_mode = #tpu.pipeline_mode<synchronous>, transform_indices = @transform_2, window_bounds = array<i64: 1, 128>}, {transform_indices = @transform_3, window_bounds = array<i64: 1, 271, 128>}]} {
    %cst = arith.constant 0.000000e+00 : f32
    %0 = vector.broadcast %cst : f32 to vector<271x128xf32>
    %c0 = arith.constant 0 : index
    %c0_0 = arith.constant 0 : index
    %c0_1 = arith.constant 0 : index
    %1 = vector.load %arg1[%c0, %c0_0, %c0_1] : memref<1x289x12xbf16, #tpu.memory_space<vmem>>, vector<1x271x12xbf16>
    %2 = vector.shape_cast %1 : vector<1x271x12xbf16> to vector<271x12xbf16>
    %c0_2 = arith.constant 0 : index
    %c0_3 = arith.constant 0 : index
    %c0_4 = arith.constant 0 : index
    %3 = vector.load %arg2[%c0_2, %c0_3, %c0_4] : memref<4x12x128xbf16, #tpu.memory_space<vmem>>, vector<1x12x128xbf16>
    %4 = vector.shape_cast %3 : vector<1x12x128xbf16> to vector<12x128xbf16>
    %cst_5 = arith.constant dense<0.000000e+00> : vector<271x128xf32>
    %5 = tpu.matmul %2, %4, %cst_5 {dimension_numbers = #tpu.dot_dimension_numbers<[1], [0], [0], [1], [0, 0, 1, 1], [], []>} : vector<271x12xbf16>, vector<12x128xbf16>, vector<271x128xf32> -> vector<271x128xf32>
    %6 = arith.addf %0, %5 : vector<271x128xf32>
    %c0_6 = arith.constant 0 : index
    %c1 = arith.constant 1 : index
    %c0_7 = arith.constant 0 : index
    %7 = vector.load %arg1[%c0_6, %c1, %c0_7] : memref<1x289x12xbf16, #tpu.memory_space<vmem>>, vector<1x271x12xbf16>
    %8 = vector.shape_cast %7 : vector<1x271x12xbf16> to vector<271x12xbf16>
    %c1_8 = arith.constant 1 : index
    %c0_9 = arith.constant 0 : index
    %c0_10 = arith.constant 0 : index
    %9 = vector.load %arg2[%c1_8, %c0_9, %c0_10] : memref<4x12x128xbf16, #tpu.memory_space<vmem>>, vector<1x12x128xbf16>
    %10 = vector.shape_cast %9 : vector<1x12x128xbf16> to vector<12x128xbf16>
    %cst_11 = arith.constant dense<0.000000e+00> : vector<271x128xf32>
    %11 = tpu.matmul %8, %10, %cst_11 {dimension_numbers = #tpu.dot_dimension_numbers<[1], [0], [0], [1], [0, 0, 1, 1], [], []>} : vector<271x12xbf16>, vector<12x128xbf16>, vector<271x128xf32> -> vector<271x128xf32>
    %12 = arith.addf %6, %11 : vector<271x128xf32>
    %c0_12 = arith.constant 0 : index
    %c17 = arith.constant 17 : index
    %c0_13 = arith.constant 0 : index
    %13 = vector.load %arg1[%c0_12, %c17, %c0_13] : memref<1x289x12xbf16, #tpu.memory_space<vmem>>, vector<1x271x12xbf16>
    %14 = vector.shape_cast %13 : vector<1x271x12xbf16> to vector<271x12xbf16>
    %c2 = arith.constant 2 : index
    %c0_14 = arith.constant 0 : index
    %c0_15 = arith.constant 0 : index
    %15 = vector.load %arg2[%c2, %c0_14, %c0_15] : memref<4x12x128xbf16, #tpu.memory_space<vmem>>, vector<1x12x128xbf16>
    %16 = vector.shape_cast %15 : vector<1x12x128xbf16> to vector<12x128xbf16>
    %cst_16 = arith.constant dense<0.000000e+00> : vector<271x128xf32>
    %17 = tpu.matmul %14, %16, %cst_16 {dimension_numbers = #tpu.dot_dimension_numbers<[1], [0], [0], [1], [0, 0, 1, 1], [], []>} : vector<271x12xbf16>, vector<12x128xbf16>, vector<271x128xf32> -> vector<271x128xf32>
    %18 = arith.addf %12, %17 : vector<271x128xf32>
    %c0_17 = arith.constant 0 : index
    %c18 = arith.constant 18 : index
    %c0_18 = arith.constant 0 : index
    %19 = vector.load %arg1[%c0_17, %c18, %c0_18] : memref<1x289x12xbf16, #tpu.memory_space<vmem>>, vector<1x271x12xbf16>
    %20 = vector.shape_cast %19 : vector<1x271x12xbf16> to vector<271x12xbf16>
    %c3 = arith.constant 3 : index
    %c0_19 = arith.constant 0 : index
    %c0_20 = arith.constant 0 : index
    %21 = vector.load %arg2[%c3, %c0_19, %c0_20] : memref<4x12x128xbf16, #tpu.memory_space<vmem>>, vector<1x12x128xbf16>
    %22 = vector.shape_cast %21 : vector<1x12x128xbf16> to vector<12x128xbf16>
    %cst_21 = arith.constant dense<0.000000e+00> : vector<271x128xf32>
    %23 = tpu.matmul %20, %22, %cst_21 {dimension_numbers = #tpu.dot_dimension_numbers<[1], [0], [0], [1], [0, 0, 1, 1], [], []>} : vector<271x12xbf16>, vector<12x128xbf16>, vector<271x128xf32> -> vector<271x128xf32>
    %24 = arith.addf %18, %23 : vector<271x128xf32>
    %c0_22 = arith.constant 0 : index
    %c0_23 = arith.constant 0 : index
    %25 = vector.load %arg3[%c0_22, %c0_23] : memref<1x128xf32, #tpu.memory_space<vmem>>, vector<1x128xf32>
    %26 = vector.broadcast %25 : vector<1x128xf32> to vector<271x128xf32>
    %27 = arith.addf %24, %26 : vector<271x128xf32>
    %cst_24 = arith.constant 0.000000e+00 : f32
    %28 = vector.broadcast %cst_24 : f32 to vector<271x128xf32>
    %29 = arith.cmpf oge, %27, %28 : vector<271x128xf32>
    %cst_25 = arith.constant 2.000000e-01 : f32
    %30 = vector.broadcast %cst_25 : f32 to vector<271x128xf32>
    %31 = arith.mulf %30, %27 : vector<271x128xf32>
    %32 = arith.select %29, %27, %31 : vector<271x128xi1>, vector<271x128xf32>
    %33 = arith.truncf %32 : vector<271x128xf32> to vector<271x128xbf16>
    %c0_26 = arith.constant 0 : index
    %c0_27 = arith.constant 0 : index
    %c0_28 = arith.constant 0 : index
    %34 = vector.load %arg4[%c0_26, %c0_27, %c0_28] : memref<1x271x128xbf16, #tpu.memory_space<vmem>>, vector<1x271x128xbf16>
    %35 = vector.shape_cast %34 : vector<1x271x128xbf16> to vector<271x128xbf16>
    %36 = vector.shape_cast %33 : vector<271x128xbf16> to vector<1x271x128xbf16>
    tpu.vector_store %arg4[%c0_26, %c0_27, %c0_28], %36 {strides = array<i32>} : memref<1x271x128xbf16, #tpu.memory_space<vmem>>, vector<1x271x128xbf16>,
    return
  }
  func.func @transform_0(%arg0: i32) -> (i32, i32, i32) {
    %c0_i32 = arith.constant 0 : i32
    %c0_i32_0 = arith.constant 0 : i32
    %c0_i32_1 = arith.constant 0 : i32
    return %arg0, %c0_i32, %c0_i32_0 : i32, i32, i32
  }
  func.func @transform_1(%arg0: i32) -> (i32, i32, i32) {
    %c0_i32 = arith.constant 0 : i32
    %c0_i32_0 = arith.constant 0 : i32
    %c0_i32_1 = arith.constant 0 : i32
    %c0_i32_2 = arith.constant 0 : i32
    return %c0_i32, %c0_i32_0, %c0_i32_1 : i32, i32, i32
  }
  func.func @transform_2(%arg0: i32) -> (i32, i32) {
    %c0_i32 = arith.constant 0 : i32
    %c0_i32_0 = arith.constant 0 : i32
    %c0_i32_1 = arith.constant 0 : i32
    return %c0_i32, %c0_i32_0 : i32, i32
  }
  func.func @transform_3(%arg0: i32) -> (i32, i32, i32) {
    %c0_i32 = arith.constant 0 : i32
    %c0_i32_0 = arith.constant 0 : i32
    %c0_i32_1 = arith.constant 0 : i32
    return %arg0, %c0_i32, %c0_i32_0 : i32, i32, i32
  }
}

module attributes {stable_mosaic.version = 11 : i64} {
  func.func @_conv_stats_kernel(%arg0: i32, %arg1: memref<1x81x32xbf16, #tpu.memory_space<vmem>>, %arg2: memref<4x32x128xbf16, #tpu.memory_space<vmem>>, %arg3: memref<1x71x128xf32, #tpu.memory_space<vmem>>, %arg4: memref<1x2x128xf32, #tpu.memory_space<vmem>>) attributes {dimension_semantics = [#tpu.dimension_semantics<parallel>], iteration_bounds = array<i64: 4>, scalar_prefetch = 0 : i64, scratch_operands = 0 : i64, tpu.core_type = #tpu.core_type<tc>, window_params = [{transform_indices = @transform_0, window_bounds = array<i64: 1, 81, 32>}, {pipeline_mode = #tpu.pipeline_mode<synchronous>, transform_indices = @transform_1, window_bounds = array<i64: 4, 32, 128>}, {transform_indices = @transform_2, window_bounds = array<i64: 1, 71, 128>}, {transform_indices = @transform_3, window_bounds = array<i64: 1, 2, 128>}]} {
    %cst = arith.constant 0.000000e+00 : f32
    %0 = vector.broadcast %cst : f32 to vector<71x128xf32>
    %c0 = arith.constant 0 : index
    %c0_0 = arith.constant 0 : index
    %c0_1 = arith.constant 0 : index
    %1 = vector.load %arg1[%c0, %c0_0, %c0_1] : memref<1x81x32xbf16, #tpu.memory_space<vmem>>, vector<1x71x32xbf16>
    %2 = vector.shape_cast %1 : vector<1x71x32xbf16> to vector<71x32xbf16>
    %c0_2 = arith.constant 0 : index
    %c0_3 = arith.constant 0 : index
    %c0_4 = arith.constant 0 : index
    %3 = vector.load %arg2[%c0_2, %c0_3, %c0_4] : memref<4x32x128xbf16, #tpu.memory_space<vmem>>, vector<1x32x128xbf16>
    %4 = vector.shape_cast %3 : vector<1x32x128xbf16> to vector<32x128xbf16>
    %cst_5 = arith.constant dense<0.000000e+00> : vector<71x128xf32>
    %5 = tpu.matmul %2, %4, %cst_5 {dimension_numbers = #tpu.dot_dimension_numbers<[1], [0], [0], [1], [0, 0, 1, 1], [], []>} : vector<71x32xbf16>, vector<32x128xbf16>, vector<71x128xf32> -> vector<71x128xf32>
    %6 = arith.addf %0, %5 : vector<71x128xf32>
    %c0_6 = arith.constant 0 : index
    %c1 = arith.constant 1 : index
    %c0_7 = arith.constant 0 : index
    %7 = vector.load %arg1[%c0_6, %c1, %c0_7] : memref<1x81x32xbf16, #tpu.memory_space<vmem>>, vector<1x71x32xbf16>
    %8 = vector.shape_cast %7 : vector<1x71x32xbf16> to vector<71x32xbf16>
    %c1_8 = arith.constant 1 : index
    %c0_9 = arith.constant 0 : index
    %c0_10 = arith.constant 0 : index
    %9 = vector.load %arg2[%c1_8, %c0_9, %c0_10] : memref<4x32x128xbf16, #tpu.memory_space<vmem>>, vector<1x32x128xbf16>
    %10 = vector.shape_cast %9 : vector<1x32x128xbf16> to vector<32x128xbf16>
    %cst_11 = arith.constant dense<0.000000e+00> : vector<71x128xf32>
    %11 = tpu.matmul %8, %10, %cst_11 {dimension_numbers = #tpu.dot_dimension_numbers<[1], [0], [0], [1], [0, 0, 1, 1], [], []>} : vector<71x32xbf16>, vector<32x128xbf16>, vector<71x128xf32> -> vector<71x128xf32>
    %12 = arith.addf %6, %11 : vector<71x128xf32>
    %c0_12 = arith.constant 0 : index
    %c9 = arith.constant 9 : index
    %c0_13 = arith.constant 0 : index
    %13 = vector.load %arg1[%c0_12, %c9, %c0_13] : memref<1x81x32xbf16, #tpu.memory_space<vmem>>, vector<1x71x32xbf16>
    %14 = vector.shape_cast %13 : vector<1x71x32xbf16> to vector<71x32xbf16>
    %c2 = arith.constant 2 : index
    %c0_14 = arith.constant 0 : index
    %c0_15 = arith.constant 0 : index
    %15 = vector.load %arg2[%c2, %c0_14, %c0_15] : memref<4x32x128xbf16, #tpu.memory_space<vmem>>, vector<1x32x128xbf16>
    %16 = vector.shape_cast %15 : vector<1x32x128xbf16> to vector<32x128xbf16>
    %cst_16 = arith.constant dense<0.000000e+00> : vector<71x128xf32>
    %17 = tpu.matmul %14, %16, %cst_16 {dimension_numbers = #tpu.dot_dimension_numbers<[1], [0], [0], [1], [0, 0, 1, 1], [], []>} : vector<71x32xbf16>, vector<32x128xbf16>, vector<71x128xf32> -> vector<71x128xf32>
    %18 = arith.addf %12, %17 : vector<71x128xf32>
    %c0_17 = arith.constant 0 : index
    %c10 = arith.constant 10 : index
    %c0_18 = arith.constant 0 : index
    %19 = vector.load %arg1[%c0_17, %c10, %c0_18] : memref<1x81x32xbf16, #tpu.memory_space<vmem>>, vector<1x71x32xbf16>
    %20 = vector.shape_cast %19 : vector<1x71x32xbf16> to vector<71x32xbf16>
    %c3 = arith.constant 3 : index
    %c0_19 = arith.constant 0 : index
    %c0_20 = arith.constant 0 : index
    %21 = vector.load %arg2[%c3, %c0_19, %c0_20] : memref<4x32x128xbf16, #tpu.memory_space<vmem>>, vector<1x32x128xbf16>
    %22 = vector.shape_cast %21 : vector<1x32x128xbf16> to vector<32x128xbf16>
    %cst_21 = arith.constant dense<0.000000e+00> : vector<71x128xf32>
    %23 = tpu.matmul %20, %22, %cst_21 {dimension_numbers = #tpu.dot_dimension_numbers<[1], [0], [0], [1], [0, 0, 1, 1], [], []>} : vector<71x32xbf16>, vector<32x128xbf16>, vector<71x128xf32> -> vector<71x128xf32>
    %24 = arith.addf %18, %23 : vector<71x128xf32>
    %c0_22 = arith.constant 0 : index
    %c0_23 = arith.constant 0 : index
    %c0_24 = arith.constant 0 : index
    %25 = vector.load %arg3[%c0_22, %c0_23, %c0_24] : memref<1x71x128xf32, #tpu.memory_space<vmem>>, vector<1x71x128xf32>
    %26 = vector.shape_cast %25 : vector<1x71x128xf32> to vector<71x128xf32>
    %27 = vector.shape_cast %24 : vector<71x128xf32> to vector<1x71x128xf32>
    tpu.vector_store %arg3[%c0_22, %c0_23, %c0_24], %27 {strides = array<i32>} : memref<1x71x128xf32, #tpu.memory_space<vmem>>, vector<1x71x128xf32>,
    %28 = tpu.iota {dimensions = array<i32: 0>} : vector<71x128xi32>
    %c9_i32 = arith.constant 9 : i32
    %c0_i32 = arith.constant 0 : i32
    %29 = arith.cmpi eq, %c9_i32, %c0_i32 : i32
    %c1_i32 = arith.constant 1 : i32
    %30 = arith.select %29, %c1_i32, %c9_i32 : i32
    %31 = vector.broadcast %30 : i32 to vector<71x128xi32>
    %32 = arith.remsi %28, %31 : vector<71x128xi32>
    %c0_i32_25 = arith.constant 0 : i32
    %33 = vector.broadcast %c0_i32_25 : i32 to vector<71x128xi32>
    %34 = arith.cmpi ne, %32, %33 : vector<71x128xi32>
    %c0_i32_26 = arith.constant 0 : i32
    %35 = vector.broadcast %c0_i32_26 : i32 to vector<71x128xi32>
    %36 = arith.cmpi slt, %32, %35 : vector<71x128xi32>
    %c0_i32_27 = arith.constant 0 : i32
    %37 = arith.cmpi slt, %30, %c0_i32_27 : i32
    %38 = vector.broadcast %37 : i1 to vector<71x128xi1>
    %39 = vector.broadcast %38 : vector<71x128xi1> to vector<71x128xi1>
    %40 = arith.xori %36, %39 : vector<71x128xi1>
    %41 = arith.andi %40, %34 : vector<71x128xi1>
    %42 = vector.broadcast %30 : i32 to vector<71x128xi32>
    %43 = arith.addi %32, %42 : vector<71x128xi32>
    %44 = arith.select %41, %43, %32 : vector<71x128xi1>, vector<71x128xi32>
    %c8_i32 = arith.constant 8 : i32
    %45 = vector.broadcast %c8_i32 : i32 to vector<71x128xi32>
    %46 = arith.cmpi slt, %44, %45 : vector<71x128xi32>
    %cst_28 = arith.constant 0.000000e+00 : f32
    %47 = vector.broadcast %cst_28 : f32 to vector<71x128xf32>
    %48 = arith.select %46, %24, %47 : vector<71x128xi1>, vector<71x128xf32>
    %cst_29 = arith.constant dense<0.000000e+00> : vector<128xf32>
    %49 = vector.multi_reduction <add>, %48, %cst_29 [0] : vector<71x128xf32> to vector<128xf32>
    %50 = vector.shape_cast %49 : vector<128xf32> to vector<1x128xf32>
    %51 = arith.mulf %48, %48 : vector<71x128xf32>
    %cst_30 = arith.constant dense<0.000000e+00> : vector<128xf32>
    %52 = vector.multi_reduction <add>, %51, %cst_30 [0] : vector<71x128xf32> to vector<128xf32>
    %53 = vector.shape_cast %52 : vector<128xf32> to vector<1x128xf32>
    %54 = tpu.concatenate %50, %53 in 0 : vector<1x128xf32>, vector<1x128xf32> -> vector<2x128xf32>
    %c0_31 = arith.constant 0 : index
    %c0_32 = arith.constant 0 : index
    %c0_33 = arith.constant 0 : index
    %55 = vector.load %arg4[%c0_31, %c0_32, %c0_33] : memref<1x2x128xf32, #tpu.memory_space<vmem>>, vector<1x2x128xf32>
    %56 = vector.shape_cast %55 : vector<1x2x128xf32> to vector<2x128xf32>
    %57 = vector.shape_cast %54 : vector<2x128xf32> to vector<1x2x128xf32>
    tpu.vector_store %arg4[%c0_31, %c0_32, %c0_33], %57 {strides = array<i32>} : memref<1x2x128xf32, #tpu.memory_space<vmem>>, vector<1x2x128xf32>,
    return
  }
  func.func @transform_0(%arg0: i32) -> (i32, i32, i32) {
    %c0_i32 = arith.constant 0 : i32
    %c0_i32_0 = arith.constant 0 : i32
    %c0_i32_1 = arith.constant 0 : i32
    return %arg0, %c0_i32, %c0_i32_0 : i32, i32, i32
  }
  func.func @transform_1(%arg0: i32) -> (i32, i32, i32) {
    %c0_i32 = arith.constant 0 : i32
    %c0_i32_0 = arith.constant 0 : i32
    %c0_i32_1 = arith.constant 0 : i32
    %c0_i32_2 = arith.constant 0 : i32
    return %c0_i32, %c0_i32_0, %c0_i32_1 : i32, i32, i32
  }
  func.func @transform_2(%arg0: i32) -> (i32, i32, i32) {
    %c0_i32 = arith.constant 0 : i32
    %c0_i32_0 = arith.constant 0 : i32
    %c0_i32_1 = arith.constant 0 : i32
    return %arg0, %c0_i32, %c0_i32_0 : i32, i32, i32
  }
  func.func @transform_3(%arg0: i32) -> (i32, i32, i32) {
    %c0_i32 = arith.constant 0 : i32
    %c0_i32_0 = arith.constant 0 : i32
    %c0_i32_1 = arith.constant 0 : i32
    return %arg0, %c0_i32, %c0_i32_0 : i32, i32, i32
  }
}

module attributes {stable_mosaic.version = 11 : i64} {
  func.func @_conv_stats_kernel(%arg0: i32, %arg1: memref<1x25x64xbf16, #tpu.memory_space<vmem>>, %arg2: memref<4x64x128xbf16, #tpu.memory_space<vmem>>, %arg3: memref<1x19x128xf32, #tpu.memory_space<vmem>>, %arg4: memref<1x2x128xf32, #tpu.memory_space<vmem>>) attributes {dimension_semantics = [#tpu.dimension_semantics<parallel>], iteration_bounds = array<i64: 4>, scalar_prefetch = 0 : i64, scratch_operands = 0 : i64, tpu.core_type = #tpu.core_type<tc>, window_params = [{transform_indices = @transform_0, window_bounds = array<i64: 1, 25, 64>}, {pipeline_mode = #tpu.pipeline_mode<synchronous>, transform_indices = @transform_1, window_bounds = array<i64: 4, 64, 128>}, {transform_indices = @transform_2, window_bounds = array<i64: 1, 19, 128>}, {transform_indices = @transform_3, window_bounds = array<i64: 1, 2, 128>}]} {
    %cst = arith.constant 0.000000e+00 : f32
    %0 = vector.broadcast %cst : f32 to vector<19x128xf32>
    %c0 = arith.constant 0 : index
    %c0_0 = arith.constant 0 : index
    %c0_1 = arith.constant 0 : index
    %1 = vector.load %arg1[%c0, %c0_0, %c0_1] : memref<1x25x64xbf16, #tpu.memory_space<vmem>>, vector<1x19x64xbf16>
    %2 = vector.shape_cast %1 : vector<1x19x64xbf16> to vector<19x64xbf16>
    %c0_2 = arith.constant 0 : index
    %c0_3 = arith.constant 0 : index
    %c0_4 = arith.constant 0 : index
    %3 = vector.load %arg2[%c0_2, %c0_3, %c0_4] : memref<4x64x128xbf16, #tpu.memory_space<vmem>>, vector<1x64x128xbf16>
    %4 = vector.shape_cast %3 : vector<1x64x128xbf16> to vector<64x128xbf16>
    %cst_5 = arith.constant dense<0.000000e+00> : vector<19x128xf32>
    %5 = tpu.matmul %2, %4, %cst_5 {dimension_numbers = #tpu.dot_dimension_numbers<[1], [0], [0], [1], [0, 0, 1, 1], [], []>} : vector<19x64xbf16>, vector<64x128xbf16>, vector<19x128xf32> -> vector<19x128xf32>
    %6 = arith.addf %0, %5 : vector<19x128xf32>
    %c0_6 = arith.constant 0 : index
    %c1 = arith.constant 1 : index
    %c0_7 = arith.constant 0 : index
    %7 = vector.load %arg1[%c0_6, %c1, %c0_7] : memref<1x25x64xbf16, #tpu.memory_space<vmem>>, vector<1x19x64xbf16>
    %8 = vector.shape_cast %7 : vector<1x19x64xbf16> to vector<19x64xbf16>
    %c1_8 = arith.constant 1 : index
    %c0_9 = arith.constant 0 : index
    %c0_10 = arith.constant 0 : index
    %9 = vector.load %arg2[%c1_8, %c0_9, %c0_10] : memref<4x64x128xbf16, #tpu.memory_space<vmem>>, vector<1x64x128xbf16>
    %10 = vector.shape_cast %9 : vector<1x64x128xbf16> to vector<64x128xbf16>
    %cst_11 = arith.constant dense<0.000000e+00> : vector<19x128xf32>
    %11 = tpu.matmul %8, %10, %cst_11 {dimension_numbers = #tpu.dot_dimension_numbers<[1], [0], [0], [1], [0, 0, 1, 1], [], []>} : vector<19x64xbf16>, vector<64x128xbf16>, vector<19x128xf32> -> vector<19x128xf32>
    %12 = arith.addf %6, %11 : vector<19x128xf32>
    %c0_12 = arith.constant 0 : index
    %c5 = arith.constant 5 : index
    %c0_13 = arith.constant 0 : index
    %13 = vector.load %arg1[%c0_12, %c5, %c0_13] : memref<1x25x64xbf16, #tpu.memory_space<vmem>>, vector<1x19x64xbf16>
    %14 = vector.shape_cast %13 : vector<1x19x64xbf16> to vector<19x64xbf16>
    %c2 = arith.constant 2 : index
    %c0_14 = arith.constant 0 : index
    %c0_15 = arith.constant 0 : index
    %15 = vector.load %arg2[%c2, %c0_14, %c0_15] : memref<4x64x128xbf16, #tpu.memory_space<vmem>>, vector<1x64x128xbf16>
    %16 = vector.shape_cast %15 : vector<1x64x128xbf16> to vector<64x128xbf16>
    %cst_16 = arith.constant dense<0.000000e+00> : vector<19x128xf32>
    %17 = tpu.matmul %14, %16, %cst_16 {dimension_numbers = #tpu.dot_dimension_numbers<[1], [0], [0], [1], [0, 0, 1, 1], [], []>} : vector<19x64xbf16>, vector<64x128xbf16>, vector<19x128xf32> -> vector<19x128xf32>
    %18 = arith.addf %12, %17 : vector<19x128xf32>
    %c0_17 = arith.constant 0 : index
    %c6 = arith.constant 6 : index
    %c0_18 = arith.constant 0 : index
    %19 = vector.load %arg1[%c0_17, %c6, %c0_18] : memref<1x25x64xbf16, #tpu.memory_space<vmem>>, vector<1x19x64xbf16>
    %20 = vector.shape_cast %19 : vector<1x19x64xbf16> to vector<19x64xbf16>
    %c3 = arith.constant 3 : index
    %c0_19 = arith.constant 0 : index
    %c0_20 = arith.constant 0 : index
    %21 = vector.load %arg2[%c3, %c0_19, %c0_20] : memref<4x64x128xbf16, #tpu.memory_space<vmem>>, vector<1x64x128xbf16>
    %22 = vector.shape_cast %21 : vector<1x64x128xbf16> to vector<64x128xbf16>
    %cst_21 = arith.constant dense<0.000000e+00> : vector<19x128xf32>
    %23 = tpu.matmul %20, %22, %cst_21 {dimension_numbers = #tpu.dot_dimension_numbers<[1], [0], [0], [1], [0, 0, 1, 1], [], []>} : vector<19x64xbf16>, vector<64x128xbf16>, vector<19x128xf32> -> vector<19x128xf32>
    %24 = arith.addf %18, %23 : vector<19x128xf32>
    %c0_22 = arith.constant 0 : index
    %c0_23 = arith.constant 0 : index
    %c0_24 = arith.constant 0 : index
    %25 = vector.load %arg3[%c0_22, %c0_23, %c0_24] : memref<1x19x128xf32, #tpu.memory_space<vmem>>, vector<1x19x128xf32>
    %26 = vector.shape_cast %25 : vector<1x19x128xf32> to vector<19x128xf32>
    %27 = vector.shape_cast %24 : vector<19x128xf32> to vector<1x19x128xf32>
    tpu.vector_store %arg3[%c0_22, %c0_23, %c0_24], %27 {strides = array<i32>} : memref<1x19x128xf32, #tpu.memory_space<vmem>>, vector<1x19x128xf32>,
    %28 = tpu.iota {dimensions = array<i32: 0>} : vector<19x128xi32>
    %c5_i32 = arith.constant 5 : i32
    %c0_i32 = arith.constant 0 : i32
    %29 = arith.cmpi eq, %c5_i32, %c0_i32 : i32
    %c1_i32 = arith.constant 1 : i32
    %30 = arith.select %29, %c1_i32, %c5_i32 : i32
    %31 = vector.broadcast %30 : i32 to vector<19x128xi32>
    %32 = arith.remsi %28, %31 : vector<19x128xi32>
    %c0_i32_25 = arith.constant 0 : i32
    %33 = vector.broadcast %c0_i32_25 : i32 to vector<19x128xi32>
    %34 = arith.cmpi ne, %32, %33 : vector<19x128xi32>
    %c0_i32_26 = arith.constant 0 : i32
    %35 = vector.broadcast %c0_i32_26 : i32 to vector<19x128xi32>
    %36 = arith.cmpi slt, %32, %35 : vector<19x128xi32>
    %c0_i32_27 = arith.constant 0 : i32
    %37 = arith.cmpi slt, %30, %c0_i32_27 : i32
    %38 = vector.broadcast %37 : i1 to vector<19x128xi1>
    %39 = vector.broadcast %38 : vector<19x128xi1> to vector<19x128xi1>
    %40 = arith.xori %36, %39 : vector<19x128xi1>
    %41 = arith.andi %40, %34 : vector<19x128xi1>
    %42 = vector.broadcast %30 : i32 to vector<19x128xi32>
    %43 = arith.addi %32, %42 : vector<19x128xi32>
    %44 = arith.select %41, %43, %32 : vector<19x128xi1>, vector<19x128xi32>
    %c4_i32 = arith.constant 4 : i32
    %45 = vector.broadcast %c4_i32 : i32 to vector<19x128xi32>
    %46 = arith.cmpi slt, %44, %45 : vector<19x128xi32>
    %cst_28 = arith.constant 0.000000e+00 : f32
    %47 = vector.broadcast %cst_28 : f32 to vector<19x128xf32>
    %48 = arith.select %46, %24, %47 : vector<19x128xi1>, vector<19x128xf32>
    %cst_29 = arith.constant dense<0.000000e+00> : vector<128xf32>
    %49 = vector.multi_reduction <add>, %48, %cst_29 [0] : vector<19x128xf32> to vector<128xf32>
    %50 = vector.shape_cast %49 : vector<128xf32> to vector<1x128xf32>
    %51 = arith.mulf %48, %48 : vector<19x128xf32>
    %cst_30 = arith.constant dense<0.000000e+00> : vector<128xf32>
    %52 = vector.multi_reduction <add>, %51, %cst_30 [0] : vector<19x128xf32> to vector<128xf32>
    %53 = vector.shape_cast %52 : vector<128xf32> to vector<1x128xf32>
    %54 = tpu.concatenate %50, %53 in 0 : vector<1x128xf32>, vector<1x128xf32> -> vector<2x128xf32>
    %c0_31 = arith.constant 0 : index
    %c0_32 = arith.constant 0 : index
    %c0_33 = arith.constant 0 : index
    %55 = vector.load %arg4[%c0_31, %c0_32, %c0_33] : memref<1x2x128xf32, #tpu.memory_space<vmem>>, vector<1x2x128xf32>
    %56 = vector.shape_cast %55 : vector<1x2x128xf32> to vector<2x128xf32>
    %57 = vector.shape_cast %54 : vector<2x128xf32> to vector<1x2x128xf32>
    tpu.vector_store %arg4[%c0_31, %c0_32, %c0_33], %57 {strides = array<i32>} : memref<1x2x128xf32, #tpu.memory_space<vmem>>, vector<1x2x128xf32>,
    return
  }
  func.func @transform_0(%arg0: i32) -> (i32, i32, i32) {
    %c0_i32 = arith.constant 0 : i32
    %c0_i32_0 = arith.constant 0 : i32
    %c0_i32_1 = arith.constant 0 : i32
    return %arg0, %c0_i32, %c0_i32_0 : i32, i32, i32
  }
  func.func @transform_1(%arg0: i32) -> (i32, i32, i32) {
    %c0_i32 = arith.constant 0 : i32
    %c0_i32_0 = arith.constant 0 : i32
    %c0_i32_1 = arith.constant 0 : i32
    %c0_i32_2 = arith.constant 0 : i32
    return %c0_i32, %c0_i32_0, %c0_i32_1 : i32, i32, i32
  }
  func.func @transform_2(%arg0: i32) -> (i32, i32, i32) {
    %c0_i32 = arith.constant 0 : i32
    %c0_i32_0 = arith.constant 0 : i32
    %c0_i32_1 = arith.constant 0 : i32
    return %arg0, %c0_i32, %c0_i32_0 : i32, i32, i32
  }
  func.func @transform_3(%arg0: i32) -> (i32, i32, i32) {
    %c0_i32 = arith.constant 0 : i32
    %c0_i32_0 = arith.constant 0 : i32
    %c0_i32_1 = arith.constant 0 : i32
    return %arg0, %c0_i32, %c0_i32_0 : i32, i32, i32
  }
}

module attributes {stable_mosaic.version = 11 : i64} {
  func.func @_conv_stats_kernel(%arg0: i32, %arg1: memref<1x36x32xbf16, #tpu.memory_space<vmem>>, %arg2: memref<16x32x128xbf16, #tpu.memory_space<vmem>>, %arg3: memref<1x15x128xf32, #tpu.memory_space<vmem>>, %arg4: memref<1x2x128xf32, #tpu.memory_space<vmem>>) attributes {dimension_semantics = [#tpu.dimension_semantics<parallel>], iteration_bounds = array<i64: 4>, scalar_prefetch = 0 : i64, scratch_operands = 0 : i64, tpu.core_type = #tpu.core_type<tc>, window_params = [{transform_indices = @transform_0, window_bounds = array<i64: 1, 36, 32>}, {pipeline_mode = #tpu.pipeline_mode<synchronous>, transform_indices = @transform_1, window_bounds = array<i64: 16, 32, 128>}, {transform_indices = @transform_2, window_bounds = array<i64: 1, 15, 128>}, {transform_indices = @transform_3, window_bounds = array<i64: 1, 2, 128>}]} {
    %cst = arith.constant 0.000000e+00 : f32
    %0 = vector.broadcast %cst : f32 to vector<15x128xf32>
    %c0 = arith.constant 0 : index
    %c0_0 = arith.constant 0 : index
    %c0_1 = arith.constant 0 : index
    %1 = vector.load %arg1[%c0, %c0_0, %c0_1] : memref<1x36x32xbf16, #tpu.memory_space<vmem>>, vector<1x15x32xbf16>
    %2 = vector.shape_cast %1 : vector<1x15x32xbf16> to vector<15x32xbf16>
    %c0_2 = arith.constant 0 : index
    %c0_3 = arith.constant 0 : index
    %c0_4 = arith.constant 0 : index
    %3 = vector.load %arg2[%c0_2, %c0_3, %c0_4] : memref<16x32x128xbf16, #tpu.memory_space<vmem>>, vector<1x32x128xbf16>
    %4 = vector.shape_cast %3 : vector<1x32x128xbf16> to vector<32x128xbf16>
    %cst_5 = arith.constant dense<0.000000e+00> : vector<15x128xf32>
    %5 = tpu.matmul %2, %4, %cst_5 {dimension_numbers = #tpu.dot_dimension_numbers<[1], [0], [0], [1], [0, 0, 1, 1], [], []>} : vector<15x32xbf16>, vector<32x128xbf16>, vector<15x128xf32> -> vector<15x128xf32>
    %6 = arith.addf %0, %5 : vector<15x128xf32>
    %c0_6 = arith.constant 0 : index
    %c1 = arith.constant 1 : index
    %c0_7 = arith.constant 0 : index
    %7 = vector.load %arg1[%c0_6, %c1, %c0_7] : memref<1x36x32xbf16, #tpu.memory_space<vmem>>, vector<1x15x32xbf16>
    %8 = vector.shape_cast %7 : vector<1x15x32xbf16> to vector<15x32xbf16>
    %c1_8 = arith.constant 1 : index
    %c0_9 = arith.constant 0 : index
    %c0_10 = arith.constant 0 : index
    %9 = vector.load %arg2[%c1_8, %c0_9, %c0_10] : memref<16x32x128xbf16, #tpu.memory_space<vmem>>, vector<1x32x128xbf16>
    %10 = vector.shape_cast %9 : vector<1x32x128xbf16> to vector<32x128xbf16>
    %cst_11 = arith.constant dense<0.000000e+00> : vector<15x128xf32>
    %11 = tpu.matmul %8, %10, %cst_11 {dimension_numbers = #tpu.dot_dimension_numbers<[1], [0], [0], [1], [0, 0, 1, 1], [], []>} : vector<15x32xbf16>, vector<32x128xbf16>, vector<15x128xf32> -> vector<15x128xf32>
    %12 = arith.addf %6, %11 : vector<15x128xf32>
    %c0_12 = arith.constant 0 : index
    %c2 = arith.constant 2 : index
    %c0_13 = arith.constant 0 : index
    %13 = vector.load %arg1[%c0_12, %c2, %c0_13] : memref<1x36x32xbf16, #tpu.memory_space<vmem>>, vector<1x15x32xbf16>
    %14 = vector.shape_cast %13 : vector<1x15x32xbf16> to vector<15x32xbf16>
    %c2_14 = arith.constant 2 : index
    %c0_15 = arith.constant 0 : index
    %c0_16 = arith.constant 0 : index
    %15 = vector.load %arg2[%c2_14, %c0_15, %c0_16] : memref<16x32x128xbf16, #tpu.memory_space<vmem>>, vector<1x32x128xbf16>
    %16 = vector.shape_cast %15 : vector<1x32x128xbf16> to vector<32x128xbf16>
    %cst_17 = arith.constant dense<0.000000e+00> : vector<15x128xf32>
    %17 = tpu.matmul %14, %16, %cst_17 {dimension_numbers = #tpu.dot_dimension_numbers<[1], [0], [0], [1], [0, 0, 1, 1], [], []>} : vector<15x32xbf16>, vector<32x128xbf16>, vector<15x128xf32> -> vector<15x128xf32>
    %18 = arith.addf %12, %17 : vector<15x128xf32>
    %c0_18 = arith.constant 0 : index
    %c3 = arith.constant 3 : index
    %c0_19 = arith.constant 0 : index
    %19 = vector.load %arg1[%c0_18, %c3, %c0_19] : memref<1x36x32xbf16, #tpu.memory_space<vmem>>, vector<1x15x32xbf16>
    %20 = vector.shape_cast %19 : vector<1x15x32xbf16> to vector<15x32xbf16>
    %c3_20 = arith.constant 3 : index
    %c0_21 = arith.constant 0 : index
    %c0_22 = arith.constant 0 : index
    %21 = vector.load %arg2[%c3_20, %c0_21, %c0_22] : memref<16x32x128xbf16, #tpu.memory_space<vmem>>, vector<1x32x128xbf16>
    %22 = vector.shape_cast %21 : vector<1x32x128xbf16> to vector<32x128xbf16>
    %cst_23 = arith.constant dense<0.000000e+00> : vector<15x128xf32>
    %23 = tpu.matmul %20, %22, %cst_23 {dimension_numbers = #tpu.dot_dimension_numbers<[1], [0], [0], [1], [0, 0, 1, 1], [], []>} : vector<15x32xbf16>, vector<32x128xbf16>, vector<15x128xf32> -> vector<15x128xf32>
    %24 = arith.addf %18, %23 : vector<15x128xf32>
    %c0_24 = arith.constant 0 : index
    %c6 = arith.constant 6 : index
    %c0_25 = arith.constant 0 : index
    %25 = vector.load %arg1[%c0_24, %c6, %c0_25] : memref<1x36x32xbf16, #tpu.memory_space<vmem>>, vector<1x15x32xbf16>
    %26 = vector.shape_cast %25 : vector<1x15x32xbf16> to vector<15x32xbf16>
    %c4 = arith.constant 4 : index
    %c0_26 = arith.constant 0 : index
    %c0_27 = arith.constant 0 : index
    %27 = vector.load %arg2[%c4, %c0_26, %c0_27] : memref<16x32x128xbf16, #tpu.memory_space<vmem>>, vector<1x32x128xbf16>
    %28 = vector.shape_cast %27 : vector<1x32x128xbf16> to vector<32x128xbf16>
    %cst_28 = arith.constant dense<0.000000e+00> : vector<15x128xf32>
    %29 = tpu.matmul %26, %28, %cst_28 {dimension_numbers = #tpu.dot_dimension_numbers<[1], [0], [0], [1], [0, 0, 1, 1], [], []>} : vector<15x32xbf16>, vector<32x128xbf16>, vector<15x128xf32> -> vector<15x128xf32>
    %30 = arith.addf %24, %29 : vector<15x128xf32>
    %c0_29 = arith.constant 0 : index
    %c7 = arith.constant 7 : index
    %c0_30 = arith.constant 0 : index
    %31 = vector.load %arg1[%c0_29, %c7, %c0_30] : memref<1x36x32xbf16, #tpu.memory_space<vmem>>, vector<1x15x32xbf16>
    %32 = vector.shape_cast %31 : vector<1x15x32xbf16> to vector<15x32xbf16>
    %c5 = arith.constant 5 : index
    %c0_31 = arith.constant 0 : index
    %c0_32 = arith.constant 0 : index
    %33 = vector.load %arg2[%c5, %c0_31, %c0_32] : memref<16x32x128xbf16, #tpu.memory_space<vmem>>, vector<1x32x128xbf16>
    %34 = vector.shape_cast %33 : vector<1x32x128xbf16> to vector<32x128xbf16>
    %cst_33 = arith.constant dense<0.000000e+00> : vector<15x128xf32>
    %35 = tpu.matmul %32, %34, %cst_33 {dimension_numbers = #tpu.dot_dimension_numbers<[1], [0], [0], [1], [0, 0, 1, 1], [], []>} : vector<15x32xbf16>, vector<32x128xbf16>, vector<15x128xf32> -> vector<15x128xf32>
    %36 = arith.addf %30, %35 : vector<15x128xf32>
    %c0_34 = arith.constant 0 : index
    %c8 = arith.constant 8 : index
    %c0_35 = arith.constant 0 : index
    %37 = vector.load %arg1[%c0_34, %c8, %c0_35] : memref<1x36x32xbf16, #tpu.memory_space<vmem>>, vector<1x15x32xbf16>
    %38 = vector.shape_cast %37 : vector<1x15x32xbf16> to vector<15x32xbf16>
    %c6_36 = arith.constant 6 : index
    %c0_37 = arith.constant 0 : index
    %c0_38 = arith.constant 0 : index
    %39 = vector.load %arg2[%c6_36, %c0_37, %c0_38] : memref<16x32x128xbf16, #tpu.memory_space<vmem>>, vector<1x32x128xbf16>
    %40 = vector.shape_cast %39 : vector<1x32x128xbf16> to vector<32x128xbf16>
    %cst_39 = arith.constant dense<0.000000e+00> : vector<15x128xf32>
    %41 = tpu.matmul %38, %40, %cst_39 {dimension_numbers = #tpu.dot_dimension_numbers<[1], [0], [0], [1], [0, 0, 1, 1], [], []>} : vector<15x32xbf16>, vector<32x128xbf16>, vector<15x128xf32> -> vector<15x128xf32>
    %42 = arith.addf %36, %41 : vector<15x128xf32>
    %c0_40 = arith.constant 0 : index
    %c9 = arith.constant 9 : index
    %c0_41 = arith.constant 0 : index
    %43 = vector.load %arg1[%c0_40, %c9, %c0_41] : memref<1x36x32xbf16, #tpu.memory_space<vmem>>, vector<1x15x32xbf16>
    %44 = vector.shape_cast %43 : vector<1x15x32xbf16> to vector<15x32xbf16>
    %c7_42 = arith.constant 7 : index
    %c0_43 = arith.constant 0 : index
    %c0_44 = arith.constant 0 : index
    %45 = vector.load %arg2[%c7_42, %c0_43, %c0_44] : memref<16x32x128xbf16, #tpu.memory_space<vmem>>, vector<1x32x128xbf16>
    %46 = vector.shape_cast %45 : vector<1x32x128xbf16> to vector<32x128xbf16>
    %cst_45 = arith.constant dense<0.000000e+00> : vector<15x128xf32>
    %47 = tpu.matmul %44, %46, %cst_45 {dimension_numbers = #tpu.dot_dimension_numbers<[1], [0], [0], [1], [0, 0, 1, 1], [], []>} : vector<15x32xbf16>, vector<32x128xbf16>, vector<15x128xf32> -> vector<15x128xf32>
    %48 = arith.addf %42, %47 : vector<15x128xf32>
    %c0_46 = arith.constant 0 : index
    %c12 = arith.constant 12 : index
    %c0_47 = arith.constant 0 : index
    %49 = vector.load %arg1[%c0_46, %c12, %c0_47] : memref<1x36x32xbf16, #tpu.memory_space<vmem>>, vector<1x15x32xbf16>
    %50 = vector.shape_cast %49 : vector<1x15x32xbf16> to vector<15x32xbf16>
    %c8_48 = arith.constant 8 : index
    %c0_49 = arith.constant 0 : index
    %c0_50 = arith.constant 0 : index
    %51 = vector.load %arg2[%c8_48, %c0_49, %c0_50] : memref<16x32x128xbf16, #tpu.memory_space<vmem>>, vector<1x32x128xbf16>
    %52 = vector.shape_cast %51 : vector<1x32x128xbf16> to vector<32x128xbf16>
    %cst_51 = arith.constant dense<0.000000e+00> : vector<15x128xf32>
    %53 = tpu.matmul %50, %52, %cst_51 {dimension_numbers = #tpu.dot_dimension_numbers<[1], [0], [0], [1], [0, 0, 1, 1], [], []>} : vector<15x32xbf16>, vector<32x128xbf16>, vector<15x128xf32> -> vector<15x128xf32>
    %54 = arith.addf %48, %53 : vector<15x128xf32>
    %c0_52 = arith.constant 0 : index
    %c13 = arith.constant 13 : index
    %c0_53 = arith.constant 0 : index
    %55 = vector.load %arg1[%c0_52, %c13, %c0_53] : memref<1x36x32xbf16, #tpu.memory_space<vmem>>, vector<1x15x32xbf16>
    %56 = vector.shape_cast %55 : vector<1x15x32xbf16> to vector<15x32xbf16>
    %c9_54 = arith.constant 9 : index
    %c0_55 = arith.constant 0 : index
    %c0_56 = arith.constant 0 : index
    %57 = vector.load %arg2[%c9_54, %c0_55, %c0_56] : memref<16x32x128xbf16, #tpu.memory_space<vmem>>, vector<1x32x128xbf16>
    %58 = vector.shape_cast %57 : vector<1x32x128xbf16> to vector<32x128xbf16>
    %cst_57 = arith.constant dense<0.000000e+00> : vector<15x128xf32>
    %59 = tpu.matmul %56, %58, %cst_57 {dimension_numbers = #tpu.dot_dimension_numbers<[1], [0], [0], [1], [0, 0, 1, 1], [], []>} : vector<15x32xbf16>, vector<32x128xbf16>, vector<15x128xf32> -> vector<15x128xf32>
    %60 = arith.addf %54, %59 : vector<15x128xf32>
    %c0_58 = arith.constant 0 : index
    %c14 = arith.constant 14 : index
    %c0_59 = arith.constant 0 : index
    %61 = vector.load %arg1[%c0_58, %c14, %c0_59] : memref<1x36x32xbf16, #tpu.memory_space<vmem>>, vector<1x15x32xbf16>
    %62 = vector.shape_cast %61 : vector<1x15x32xbf16> to vector<15x32xbf16>
    %c10 = arith.constant 10 : index
    %c0_60 = arith.constant 0 : index
    %c0_61 = arith.constant 0 : index
    %63 = vector.load %arg2[%c10, %c0_60, %c0_61] : memref<16x32x128xbf16, #tpu.memory_space<vmem>>, vector<1x32x128xbf16>
    %64 = vector.shape_cast %63 : vector<1x32x128xbf16> to vector<32x128xbf16>
    %cst_62 = arith.constant dense<0.000000e+00> : vector<15x128xf32>
    %65 = tpu.matmul %62, %64, %cst_62 {dimension_numbers = #tpu.dot_dimension_numbers<[1], [0], [0], [1], [0, 0, 1, 1], [], []>} : vector<15x32xbf16>, vector<32x128xbf16>, vector<15x128xf32> -> vector<15x128xf32>
    %66 = arith.addf %60, %65 : vector<15x128xf32>
    %c0_63 = arith.constant 0 : index
    %c15 = arith.constant 15 : index
    %c0_64 = arith.constant 0 : index
    %67 = vector.load %arg1[%c0_63, %c15, %c0_64] : memref<1x36x32xbf16, #tpu.memory_space<vmem>>, vector<1x15x32xbf16>
    %68 = vector.shape_cast %67 : vector<1x15x32xbf16> to vector<15x32xbf16>
    %c11 = arith.constant 11 : index
    %c0_65 = arith.constant 0 : index
    %c0_66 = arith.constant 0 : index
    %69 = vector.load %arg2[%c11, %c0_65, %c0_66] : memref<16x32x128xbf16, #tpu.memory_space<vmem>>, vector<1x32x128xbf16>
    %70 = vector.shape_cast %69 : vector<1x32x128xbf16> to vector<32x128xbf16>
    %cst_67 = arith.constant dense<0.000000e+00> : vector<15x128xf32>
    %71 = tpu.matmul %68, %70, %cst_67 {dimension_numbers = #tpu.dot_dimension_numbers<[1], [0], [0], [1], [0, 0, 1, 1], [], []>} : vector<15x32xbf16>, vector<32x128xbf16>, vector<15x128xf32> -> vector<15x128xf32>
    %72 = arith.addf %66, %71 : vector<15x128xf32>
    %c0_68 = arith.constant 0 : index
    %c18 = arith.constant 18 : index
    %c0_69 = arith.constant 0 : index
    %73 = vector.load %arg1[%c0_68, %c18, %c0_69] : memref<1x36x32xbf16, #tpu.memory_space<vmem>>, vector<1x15x32xbf16>
    %74 = vector.shape_cast %73 : vector<1x15x32xbf16> to vector<15x32xbf16>
    %c12_70 = arith.constant 12 : index
    %c0_71 = arith.constant 0 : index
    %c0_72 = arith.constant 0 : index
    %75 = vector.load %arg2[%c12_70, %c0_71, %c0_72] : memref<16x32x128xbf16, #tpu.memory_space<vmem>>, vector<1x32x128xbf16>
    %76 = vector.shape_cast %75 : vector<1x32x128xbf16> to vector<32x128xbf16>
    %cst_73 = arith.constant dense<0.000000e+00> : vector<15x128xf32>
    %77 = tpu.matmul %74, %76, %cst_73 {dimension_numbers = #tpu.dot_dimension_numbers<[1], [0], [0], [1], [0, 0, 1, 1], [], []>} : vector<15x32xbf16>, vector<32x128xbf16>, vector<15x128xf32> -> vector<15x128xf32>
    %78 = arith.addf %72, %77 : vector<15x128xf32>
    %c0_74 = arith.constant 0 : index
    %c19 = arith.constant 19 : index
    %c0_75 = arith.constant 0 : index
    %79 = vector.load %arg1[%c0_74, %c19, %c0_75] : memref<1x36x32xbf16, #tpu.memory_space<vmem>>, vector<1x15x32xbf16>
    %80 = vector.shape_cast %79 : vector<1x15x32xbf16> to vector<15x32xbf16>
    %c13_76 = arith.constant 13 : index
    %c0_77 = arith.constant 0 : index
    %c0_78 = arith.constant 0 : index
    %81 = vector.load %arg2[%c13_76, %c0_77, %c0_78] : memref<16x32x128xbf16, #tpu.memory_space<vmem>>, vector<1x32x128xbf16>
    %82 = vector.shape_cast %81 : vector<1x32x128xbf16> to vector<32x128xbf16>
    %cst_79 = arith.constant dense<0.000000e+00> : vector<15x128xf32>
    %83 = tpu.matmul %80, %82, %cst_79 {dimension_numbers = #tpu.dot_dimension_numbers<[1], [0], [0], [1], [0, 0, 1, 1], [], []>} : vector<15x32xbf16>, vector<32x128xbf16>, vector<15x128xf32> -> vector<15x128xf32>
    %84 = arith.addf %78, %83 : vector<15x128xf32>
    %c0_80 = arith.constant 0 : index
    %c20 = arith.constant 20 : index
    %c0_81 = arith.constant 0 : index
    %85 = vector.load %arg1[%c0_80, %c20, %c0_81] : memref<1x36x32xbf16, #tpu.memory_space<vmem>>, vector<1x15x32xbf16>
    %86 = vector.shape_cast %85 : vector<1x15x32xbf16> to vector<15x32xbf16>
    %c14_82 = arith.constant 14 : index
    %c0_83 = arith.constant 0 : index
    %c0_84 = arith.constant 0 : index
    %87 = vector.load %arg2[%c14_82, %c0_83, %c0_84] : memref<16x32x128xbf16, #tpu.memory_space<vmem>>, vector<1x32x128xbf16>
    %88 = vector.shape_cast %87 : vector<1x32x128xbf16> to vector<32x128xbf16>
    %cst_85 = arith.constant dense<0.000000e+00> : vector<15x128xf32>
    %89 = tpu.matmul %86, %88, %cst_85 {dimension_numbers = #tpu.dot_dimension_numbers<[1], [0], [0], [1], [0, 0, 1, 1], [], []>} : vector<15x32xbf16>, vector<32x128xbf16>, vector<15x128xf32> -> vector<15x128xf32>
    %90 = arith.addf %84, %89 : vector<15x128xf32>
    %c0_86 = arith.constant 0 : index
    %c21 = arith.constant 21 : index
    %c0_87 = arith.constant 0 : index
    %91 = vector.load %arg1[%c0_86, %c21, %c0_87] : memref<1x36x32xbf16, #tpu.memory_space<vmem>>, vector<1x15x32xbf16>
    %92 = vector.shape_cast %91 : vector<1x15x32xbf16> to vector<15x32xbf16>
    %c15_88 = arith.constant 15 : index
    %c0_89 = arith.constant 0 : index
    %c0_90 = arith.constant 0 : index
    %93 = vector.load %arg2[%c15_88, %c0_89, %c0_90] : memref<16x32x128xbf16, #tpu.memory_space<vmem>>, vector<1x32x128xbf16>
    %94 = vector.shape_cast %93 : vector<1x32x128xbf16> to vector<32x128xbf16>
    %cst_91 = arith.constant dense<0.000000e+00> : vector<15x128xf32>
    %95 = tpu.matmul %92, %94, %cst_91 {dimension_numbers = #tpu.dot_dimension_numbers<[1], [0], [0], [1], [0, 0, 1, 1], [], []>} : vector<15x32xbf16>, vector<32x128xbf16>, vector<15x128xf32> -> vector<15x128xf32>
    %96 = arith.addf %90, %95 : vector<15x128xf32>
    %c0_92 = arith.constant 0 : index
    %c0_93 = arith.constant 0 : index
    %c0_94 = arith.constant 0 : index
    %97 = vector.load %arg3[%c0_92, %c0_93, %c0_94] : memref<1x15x128xf32, #tpu.memory_space<vmem>>, vector<1x15x128xf32>
    %98 = vector.shape_cast %97 : vector<1x15x128xf32> to vector<15x128xf32>
    %99 = vector.shape_cast %96 : vector<15x128xf32> to vector<1x15x128xf32>
    tpu.vector_store %arg3[%c0_92, %c0_93, %c0_94], %99 {strides = array<i32>} : memref<1x15x128xf32, #tpu.memory_space<vmem>>, vector<1x15x128xf32>,
    %100 = tpu.iota {dimensions = array<i32: 0>} : vector<15x128xi32>
    %c6_i32 = arith.constant 6 : i32
    %c0_i32 = arith.constant 0 : i32
    %101 = arith.cmpi eq, %c6_i32, %c0_i32 : i32
    %c1_i32 = arith.constant 1 : i32
    %102 = arith.select %101, %c1_i32, %c6_i32 : i32
    %103 = vector.broadcast %102 : i32 to vector<15x128xi32>
    %104 = arith.remsi %100, %103 : vector<15x128xi32>
    %c0_i32_95 = arith.constant 0 : i32
    %105 = vector.broadcast %c0_i32_95 : i32 to vector<15x128xi32>
    %106 = arith.cmpi ne, %104, %105 : vector<15x128xi32>
    %c0_i32_96 = arith.constant 0 : i32
    %107 = vector.broadcast %c0_i32_96 : i32 to vector<15x128xi32>
    %108 = arith.cmpi slt, %104, %107 : vector<15x128xi32>
    %c0_i32_97 = arith.constant 0 : i32
    %109 = arith.cmpi slt, %102, %c0_i32_97 : i32
    %110 = vector.broadcast %109 : i1 to vector<15x128xi1>
    %111 = vector.broadcast %110 : vector<15x128xi1> to vector<15x128xi1>
    %112 = arith.xori %108, %111 : vector<15x128xi1>
    %113 = arith.andi %112, %106 : vector<15x128xi1>
    %114 = vector.broadcast %102 : i32 to vector<15x128xi32>
    %115 = arith.addi %104, %114 : vector<15x128xi32>
    %116 = arith.select %113, %115, %104 : vector<15x128xi1>, vector<15x128xi32>
    %c3_i32 = arith.constant 3 : i32
    %117 = vector.broadcast %c3_i32 : i32 to vector<15x128xi32>
    %118 = arith.cmpi slt, %116, %117 : vector<15x128xi32>
    %cst_98 = arith.constant 0.000000e+00 : f32
    %119 = vector.broadcast %cst_98 : f32 to vector<15x128xf32>
    %120 = arith.select %118, %96, %119 : vector<15x128xi1>, vector<15x128xf32>
    %cst_99 = arith.constant dense<0.000000e+00> : vector<128xf32>
    %121 = vector.multi_reduction <add>, %120, %cst_99 [0] : vector<15x128xf32> to vector<128xf32>
    %122 = vector.shape_cast %121 : vector<128xf32> to vector<1x128xf32>
    %123 = arith.mulf %120, %120 : vector<15x128xf32>
    %cst_100 = arith.constant dense<0.000000e+00> : vector<128xf32>
    %124 = vector.multi_reduction <add>, %123, %cst_100 [0] : vector<15x128xf32> to vector<128xf32>
    %125 = vector.shape_cast %124 : vector<128xf32> to vector<1x128xf32>
    %126 = tpu.concatenate %122, %125 in 0 : vector<1x128xf32>, vector<1x128xf32> -> vector<2x128xf32>
    %c0_101 = arith.constant 0 : index
    %c0_102 = arith.constant 0 : index
    %c0_103 = arith.constant 0 : index
    %127 = vector.load %arg4[%c0_101, %c0_102, %c0_103] : memref<1x2x128xf32, #tpu.memory_space<vmem>>, vector<1x2x128xf32>
    %128 = vector.shape_cast %127 : vector<1x2x128xf32> to vector<2x128xf32>
    %129 = vector.shape_cast %126 : vector<2x128xf32> to vector<1x2x128xf32>
    tpu.vector_store %arg4[%c0_101, %c0_102, %c0_103], %129 {strides = array<i32>} : memref<1x2x128xf32, #tpu.memory_space<vmem>>, vector<1x2x128xf32>,
    return
  }
  func.func @transform_0(%arg0: i32) -> (i32, i32, i32) {
    %c0_i32 = arith.constant 0 : i32
    %c0_i32_0 = arith.constant 0 : i32
    %c0_i32_1 = arith.constant 0 : i32
    return %arg0, %c0_i32, %c0_i32_0 : i32, i32, i32
  }
  func.func @transform_1(%arg0: i32) -> (i32, i32, i32) {
    %c0_i32 = arith.constant 0 : i32
    %c0_i32_0 = arith.constant 0 : i32
    %c0_i32_1 = arith.constant 0 : i32
    %c0_i32_2 = arith.constant 0 : i32
    return %c0_i32, %c0_i32_0, %c0_i32_1 : i32, i32, i32
  }
  func.func @transform_2(%arg0: i32) -> (i32, i32, i32) {
    %c0_i32 = arith.constant 0 : i32
    %c0_i32_0 = arith.constant 0 : i32
    %c0_i32_1 = arith.constant 0 : i32
    return %arg0, %c0_i32, %c0_i32_0 : i32, i32, i32
  }
  func.func @transform_3(%arg0: i32) -> (i32, i32, i32) {
    %c0_i32 = arith.constant 0 : i32
    %c0_i32_0 = arith.constant 0 : i32
    %c0_i32_1 = arith.constant 0 : i32
    return %arg0, %c0_i32, %c0_i32_0 : i32, i32, i32
  }
}

module attributes {stable_mosaic.version = 11 : i64} {
  func.func @_conv_bce_kernel(%arg0: i32, %arg1: memref<1x25x64xbf16, #tpu.memory_space<vmem>>, %arg2: memref<16x64x128xbf16, #tpu.memory_space<vmem>>, %arg3: memref<1x1x128xf32, #tpu.memory_space<vmem>>) attributes {dimension_semantics = [#tpu.dimension_semantics<parallel>], iteration_bounds = array<i64: 4>, scalar_prefetch = 0 : i64, scratch_operands = 0 : i64, tpu.core_type = #tpu.core_type<tc>, window_params = [{transform_indices = @transform_0, window_bounds = array<i64: 1, 25, 64>}, {pipeline_mode = #tpu.pipeline_mode<synchronous>, transform_indices = @transform_1, window_bounds = array<i64: 16, 64, 128>}, {transform_indices = @transform_2, window_bounds = array<i64: 1, 1, 128>}]} {
    %cst = arith.constant 0.000000e+00 : f32
    %0 = vector.broadcast %cst : f32 to vector<7x128xf32>
    %c0 = arith.constant 0 : index
    %c0_0 = arith.constant 0 : index
    %c0_1 = arith.constant 0 : index
    %1 = vector.load %arg1[%c0, %c0_0, %c0_1] : memref<1x25x64xbf16, #tpu.memory_space<vmem>>, vector<1x7x64xbf16>
    %2 = vector.shape_cast %1 : vector<1x7x64xbf16> to vector<7x64xbf16>
    %c0_2 = arith.constant 0 : index
    %c0_3 = arith.constant 0 : index
    %c0_4 = arith.constant 0 : index
    %3 = vector.load %arg2[%c0_2, %c0_3, %c0_4] : memref<16x64x128xbf16, #tpu.memory_space<vmem>>, vector<1x64x128xbf16>
    %4 = vector.shape_cast %3 : vector<1x64x128xbf16> to vector<64x128xbf16>
    %cst_5 = arith.constant dense<0.000000e+00> : vector<7x128xf32>
    %5 = tpu.matmul %2, %4, %cst_5 {dimension_numbers = #tpu.dot_dimension_numbers<[1], [0], [0], [1], [0, 0, 1, 1], [], []>} : vector<7x64xbf16>, vector<64x128xbf16>, vector<7x128xf32> -> vector<7x128xf32>
    %6 = arith.addf %0, %5 : vector<7x128xf32>
    %c0_6 = arith.constant 0 : index
    %c1 = arith.constant 1 : index
    %c0_7 = arith.constant 0 : index
    %7 = vector.load %arg1[%c0_6, %c1, %c0_7] : memref<1x25x64xbf16, #tpu.memory_space<vmem>>, vector<1x7x64xbf16>
    %8 = vector.shape_cast %7 : vector<1x7x64xbf16> to vector<7x64xbf16>
    %c1_8 = arith.constant 1 : index
    %c0_9 = arith.constant 0 : index
    %c0_10 = arith.constant 0 : index
    %9 = vector.load %arg2[%c1_8, %c0_9, %c0_10] : memref<16x64x128xbf16, #tpu.memory_space<vmem>>, vector<1x64x128xbf16>
    %10 = vector.shape_cast %9 : vector<1x64x128xbf16> to vector<64x128xbf16>
    %cst_11 = arith.constant dense<0.000000e+00> : vector<7x128xf32>
    %11 = tpu.matmul %8, %10, %cst_11 {dimension_numbers = #tpu.dot_dimension_numbers<[1], [0], [0], [1], [0, 0, 1, 1], [], []>} : vector<7x64xbf16>, vector<64x128xbf16>, vector<7x128xf32> -> vector<7x128xf32>
    %12 = arith.addf %6, %11 : vector<7x128xf32>
    %c0_12 = arith.constant 0 : index
    %c2 = arith.constant 2 : index
    %c0_13 = arith.constant 0 : index
    %13 = vector.load %arg1[%c0_12, %c2, %c0_13] : memref<1x25x64xbf16, #tpu.memory_space<vmem>>, vector<1x7x64xbf16>
    %14 = vector.shape_cast %13 : vector<1x7x64xbf16> to vector<7x64xbf16>
    %c2_14 = arith.constant 2 : index
    %c0_15 = arith.constant 0 : index
    %c0_16 = arith.constant 0 : index
    %15 = vector.load %arg2[%c2_14, %c0_15, %c0_16] : memref<16x64x128xbf16, #tpu.memory_space<vmem>>, vector<1x64x128xbf16>
    %16 = vector.shape_cast %15 : vector<1x64x128xbf16> to vector<64x128xbf16>
    %cst_17 = arith.constant dense<0.000000e+00> : vector<7x128xf32>
    %17 = tpu.matmul %14, %16, %cst_17 {dimension_numbers = #tpu.dot_dimension_numbers<[1], [0], [0], [1], [0, 0, 1, 1], [], []>} : vector<7x64xbf16>, vector<64x128xbf16>, vector<7x128xf32> -> vector<7x128xf32>
    %18 = arith.addf %12, %17 : vector<7x128xf32>
    %c0_18 = arith.constant 0 : index
    %c3 = arith.constant 3 : index
    %c0_19 = arith.constant 0 : index
    %19 = vector.load %arg1[%c0_18, %c3, %c0_19] : memref<1x25x64xbf16, #tpu.memory_space<vmem>>, vector<1x7x64xbf16>
    %20 = vector.shape_cast %19 : vector<1x7x64xbf16> to vector<7x64xbf16>
    %c3_20 = arith.constant 3 : index
    %c0_21 = arith.constant 0 : index
    %c0_22 = arith.constant 0 : index
    %21 = vector.load %arg2[%c3_20, %c0_21, %c0_22] : memref<16x64x128xbf16, #tpu.memory_space<vmem>>, vector<1x64x128xbf16>
    %22 = vector.shape_cast %21 : vector<1x64x128xbf16> to vector<64x128xbf16>
    %cst_23 = arith.constant dense<0.000000e+00> : vector<7x128xf32>
    %23 = tpu.matmul %20, %22, %cst_23 {dimension_numbers = #tpu.dot_dimension_numbers<[1], [0], [0], [1], [0, 0, 1, 1], [], []>} : vector<7x64xbf16>, vector<64x128xbf16>, vector<7x128xf32> -> vector<7x128xf32>
    %24 = arith.addf %18, %23 : vector<7x128xf32>
    %c0_24 = arith.constant 0 : index
    %c5 = arith.constant 5 : index
    %c0_25 = arith.constant 0 : index
    %25 = vector.load %arg1[%c0_24, %c5, %c0_25] : memref<1x25x64xbf16, #tpu.memory_space<vmem>>, vector<1x7x64xbf16>
    %26 = vector.shape_cast %25 : vector<1x7x64xbf16> to vector<7x64xbf16>
    %c4 = arith.constant 4 : index
    %c0_26 = arith.constant 0 : index
    %c0_27 = arith.constant 0 : index
    %27 = vector.load %arg2[%c4, %c0_26, %c0_27] : memref<16x64x128xbf16, #tpu.memory_space<vmem>>, vector<1x64x128xbf16>
    %28 = vector.shape_cast %27 : vector<1x64x128xbf16> to vector<64x128xbf16>
    %cst_28 = arith.constant dense<0.000000e+00> : vector<7x128xf32>
    %29 = tpu.matmul %26, %28, %cst_28 {dimension_numbers = #tpu.dot_dimension_numbers<[1], [0], [0], [1], [0, 0, 1, 1], [], []>} : vector<7x64xbf16>, vector<64x128xbf16>, vector<7x128xf32> -> vector<7x128xf32>
    %30 = arith.addf %24, %29 : vector<7x128xf32>
    %c0_29 = arith.constant 0 : index
    %c6 = arith.constant 6 : index
    %c0_30 = arith.constant 0 : index
    %31 = vector.load %arg1[%c0_29, %c6, %c0_30] : memref<1x25x64xbf16, #tpu.memory_space<vmem>>, vector<1x7x64xbf16>
    %32 = vector.shape_cast %31 : vector<1x7x64xbf16> to vector<7x64xbf16>
    %c5_31 = arith.constant 5 : index
    %c0_32 = arith.constant 0 : index
    %c0_33 = arith.constant 0 : index
    %33 = vector.load %arg2[%c5_31, %c0_32, %c0_33] : memref<16x64x128xbf16, #tpu.memory_space<vmem>>, vector<1x64x128xbf16>
    %34 = vector.shape_cast %33 : vector<1x64x128xbf16> to vector<64x128xbf16>
    %cst_34 = arith.constant dense<0.000000e+00> : vector<7x128xf32>
    %35 = tpu.matmul %32, %34, %cst_34 {dimension_numbers = #tpu.dot_dimension_numbers<[1], [0], [0], [1], [0, 0, 1, 1], [], []>} : vector<7x64xbf16>, vector<64x128xbf16>, vector<7x128xf32> -> vector<7x128xf32>
    %36 = arith.addf %30, %35 : vector<7x128xf32>
    %c0_35 = arith.constant 0 : index
    %c7 = arith.constant 7 : index
    %c0_36 = arith.constant 0 : index
    %37 = vector.load %arg1[%c0_35, %c7, %c0_36] : memref<1x25x64xbf16, #tpu.memory_space<vmem>>, vector<1x7x64xbf16>
    %38 = vector.shape_cast %37 : vector<1x7x64xbf16> to vector<7x64xbf16>
    %c6_37 = arith.constant 6 : index
    %c0_38 = arith.constant 0 : index
    %c0_39 = arith.constant 0 : index
    %39 = vector.load %arg2[%c6_37, %c0_38, %c0_39] : memref<16x64x128xbf16, #tpu.memory_space<vmem>>, vector<1x64x128xbf16>
    %40 = vector.shape_cast %39 : vector<1x64x128xbf16> to vector<64x128xbf16>
    %cst_40 = arith.constant dense<0.000000e+00> : vector<7x128xf32>
    %41 = tpu.matmul %38, %40, %cst_40 {dimension_numbers = #tpu.dot_dimension_numbers<[1], [0], [0], [1], [0, 0, 1, 1], [], []>} : vector<7x64xbf16>, vector<64x128xbf16>, vector<7x128xf32> -> vector<7x128xf32>
    %42 = arith.addf %36, %41 : vector<7x128xf32>
    %c0_41 = arith.constant 0 : index
    %c8 = arith.constant 8 : index
    %c0_42 = arith.constant 0 : index
    %43 = vector.load %arg1[%c0_41, %c8, %c0_42] : memref<1x25x64xbf16, #tpu.memory_space<vmem>>, vector<1x7x64xbf16>
    %44 = vector.shape_cast %43 : vector<1x7x64xbf16> to vector<7x64xbf16>
    %c7_43 = arith.constant 7 : index
    %c0_44 = arith.constant 0 : index
    %c0_45 = arith.constant 0 : index
    %45 = vector.load %arg2[%c7_43, %c0_44, %c0_45] : memref<16x64x128xbf16, #tpu.memory_space<vmem>>, vector<1x64x128xbf16>
    %46 = vector.shape_cast %45 : vector<1x64x128xbf16> to vector<64x128xbf16>
    %cst_46 = arith.constant dense<0.000000e+00> : vector<7x128xf32>
    %47 = tpu.matmul %44, %46, %cst_46 {dimension_numbers = #tpu.dot_dimension_numbers<[1], [0], [0], [1], [0, 0, 1, 1], [], []>} : vector<7x64xbf16>, vector<64x128xbf16>, vector<7x128xf32> -> vector<7x128xf32>
    %48 = arith.addf %42, %47 : vector<7x128xf32>
    %c0_47 = arith.constant 0 : index
    %c10 = arith.constant 10 : index
    %c0_48 = arith.constant 0 : index
    %49 = vector.load %arg1[%c0_47, %c10, %c0_48] : memref<1x25x64xbf16, #tpu.memory_space<vmem>>, vector<1x7x64xbf16>
    %50 = vector.shape_cast %49 : vector<1x7x64xbf16> to vector<7x64xbf16>
    %c8_49 = arith.constant 8 : index
    %c0_50 = arith.constant 0 : index
    %c0_51 = arith.constant 0 : index
    %51 = vector.load %arg2[%c8_49, %c0_50, %c0_51] : memref<16x64x128xbf16, #tpu.memory_space<vmem>>, vector<1x64x128xbf16>
    %52 = vector.shape_cast %51 : vector<1x64x128xbf16> to vector<64x128xbf16>
    %cst_52 = arith.constant dense<0.000000e+00> : vector<7x128xf32>
    %53 = tpu.matmul %50, %52, %cst_52 {dimension_numbers = #tpu.dot_dimension_numbers<[1], [0], [0], [1], [0, 0, 1, 1], [], []>} : vector<7x64xbf16>, vector<64x128xbf16>, vector<7x128xf32> -> vector<7x128xf32>
    %54 = arith.addf %48, %53 : vector<7x128xf32>
    %c0_53 = arith.constant 0 : index
    %c11 = arith.constant 11 : index
    %c0_54 = arith.constant 0 : index
    %55 = vector.load %arg1[%c0_53, %c11, %c0_54] : memref<1x25x64xbf16, #tpu.memory_space<vmem>>, vector<1x7x64xbf16>
    %56 = vector.shape_cast %55 : vector<1x7x64xbf16> to vector<7x64xbf16>
    %c9 = arith.constant 9 : index
    %c0_55 = arith.constant 0 : index
    %c0_56 = arith.constant 0 : index
    %57 = vector.load %arg2[%c9, %c0_55, %c0_56] : memref<16x64x128xbf16, #tpu.memory_space<vmem>>, vector<1x64x128xbf16>
    %58 = vector.shape_cast %57 : vector<1x64x128xbf16> to vector<64x128xbf16>
    %cst_57 = arith.constant dense<0.000000e+00> : vector<7x128xf32>
    %59 = tpu.matmul %56, %58, %cst_57 {dimension_numbers = #tpu.dot_dimension_numbers<[1], [0], [0], [1], [0, 0, 1, 1], [], []>} : vector<7x64xbf16>, vector<64x128xbf16>, vector<7x128xf32> -> vector<7x128xf32>
    %60 = arith.addf %54, %59 : vector<7x128xf32>
    %c0_58 = arith.constant 0 : index
    %c12 = arith.constant 12 : index
    %c0_59 = arith.constant 0 : index
    %61 = vector.load %arg1[%c0_58, %c12, %c0_59] : memref<1x25x64xbf16, #tpu.memory_space<vmem>>, vector<1x7x64xbf16>
    %62 = vector.shape_cast %61 : vector<1x7x64xbf16> to vector<7x64xbf16>
    %c10_60 = arith.constant 10 : index
    %c0_61 = arith.constant 0 : index
    %c0_62 = arith.constant 0 : index
    %63 = vector.load %arg2[%c10_60, %c0_61, %c0_62] : memref<16x64x128xbf16, #tpu.memory_space<vmem>>, vector<1x64x128xbf16>
    %64 = vector.shape_cast %63 : vector<1x64x128xbf16> to vector<64x128xbf16>
    %cst_63 = arith.constant dense<0.000000e+00> : vector<7x128xf32>
    %65 = tpu.matmul %62, %64, %cst_63 {dimension_numbers = #tpu.dot_dimension_numbers<[1], [0], [0], [1], [0, 0, 1, 1], [], []>} : vector<7x64xbf16>, vector<64x128xbf16>, vector<7x128xf32> -> vector<7x128xf32>
    %66 = arith.addf %60, %65 : vector<7x128xf32>
    %c0_64 = arith.constant 0 : index
    %c13 = arith.constant 13 : index
    %c0_65 = arith.constant 0 : index
    %67 = vector.load %arg1[%c0_64, %c13, %c0_65] : memref<1x25x64xbf16, #tpu.memory_space<vmem>>, vector<1x7x64xbf16>
    %68 = vector.shape_cast %67 : vector<1x7x64xbf16> to vector<7x64xbf16>
    %c11_66 = arith.constant 11 : index
    %c0_67 = arith.constant 0 : index
    %c0_68 = arith.constant 0 : index
    %69 = vector.load %arg2[%c11_66, %c0_67, %c0_68] : memref<16x64x128xbf16, #tpu.memory_space<vmem>>, vector<1x64x128xbf16>
    %70 = vector.shape_cast %69 : vector<1x64x128xbf16> to vector<64x128xbf16>
    %cst_69 = arith.constant dense<0.000000e+00> : vector<7x128xf32>
    %71 = tpu.matmul %68, %70, %cst_69 {dimension_numbers = #tpu.dot_dimension_numbers<[1], [0], [0], [1], [0, 0, 1, 1], [], []>} : vector<7x64xbf16>, vector<64x128xbf16>, vector<7x128xf32> -> vector<7x128xf32>
    %72 = arith.addf %66, %71 : vector<7x128xf32>
    %c0_70 = arith.constant 0 : index
    %c15 = arith.constant 15 : index
    %c0_71 = arith.constant 0 : index
    %73 = vector.load %arg1[%c0_70, %c15, %c0_71] : memref<1x25x64xbf16, #tpu.memory_space<vmem>>, vector<1x7x64xbf16>
    %74 = vector.shape_cast %73 : vector<1x7x64xbf16> to vector<7x64xbf16>
    %c12_72 = arith.constant 12 : index
    %c0_73 = arith.constant 0 : index
    %c0_74 = arith.constant 0 : index
    %75 = vector.load %arg2[%c12_72, %c0_73, %c0_74] : memref<16x64x128xbf16, #tpu.memory_space<vmem>>, vector<1x64x128xbf16>
    %76 = vector.shape_cast %75 : vector<1x64x128xbf16> to vector<64x128xbf16>
    %cst_75 = arith.constant dense<0.000000e+00> : vector<7x128xf32>
    %77 = tpu.matmul %74, %76, %cst_75 {dimension_numbers = #tpu.dot_dimension_numbers<[1], [0], [0], [1], [0, 0, 1, 1], [], []>} : vector<7x64xbf16>, vector<64x128xbf16>, vector<7x128xf32> -> vector<7x128xf32>
    %78 = arith.addf %72, %77 : vector<7x128xf32>
    %c0_76 = arith.constant 0 : index
    %c16 = arith.constant 16 : index
    %c0_77 = arith.constant 0 : index
    %79 = vector.load %arg1[%c0_76, %c16, %c0_77] : memref<1x25x64xbf16, #tpu.memory_space<vmem>>, vector<1x7x64xbf16>
    %80 = vector.shape_cast %79 : vector<1x7x64xbf16> to vector<7x64xbf16>
    %c13_78 = arith.constant 13 : index
    %c0_79 = arith.constant 0 : index
    %c0_80 = arith.constant 0 : index
    %81 = vector.load %arg2[%c13_78, %c0_79, %c0_80] : memref<16x64x128xbf16, #tpu.memory_space<vmem>>, vector<1x64x128xbf16>
    %82 = vector.shape_cast %81 : vector<1x64x128xbf16> to vector<64x128xbf16>
    %cst_81 = arith.constant dense<0.000000e+00> : vector<7x128xf32>
    %83 = tpu.matmul %80, %82, %cst_81 {dimension_numbers = #tpu.dot_dimension_numbers<[1], [0], [0], [1], [0, 0, 1, 1], [], []>} : vector<7x64xbf16>, vector<64x128xbf16>, vector<7x128xf32> -> vector<7x128xf32>
    %84 = arith.addf %78, %83 : vector<7x128xf32>
    %c0_82 = arith.constant 0 : index
    %c17 = arith.constant 17 : index
    %c0_83 = arith.constant 0 : index
    %85 = vector.load %arg1[%c0_82, %c17, %c0_83] : memref<1x25x64xbf16, #tpu.memory_space<vmem>>, vector<1x7x64xbf16>
    %86 = vector.shape_cast %85 : vector<1x7x64xbf16> to vector<7x64xbf16>
    %c14 = arith.constant 14 : index
    %c0_84 = arith.constant 0 : index
    %c0_85 = arith.constant 0 : index
    %87 = vector.load %arg2[%c14, %c0_84, %c0_85] : memref<16x64x128xbf16, #tpu.memory_space<vmem>>, vector<1x64x128xbf16>
    %88 = vector.shape_cast %87 : vector<1x64x128xbf16> to vector<64x128xbf16>
    %cst_86 = arith.constant dense<0.000000e+00> : vector<7x128xf32>
    %89 = tpu.matmul %86, %88, %cst_86 {dimension_numbers = #tpu.dot_dimension_numbers<[1], [0], [0], [1], [0, 0, 1, 1], [], []>} : vector<7x64xbf16>, vector<64x128xbf16>, vector<7x128xf32> -> vector<7x128xf32>
    %90 = arith.addf %84, %89 : vector<7x128xf32>
    %c0_87 = arith.constant 0 : index
    %c18 = arith.constant 18 : index
    %c0_88 = arith.constant 0 : index
    %91 = vector.load %arg1[%c0_87, %c18, %c0_88] : memref<1x25x64xbf16, #tpu.memory_space<vmem>>, vector<1x7x64xbf16>
    %92 = vector.shape_cast %91 : vector<1x7x64xbf16> to vector<7x64xbf16>
    %c15_89 = arith.constant 15 : index
    %c0_90 = arith.constant 0 : index
    %c0_91 = arith.constant 0 : index
    %93 = vector.load %arg2[%c15_89, %c0_90, %c0_91] : memref<16x64x128xbf16, #tpu.memory_space<vmem>>, vector<1x64x128xbf16>
    %94 = vector.shape_cast %93 : vector<1x64x128xbf16> to vector<64x128xbf16>
    %cst_92 = arith.constant dense<0.000000e+00> : vector<7x128xf32>
    %95 = tpu.matmul %92, %94, %cst_92 {dimension_numbers = #tpu.dot_dimension_numbers<[1], [0], [0], [1], [0, 0, 1, 1], [], []>} : vector<7x64xbf16>, vector<64x128xbf16>, vector<7x128xf32> -> vector<7x128xf32>
    %96 = arith.addf %90, %95 : vector<7x128xf32>
    %cst_93 = arith.constant dense<0.000000e+00> : vector<7xf32>
    %97 = vector.multi_reduction <add>, %96, %cst_93 [1] : vector<7x128xf32> to vector<7xf32>
    %98 = vector.shape_cast %97 : vector<7xf32> to vector<7x1xf32>
    %99 = tpu.iota {dimensions = array<i32: 0>} : vector<7x1xi32>
    %c5_i32 = arith.constant 5 : i32
    %c0_i32 = arith.constant 0 : i32
    %100 = arith.cmpi eq, %c5_i32, %c0_i32 : i32
    %c1_i32 = arith.constant 1 : i32
    %101 = arith.select %100, %c1_i32, %c5_i32 : i32
    %102 = vector.broadcast %101 : i32 to vector<7x1xi32>
    %103 = arith.remsi %99, %102 : vector<7x1xi32>
    %c0_i32_94 = arith.constant 0 : i32
    %104 = vector.broadcast %c0_i32_94 : i32 to vector<7x1xi32>
    %105 = arith.cmpi ne, %103, %104 : vector<7x1xi32>
    %c0_i32_95 = arith.constant 0 : i32
    %106 = vector.broadcast %c0_i32_95 : i32 to vector<7x1xi32>
    %107 = arith.cmpi slt, %103, %106 : vector<7x1xi32>
    %c0_i32_96 = arith.constant 0 : i32
    %108 = arith.cmpi slt, %101, %c0_i32_96 : i32
    %109 = vector.broadcast %108 : i1 to vector<7x1xi1>
    %110 = vector.broadcast %109 : vector<7x1xi1> to vector<7x1xi1>
    %111 = arith.xori %107, %110 : vector<7x1xi1>
    %112 = arith.andi %111, %105 : vector<7x1xi1>
    %113 = vector.broadcast %101 : i32 to vector<7x1xi32>
    %114 = arith.addi %103, %113 : vector<7x1xi32>
    %115 = arith.select %112, %114, %103 : vector<7x1xi1>, vector<7x1xi32>
    %c2_i32 = arith.constant 2 : i32
    %116 = vector.broadcast %c2_i32 : i32 to vector<7x1xi32>
    %117 = arith.cmpi slt, %115, %116 : vector<7x1xi32>
    %118 = math.absf %98 : vector<7x1xf32>
    %cst_97 = arith.constant 0.000000e+00 : f32
    %119 = vector.broadcast %cst_97 : f32 to vector<7x1xf32>
    %120 = arith.subf %119, %118 : vector<7x1xf32>
    %121 = math.exp %120 : vector<7x1xf32>
    %122 = math.log1p %121 : vector<7x1xf32>
    %c2_i32_98 = arith.constant 2 : i32
    %123 = arith.cmpi slt, %arg0, %c2_i32_98 : i32
    %cst_99 = arith.constant 0.000000e+00 : f32
    %124 = vector.broadcast %cst_99 : f32 to vector<7x1xf32>
    %125 = arith.subf %124, %98 : vector<7x1xf32>
    %cst_100 = arith.constant 0.000000e+00 : f32
    %126 = vector.broadcast %cst_100 : f32 to vector<7x1xf32>
    %127 = arith.maximumf %125, %126 : vector<7x1xf32>
    %cst_101 = arith.constant 0.000000e+00 : f32
    %128 = vector.broadcast %cst_101 : f32 to vector<7x1xf32>
    %129 = arith.maximumf %98, %128 : vector<7x1xf32>
    %130 = arith.select %123, %127, %129 : vector<7x1xf32>
    %131 = arith.addf %130, %122 : vector<7x1xf32>
    %cst_102 = arith.constant 0.000000e+00 : f32
    %132 = vector.broadcast %cst_102 : f32 to vector<7x1xf32>
    %133 = arith.select %117, %131, %132 : vector<7x1xi1>, vector<7x1xf32>
    %134 = vector.shape_cast %133 : vector<7x1xf32> to vector<1x7x1xf32>
    %cst_103 = arith.constant dense<0.000000e+00> : vector<1xf32>
    %135 = vector.multi_reduction <add>, %134, %cst_103 [1, 2] : vector<1x7x1xf32> to vector<1xf32>
    %136 = vector.shape_cast %135 : vector<1xf32> to vector<1x1x1xf32>
    %137 = vector.extract %136[0, 0, 0] : f32 from vector<1x1x1xf32>
    %cst_104 = arith.constant 0.000000e+00 : f32
    %138 = vector.broadcast %cst_104 : f32 to vector<1x1x128xf32>
    %139 = vector.broadcast %137 : f32 to vector<1x1x128xf32>
    %140 = arith.addf %138, %139 : vector<1x1x128xf32>
    %c0_105 = arith.constant 0 : index
    %c0_106 = arith.constant 0 : index
    %c0_107 = arith.constant 0 : index
    %141 = vector.load %arg3[%c0_105, %c0_106, %c0_107] : memref<1x1x128xf32, #tpu.memory_space<vmem>>, vector<1x1x128xf32>
    tpu.vector_store %arg3[%c0_105, %c0_106, %c0_107], %140 {strides = array<i32>} : memref<1x1x128xf32, #tpu.memory_space<vmem>>, vector<1x1x128xf32>,
    return
  }
  func.func @transform_0(%arg0: i32) -> (i32, i32, i32) {
    %c0_i32 = arith.constant 0 : i32
    %c0_i32_0 = arith.constant 0 : i32
    %c0_i32_1 = arith.constant 0 : i32
    return %arg0, %c0_i32, %c0_i32_0 : i32, i32, i32
  }
  func.func @transform_1(%arg0: i32) -> (i32, i32, i32) {
    %c0_i32 = arith.constant 0 : i32
    %c0_i32_0 = arith.constant 0 : i32
    %c0_i32_1 = arith.constant 0 : i32
    %c0_i32_2 = arith.constant 0 : i32
    return %c0_i32, %c0_i32_0, %c0_i32_1 : i32, i32, i32
  }
  func.func @transform_2(%arg0: i32) -> (i32, i32, i32) {
    %c0_i32 = arith.constant 0 : i32
    %c0_i32_0 = arith.constant 0 : i32
    %c0_i32_1 = arith.constant 0 : i32
    return %arg0, %c0_i32, %c0_i32_0 : i32, i32, i32
  }
}

module attributes {stable_mosaic.version = 11 : i64} {
  func.func @_l1_sum_kernel(%arg0: i32, %arg1: i32, %arg2: memref<1x48x128xf32, #tpu.memory_space<vmem>>, %arg3: memref<1x48x128xf32, #tpu.memory_space<vmem>>, %arg4: memref<1x1x128xf32, #tpu.memory_space<vmem>>, %arg5: memref<1x128xf32, #tpu.memory_space<vmem>>) attributes {dimension_semantics = [#tpu.dimension_semantics<parallel>, #tpu.dimension_semantics<arbitrary>], iteration_bounds = array<i64: 2, 1>, scalar_prefetch = 0 : i64, scratch_operands = 1 : i64, tpu.core_type = #tpu.core_type<tc>, window_params = [{transform_indices = @transform_0, window_bounds = array<i64: 1, 48, 128>}, {transform_indices = @transform_1, window_bounds = array<i64: 1, 48, 128>}, {transform_indices = @transform_2, window_bounds = array<i64: 1, 1, 128>}]} {
    %c0_i32 = arith.constant 0 : i32
    %0 = arith.cmpi eq, %arg1, %c0_i32 : i32
    %1 = arith.extui %0 : i1 to i32
    %c0_i32_0 = arith.constant 0 : i32
    %2 = arith.cmpi ne, %1, %c0_i32_0 : i32
    scf.if %2 {
      %cst_12 = arith.constant 0.000000e+00 : f32
      %17 = vector.broadcast %cst_12 : f32 to vector<1x128xf32>
      %c0_13 = arith.constant 0 : index
      %c0_14 = arith.constant 0 : index
      %18 = vector.load %arg5[%c0_13, %c0_14] : memref<1x128xf32, #tpu.memory_space<vmem>>, vector<1x128xf32>
      tpu.vector_store %arg5[%c0_13, %c0_14], %17 {strides = array<i32>} : memref<1x128xf32, #tpu.memory_space<vmem>>, vector<1x128xf32>,
    } else {
    }
    %c0 = arith.constant 0 : index
    %c0_1 = arith.constant 0 : index
    %3 = vector.load %arg5[%c0, %c0_1] : memref<1x128xf32, #tpu.memory_space<vmem>>, vector<1x128xf32>
    %c0_2 = arith.constant 0 : index
    %c0_3 = arith.constant 0 : index
    %c0_4 = arith.constant 0 : index
    %4 = vector.load %arg2[%c0_2, %c0_3, %c0_4] : memref<1x48x128xf32, #tpu.memory_space<vmem>>, vector<1x48x128xf32>
    %5 = vector.shape_cast %4 : vector<1x48x128xf32> to vector<48x128xf32>
    %c0_5 = arith.constant 0 : index
    %c0_6 = arith.constant 0 : index
    %c0_7 = arith.constant 0 : index
    %6 = vector.load %arg3[%c0_5, %c0_6, %c0_7] : memref<1x48x128xf32, #tpu.memory_space<vmem>>, vector<1x48x128xf32>
    %7 = vector.shape_cast %6 : vector<1x48x128xf32> to vector<48x128xf32>
    %8 = arith.subf %5, %7 : vector<48x128xf32>
    %9 = math.absf %8 : vector<48x128xf32>
    %cst = arith.constant dense<0.000000e+00> : vector<128xf32>
    %10 = vector.multi_reduction <add>, %9, %cst [0] : vector<48x128xf32> to vector<128xf32>
    %11 = vector.shape_cast %10 : vector<128xf32> to vector<1x128xf32>
    %12 = arith.addf %3, %11 : vector<1x128xf32>
    %c0_8 = arith.constant 0 : index
    %c0_9 = arith.constant 0 : index
    %13 = vector.load %arg5[%c0_8, %c0_9] : memref<1x128xf32, #tpu.memory_space<vmem>>, vector<1x128xf32>
    tpu.vector_store %arg5[%c0_8, %c0_9], %12 {strides = array<i32>} : memref<1x128xf32, #tpu.memory_space<vmem>>, vector<1x128xf32>,
    %c0_i32_10 = arith.constant 0 : i32
    %14 = arith.cmpi eq, %arg1, %c0_i32_10 : i32
    %15 = arith.extui %14 : i1 to i32
    %c0_i32_11 = arith.constant 0 : i32
    %16 = arith.cmpi ne, %15, %c0_i32_11 : i32
    scf.if %16 {
      %c0_12 = arith.constant 0 : index
      %c0_13 = arith.constant 0 : index
      %17 = vector.load %arg5[%c0_12, %c0_13] : memref<1x128xf32, #tpu.memory_space<vmem>>, vector<1x128xf32>
      %c0_14 = arith.constant 0 : index
      %c0_15 = arith.constant 0 : index
      %c0_16 = arith.constant 0 : index
      %18 = vector.load %arg4[%c0_14, %c0_15, %c0_16] : memref<1x1x128xf32, #tpu.memory_space<vmem>>, vector<1x1x128xf32>
      %19 = vector.shape_cast %18 : vector<1x1x128xf32> to vector<1x128xf32>
      %20 = vector.shape_cast %17 : vector<1x128xf32> to vector<1x1x128xf32>
      tpu.vector_store %arg4[%c0_14, %c0_15, %c0_16], %20 {strides = array<i32>} : memref<1x1x128xf32, #tpu.memory_space<vmem>>, vector<1x1x128xf32>,
    } else {
    }
    return
  }
  func.func @transform_0(%arg0: i32, %arg1: i32) -> (i32, i32, i32) {
    %c0_i32 = arith.constant 0 : i32
    %c0_i32_0 = arith.constant 0 : i32
    return %arg0, %arg1, %c0_i32 : i32, i32, i32
  }
  func.func @transform_1(%arg0: i32, %arg1: i32) -> (i32, i32, i32) {
    %c0_i32 = arith.constant 0 : i32
    %c0_i32_0 = arith.constant 0 : i32
    return %arg0, %arg1, %c0_i32 : i32, i32, i32
  }
  func.func @transform_2(%arg0: i32, %arg1: i32) -> (i32, i32, i32) {
    %c0_i32 = arith.constant 0 : i32
    %c0_i32_0 = arith.constant 0 : i32
    %c0_i32_1 = arith.constant 0 : i32
    return %arg0, %c0_i32, %c0_i32_0 : i32, i32, i32
  }
}

module attributes {stable_mosaic.version = 11 : i64} {
  func.func @_kl_sum_kernel(%arg0: i32, %arg1: i32, %arg2: memref<1x8x128xf32, #tpu.memory_space<vmem>>, %arg3: memref<1x8x128xf32, #tpu.memory_space<vmem>>, %arg4: memref<1x1x128xf32, #tpu.memory_space<vmem>>, %arg5: memref<1x128xf32, #tpu.memory_space<vmem>>) attributes {dimension_semantics = [#tpu.dimension_semantics<parallel>, #tpu.dimension_semantics<arbitrary>], iteration_bounds = array<i64: 2, 1>, scalar_prefetch = 0 : i64, scratch_operands = 1 : i64, tpu.core_type = #tpu.core_type<tc>, window_params = [{transform_indices = @transform_0, window_bounds = array<i64: 1, 8, 128>}, {transform_indices = @transform_1, window_bounds = array<i64: 1, 8, 128>}, {transform_indices = @transform_2, window_bounds = array<i64: 1, 1, 128>}]} {
    %c0_i32 = arith.constant 0 : i32
    %0 = arith.cmpi eq, %arg1, %c0_i32 : i32
    %1 = arith.extui %0 : i1 to i32
    %c0_i32_0 = arith.constant 0 : i32
    %2 = arith.cmpi ne, %1, %c0_i32_0 : i32
    scf.if %2 {
      %cst_14 = arith.constant 0.000000e+00 : f32
      %23 = vector.broadcast %cst_14 : f32 to vector<1x128xf32>
      %c0_15 = arith.constant 0 : index
      %c0_16 = arith.constant 0 : index
      %24 = vector.load %arg5[%c0_15, %c0_16] : memref<1x128xf32, #tpu.memory_space<vmem>>, vector<1x128xf32>
      tpu.vector_store %arg5[%c0_15, %c0_16], %23 {strides = array<i32>} : memref<1x128xf32, #tpu.memory_space<vmem>>, vector<1x128xf32>,
    } else {
    }
    %c0 = arith.constant 0 : index
    %c0_1 = arith.constant 0 : index
    %c0_2 = arith.constant 0 : index
    %3 = vector.load %arg2[%c0, %c0_1, %c0_2] : memref<1x8x128xf32, #tpu.memory_space<vmem>>, vector<1x8x128xf32>
    %4 = vector.shape_cast %3 : vector<1x8x128xf32> to vector<8x128xf32>
    %c0_3 = arith.constant 0 : index
    %c0_4 = arith.constant 0 : index
    %c0_5 = arith.constant 0 : index
    %5 = vector.load %arg3[%c0_3, %c0_4, %c0_5] : memref<1x8x128xf32, #tpu.memory_space<vmem>>, vector<1x8x128xf32>
    %6 = vector.shape_cast %5 : vector<1x8x128xf32> to vector<8x128xf32>
    %cst = arith.constant 1.000000e+00 : f32
    %7 = vector.broadcast %cst : f32 to vector<8x128xf32>
    %8 = arith.addf %7, %6 : vector<8x128xf32>
    %9 = arith.mulf %4, %4 : vector<8x128xf32>
    %10 = arith.subf %8, %9 : vector<8x128xf32>
    %11 = math.exp %6 : vector<8x128xf32>
    %12 = arith.subf %10, %11 : vector<8x128xf32>
    %cst_6 = arith.constant -5.000000e-01 : f32
    %13 = vector.broadcast %cst_6 : f32 to vector<8x128xf32>
    %14 = arith.mulf %13, %12 : vector<8x128xf32>
    %c0_7 = arith.constant 0 : index
    %c0_8 = arith.constant 0 : index
    %15 = vector.load %arg5[%c0_7, %c0_8] : memref<1x128xf32, #tpu.memory_space<vmem>>, vector<1x128xf32>
    %cst_9 = arith.constant dense<0.000000e+00> : vector<128xf32>
    %16 = vector.multi_reduction <add>, %14, %cst_9 [0] : vector<8x128xf32> to vector<128xf32>
    %17 = vector.shape_cast %16 : vector<128xf32> to vector<1x128xf32>
    %18 = arith.addf %15, %17 : vector<1x128xf32>
    %c0_10 = arith.constant 0 : index
    %c0_11 = arith.constant 0 : index
    %19 = vector.load %arg5[%c0_10, %c0_11] : memref<1x128xf32, #tpu.memory_space<vmem>>, vector<1x128xf32>
    tpu.vector_store %arg5[%c0_10, %c0_11], %18 {strides = array<i32>} : memref<1x128xf32, #tpu.memory_space<vmem>>, vector<1x128xf32>,
    %c0_i32_12 = arith.constant 0 : i32
    %20 = arith.cmpi eq, %arg1, %c0_i32_12 : i32
    %21 = arith.extui %20 : i1 to i32
    %c0_i32_13 = arith.constant 0 : i32
    %22 = arith.cmpi ne, %21, %c0_i32_13 : i32
    scf.if %22 {
      %c0_14 = arith.constant 0 : index
      %c0_15 = arith.constant 0 : index
      %23 = vector.load %arg5[%c0_14, %c0_15] : memref<1x128xf32, #tpu.memory_space<vmem>>, vector<1x128xf32>
      %c0_16 = arith.constant 0 : index
      %c0_17 = arith.constant 0 : index
      %c0_18 = arith.constant 0 : index
      %24 = vector.load %arg4[%c0_16, %c0_17, %c0_18] : memref<1x1x128xf32, #tpu.memory_space<vmem>>, vector<1x1x128xf32>
      %25 = vector.shape_cast %24 : vector<1x1x128xf32> to vector<1x128xf32>
      %26 = vector.shape_cast %23 : vector<1x128xf32> to vector<1x1x128xf32>
      tpu.vector_store %arg4[%c0_16, %c0_17, %c0_18], %26 {strides = array<i32>} : memref<1x1x128xf32, #tpu.memory_space<vmem>>, vector<1x1x128xf32>,
    } else {
    }
    return
  }
  func.func @transform_0(%arg0: i32, %arg1: i32) -> (i32, i32, i32) {
    %c0_i32 = arith.constant 0 : i32
    %c0_i32_0 = arith.constant 0 : i32
    return %arg0, %arg1, %c0_i32 : i32, i32, i32
  }
  func.func @transform_1(%arg0: i32, %arg1: i32) -> (i32, i32, i32) {
    %c0_i32 = arith.constant 0 : i32
    %c0_i32_0 = arith.constant 0 : i32
    return %arg0, %arg1, %c0_i32 : i32, i32, i32
  }
  func.func @transform_2(%arg0: i32, %arg1: i32) -> (i32, i32, i32) {
    %c0_i32 = arith.constant 0 : i32
    %c0_i32_0 = arith.constant 0 : i32
    %c0_i32_1 = arith.constant 0 : i32
    return %arg0, %c0_i32, %c0_i32_0 : i32, i32, i32
  }
}

</mosaic_0001>

<llo_original>
// kernel: autoencoder_loss.8
$region0: #{autoencoder_loss.8}
  #allocation0 [shape = 'u32[]', space=smem, size = 0x4, offset = 0x4, fixed_abs, tag = 'smem constant byte address 0x4 - core index']
  #allocation1 [shape = 'u32[144,128]{1,0:T(1,128)}', space=vmem, size = 0x12000, scoped, tag = 'internal scratch']
  %s0 = inlined_call_operand.hbm [shape: bf16[4,289,12], index: 0, kind: input, shape index: {}]
  %s1 = inlined_call_operand.hbm [shape: bf16[4,12,128], index: 1, kind: input, shape index: {}]
  %s2 = inlined_call_operand.hbm [shape: f32[1,128], index: 2, kind: input, shape index: {}]
  %s3 = inlined_call_operand.hbm [shape: bf16[4,271,128], index: 3, kind: output, shape index: {}]
  %s4 = sld [smem:[#allocation0]]
  $region57: #{autoencoder_loss.8} parent=0
    _
  %s6 = ssub.s32 1, %s4
  %s7 = scalar_select 0, %s6, %s4
  $region1: #{autoencoder_loss.8} parent=0
    #allocation2 [shape = 'u8[151552]{0}', space=vmem, size = 0x25000, scoped, tag = 'input window, operand 0']
    #allocation3 [shape = 's32[2]{0}', space=sflag, size = 0x8, scoped, tag = 'scoped memory for autoencoder_loss.8']
    #allocation4 [shape = 's32[2]{0}', space=sflag, size = 0x8, scoped, tag = 'scoped memory for autoencoder_loss.8']
    #allocation5 [shape = 'u8[16384]{0}', space=vmem, size = 0x4000, scoped, tag = 'input window, operand 1, single buffered']
    #allocation6 [shape = 's32[1]{0}', space=sflag, size = 0x4, scoped, tag = 'scoped memory for autoencoder_loss.8']
    #allocation7 [shape = 'u8[512]{0}', space=vmem, size = 0x400, scoped, tag = 'input window, operand 2, single buffered']
    #allocation8 [shape = 'u8[139264]{0}', space=vmem, size = 0x22000, scoped, tag = 'output window, operand 0']
    %8 = vsyncpa [#allocation3], 0
    %s9 = scalar_lea.sflag [#allocation3], 1
    %10 = vsyncpa %s9, 0
    %11 = vsyncpa [#allocation6], 0
    %12 = vsyncpa [#allocation4], 0
    %s13 = scalar_lea.sflag [#allocation4], 1
    %14 = vsyncpa %s13, 0
    loop: start=0, step=1, limit=6
    $region2: #{autoencoder_loss.8} parent=1 // loop_pre_header
      _
    $region3: #{autoencoder_loss.8} parent=1 // loop_header
      %s16 = sphi 0, %s20
      %p17 = scmp.ge.s32.totalorder %s16, 6
      %s26 = sphi 0, %s28
      %s29 = sphi 0, %s26
      %s30 = sphi 0, %s29
      %s46 = sphi 0, %s30
      %s50 = sphi 0, %s50
      %s52 = sphi 0, %s50
      %s53 = sphi 0, %s52
      %s67 = sphi 0, %s53
      %s71 = sphi 0, %s71
      %s73 = sphi 0, %s71
      %s74 = sphi 0, %s73
      %s88 = sphi 0, %s74
      %s94 = sphi 0, %s96
      %s97 = sphi 0, %s94
      %s98 = sphi 0, %s97
      %s114 = sphi 0, %s98
    $region4: #{autoencoder_loss.8} parent=1 // loop_header_branch
      %19 = sbr.rel (%p17) target = $region8
    $region5: #{autoencoder_loss.8} parent=1 // loop_body
      %s21 = ssub.s32 %s16, 1
      %s22 = ssub.s32 %s16, 2
      %s23 = sadd.s32 %s16, 1
      %s24 = ssub.s32 %s16, %s23
      %p25 = scmp.eq.s32.totalorder %s24, 0
      %s27 = sadd.s32 %s26, 1
      %s28 = scalar_select %p25, %s26, %s27
      %p31 = pneg %p25
      %p32 = scmp.eq.s32.totalorder %s16, 3
      %p33 = por %p31, %p32
      %p34 = scmp.ne.s32.totalorder %s26, %s29
      %p35 = scmp.eq.s32.totalorder %s16, 0
      %p36 = por %p34, %p35
      %p37 = scmp.ne.s32.totalorder %s26, %s29
      %p38 = scmp.eq.s32.totalorder %s21, 3
      %p39 = por %p37, %p38
      %p40 = scmp.ne.s32.totalorder %s29, %s30
      %p41 = scmp.eq.s32.totalorder %s21, 0
      %p42 = por %p40, %p41
      %p43 = scmp.ne.s32.totalorder %s29, %s30
      %p44 = scmp.eq.s32.totalorder %s22, 3
      %p45 = por %p43, %p44
      %p47 = scmp.ne.s32.totalorder %s30, %s46
      %p48 = scmp.eq.s32.totalorder %s22, 0
      %p49 = por %p47, %p48
      %s51 = sadd.s32 %s50, 1
      %p54 = scmp.eq.s32.totalorder %s16, 3
      %p55 = scmp.ne.s32.totalorder %s50, %s52
      %p56 = scmp.eq.s32.totalorder %s16, 0
      %p57 = por %p55, %p56
      %p58 = scmp.ne.s32.totalorder %s50, %s52
      %p59 = scmp.eq.s32.totalorder %s21, 3
      %p60 = por %p58, %p59
      %p61 = scmp.ne.s32.totalorder %s52, %s53
      %p62 = scmp.eq.s32.totalorder %s21, 0
      %p63 = por %p61, %p62
      %p64 = scmp.ne.s32.totalorder %s52, %s53
      %p65 = scmp.eq.s32.totalorder %s22, 3
      %p66 = por %p64, %p65
      %p68 = scmp.ne.s32.totalorder %s53, %s67
      %p69 = scmp.eq.s32.totalorder %s22, 0
      %p70 = por %p68, %p69
      %s72 = sadd.s32 %s71, 1
      %p75 = scmp.eq.s32.totalorder %s16, 3
      %p76 = scmp.ne.s32.totalorder %s71, %s73
      %p77 = scmp.eq.s32.totalorder %s16, 0
      %p78 = por %p76, %p77
      %p79 = scmp.ne.s32.totalorder %s71, %s73
      %p80 = scmp.eq.s32.totalorder %s21, 3
      %p81 = por %p79, %p80
      %p82 = scmp.ne.s32.totalorder %s73, %s74
      %p83 = scmp.eq.s32.totalorder %s21, 0
      %p84 = por %p82, %p83
      %p85 = scmp.ne.s32.totalorder %s73, %s74
      %p86 = scmp.eq.s32.totalorder %s22, 3
      %p87 = por %p85, %p86
      %p89 = scmp.ne.s32.totalorder %s74, %s88
      %p90 = scmp.eq.s32.totalorder %s22, 0
      %p91 = por %p89, %p90
      %s92 = ssub.s32 %s16, %s23
      %p93 = scmp.eq.s32.totalorder %s92, 0
      %s95 = sadd.s32 %s94, 1
      %s96 = scalar_select %p93, %s94, %s95
      %p99 = pneg %p93
      %p100 = scmp.eq.s32.totalorder %s16, 3
      %p101 = por %p99, %p100
      %p102 = scmp.ne.s32.totalorder %s94, %s97
      %p103 = scmp.eq.s32.totalorder %s16, 0
      %p104 = por %p102, %p103
      %p105 = scmp.ne.s32.totalorder %s94, %s97
      %p106 = scmp.eq.s32.totalorder %s21, 3
      %p107 = por %p105, %p106
      %p108 = scmp.ne.s32.totalorder %s97, %s98
      %p109 = scmp.eq.s32.totalorder %s21, 0
      %p110 = por %p108, %p109
      %p111 = scmp.ne.s32.totalorder %s97, %s98
      %p112 = scmp.eq.s32.totalorder %s22, 3
      %p113 = por %p111, %p112
      %p115 = scmp.ne.s32.totalorder %s98, %s114
      %p116 = scmp.eq.s32.totalorder %s22, 0
      %p117 = por %p115, %p116
      %p118 = scmp.le.s32.totalorder 1, %s16
      %p119 = scmp.lt.s32.totalorder %s16, 5
      %p120 = pnand %p118, %p119
      %p121 = pneg %p120
      // Predicated region
      $region9: #{autoencoder_loss.8} parent=5 // pred_check
        _
      $region10: #{autoencoder_loss.8} parent=5 // pred_check_branch
        %123 = sbr.rel (%p120) target = $region12
      $region11: #{autoencoder_loss.8} parent=5 // pred_region
        %s124 = ssub.s32 %s16, 1
        // Predicated region
        $region13: #{autoencoder_loss.8} parent=11 // pred_check
          %p125 = pneg %p63
        $region14: #{autoencoder_loss.8} parent=11 // pred_check_branch
          %127 = sbr.rel (%p125) target = $region16
        $region15: #{autoencoder_loss.8} parent=11 // pred_region
          %s129 = ssub.s32 512, 512
          %130 = vsyncadd [#allocation6], %s129
          %s131 = sshll.u32 [#allocation5], 4
          %s132 = int_to_ptr.vmem [resolvable:$true] %s131
          %137 = dma.hbm_to_vmem [thread:$0]  %s1, 512, %s132, [#allocation6], 64, 64, 4
        $region16: #{autoencoder_loss.8} parent=11 // pred_fallthru
          _
        // Predicated region
        $region17: #{autoencoder_loss.8} parent=11 // pred_check
          %p138 = pneg %p84
        $region18: #{autoencoder_loss.8} parent=11 // pred_check_branch
          %140 = sbr.rel (%p138) target = $region20
        $region19: #{autoencoder_loss.8} parent=11 // pred_region
          %s142 = ssub.s32 16, 16
          %143 = vsyncadd [#allocation6], %s142
          %s145 = sshll.u32 [#allocation7], 4
          %s146 = int_to_ptr.vmem [resolvable:$true] %s145
          %148 = dma.hbm_to_vmem [thread:$0]  %s2, 16, %s146, [#allocation6]
        $region20: #{autoencoder_loss.8} parent=11 // pred_fallthru
          _
      $region12: #{autoencoder_loss.8} parent=5 // pred_fallthru
        _
      %p149 = scmp.lt.s32.totalorder %s16, 4
      // Predicated region
      $region21: #{autoencoder_loss.8} parent=5 // pred_check
        %p150 = pneg %p149
      $region22: #{autoencoder_loss.8} parent=5 // pred_check_branch
        %152 = sbr.rel (%p150) target = $region24
      $region23: #{autoencoder_loss.8} parent=5 // pred_region
        // Predicated region
        $region25: #{autoencoder_loss.8} parent=23 // pred_check
          %p153 = pneg %p36
        $region26: #{autoencoder_loss.8} parent=23 // pred_check_branch
          %155 = sbr.rel (%p153) target = $region28
        $region27: #{autoencoder_loss.8} parent=23 // pred_region
          %s156 = sand.u32 %s26, 1
          %s157 = scalar_lea.sflag [#allocation3], %s156
          %s158 = sand.u32 %s26, 1
          %s159 = smul.addr %s158, 148
          %s160 = scalar_lea.vmem [#allocation2], %s159
          %s162 = ssub.s32 2368, 2368
          %163 = vsyncadd %s157, %s162
          %s164 = smul.addr %s16, 37
          %s165 = smul.addr %s164, 64
          %s166 = scalar_lea.hbm %s0, %s165
          %s167 = sshll.u32 %s160, 4
          %s168 = int_to_ptr.vmem [resolvable:$true] %s167
          %173 = dma.hbm_to_vmem [thread:$0]  %s166, 2368, %s168, %s157, 64, 64, 4
        $region28: #{autoencoder_loss.8} parent=23 // pred_fallthru
          _
      $region24: #{autoencoder_loss.8} parent=5 // pred_fallthru
        _
      %p174 = scmp.le.s32.totalorder 1, %s16
      %p175 = scmp.lt.s32.totalorder %s16, 5
      %p176 = pnand %p174, %p175
      %p177 = pneg %p176
      // Predicated region
      $region29: #{autoencoder_loss.8} parent=5 // pred_check
        _
      $region30: #{autoencoder_loss.8} parent=5 // pred_check_branch
        %179 = sbr.rel (%p176) target = $region32
      $region31: #{autoencoder_loss.8} parent=5 // pred_region
        %s180 = ssub.s32 %s16, 1
        %s181 = sand.u32 %s29, 1
        %s182 = scalar_lea.sflag [#allocation3], %s181
        %s183 = sand.u32 %s29, 1
        %s184 = smul.addr %s183, 148
        %s185 = scalar_lea.vmem [#allocation2], %s184
        // Predicated region
        $region33: #{autoencoder_loss.8} parent=31 // pred_check
          %p186 = pneg %p42
        $region34: #{autoencoder_loss.8} parent=31 // pred_check_branch
          %188 = sbr.rel (%p186) target = $region36
        $region35: #{autoencoder_loss.8} parent=31 // pred_region
          %189 = dma.done %s182, 2368
        $region36: #{autoencoder_loss.8} parent=31 // pred_fallthru
          _
        // Predicated region
        $region37: #{autoencoder_loss.8} parent=31 // pred_check
          %p190 = pneg %p63
        $region38: #{autoencoder_loss.8} parent=31 // pred_check_branch
          %192 = sbr.rel (%p190) target = $region40
        $region39: #{autoencoder_loss.8} parent=31 // pred_region
          %193 = dma.done [#allocation6], 512
        $region40: #{autoencoder_loss.8} parent=31 // pred_fallthru
          _
        // Predicated region
        $region41: #{autoencoder_loss.8} parent=31 // pred_check
          %p194 = pneg %p84
        $region42: #{autoencoder_loss.8} parent=31 // pred_check_branch
          %196 = sbr.rel (%p194) target = $region44
        $region43: #{autoencoder_loss.8} parent=31 // pred_region
          %197 = dma.done [#allocation6], 16
        $region44: #{autoencoder_loss.8} parent=31 // pred_fallthru
          _
        %s198 = sand.u32 %s29, 1
        %s199 = scalar_lea.sflag [#allocation3], %s198
        %s200 = sand.u32 %s29, 1
        %s201 = smul.addr %s200, 148
        %s202 = scalar_lea.vmem [#allocation2], %s201
        %p203 = pneg %p42
        %p204 = pneg %p39
        %p205 = pneg %p63
        %p206 = pneg %p60
        %p207 = pneg %p84
        %p208 = pneg %p81
        %p209 = pneg %p110
        %p210 = pneg %p107
        %s211 = sand.u32 %s97, 1
        %s212 = scalar_lea.sflag [#allocation4], %s211
        %s213 = sand.u32 %s97, 1
        %s214 = smul.addr %s213, 136
        %s215 = scalar_lea.vmem [#allocation8], %s214
        %v217 = vld [vmem:[%s185] sm:$0xf]
        %v218 = vld [vmem:[%s185 + $0x4] sm:$0xf]
        %v219 = vld [vmem:[%s185 + $0x8] sm:$0xf]
        %v220 = vld [vmem:[%s185 + $0xc] sm:$0xf]
        %v221 = vld [vmem:[%s185 + $0x10] sm:$0xf]
        %v222 = vld [vmem:[%s185 + $0x14] sm:$0xf]
        %v223 = vld [vmem:[%s185 + $0x18] sm:$0xf]
        %v224 = vld [vmem:[%s185 + $0x1c] sm:$0xf]
        %v225 = vld [vmem:[%s185 + $0x20] sm:$0xf]
        %v226 = vld [vmem:[%s185 + $0x24] sm:$0xf]
        %v227 = vld [vmem:[%s185 + $0x28] sm:$0xf]
        %v228 = vld [vmem:[%s185 + $0x2c] sm:$0xf]
        %v229 = vld [vmem:[%s185 + $0x30] sm:$0xf]
        %v230 = vld [vmem:[%s185 + $0x34] sm:$0xf]
        %v231 = vld [vmem:[%s185 + $0x38] sm:$0xf]
        %v232 = vld [vmem:[%s185 + $0x3c] sm:$0xf]
        %v233 = vld [vmem:[%s185 + $0x40] sm:$0xf]
        %v234 = vld [vmem:[%s185 + $0x44] sm:$0xf]
        %v235 = vld [vmem:[%s185 + $0x48] sm:$0xf]
        %v236 = vld [vmem:[%s185 + $0x4c] sm:$0xf]
        %v237 = vld [vmem:[%s185 + $0x50] sm:$0xf]
        %v238 = vld [vmem:[%s185 + $0x54] sm:$0xf]
        %v239 = vld [vmem:[%s185 + $0x58] sm:$0xf]
        %v240 = vld [vmem:[%s185 + $0x5c] sm:$0xf]
        %v241 = vld [vmem:[%s185 + $0x60] sm:$0xf]
        %v242 = vld [vmem:[%s185 + $0x64] sm:$0xf]
        %v243 = vld [vmem:[%s185 + $0x68] sm:$0xf]
        %v244 = vld [vmem:[%s185 + $0x6c] sm:$0xf]
        %v245 = vld [vmem:[%s185 + $0x70] sm:$0xf]
        %v246 = vld [vmem:[%s185 + $0x74] sm:$0xf]
        %v247 = vld [vmem:[%s185 + $0x78] sm:$0xf]
        %v248 = vld [vmem:[%s185 + $0x7c] sm:$0xf]
        %v249 = vld [vmem:[%s185 + $0x80] sm:$0xf]
        %v250 = vld [vmem:[%s185 + $0x84] sm:$0xf]
        %v251 = vld [vmem:[#allocation5] sm:$0xf]
        %v252 = vld [vmem:[#allocation5 + $0x4] sm:$0x3]
        %s253 = scalar_lea.vmem [#allocation5], 8
        %v254 = vld [vmem:[%s253] sm:$0xf]
        %v255 = vld [vmem:[%s253 + $0x4] sm:$0x3]
        %v290 = vunpack.c.l.b16 %v217
        %v291 = vunpack.c.l.b16 %v218
        %v292 = vunpack.c.l.b16 %v219
        %v293 = vunpack.c.l.b16 %v220
        %v294 = vunpack.c.l.b16 %v221
        %v295 = vunpack.c.l.b16 %v222
        %v296 = vunpack.c.l.b16 %v223
        %v297 = vunpack.c.l.b16 %v224
        %v298 = vunpack.c.l.b16 %v225
        %v299 = vunpack.c.l.b16 %v226
        %v300 = vunpack.c.l.b16 %v227
        %v301 = vunpack.c.l.b16 %v228
        %v302 = vunpack.c.l.b16 %v229
        %v303 = vunpack.c.l.b16 %v230
        %v304 = vunpack.c.l.b16 %v231
        %v305 = vunpack.c.l.b16 %v232
        %v306 = vunpack.c.l.b16 %v233
        %v307 = vunpack.c.l.b16 %v234
        %v308 = vunpack.c.l.b16 %v235
        %v309 = vunpack.c.l.b16 %v236
        %v310 = vunpack.c.l.b16 %v237
        %v311 = vunpack.c.l.b16 %v238
        %v312 = vunpack.c.l.b16 %v239
        %v313 = vunpack.c.l.b16 %v240
        %v314 = vunpack.c.l.b16 %v241
        %v315 = vunpack.c.l.b16 %v242
        %v316 = vunpack.c.l.b16 %v243
        %v317 = vunpack.c.l.b16 %v244
        %v318 = vunpack.c.l.b16 %v245
        %v319 = vunpack.c.l.b16 %v246
        %v320 = vunpack.c.l.b16 %v247
        %v321 = vunpack.c.l.b16 %v248
        %v322 = vunpack.c.l.b16 %v249
        %v323 = vunpack.c.l.b16 %v250
        %v324 = vpack.c.b16 %v291, %v290
        %v325 = vpack.c.b16 %v293, %v292
        %v326 = vpack.c.b16 %v295, %v294
        %v327 = vpack.c.b16 %v297, %v296
        %v328 = vpack.c.b16 %v299, %v298
        %v329 = vpack.c.b16 %v301, %v300
        %v330 = vpack.c.b16 %v303, %v302
        %v331 = vpack.c.b16 %v305, %v304
        %v332 = vpack.c.b16 %v307, %v306
        %v333 = vpack.c.b16 %v309, %v308
        %v334 = vpack.c.b16 %v311, %v310
        %v335 = vpack.c.b16 %v313, %v312
        %v336 = vpack.c.b16 %v315, %v314
        %v337 = vpack.c.b16 %v317, %v316
        %v338 = vpack.c.b16 %v319, %v318
        %v339 = vpack.c.b16 %v321, %v320
        %v340 = vpack.c.b16 %v323, %v322
        %vm341 = vsmask.f32 7424
        %v343 = vshrl.u32 %v324, 16
        %v345 = vshll.u32 %v324, 16
        %v347 = vrot.slane %v345, 1
        %v348 = vor.u32 %v343, %v347
        %v350 = vshll.u32 %v325, 16
        %v352 = vrot.slane %v350, 1
        %v353 = vsel %vm341, %v348, %v352
        %v354 = vshrl.u32 %v325, 16
        %v356 = vor.u32 %v354, %v352
        %v358 = vshll.u32 %v326, 16
        %v360 = vrot.slane %v358, 1
        %v361 = vsel %vm341, %v356, %v360
        %v362 = vshrl.u32 %v326, 16
        %v364 = vor.u32 %v362, %v360
        %v366 = vshll.u32 %v327, 16
        %v368 = vrot.slane %v366, 1
        %v369 = vsel %vm341, %v364, %v368
        %v370 = vshrl.u32 %v327, 16
        %v372 = vor.u32 %v370, %v368
        %v374 = vshll.u32 %v328, 16
        %v376 = vrot.slane %v374, 1
        %v377 = vsel %vm341, %v372, %v376
        %v378 = vshrl.u32 %v328, 16
        %v380 = vor.u32 %v378, %v376
        %v382 = vshll.u32 %v329, 16
        %v384 = vrot.slane %v382, 1
        %v385 = vsel %vm341, %v380, %v384
        %v386 = vshrl.u32 %v329, 16
        %v388 = vor.u32 %v386, %v384
        %v390 = vshll.u32 %v330, 16
        %v392 = vrot.slane %v390, 1
        %v393 = vsel %vm341, %v388, %v392
        %v394 = vshrl.u32 %v330, 16
        %v396 = vor.u32 %v394, %v392
        %v398 = vshll.u32 %v331, 16
        %v400 = vrot.slane %v398, 1
        %v401 = vsel %vm341, %v396, %v400
        %v402 = vshrl.u32 %v331, 16
        %v404 = vor.u32 %v402, %v400
        %v406 = vshll.u32 %v332, 16
        %v408 = vrot.slane %v406, 1
        %v409 = vsel %vm341, %v404, %v408
        %v410 = vshrl.u32 %v332, 16
        %v412 = vor.u32 %v410, %v408
        %v414 = vshll.u32 %v333, 16
        %v416 = vrot.slane %v414, 1
        %v417 = vsel %vm341, %v412, %v416
        %v418 = vshrl.u32 %v333, 16
        %v420 = vor.u32 %v418, %v416
        %v422 = vshll.u32 %v334, 16
        %v424 = vrot.slane %v422, 1
        %v425 = vsel %vm341, %v420, %v424
        %v426 = vshrl.u32 %v334, 16
        %v428 = vor.u32 %v426, %v424
        %v430 = vshll.u32 %v335, 16
        %v432 = vrot.slane %v430, 1
        %v433 = vsel %vm341, %v428, %v432
        %v434 = vshrl.u32 %v335, 16
        %v436 = vor.u32 %v434, %v432
        %v438 = vshll.u32 %v336, 16
        %v440 = vrot.slane %v438, 1
        %v441 = vsel %vm341, %v436, %v440
        %v442 = vshrl.u32 %v336, 16
        %v444 = vor.u32 %v442, %v440
        %v446 = vshll.u32 %v337, 16
        %v448 = vrot.slane %v446, 1
        %v449 = vsel %vm341, %v444, %v448
        %v450 = vshrl.u32 %v337, 16
        %v452 = vor.u32 %v450, %v448
        %v454 = vshll.u32 %v338, 16
        %v456 = vrot.slane %v454, 1
        %v457 = vsel %vm341, %v452, %v456
        %v458 = vshrl.u32 %v338, 16
        %v460 = vor.u32 %v458, %v456
        %v462 = vshll.u32 %v339, 16
        %v464 = vrot.slane %v462, 1
        %v465 = vsel %vm341, %v460, %v464
        %v466 = vshrl.u32 %v339, 16
        %v468 = vor.u32 %v466, %v464
        %v470 = vshll.u32 %v340, 16
        %v472 = vrot.slane %v470, 1
        %v473 = vsel %vm341, %v468, %v472
        %v474 = vshrl.u32 %v340, 16
        %v476 = vor.u32 %v474, %v472
        %v479 = vunpack.c.l.b16 %v254
        %v480 = vunpack.c.l.b16 %v255
        %v481 = vpack.c.b16 %v480, %v479
        %vm482 = vcmask 97280
        %v484 = vsel %vm482, %v353, 0
        %v487 = vsel %vm482, %v361, 0
        %v490 = vsel %vm482, %v369, 0
        %v493 = vsel %vm482, %v377, 0
        %v496 = vsel %vm482, %v385, 0
        %v499 = vsel %vm482, %v393, 0
        %v502 = vsel %vm482, %v401, 0
        %v505 = vsel %vm482, %v409, 0
        %v508 = vsel %vm482, %v417, 0
        %v511 = vsel %vm482, %v425, 0
        %v514 = vsel %vm482, %v433, 0
        %v517 = vsel %vm482, %v441, 0
        %v520 = vsel %vm482, %v449, 0
        %v523 = vsel %vm482, %v457, 0
        %v526 = vsel %vm482, %v465, 0
        %v529 = vsel %vm482, %v473, 0
        %v532 = vsel %vm482, %v476, 0
        %vm534 = vcmask 1045504
        %v536 = vsel %vm534, %v481, 0
        %538 = vmatprep.subr.bf16.mxu0 0
        %539 = vmatpush1.bf16.msra.mxu0 %v536
        %540 = vmatprep.subr.bf16.mxu0 0
        %541 = vmatpush1.bf16.msra.mxu0 0
        %542 = vmatprep.subr.bf16.mxu0 0
        %543 = vmatpush1.bf16.msra.mxu0 0
        %544 = vmatprep.subr.bf16.mxu0 0
        %545 = vmatpush1.bf16.msra.mxu0 0
        %546 = vmatprep.subr.bf16.mxu0 0
        %547 = vmatpush1.bf16.msra.mxu0 0
        %548 = vmatprep.subr.bf16.mxu0 0
        %549 = vmatpush1.bf16.msra.mxu0 0
        %550 = vmatprep.subr.bf16.mxu0 0
        %551 = vmatpush1.bf16.msra.mxu0 0
        %552 = vmatprep.subr.bf16.mxu0 0
        %553 = vmatpush1.bf16.msra.mxu0 0
        %554 = vmatprep.subr.bf16.mxu0 0
        %555 = vmatpush1.bf16.msra.mxu0 0
        %556 = vmatprep.subr.bf16.mxu0 0
        %557 = vmatpush1.bf16.msra.mxu0 0
        %558 = vmatprep.subr.bf16.mxu0 0
        %559 = vmatpush1.bf16.msra.mxu0 0
        %560 = vmatprep.subr.bf16.mxu0 0
        %561 = vmatpush1.bf16.msra.mxu0 0
        %562 = vmatprep.subr.bf16.mxu0 0
        %563 = vmatpush1.bf16.msra.mxu0 0
        %564 = vmatprep.subr.bf16.mxu0 0
        %565 = vmatpush1.bf16.msra.mxu0 0
        %566 = vmatprep.subr.bf16.mxu0 0
        %567 = vmatpush1.bf16.msra.mxu0 0
        %568 = vmatprep.subr.bf16.mxu0 0
        %569 = vmatpush1.bf16.msra.mxu0 0
        %570 = vmatprep.mubr.bf16.mxu0 0
        %571 = vmatmul.mubr.bf16.gmra.mrb[0].mxu0 %v484
        %v572 = vpop.f32.mrb[0].mxu0
        %v573 = vadd.f32 0.0, %v572
        %v574 = vpop.f32.mrb[0].mxu0
        %v575 = vpop.f32.mrb[0].mxu0
        %v576 = vadd.f32 0.0, %v575
        %v577 = vpop.f32.mrb[0].mxu0
        %578 = vmatprep.mubr.bf16.mxu0 0
        %579 = vmatmul.mubr.bf16.gmra.mrb[0].mxu0 %v487
        %v580 = vpop.f32.mrb[0].mxu0
        %v581 = vadd.f32 0.0, %v580
        %v582 = vpop.f32.mrb[0].mxu0
        %v583 = vpop.f32.mrb[0].mxu0
        %v584 = vadd.f32 0.0, %v583
        %v585 = vpop.f32.mrb[0].mxu0
        %586 = vmatprep.mubr.bf16.mxu0 0
        %587 = vmatmul.mubr.bf16.gmra.mrb[0].mxu0 %v490
        %v588 = vpop.f32.mrb[0].mxu0
        %v589 = vadd.f32 0.0, %v588
        %v590 = vpop.f32.mrb[0].mxu0
        %v591 = vpop.f32.mrb[0].mxu0
        %v592 = vadd.f32 0.0, %v591
        %v593 = vpop.f32.mrb[0].mxu0
        %594 = vmatprep.mubr.bf16.mxu0 0
        %595 = vmatmul.mubr.bf16.gmra.mrb[0].mxu0 %v493
        %v596 = vpop.f32.mrb[0].mxu0
        %v597 = vadd.f32 0.0, %v596
        %v598 = vpop.f32.mrb[0].mxu0
        %v599 = vpop.f32.mrb[0].mxu0
        %v600 = vadd.f32 0.0, %v599
        %v601 = vpop.f32.mrb[0].mxu0
        %602 = vmatprep.mubr.bf16.mxu0 0
        %603 = vmatmul.mubr.bf16.gmra.mrb[0].mxu0 %v496
        %v604 = vpop.f32.mrb[0].mxu0
        %v605 = vadd.f32 0.0, %v604
        %v606 = vpop.f32.mrb[0].mxu0
        %v607 = vpop.f32.mrb[0].mxu0
        %v608 = vadd.f32 0.0, %v607
        %v609 = vpop.f32.mrb[0].mxu0
        %610 = vmatprep.mubr.bf16.mxu0 0
        %611 = vmatmul.mubr.bf16.gmra.mrb[0].mxu0 %v499
        %v612 = vpop.f32.mrb[0].mxu0
        %v613 = vadd.f32 0.0, %v612
        %v614 = vpop.f32.mrb[0].mxu0
        %v615 = vpop.f32.mrb[0].mxu0
        %v616 = vadd.f32 0.0, %v615
        %v617 = vpop.f32.mrb[0].mxu0
        %618 = vmatprep.mubr.bf16.mxu0 0
        %619 = vmatmul.mubr.bf16.gmra.mrb[0].mxu0 %v502
        %v620 = vpop.f32.mrb[0].mxu0
        %v621 = vadd.f32 0.0, %v620
        %v622 = vpop.f32.mrb[0].mxu0
        %v623 = vpop.f32.mrb[0].mxu0
        %v624 = vadd.f32 0.0, %v623
        %v625 = vpop.f32.mrb[0].mxu0
        %626 = vmatprep.mubr.bf16.mxu0 0
        %627 = vmatmul.mubr.bf16.gmra.mrb[0].mxu0 %v505
        %v628 = vpop.f32.mrb[0].mxu0
        %v629 = vadd.f32 0.0, %v628
        %v630 = vpop.f32.mrb[0].mxu0
        %v631 = vpop.f32.mrb[0].mxu0
        %v632 = vadd.f32 0.0, %v631
        %v633 = vpop.f32.mrb[0].mxu0
        %634 = vmatprep.mubr.bf16.mxu0 0
        %635 = vmatmul.mubr.bf16.gmra.mrb[0].mxu0 %v508
        %v636 = vpop.f32.mrb[0].mxu0
        %v637 = vadd.f32 0.0, %v636
        %v638 = vpop.f32.mrb[0].mxu0
        %v639 = vpop.f32.mrb[0].mxu0
        %v640 = vadd.f32 0.0, %v639
        %v641 = vpop.f32.mrb[0].mxu0
        %642 = vmatprep.mubr.bf16.mxu0 0
        %643 = vmatmul.mubr.bf16.gmra.mrb[0].mxu0 %v511
        %v644 = vpop.f32.mrb[0].mxu0
        %v645 = vadd.f32 0.0, %v644
        %v646 = vpop.f32.mrb[0].mxu0
        %v647 = vpop.f32.mrb[0].mxu0
        %v648 = vadd.f32 0.0, %v647
        %v649 = vpop.f32.mrb[0].mxu0
        %650 = vmatprep.mubr.bf16.mxu0 0
        %651 = vmatmul.mubr.bf16.gmra.mrb[0].mxu0 %v514
        %v652 = vpop.f32.mrb[0].mxu0
        %v653 = vadd.f32 0.0, %v652
        %v654 = vpop.f32.mrb[0].mxu0
        %v655 = vpop.f32.mrb[0].mxu0
        %v656 = vadd.f32 0.0, %v655
        %v657 = vpop.f32.mrb[0].mxu0
        %658 = vmatprep.mubr.bf16.mxu0 0
        %659 = vmatmul.mubr.bf16.gmra.mrb[0].mxu0 %v517
        %v660 = vpop.f32.mrb[0].mxu0
        %v661 = vadd.f32 0.0, %v660
        %v662 = vpop.f32.mrb[0].mxu0
        %v663 = vpop.f32.mrb[0].mxu0
        %v664 = vadd.f32 0.0, %v663
        %v665 = vpop.f32.mrb[0].mxu0
        %666 = vmatprep.mubr.bf16.mxu0 0
        %667 = vmatmul.mubr.bf16.gmra.mrb[0].mxu0 %v520
        %v668 = vpop.f32.mrb[0].mxu0
        %v669 = vadd.f32 0.0, %v668
        %v670 = vpop.f32.mrb[0].mxu0
        %v671 = vpop.f32.mrb[0].mxu0
        %v672 = vadd.f32 0.0, %v671
        %v673 = vpop.f32.mrb[0].mxu0
        %674 = vmatprep.mubr.bf16.mxu0 0
        %675 = vmatmul.mubr.bf16.gmra.mrb[0].mxu0 %v523
        %v676 = vpop.f32.mrb[0].mxu0
        %v677 = vadd.f32 0.0, %v676
        %v678 = vpop.f32.mrb[0].mxu0
        %v679 = vpop.f32.mrb[0].mxu0
        %v680 = vadd.f32 0.0, %v679
        %v681 = vpop.f32.mrb[0].mxu0
        %682 = vmatprep.mubr.bf16.mxu0 0
        %683 = vmatmul.mubr.bf16.gmra.mrb[0].mxu0 %v526
        %v684 = vpop.f32.mrb[0].mxu0
        %v685 = vadd.f32 0.0, %v684
        %v686 = vpop.f32.mrb[0].mxu0
        %v687 = vpop.f32.mrb[0].mxu0
        %v688 = vadd.f32 0.0, %v687
        %v689 = vpop.f32.mrb[0].mxu0
        %690 = vmatprep.mubr.bf16.mxu0 0
        %691 = vmatmul.mubr.bf16.gmra.mrb[0].mxu0 %v529
        %v692 = vpop.f32.mrb[0].mxu0
        %v693 = vadd.f32 0.0, %v692
        %v694 = vpop.f32.mrb[0].mxu0
        %v695 = vpop.f32.mrb[0].mxu0
        %v696 = vadd.f32 0.0, %v695
        %v697 = vpop.f32.mrb[0].mxu0
        %698 = vmatprep.mubr.bf16.mxu0 0
        %699 = vmatmul.mubr.bf16.gmra.mrb[0].mxu0 %v532
        %v700 = vpop.f32.mrb[0].mxu0
        %v701 = vadd.f32 0.0, %v700
        %v702 = vpop.f32.mrb[0].mxu0
        %v703 = vpop.f32.mrb[0].mxu0
        %v704 = vadd.f32 0.0, %v703
        %v705 = vpop.f32.mrb[0].mxu0
        %706 = vdwg.mxu0
        %v709 = vunpack.c.l.b16 %v251
        %v710 = vunpack.c.l.b16 %v252
        %v711 = vpack.c.b16 %v710, %v709
        %v712 = vsel %vm482, %v324, 0
        %v714 = vsel %vm482, %v325, 0
        %v716 = vsel %vm482, %v326, 0
        %v718 = vsel %vm482, %v327, 0
        %v720 = vsel %vm482, %v328, 0
        %v722 = vsel %vm482, %v329, 0
        %v724 = vsel %vm482, %v330, 0
        %v726 = vsel %vm482, %v331, 0
        %v728 = vsel %vm482, %v332, 0
        %v730 = vsel %vm482, %v333, 0
        %v732 = vsel %vm482, %v334, 0
        %v734 = vsel %vm482, %v335, 0
        %v736 = vsel %vm482, %v336, 0
        %v738 = vsel %vm482, %v337, 0
        %v740 = vsel %vm482, %v338, 0
        %v742 = vsel %vm482, %v339, 0
        %v744 = vsel %vm482, %v340, 0
        %v747 = vsel %vm534, %v711, 0
        %749 = vmatprep.subr.bf16.mxu0 0
        %750 = vmatpush1.bf16.msra.mxu0 %v747
        %751 = vmatprep.subr.bf16.mxu0 0
        %752 = vmatpush1.bf16.msra.mxu0 0
        %753 = vmatprep.subr.bf16.mxu0 0
        %754 = vmatpush1.bf16.msra.mxu0 0
        %755 = vmatprep.subr.bf16.mxu0 0
        %756 = vmatpush1.bf16.msra.mxu0 0
        %757 = vmatprep.subr.bf16.mxu0 0
        %758 = vmatpush1.bf16.msra.mxu0 0
        %759 = vmatprep.subr.bf16.mxu0 0
        %760 = vmatpush1.bf16.msra.mxu0 0
        %761 = vmatprep.subr.bf16.mxu0 0
        %762 = vmatpush1.bf16.msra.mxu0 0
        %763 = vmatprep.subr.bf16.mxu0 0
        %764 = vmatpush1.bf16.msra.mxu0 0
        %765 = vmatprep.subr.bf16.mxu0 0
        %766 = vmatpush1.bf16.msra.mxu0 0
        %767 = vmatprep.subr.bf16.mxu0 0
        %768 = vmatpush1.bf16.msra.mxu0 0
        %769 = vmatprep.subr.bf16.mxu0 0
        %770 = vmatpush1.bf16.msra.mxu0 0
        %771 = vmatprep.subr.bf16.mxu0 0
        %772 = vmatpush1.bf16.msra.mxu0 0
        %773 = vmatprep.subr.bf16.mxu0 0
        %774 = vmatpush1.bf16.msra.mxu0 0
        %775 = vmatprep.subr.bf16.mxu0 0
        %776 = vmatpush1.bf16.msra.mxu0 0
        %777 = vmatprep.subr.bf16.mxu0 0
        %778 = vmatpush1.bf16.msra.mxu0 0
        %779 = vmatprep.subr.bf16.mxu0 0
        %780 = vmatpush1.bf16.msra.mxu0 0
        %781 = vmatprep.mubr.bf16.mxu0 0
        %782 = vmatmul.mubr.bf16.gmra.mrb[0].mxu0 %v712
        %v783 = vpop.f32.mrb[0].mxu0
        %v784 = vadd.f32 %v573, %v783
        %v785 = vpop.f32.mrb[0].mxu0
        %v786 = vpop.f32.mrb[0].mxu0
        %v787 = vadd.f32 %v576, %v786
        %v788 = vpop.f32.mrb[0].mxu0
        %789 = vmatprep.mubr.bf16.mxu0 0
        %790 = vmatmul.mubr.bf16.gmra.mrb[0].mxu0 %v714
        %v791 = vpop.f32.mrb[0].mxu0
        %v792 = vadd.f32 %v581, %v791
        %v793 = vpop.f32.mrb[0].mxu0
        %v794 = vpop.f32.mrb[0].mxu0
        %v795 = vadd.f32 %v584, %v794
        %v796 = vpop.f32.mrb[0].mxu0
        %797 = vmatprep.mubr.bf16.mxu0 0
        %798 = vmatmul.mubr.bf16.gmra.mrb[0].mxu0 %v716
        %v799 = vpop.f32.mrb[0].mxu0
        %v800 = vadd.f32 %v589, %v799
        %v801 = vpop.f32.mrb[0].mxu0
        %v802 = vpop.f32.mrb[0].mxu0
        %v803 = vadd.f32 %v592, %v802
        %v804 = vpop.f32.mrb[0].mxu0
        %805 = vmatprep.mubr.bf16.mxu0 0
        %806 = vmatmul.mubr.bf16.gmra.mrb[0].mxu0 %v718
        %v807 = vpop.f32.mrb[0].mxu0
        %v808 = vadd.f32 %v597, %v807
        %v809 = vpop.f32.mrb[0].mxu0
        %v810 = vpop.f32.mrb[0].mxu0
        %v811 = vadd.f32 %v600, %v810
        %v812 = vpop.f32.mrb[0].mxu0
        %813 = vmatprep.mubr.bf16.mxu0 0
        %814 = vmatmul.mubr.bf16.gmra.mrb[0].mxu0 %v720
        %v815 = vpop.f32.mrb[0].mxu0
        %v816 = vadd.f32 %v605, %v815
        %v817 = vpop.f32.mrb[0].mxu0
        %v818 = vpop.f32.mrb[0].mxu0
        %v819 = vadd.f32 %v608, %v818
        %v820 = vpop.f32.mrb[0].mxu0
        %821 = vmatprep.mubr.bf16.mxu0 0
        %822 = vmatmul.mubr.bf16.gmra.mrb[0].mxu0 %v722
        %v823 = vpop.f32.mrb[0].mxu0
        %v824 = vadd.f32 %v613, %v823
        %v825 = vpop.f32.mrb[0].mxu0
        %v826 = vpop.f32.mrb[0].mxu0
        %v827 = vadd.f32 %v616, %v826
        %v828 = vpop.f32.mrb[0].mxu0
        %829 = vmatprep.mubr.bf16.mxu0 0
        %830 = vmatmul.mubr.bf16.gmra.mrb[0].mxu0 %v724
        %v831 = vpop.f32.mrb[0].mxu0
        %v832 = vadd.f32 %v621, %v831
        %v833 = vpop.f32.mrb[0].mxu0
        %v834 = vpop.f32.mrb[0].mxu0
        %v835 = vadd.f32 %v624, %v834
        %v836 = vpop.f32.mrb[0].mxu0
        %837 = vmatprep.mubr.bf16.mxu0 0
        %838 = vmatmul.mubr.bf16.gmra.mrb[0].mxu0 %v726
        %v839 = vpop.f32.mrb[0].mxu0
        %v840 = vadd.f32 %v629, %v839
        %v841 = vpop.f32.mrb[0].mxu0
        %v842 = vpop.f32.mrb[0].mxu0
        %v843 = vadd.f32 %v632, %v842
        %v844 = vpop.f32.mrb[0].mxu0
        %845 = vmatprep.mubr.bf16.mxu0 0
        %846 = vmatmul.mubr.bf16.gmra.mrb[0].mxu0 %v728
        %v847 = vpop.f32.mrb[0].mxu0
        %v848 = vadd.f32 %v637, %v847
        %v849 = vpop.f32.mrb[0].mxu0
        %v850 = vpop.f32.mrb[0].mxu0
        %v851 = vadd.f32 %v640, %v850
        %v852 = vpop.f32.mrb[0].mxu0
        %853 = vmatprep.mubr.bf16.mxu0 0
        %854 = vmatmul.mubr.bf16.gmra.mrb[0].mxu0 %v730
        %v855 = vpop.f32.mrb[0].mxu0
        %v856 = vadd.f32 %v645, %v855
        %v857 = vpop.f32.mrb[0].mxu0
        %v858 = vpop.f32.mrb[0].mxu0
        %v859 = vadd.f32 %v648, %v858
        %v860 = vpop.f32.mrb[0].mxu0
        %861 = vmatprep.mubr.bf16.mxu0 0
        %862 = vmatmul.mubr.bf16.gmra.mrb[0].mxu0 %v732
        %v863 = vpop.f32.mrb[0].mxu0
        %v864 = vadd.f32 %v653, %v863
        %v865 = vpop.f32.mrb[0].mxu0
        %v866 = vpop.f32.mrb[0].mxu0
        %v867 = vadd.f32 %v656, %v866
        %v868 = vpop.f32.mrb[0].mxu0
        %869 = vmatprep.mubr.bf16.mxu0 0
        %870 = vmatmul.mubr.bf16.gmra.mrb[0].mxu0 %v734
        %v871 = vpop.f32.mrb[0].mxu0
        %v872 = vadd.f32 %v661, %v871
        %v873 = vpop.f32.mrb[0].mxu0
        %v874 = vpop.f32.mrb[0].mxu0
        %v875 = vadd.f32 %v664, %v874
        %v876 = vpop.f32.mrb[0].mxu0
        %877 = vmatprep.mubr.bf16.mxu0 0
        %878 = vmatmul.mubr.bf16.gmra.mrb[0].mxu0 %v736
        %v879 = vpop.f32.mrb[0].mxu0
        %v880 = vadd.f32 %v669, %v879
        %v881 = vpop.f32.mrb[0].mxu0
        %v882 = vpop.f32.mrb[0].mxu0
        %v883 = vadd.f32 %v672, %v882
        %v884 = vpop.f32.mrb[0].mxu0
        %885 = vmatprep.mubr.bf16.mxu0 0
        %886 = vmatmul.mubr.bf16.gmra.mrb[0].mxu0 %v738
        %v887 = vpop.f32.mrb[0].mxu0
        %v888 = vadd.f32 %v677, %v887
        %v889 = vpop.f32.mrb[0].mxu0
        %v890 = vpop.f32.mrb[0].mxu0
        %v891 = vadd.f32 %v680, %v890
        %v892 = vpop.f32.mrb[0].mxu0
        %893 = vmatprep.mubr.bf16.mxu0 0
        %894 = vmatmul.mubr.bf16.gmra.mrb[0].mxu0 %v740
        %v895 = vpop.f32.mrb[0].mxu0
        %v896 = vadd.f32 %v685, %v895
        %v897 = vpop.f32.mrb[0].mxu0
        %v898 = vpop.f32.mrb[0].mxu0
        %v899 = vadd.f32 %v688, %v898
        %v900 = vpop.f32.mrb[0].mxu0
        %901 = vmatprep.mubr.bf16.mxu0 0
        %902 = vmatmul.mubr.bf16.gmra.mrb[0].mxu0 %v742
        %v903 = vpop.f32.mrb[0].mxu0
        %v904 = vadd.f32 %v693, %v903
        %v905 = vpop.f32.mrb[0].mxu0
        %v906 = vpop.f32.mrb[0].mxu0
        %v907 = vadd.f32 %v696, %v906
        %v908 = vpop.f32.mrb[0].mxu0
        %909 = vmatprep.mubr.bf16.mxu0 0
        %910 = vmatmul.mubr.bf16.gmra.mrb[0].mxu0 %v744
        %v911 = vpop.f32.mrb[0].mxu0
        %v912 = vadd.f32 %v701, %v911
        %v913 = vpop.f32.mrb[0].mxu0
        %v914 = vpop.f32.mrb[0].mxu0
        %v915 = vadd.f32 %v704, %v914
        %v916 = vpop.f32.mrb[0].mxu0
        %917 = vdwg.mxu0
        %v918 = vld [vmem:[%s185 + $0x8] sm:$0xf]
        %v919 = vld [vmem:[%s185 + $0xc] sm:$0xf]
        %v920 = vld [vmem:[%s185 + $0x10] sm:$0xf]
        %v921 = vld [vmem:[%s185 + $0x14] sm:$0xf]
        %v922 = vld [vmem:[%s185 + $0x18] sm:$0xf]
        %v923 = vld [vmem:[%s185 + $0x1c] sm:$0xf]
        %v924 = vld [vmem:[%s185 + $0x20] sm:$0xf]
        %v925 = vld [vmem:[%s185 + $0x24] sm:$0xf]
        %v926 = vld [vmem:[%s185 + $0x28] sm:$0xf]
        %v927 = vld [vmem:[%s185 + $0x2c] sm:$0xf]
        %v928 = vld [vmem:[%s185 + $0x30] sm:$0xf]
        %v929 = vld [vmem:[%s185 + $0x34] sm:$0xf]
        %v930 = vld [vmem:[%s185 + $0x38] sm:$0xf]
        %v931 = vld [vmem:[%s185 + $0x3c] sm:$0xf]
        %v932 = vld [vmem:[%s185 + $0x40] sm:$0xf]
        %v933 = vld [vmem:[%s185 + $0x44] sm:$0xf]
        %v934 = vld [vmem:[%s185 + $0x48] sm:$0xf]
        %v935 = vld [vmem:[%s185 + $0x4c] sm:$0xf]
        %v936 = vld [vmem:[%s185 + $0x50] sm:$0xf]
        %v937 = vld [vmem:[%s185 + $0x54] sm:$0xf]
        %v938 = vld [vmem:[%s185 + $0x58] sm:$0xf]
        %v939 = vld [vmem:[%s185 + $0x5c] sm:$0xf]
        %v940 = vld [vmem:[%s185 + $0x60] sm:$0xf]
        %v941 = vld [vmem:[%s185 + $0x64] sm:$0xf]
        %v942 = vld [vmem:[%s185 + $0x68] sm:$0xf]
        %v943 = vld [vmem:[%s185 + $0x6c] sm:$0xf]
        %v944 = vld [vmem:[%s185 + $0x70] sm:$0xf]
        %v945 = vld [vmem:[%s185 + $0x74] sm:$0xf]
        %v946 = vld [vmem:[%s185 + $0x78] sm:$0xf]
        %v947 = vld [vmem:[%s185 + $0x7c] sm:$0xf]
        %v948 = vld [vmem:[%s185 + $0x80] sm:$0xf]
        %v949 = vld [vmem:[%s185 + $0x84] sm:$0xf]
        %v950 = vld [vmem:[%s185 + $0x88] sm:$0xf]
        %v951 = vld [vmem:[%s185 + $0x8c] sm:$0xf]
        %s952 = scalar_lea.vmem [#allocation5], 16
        %v953 = vld [vmem:[%s952] sm:$0xf]
        %v954 = vld [vmem:[%s952 + $0x4] sm:$0x3]
        %v989 = vunpack.c.l.b16 %v918
        %v990 = vunpack.c.l.b16 %v919
        %v991 = vunpack.c.l.b16 %v920
        %v992 = vunpack.c.l.b16 %v921
        %v993 = vunpack.c.l.b16 %v922
        %v994 = vunpack.c.l.b16 %v923
        %v995 = vunpack.c.l.b16 %v924
        %v996 = vunpack.c.l.b16 %v925
        %v997 = vunpack.c.l.b16 %v926
        %v998 = vunpack.c.l.b16 %v927
        %v999 = vunpack.c.l.b16 %v928
        %v1000 = vunpack.c.l.b16 %v929
        %v1001 = vunpack.c.l.b16 %v930
        %v1002 = vunpack.c.l.b16 %v931
        %v1003 = vunpack.c.l.b16 %v932
        %v1004 = vunpack.c.l.b16 %v933
        %v1005 = vunpack.c.l.b16 %v934
        %v1006 = vunpack.c.l.b16 %v935
        %v1007 = vunpack.c.l.b16 %v936
        %v1008 = vunpack.c.l.b16 %v937
        %v1009 = vunpack.c.l.b16 %v938
        %v1010 = vunpack.c.l.b16 %v939
        %v1011 = vunpack.c.l.b16 %v940
        %v1012 = vunpack.c.l.b16 %v941
        %v1013 = vunpack.c.l.b16 %v942
        %v1014 = vunpack.c.l.b16 %v943
        %v1015 = vunpack.c.l.b16 %v944
        %v1016 = vunpack.c.l.b16 %v945
        %v1017 = vunpack.c.l.b16 %v946
        %v1018 = vunpack.c.l.b16 %v947
        %v1019 = vunpack.c.l.b16 %v948
        %v1020 = vunpack.c.l.b16 %v949
        %v1021 = vunpack.c.l.b16 %v950
        %v1022 = vunpack.c.l.b16 %v951
        %v1023 = vpack.c.b16 %v990, %v989
        %v1024 = vpack.c.b16 %v992, %v991
        %v1025 = vpack.c.b16 %v994, %v993
        %v1026 = vpack.c.b16 %v996, %v995
        %v1027 = vpack.c.b16 %v998, %v997
        %v1028 = vpack.c.b16 %v1000, %v999
        %v1029 = vpack.c.b16 %v1002, %v1001
        %v1030 = vpack.c.b16 %v1004, %v1003
        %v1031 = vpack.c.b16 %v1006, %v1005
        %v1032 = vpack.c.b16 %v1008, %v1007
        %v1033 = vpack.c.b16 %v1010, %v1009
        %v1034 = vpack.c.b16 %v1012, %v1011
        %v1035 = vpack.c.b16 %v1014, %v1013
        %v1036 = vpack.c.b16 %v1016, %v1015
        %v1037 = vpack.c.b16 %v1018, %v1017
        %v1038 = vpack.c.b16 %v1020, %v1019
        %v1039 = vpack.c.b16 %v1022, %v1021
        %v1041 = vshrl.u32 %v1023, 16
        %v1043 = vshll.u32 %v1023, 16
        %v1045 = vrot.slane %v1043, 1
        %v1046 = vor.u32 %v1041, %v1045
        %v1048 = vshll.u32 %v1024, 16
        %v1050 = vrot.slane %v1048, 1
        %v1051 = vsel %vm341, %v1046, %v1050
        %v1052 = vshrl.u32 %v1024, 16
        %v1054 = vor.u32 %v1052, %v1050
        %v1056 = vshll.u32 %v1025, 16
        %v1058 = vrot.slane %v1056, 1
        %v1059 = vsel %vm341, %v1054, %v1058
        %v1060 = vshrl.u32 %v1025, 16
        %v1062 = vor.u32 %v1060, %v1058
        %v1064 = vshll.u32 %v1026, 16
        %v1066 = vrot.slane %v1064, 1
        %v1067 = vsel %vm341, %v1062, %v1066
        %v1068 = vshrl.u32 %v1026, 16
        %v1070 = vor.u32 %v1068, %v1066
        %v1072 = vshll.u32 %v1027, 16
        %v1074 = vrot.slane %v1072, 1
        %v1075 = vsel %vm341, %v1070, %v1074
        %v1076 = vshrl.u32 %v1027, 16
        %v1078 = vor.u32 %v1076, %v1074
        %v1080 = vshll.u32 %v1028, 16
        %v1082 = vrot.slane %v1080, 1
        %v1083 = vsel %vm341, %v1078, %v1082
        %v1084 = vshrl.u32 %v1028, 16
        %v1086 = vor.u32 %v1084, %v1082
        %v1088 = vshll.u32 %v1029, 16
        %v1090 = vrot.slane %v1088, 1
        %v1091 = vsel %vm341, %v1086, %v1090
        %v1092 = vshrl.u32 %v1029, 16
        %v1094 = vor.u32 %v1092, %v1090
        %v1096 = vshll.u32 %v1030, 16
        %v1098 = vrot.slane %v1096, 1
        %v1099 = vsel %vm341, %v1094, %v1098
        %v1100 = vshrl.u32 %v1030, 16
        %v1102 = vor.u32 %v1100, %v1098
        %v1104 = vshll.u32 %v1031, 16
        %v1106 = vrot.slane %v1104, 1
        %v1107 = vsel %vm341, %v1102, %v1106
        %v1108 = vshrl.u32 %v1031, 16
        %v1110 = vor.u32 %v1108, %v1106
        %v1112 = vshll.u32 %v1032, 16
        %v1114 = vrot.slane %v1112, 1
        %v1115 = vsel %vm341, %v1110, %v1114
        %v1116 = vshrl.u32 %v1032, 16
        %v1118 = vor.u32 %v1116, %v1114
        %v1120 = vshll.u32 %v1033, 16
        %v1122 = vrot.slane %v1120, 1
        %v1123 = vsel %vm341, %v1118, %v1122
        %v1124 = vshrl.u32 %v1033, 16
        %v1126 = vor.u32 %v1124, %v1122
        %v1128 = vshll.u32 %v1034, 16
        %v1130 = vrot.slane %v1128, 1
        %v1131 = vsel %vm341, %v1126, %v1130
        %v1132 = vshrl.u32 %v1034, 16
        %v1134 = vor.u32 %v1132, %v1130
        %v1136 = vshll.u32 %v1035, 16
        %v1138 = vrot.slane %v1136, 1
        %v1139 = vsel %vm341, %v1134, %v1138
        %v1140 = vshrl.u32 %v1035, 16
        %v1142 = vor.u32 %v1140, %v1138
        %v1144 = vshll.u32 %v1036, 16
        %v1146 = vrot.slane %v1144, 1
        %v1147 = vsel %vm341, %v1142, %v1146
        %v1148 = vshrl.u32 %v1036, 16
        %v1150 = vor.u32 %v1148, %v1146
        %v1152 = vshll.u32 %v1037, 16
        %v1154 = vrot.slane %v1152, 1
        %v1155 = vsel %vm341, %v1150, %v1154
        %v1156 = vshrl.u32 %v1037, 16
        %v1158 = vor.u32 %v1156, %v1154
        %v1160 = vshll.u32 %v1038, 16
        %v1162 = vrot.slane %v1160, 1
        %v1163 = vsel %vm341, %v1158, %v1162
        %v1164 = vshrl.u32 %v1038, 16
        %v1166 = vor.u32 %v1164, %v1162
        %v1168 = vshll.u32 %v1039, 16
        %v1170 = vrot.slane %v1168, 1
        %v1171 = vsel %vm341, %v1166, %v1170
        %v1172 = vshrl.u32 %v1039, 16
        %v1174 = vor.u32 %v1172, %v1170
        %v1177 = vunpack.c.l.b16 %v953
        %v1178 = vunpack.c.l.b16 %v954
        %v1179 = vpack.c.b16 %v1178, %v1177
        %v1181 = vsel %vm482, %v1051, 0
        %v1184 = vsel %vm482, %v1059, 0
        %v1187 = vsel %vm482, %v1067, 0
        %v1190 = vsel %vm482, %v1075, 0
        %v1193 = vsel %vm482, %v1083, 0
        %v1196 = vsel %vm482, %v1091, 0
        %v1199 = vsel %vm482, %v1099, 0
        %v1202 = vsel %vm482, %v1107, 0
        %v1205 = vsel %vm482, %v1115, 0
        %v1208 = vsel %vm482, %v1123, 0
        %v1211 = vsel %vm482, %v1131, 0
        %v1214 = vsel %vm482, %v1139, 0
        %v1217 = vsel %vm482, %v1147, 0
        %v1220 = vsel %vm482, %v1155, 0
        %v1223 = vsel %vm482, %v1163, 0
        %v1226 = vsel %vm482, %v1171, 0
        %v1229 = vsel %vm482, %v1174, 0
        %v1232 = vsel %vm534, %v1179, 0
        %1234 = vmatprep.subr.bf16.mxu0 0
        %1235 = vmatpush1.bf16.msra.mxu0 %v1232
        %1236 = vmatprep.subr.bf16.mxu0 0
        %1237 = vmatpush1.bf16.msra.mxu0 0
        %1238 = vmatprep.subr.bf16.mxu0 0
        %1239 = vmatpush1.bf16.msra.mxu0 0
        %1240 = vmatprep.subr.bf16.mxu0 0
        %1241 = vmatpush1.bf16.msra.mxu0 0
        %1242 = vmatprep.subr.bf16.mxu0 0
        %1243 = vmatpush1.bf16.msra.mxu0 0
        %1244 = vmatprep.subr.bf16.mxu0 0
        %1245 = vmatpush1.bf16.msra.mxu0 0
        %1246 = vmatprep.subr.bf16.mxu0 0
        %1247 = vmatpush1.bf16.msra.mxu0 0
        %1248 = vmatprep.subr.bf16.mxu0 0
        %1249 = vmatpush1.bf16.msra.mxu0 0
        %1250 = vmatprep.subr.bf16.mxu0 0
        %1251 = vmatpush1.bf16.msra.mxu0 0
        %1252 = vmatprep.subr.bf16.mxu0 0
        %1253 = vmatpush1.bf16.msra.mxu0 0
        %1254 = vmatprep.subr.bf16.mxu0 0
        %1255 = vmatpush1.bf16.msra.mxu0 0
        %1256 = vmatprep.subr.bf16.mxu0 0
        %1257 = vmatpush1.bf16.msra.mxu0 0
        %1258 = vmatprep.subr.bf16.mxu0 0
        %1259 = vmatpush1.bf16.msra.mxu0 0
        %1260 = vmatprep.subr.bf16.mxu0 0
        %1261 = vmatpush1.bf16.msra.mxu0 0
        %1262 = vmatprep.subr.bf16.mxu0 0
        %1263 = vmatpush1.bf16.msra.mxu0 0
        %1264 = vmatprep.subr.bf16.mxu0 0
        %1265 = vmatpush1.bf16.msra.mxu0 0
        %1266 = vmatprep.mubr.bf16.mxu0 0
        %1267 = vmatmul.mubr.bf16.gmra.mrb[0].mxu0 %v1181
        %v1268 = vpop.f32.mrb[0].mxu0
        %v1269 = vadd.f32 0.0, %v1268
        %v1270 = vpop.f32.mrb[0].mxu0
        %v1271 = vpop.f32.mrb[0].mxu0
        %v1272 = vadd.f32 0.0, %v1271
        %v1273 = vpop.f32.mrb[0].mxu0
        %1274 = vmatprep.mubr.bf16.mxu0 0
        %1275 = vmatmul.mubr.bf16.gmra.mrb[0].mxu0 %v1184
        %v1276 = vpop.f32.mrb[0].mxu0
        %v1277 = vadd.f32 0.0, %v1276
        %v1278 = vpop.f32.mrb[0].mxu0
        %v1279 = vpop.f32.mrb[0].mxu0
        %v1280 = vadd.f32 0.0, %v1279
        %v1281 = vpop.f32.mrb[0].mxu0
        %1282 = vmatprep.mubr.bf16.mxu0 0
        %1283 = vmatmul.mubr.bf16.gmra.mrb[0].mxu0 %v1187
        %v1284 = vpop.f32.mrb[0].mxu0
        %v1285 = vadd.f32 0.0, %v1284
        %v1286 = vpop.f32.mrb[0].mxu0
        %v1287 = vpop.f32.mrb[0].mxu0
        %v1288 = vadd.f32 0.0, %v1287
        %v1289 = vpop.f32.mrb[0].mxu0
        %1290 = vmatprep.mubr.bf16.mxu0 0
        %1291 = vmatmul.mubr.bf16.gmra.mrb[0].mxu0 %v1190
        %v1292 = vpop.f32.mrb[0].mxu0
        %v1293 = vadd.f32 0.0, %v1292
        %v1294 = vpop.f32.mrb[0].mxu0
        %v1295 = vpop.f32.mrb[0].mxu0
        %v1296 = vadd.f32 0.0, %v1295
        %v1297 = vpop.f32.mrb[0].mxu0
        %1298 = vmatprep.mubr.bf16.mxu0 0
        %1299 = vmatmul.mubr.bf16.gmra.mrb[0].mxu0 %v1193
        %v1300 = vpop.f32.mrb[0].mxu0
        %v1301 = vadd.f32 0.0, %v1300
        %v1302 = vpop.f32.mrb[0].mxu0
        %v1303 = vpop.f32.mrb[0].mxu0
        %v1304 = vadd.f32 0.0, %v1303
        %v1305 = vpop.f32.mrb[0].mxu0
        %1306 = vmatprep.mubr.bf16.mxu0 0
        %1307 = vmatmul.mubr.bf16.gmra.mrb[0].mxu0 %v1196
        %v1308 = vpop.f32.mrb[0].mxu0
        %v1309 = vadd.f32 0.0, %v1308
        %v1310 = vpop.f32.mrb[0].mxu0
        %v1311 = vpop.f32.mrb[0].mxu0
        %v1312 = vadd.f32 0.0, %v1311
        %v1313 = vpop.f32.mrb[0].mxu0
        %1314 = vmatprep.mubr.bf16.mxu0 0
        %1315 = vmatmul.mubr.bf16.gmra.mrb[0].mxu0 %v1199
        %v1316 = vpop.f32.mrb[0].mxu0
        %v1317 = vadd.f32 0.0, %v1316
        %v1318 = vpop.f32.mrb[0].mxu0
        %v1319 = vpop.f32.mrb[0].mxu0
        %v1320 = vadd.f32 0.0, %v1319
        %v1321 = vpop.f32.mrb[0].mxu0
        %1322 = vmatprep.mubr.bf16.mxu0 0
        %1323 = vmatmul.mubr.bf16.gmra.mrb[0].mxu0 %v1202
        %v1324 = vpop.f32.mrb[0].mxu0
        %v1325 = vadd.f32 0.0, %v1324
        %v1326 = vpop.f32.mrb[0].mxu0
        %v1327 = vpop.f32.mrb[0].mxu0
        %v1328 = vadd.f32 0.0, %v1327
        %v1329 = vpop.f32.mrb[0].mxu0
        %1330 = vmatprep.mubr.bf16.mxu0 0
        %1331 = vmatmul.mubr.bf16.gmra.mrb[0].mxu0 %v1205
        %v1332 = vpop.f32.mrb[0].mxu0
        %v1333 = vadd.f32 0.0, %v1332
        %v1334 = vpop.f32.mrb[0].mxu0
        %v1335 = vpop.f32.mrb[0].mxu0
        %v1336 = vadd.f32 0.0, %v1335
        %v1337 = vpop.f32.mrb[0].mxu0
        %1338 = vmatprep.mubr.bf16.mxu0 0
        %1339 = vmatmul.mubr.bf16.gmra.mrb[0].mxu0 %v1208
        %v1340 = vpop.f32.mrb[0].mxu0
        %v1341 = vadd.f32 0.0, %v1340
        %v1342 = vpop.f32.mrb[0].mxu0
        %v1343 = vpop.f32.mrb[0].mxu0
        %v1344 = vadd.f32 0.0, %v1343
        %v1345 = vpop.f32.mrb[0].mxu0
        %1346 = vmatprep.mubr.bf16.mxu0 0
        %1347 = vmatmul.mubr.bf16.gmra.mrb[0].mxu0 %v1211
        %v1348 = vpop.f32.mrb[0].mxu0
        %v1349 = vadd.f32 0.0, %v1348
        %v1350 = vpop.f32.mrb[0].mxu0
        %v1351 = vpop.f32.mrb[0].mxu0
        %v1352 = vadd.f32 0.0, %v1351
        %v1353 = vpop.f32.mrb[0].mxu0
        %1354 = vmatprep.mubr.bf16.mxu0 0
        %1355 = vmatmul.mubr.bf16.gmra.mrb[0].mxu0 %v1214
        %v1356 = vpop.f32.mrb[0].mxu0
        %v1357 = vadd.f32 0.0, %v1356
        %v1358 = vpop.f32.mrb[0].mxu0
        %v1359 = vpop.f32.mrb[0].mxu0
        %v1360 = vadd.f32 0.0, %v1359
        %v1361 = vpop.f32.mrb[0].mxu0
        %1362 = vmatprep.mubr.bf16.mxu0 0
        %1363 = vmatmul.mubr.bf16.gmra.mrb[0].mxu0 %v1217
        %v1364 = vpop.f32.mrb[0].mxu0
        %v1365 = vadd.f32 0.0, %v1364
        %v1366 = vpop.f32.mrb[0].mxu0
        %v1367 = vpop.f32.mrb[0].mxu0
        %v1368 = vadd.f32 0.0, %v1367
        %v1369 = vpop.f32.mrb[0].mxu0
        %1370 = vmatprep.mubr.bf16.mxu0 0
        %1371 = vmatmul.mubr.bf16.gmra.mrb[0].mxu0 %v1220
        %v1372 = vpop.f32.mrb[0].mxu0
        %v1373 = vadd.f32 0.0, %v1372
        %v1374 = vpop.f32.mrb[0].mxu0
        %v1375 = vpop.f32.mrb[0].mxu0
        %v1376 = vadd.f32 0.0, %v1375
        %v1377 = vpop.f32.mrb[0].mxu0
        %1378 = vmatprep.mubr.bf16.mxu0 0
        %1379 = vmatmul.mubr.bf16.gmra.mrb[0].mxu0 %v1223
        %v1380 = vpop.f32.mrb[0].mxu0
        %v1381 = vadd.f32 0.0, %v1380
        %v1382 = vpop.f32.mrb[0].mxu0
        %v1383 = vpop.f32.mrb[0].mxu0
        %v1384 = vadd.f32 0.0, %v1383
        %v1385 = vpop.f32.mrb[0].mxu0
        %1386 = vmatprep.mubr.bf16.mxu0 0
        %1387 = vmatmul.mubr.bf16.gmra.mrb[0].mxu0 %v1226
        %v1388 = vpop.f32.mrb[0].mxu0
        %v1389 = vadd.f32 0.0, %v1388
        %v1390 = vpop.f32.mrb[0].mxu0
        %v1391 = vpop.f32.mrb[0].mxu0
        %v1392 = vadd.f32 0.0, %v1391
        %v1393 = vpop.f32.mrb[0].mxu0
        %1394 = vmatprep.mubr.bf16.mxu0 0
        %1395 = vmatmul.mubr.bf16.gmra.mrb[0].mxu0 %v1229
        %v1396 = vpop.f32.mrb[0].mxu0
        %v1397 = vadd.f32 0.0, %v1396
        %v1398 = vpop.f32.mrb[0].mxu0
        %v1399 = vpop.f32.mrb[0].mxu0
        %v1400 = vadd.f32 0.0, %v1399
        %v1401 = vpop.f32.mrb[0].mxu0
        %1402 = vdwg.mxu0
        %v1403 = vadd.f32 %v784, %v1269
        %v1404 = vadd.f32 %v787, %v1272
        %v1405 = vadd.f32 %v792, %v1277
        %v1406 = vadd.f32 %v795, %v1280
        %v1407 = vadd.f32 %v800, %v1285
        %v1408 = vadd.f32 %v803, %v1288
        %v1409 = vadd.f32 %v808, %v1293
        %v1410 = vadd.f32 %v811, %v1296
        %v1411 = vadd.f32 %v816, %v1301
        %v1412 = vadd.f32 %v819, %v1304
        %v1413 = vadd.f32 %v824, %v1309
        %v1414 = vadd.f32 %v827, %v1312
        %v1415 = vadd.f32 %v832, %v1317
        %v1416 = vadd.f32 %v835, %v1320
        %v1417 = vadd.f32 %v840, %v1325
        %v1418 = vadd.f32 %v843, %v1328
        %v1419 = vadd.f32 %v848, %v1333
        %v1420 = vadd.f32 %v851, %v1336
        %v1421 = vadd.f32 %v856, %v1341
        %v1422 = vadd.f32 %v859, %v1344
        %v1423 = vadd.f32 %v864, %v1349
        %v1424 = vadd.f32 %v867, %v1352
        %v1425 = vadd.f32 %v872, %v1357
        %v1426 = vadd.f32 %v875, %v1360
        %v1427 = vadd.f32 %v880, %v1365
        %v1428 = vadd.f32 %v883, %v1368
        %v1429 = vadd.f32 %v888, %v1373
        %v1430 = vadd.f32 %v891, %v1376
        %v1431 = vadd.f32 %v896, %v1381
        %v1432 = vadd.f32 %v899, %v1384
        %v1433 = vadd.f32 %v904, %v1389
        %v1434 = vadd.f32 %v907, %v1392
        %v1435 = vadd.f32 %v912, %v1397
        %v1436 = vadd.f32 %v915, %v1400
        %v1437 = vld [vmem:[%s185 + $0x8] sm:$0xe]
        %v1438 = vld [vmem:[%s185 + $0xc] sm:$0xf]
        %v1439 = vld [vmem:[%s185 + $0x10] sm:$0xf]
        %v1440 = vld [vmem:[%s185 + $0x14] sm:$0xf]
        %v1441 = vld [vmem:[%s185 + $0x18] sm:$0xf]
        %v1442 = vld [vmem:[%s185 + $0x1c] sm:$0xf]
        %v1443 = vld [vmem:[%s185 + $0x20] sm:$0xf]
        %v1444 = vld [vmem:[%s185 + $0x24] sm:$0xf]
        %v1445 = vld [vmem:[%s185 + $0x28] sm:$0xf]
        %v1446 = vld [vmem:[%s185 + $0x2c] sm:$0xf]
        %v1447 = vld [vmem:[%s185 + $0x30] sm:$0xf]
        %v1448 = vld [vmem:[%s185 + $0x34] sm:$0xf]
        %v1449 = vld [vmem:[%s185 + $0x38] sm:$0xf]
        %v1450 = vld [vmem:[%s185 + $0x3c] sm:$0xf]
        %v1451 = vld [vmem:[%s185 + $0x40] sm:$0xf]
        %v1452 = vld [vmem:[%s185 + $0x44] sm:$0xf]
        %v1453 = vld [vmem:[%s185 + $0x48] sm:$0xf]
        %v1454 = vld [vmem:[%s185 + $0x4c] sm:$0xf]
        %v1455 = vld [vmem:[%s185 + $0x50] sm:$0xf]
        %v1456 = vld [vmem:[%s185 + $0x54] sm:$0xf]
        %v1457 = vld [vmem:[%s185 + $0x58] sm:$0xf]
        %v1458 = vld [vmem:[%s185 + $0x5c] sm:$0xf]
        %v1459 = vld [vmem:[%s185 + $0x60] sm:$0xf]
        %v1460 = vld [vmem:[%s185 + $0x64] sm:$0xf]
        %v1461 = vld [vmem:[%s185 + $0x68] sm:$0xf]
        %v1462 = vld [vmem:[%s185 + $0x6c] sm:$0xf]
        %v1463 = vld [vmem:[%s185 + $0x70] sm:$0xf]
        %v1464 = vld [vmem:[%s185 + $0x74] sm:$0xf]
        %v1465 = vld [vmem:[%s185 + $0x78] sm:$0xf]
        %v1466 = vld [vmem:[%s185 + $0x7c] sm:$0xf]
        %v1467 = vld [vmem:[%s185 + $0x80] sm:$0xf]
        %v1468 = vld [vmem:[%s185 + $0x84] sm:$0xf]
        %v1469 = vld [vmem:[%s185 + $0x88] sm:$0xf]
        %v1470 = vld [vmem:[%s185 + $0x8c] sm:$0xf]
        %v1471 = vld [vmem:[%s185 + $0x90] sm:$0x1]
        %s1472 = scalar_lea.vmem [#allocation5], 24
        %v1473 = vld [vmem:[%s1472] sm:$0xf]
        %v1474 = vld [vmem:[%s1472 + $0x4] sm:$0x3]
        %v1510 = vunpack.c.l.b16 %v1437
        %v1511 = vunpack.c.l.b16 %v1438
        %v1512 = vunpack.c.l.b16 %v1439
        %v1513 = vunpack.c.l.b16 %v1440
        %v1514 = vunpack.c.l.b16 %v1441
        %v1515 = vunpack.c.l.b16 %v1442
        %v1516 = vunpack.c.l.b16 %v1443
        %v1517 = vunpack.c.l.b16 %v1444
        %v1518 = vunpack.c.l.b16 %v1445
        %v1519 = vunpack.c.l.b16 %v1446
        %v1520 = vunpack.c.l.b16 %v1447
        %v1521 = vunpack.c.l.b16 %v1448
        %v1522 = vunpack.c.l.b16 %v1449
        %v1523 = vunpack.c.l.b16 %v1450
        %v1524 = vunpack.c.l.b16 %v1451
        %v1525 = vunpack.c.l.b16 %v1452
        %v1526 = vunpack.c.l.b16 %v1453
        %v1527 = vunpack.c.l.b16 %v1454
        %v1528 = vunpack.c.l.b16 %v1455
        %v1529 = vunpack.c.l.b16 %v1456
        %v1530 = vunpack.c.l.b16 %v1457
        %v1531 = vunpack.c.l.b16 %v1458
        %v1532 = vunpack.c.l.b16 %v1459
        %v1533 = vunpack.c.l.b16 %v1460
        %v1534 = vunpack.c.l.b16 %v1461
        %v1535 = vunpack.c.l.b16 %v1462
        %v1536 = vunpack.c.l.b16 %v1463
        %v1537 = vunpack.c.l.b16 %v1464
        %v1538 = vunpack.c.l.b16 %v1465
        %v1539 = vunpack.c.l.b16 %v1466
        %v1540 = vunpack.c.l.b16 %v1467
        %v1541 = vunpack.c.l.b16 %v1468
        %v1542 = vunpack.c.l.b16 %v1469
        %v1543 = vunpack.c.l.b16 %v1470
        %v1544 = vunpack.c.l.b16 %v1471
        %v1545 = vpack.c.b16 %v1511, %v1510
        %v1546 = vpack.c.b16 %v1513, %v1512
        %v1547 = vpack.c.b16 %v1515, %v1514
        %v1548 = vpack.c.b16 %v1517, %v1516
        %v1549 = vpack.c.b16 %v1519, %v1518
        %v1550 = vpack.c.b16 %v1521, %v1520
        %v1551 = vpack.c.b16 %v1523, %v1522
        %v1552 = vpack.c.b16 %v1525, %v1524
        %v1553 = vpack.c.b16 %v1527, %v1526
        %v1554 = vpack.c.b16 %v1529, %v1528
        %v1555 = vpack.c.b16 %v1531, %v1530
        %v1556 = vpack.c.b16 %v1533, %v1532
        %v1557 = vpack.c.b16 %v1535, %v1534
        %v1558 = vpack.c.b16 %v1537, %v1536
        %v1559 = vpack.c.b16 %v1539, %v1538
        %v1560 = vpack.c.b16 %v1541, %v1540
        %v1561 = vpack.c.b16 %v1543, %v1542
        %v1562 = vpack.c.b16 %v1544, %v1544
        %vm1563 = vcmask 1046528
        %v1564 = vrot.slane %v1545, 1
        %v1565 = vrot.slane %v1546, 1
        %v1566 = vsel %vm1563, %v1564, %v1565
        %v1567 = vrot.slane %v1547, 1
        %v1568 = vsel %vm1563, %v1565, %v1567
        %v1569 = vrot.slane %v1548, 1
        %v1570 = vsel %vm1563, %v1567, %v1569
        %v1571 = vrot.slane %v1549, 1
        %v1572 = vsel %vm1563, %v1569, %v1571
        %v1573 = vrot.slane %v1550, 1
        %v1574 = vsel %vm1563, %v1571, %v1573
        %v1575 = vrot.slane %v1551, 1
        %v1576 = vsel %vm1563, %v1573, %v1575
        %v1577 = vrot.slane %v1552, 1
        %v1578 = vsel %vm1563, %v1575, %v1577
        %v1579 = vrot.slane %v1553, 1
        %v1580 = vsel %vm1563, %v1577, %v1579
        %v1581 = vrot.slane %v1554, 1
        %v1582 = vsel %vm1563, %v1579, %v1581
        %v1583 = vrot.slane %v1555, 1
        %v1584 = vsel %vm1563, %v1581, %v1583
        %v1585 = vrot.slane %v1556, 1
        %v1586 = vsel %vm1563, %v1583, %v1585
        %v1587 = vrot.slane %v1557, 1
        %v1588 = vsel %vm1563, %v1585, %v1587
        %v1589 = vrot.slane %v1558, 1
        %v1590 = vsel %vm1563, %v1587, %v1589
        %v1591 = vrot.slane %v1559, 1
        %v1592 = vsel %vm1563, %v1589, %v1591
        %v1593 = vrot.slane %v1560, 1
        %v1594 = vsel %vm1563, %v1591, %v1593
        %v1595 = vrot.slane %v1561, 1
        %v1596 = vsel %vm1563, %v1593, %v1595
        %v1597 = vrot.slane %v1562, 1
        %v1598 = vsel %vm1563, %v1595, %v1597
        %v1601 = vunpack.c.l.b16 %v1473
        %v1602 = vunpack.c.l.b16 %v1474
        %v1603 = vpack.c.b16 %v1602, %v1601
        %v1605 = vsel %vm482, %v1566, 0
        %v1608 = vsel %vm482, %v1568, 0
        %v1611 = vsel %vm482, %v1570, 0
        %v1614 = vsel %vm482, %v1572, 0
        %v1617 = vsel %vm482, %v1574, 0
        %v1620 = vsel %vm482, %v1576, 0
        %v1623 = vsel %vm482, %v1578, 0
        %v1626 = vsel %vm482, %v1580, 0
        %v1629 = vsel %vm482, %v1582, 0
        %v1632 = vsel %vm482, %v1584, 0
        %v1635 = vsel %vm482, %v1586, 0
        %v1638 = vsel %vm482, %v1588, 0
        %v1641 = vsel %vm482, %v1590, 0
        %v1644 = vsel %vm482, %v1592, 0
        %v1647 = vsel %vm482, %v1594, 0
        %v1650 = vsel %vm482, %v1596, 0
        %v1653 = vsel %vm482, %v1598, 0
        %v1656 = vsel %vm534, %v1603, 0
        %1658 = vmatprep.subr.bf16.mxu0 0
        %1659 = vmatpush1.bf16.msra.mxu0 %v1656
        %1660 = vmatprep.subr.bf16.mxu0 0
        %1661 = vmatpush1.bf16.msra.mxu0 0
        %1662 = vmatprep.subr.bf16.mxu0 0
        %1663 = vmatpush1.bf16.msra.mxu0 0
        %1664 = vmatprep.subr.bf16.mxu0 0
        %1665 = vmatpush1.bf16.msra.mxu0 0
        %1666 = vmatprep.subr.bf16.mxu0 0
        %1667 = vmatpush1.bf16.msra.mxu0 0
        %1668 = vmatprep.subr.bf16.mxu0 0
        %1669 = vmatpush1.bf16.msra.mxu0 0
        %1670 = vmatprep.subr.bf16.mxu0 0
        %1671 = vmatpush1.bf16.msra.mxu0 0
        %1672 = vmatprep.subr.bf16.mxu0 0
        %1673 = vmatpush1.bf16.msra.mxu0 0
        %1674 = vmatprep.subr.bf16.mxu0 0
        %1675 = vmatpush1.bf16.msra.mxu0 0
        %1676 = vmatprep.subr.bf16.mxu0 0
        %1677 = vmatpush1.bf16.msra.mxu0 0
        %1678 = vmatprep.subr.bf16.mxu0 0
        %1679 = vmatpush1.bf16.msra.mxu0 0
        %1680 = vmatprep.subr.bf16.mxu0 0
        %1681 = vmatpush1.bf16.msra.mxu0 0
        %1682 = vmatprep.subr.bf16.mxu0 0
        %1683 = vmatpush1.bf16.msra.mxu0 0
        %1684 = vmatprep.subr.bf16.mxu0 0
        %1685 = vmatpush1.bf16.msra.mxu0 0
        %1686 = vmatprep.subr.bf16.mxu0 0
        %1687 = vmatpush1.bf16.msra.mxu0 0
        %1688 = vmatprep.subr.bf16.mxu0 0
        %1689 = vmatpush1.bf16.msra.mxu0 0
        %1690 = vmatprep.mubr.bf16.mxu0 0
        %1691 = vmatmul.mubr.bf16.gmra.mrb[0].mxu0 %v1605
        %v1692 = vpop.f32.mrb[0].mxu0
        %v1693 = vadd.f32 0.0, %v1692
        %v1694 = vpop.f32.mrb[0].mxu0
        %v1695 = vpop.f32.mrb[0].mxu0
        %v1696 = vadd.f32 0.0, %v1695
        %v1697 = vpop.f32.mrb[0].mxu0
        %1698 = vmatprep.mubr.bf16.mxu0 0
        %1699 = vmatmul.mubr.bf16.gmra.mrb[0].mxu0 %v1608
        %v1700 = vpop.f32.mrb[0].mxu0
        %v1701 = vadd.f32 0.0, %v1700
        %v1702 = vpop.f32.mrb[0].mxu0
        %v1703 = vpop.f32.mrb[0].mxu0
        %v1704 = vadd.f32 0.0, %v1703
        %v1705 = vpop.f32.mrb[0].mxu0
        %1706 = vmatprep.mubr.bf16.mxu0 0
        %1707 = vmatmul.mubr.bf16.gmra.mrb[0].mxu0 %v1611
        %v1708 = vpop.f32.mrb[0].mxu0
        %v1709 = vadd.f32 0.0, %v1708
        %v1710 = vpop.f32.mrb[0].mxu0
        %v1711 = vpop.f32.mrb[0].mxu0
        %v1712 = vadd.f32 0.0, %v1711
        %v1713 = vpop.f32.mrb[0].mxu0
        %1714 = vmatprep.mubr.bf16.mxu0 0
        %1715 = vmatmul.mubr.bf16.gmra.mrb[0].mxu0 %v1614
        %v1716 = vpop.f32.mrb[0].mxu0
        %v1717 = vadd.f32 0.0, %v1716
        %v1718 = vpop.f32.mrb[0].mxu0
        %v1719 = vpop.f32.mrb[0].mxu0
        %v1720 = vadd.f32 0.0, %v1719
        %v1721 = vpop.f32.mrb[0].mxu0
        %1722 = vmatprep.mubr.bf16.mxu0 0
        %1723 = vmatmul.mubr.bf16.gmra.mrb[0].mxu0 %v1617
        %v1724 = vpop.f32.mrb[0].mxu0
        %v1725 = vadd.f32 0.0, %v1724
        %v1726 = vpop.f32.mrb[0].mxu0
        %v1727 = vpop.f32.mrb[0].mxu0
        %v1728 = vadd.f32 0.0, %v1727
        %v1729 = vpop.f32.mrb[0].mxu0
        %1730 = vmatprep.mubr.bf16.mxu0 0
        %1731 = vmatmul.mubr.bf16.gmra.mrb[0].mxu0 %v1620
        %v1732 = vpop.f32.mrb[0].mxu0
        %v1733 = vadd.f32 0.0, %v1732
        %v1734 = vpop.f32.mrb[0].mxu0
        %v1735 = vpop.f32.mrb[0].mxu0
        %v1736 = vadd.f32 0.0, %v1735
        %v1737 = vpop.f32.mrb[0].mxu0
        %1738 = vmatprep.mubr.bf16.mxu0 0
        %1739 = vmatmul.mubr.bf16.gmra.mrb[0].mxu0 %v1623
        %v1740 = vpop.f32.mrb[0].mxu0
        %v1741 = vadd.f32 0.0, %v1740
        %v1742 = vpop.f32.mrb[0].mxu0
        %v1743 = vpop.f32.mrb[0].mxu0
        %v1744 = vadd.f32 0.0, %v1743
        %v1745 = vpop.f32.mrb[0].mxu0
        %1746 = vmatprep.mubr.bf16.mxu0 0
        %1747 = vmatmul.mubr.bf16.gmra.mrb[0].mxu0 %v1626
        %v1748 = vpop.f32.mrb[0].mxu0
        %v1749 = vadd.f32 0.0, %v1748
        %v1750 = vpop.f32.mrb[0].mxu0
        %v1751 = vpop.f32.mrb[0].mxu0
        %v1752 = vadd.f32 0.0, %v1751
        %v1753 = vpop.f32.mrb[0].mxu0
        %1754 = vmatprep.mubr.bf16.mxu0 0
        %1755 = vmatmul.mubr.bf16.gmra.mrb[0].mxu0 %v1629
        %v1756 = vpop.f32.mrb[0].mxu0
        %v1757 = vadd.f32 0.0, %v1756
        %v1758 = vpop.f32.mrb[0].mxu0
        %v1759 = vpop.f32.mrb[0].mxu0
        %v1760 = vadd.f32 0.0, %v1759
        %v1761 = vpop.f32.mrb[0].mxu0
        %1762 = vmatprep.mubr.bf16.mxu0 0
        %1763 = vmatmul.mubr.bf16.gmra.mrb[0].mxu0 %v1632
        %v1764 = vpop.f32.mrb[0].mxu0
        %v1765 = vadd.f32 0.0, %v1764
        %v1766 = vpop.f32.mrb[0].mxu0
        %v1767 = vpop.f32.mrb[0].mxu0
        %v1768 = vadd.f32 0.0, %v1767
        %v1769 = vpop.f32.mrb[0].mxu0
        %1770 = vmatprep.mubr.bf16.mxu0 0
        %1771 = vmatmul.mubr.bf16.gmra.mrb[0].mxu0 %v1635
        %v1772 = vpop.f32.mrb[0].mxu0
        %v1773 = vadd.f32 0.0, %v1772
        %v1774 = vpop.f32.mrb[0].mxu0
        %v1775 = vpop.f32.mrb[0].mxu0
        %v1776 = vadd.f32 0.0, %v1775
        %v1777 = vpop.f32.mrb[0].mxu0
        %1778 = vmatprep.mubr.bf16.mxu0 0
        %1779 = vmatmul.mubr.bf16.gmra.mrb[0].mxu0 %v1638
        %v1780 = vpop.f32.mrb[0].mxu0
        %v1781 = vadd.f32 0.0, %v1780
        %v1782 = vpop.f32.mrb[0].mxu0
        %v1783 = vpop.f32.mrb[0].mxu0
        %v1784 = vadd.f32 0.0, %v1783
        %v1785 = vpop.f32.mrb[0].mxu0
        %1786 = vmatprep.mubr.bf16.mxu0 0
        %1787 = vmatmul.mubr.bf16.gmra.mrb[0].mxu0 %v1641
        %v1788 = vpop.f32.mrb[0].mxu0
        %v1789 = vadd.f32 0.0, %v1788
        %v1790 = vpop.f32.mrb[0].mxu0
        %v1791 = vpop.f32.mrb[0].mxu0
        %v1792 = vadd.f32 0.0, %v1791
        %v1793 = vpop.f32.mrb[0].mxu0
        %1794 = vmatprep.mubr.bf16.mxu0 0
        %1795 = vmatmul.mubr.bf16.gmra.mrb[0].mxu0 %v1644
        %v1796 = vpop.f32.mrb[0].mxu0
        %v1797 = vadd.f32 0.0, %v1796
        %v1798 = vpop.f32.mrb[0].mxu0
        %v1799 = vpop.f32.mrb[0].mxu0
        %v1800 = vadd.f32 0.0, %v1799
        %v1801 = vpop.f32.mrb[0].mxu0
        %1802 = vmatprep.mubr.bf16.mxu0 0
        %1803 = vmatmul.mubr.bf16.gmra.mrb[0].mxu0 %v1647
        %v1804 = vpop.f32.mrb[0].mxu0
        %v1805 = vadd.f32 0.0, %v1804
        %v1806 = vpop.f32.mrb[0].mxu0
        %v1807 = vpop.f32.mrb[0].mxu0
        %v1808 = vadd.f32 0.0, %v1807
        %v1809 = vpop.f32.mrb[0].mxu0
        %1810 = vmatprep.mubr.bf16.mxu0 0
        %1811 = vmatmul.mubr.bf16.gmra.mrb[0].mxu0 %v1650
        %v1812 = vpop.f32.mrb[0].mxu0
        %v1813 = vadd.f32 0.0, %v1812
        %v1814 = vpop.f32.mrb[0].mxu0
        %v1815 = vpop.f32.mrb[0].mxu0
        %v1816 = vadd.f32 0.0, %v1815
        %v1817 = vpop.f32.mrb[0].mxu0
        %1818 = vmatprep.mubr.bf16.mxu0 0
        %1819 = vmatmul.mubr.bf16.gmra.mrb[0].mxu0 %v1653
        %v1820 = vpop.f32.mrb[0].mxu0
        %v1821 = vadd.f32 0.0, %v1820
        %v1822 = vpop.f32.mrb[0].mxu0
        %v1823 = vpop.f32.mrb[0].mxu0
        %v1824 = vadd.f32 0.0, %v1823
        %v1825 = vpop.f32.mrb[0].mxu0
        %1826 = vdwg.mxu0
        %v1827 = vadd.f32 %v1403, %v1693
        %v1828 = vadd.f32 %v1404, %v1696
        %v1829 = vadd.f32 %v1405, %v1701
        %v1830 = vadd.f32 %v1406, %v1704
        %v1831 = vadd.f32 %v1407, %v1709
        %v1832 = vadd.f32 %v1408, %v1712
        %v1833 = vadd.f32 %v1409, %v1717
        %v1834 = vadd.f32 %v1410, %v1720
        %v1835 = vadd.f32 %v1411, %v1725
        %v1836 = vadd.f32 %v1412, %v1728
        %v1837 = vadd.f32 %v1413, %v1733
        %v1838 = vadd.f32 %v1414, %v1736
        %v1839 = vadd.f32 %v1415, %v1741
        %v1840 = vadd.f32 %v1416, %v1744
        %v1841 = vadd.f32 %v1417, %v1749
        %v1842 = vadd.f32 %v1418, %v1752
        %v1843 = vadd.f32 %v1419, %v1757
        %v1844 = vadd.f32 %v1420, %v1760
        %v1845 = vadd.f32 %v1421, %v1765
        %v1846 = vadd.f32 %v1422, %v1768
        %v1847 = vadd.f32 %v1423, %v1773
        %v1848 = vadd.f32 %v1424, %v1776
        %v1849 = vadd.f32 %v1425, %v1781
        %v1850 = vadd.f32 %v1426, %v1784
        %v1851 = vadd.f32 %v1427, %v1789
        %v1852 = vadd.f32 %v1428, %v1792
        %v1853 = vadd.f32 %v1429, %v1797
        %v1854 = vadd.f32 %v1430, %v1800
        %v1855 = vadd.f32 %v1431, %v1805
        %v1856 = vadd.f32 %v1432, %v1808
        %v1857 = vadd.f32 %v1433, %v1813
        %v1858 = vadd.f32 %v1434, %v1816
        %v1859 = vadd.f32 %v1435, %v1821
        %v1860 = vadd.f32 %v1436, %v1824
        %v1861 = vld [vmem:[#allocation7] sm:$0x1]
        %v1863 = vlaneseq
        %v1864 = vshrl.u32 %v1863, 7
        %v1865 = vsub.s32 0, %v1864
        %v1866 = vrot.slane %v1861, %v1865
        %v1868 = vadd.f32 %v1827, %v1866
        %v1869 = vadd.f32 %v1828, %v1866
        %v1870 = vadd.f32 %v1829, %v1866
        %v1871 = vadd.f32 %v1830, %v1866
        %v1872 = vadd.f32 %v1831, %v1866
        %v1873 = vadd.f32 %v1832, %v1866
        %v1874 = vadd.f32 %v1833, %v1866
        %v1875 = vadd.f32 %v1834, %v1866
        %v1876 = vadd.f32 %v1835, %v1866
        %v1877 = vadd.f32 %v1836, %v1866
        %v1878 = vadd.f32 %v1837, %v1866
        %v1879 = vadd.f32 %v1838, %v1866
        %v1880 = vadd.f32 %v1839, %v1866
        %v1881 = vadd.f32 %v1840, %v1866
        %v1882 = vadd.f32 %v1841, %v1866
        %v1883 = vadd.f32 %v1842, %v1866
        %v1884 = vadd.f32 %v1843, %v1866
        %v1885 = vadd.f32 %v1844, %v1866
        %v1886 = vadd.f32 %v1845, %v1866
        %v1887 = vadd.f32 %v1846, %v1866
        %v1888 = vadd.f32 %v1847, %v1866
        %v1889 = vadd.f32 %v1848, %v1866
        %v1890 = vadd.f32 %v1849, %v1866
        %v1891 = vadd.f32 %v1850, %v1866
        %v1892 = vadd.f32 %v1851, %v1866
        %v1893 = vadd.f32 %v1852, %v1866
        %v1894 = vadd.f32 %v1853, %v1866
        %v1895 = vadd.f32 %v1854, %v1866
        %v1896 = vadd.f32 %v1855, %v1866
        %v1897 = vadd.f32 %v1856, %v1866
        %v1898 = vadd.f32 %v1857, %v1866
        %v1899 = vadd.f32 %v1858, %v1866
        %v1900 = vadd.f32 %v1859, %v1866
        %v1901 = vadd.f32 %v1860, %v1866
        %vm1902 = vcmp.ge.f32.partialorder %v1868, 0.0
        %vm1903 = vcmp.ge.f32.partialorder %v1869, 0.0
        %vm1904 = vcmp.ge.f32.partialorder %v1870, 0.0
        %vm1905 = vcmp.ge.f32.partialorder %v1871, 0.0
        %vm1906 = vcmp.ge.f32.partialorder %v1872, 0.0
        %vm1907 = vcmp.ge.f32.partialorder %v1873, 0.0
        %vm1908 = vcmp.ge.f32.partialorder %v1874, 0.0
        %vm1909 = vcmp.ge.f32.partialorder %v1875, 0.0
        %vm1910 = vcmp.ge.f32.partialorder %v1876, 0.0
        %vm1911 = vcmp.ge.f32.partialorder %v1877, 0.0
        %vm1912 = vcmp.ge.f32.partialorder %v1878, 0.0
        %vm1913 = vcmp.ge.f32.partialorder %v1879, 0.0
        %vm1914 = vcmp.ge.f32.partialorder %v1880, 0.0
        %vm1915 = vcmp.ge.f32.partialorder %v1881, 0.0
        %vm1916 = vcmp.ge.f32.partialorder %v1882, 0.0
        %vm1917 = vcmp.ge.f32.partialorder %v1883, 0.0
        %vm1918 = vcmp.ge.f32.partialorder %v1884, 0.0
        %vm1919 = vcmp.ge.f32.partialorder %v1885, 0.0
        %vm1920 = vcmp.ge.f32.partialorder %v1886, 0.0
        %vm1921 = vcmp.ge.f32.partialorder %v1887, 0.0
        %vm1922 = vcmp.ge.f32.partialorder %v1888, 0.0
        %vm1923 = vcmp.ge.f32.partialorder %v1889, 0.0
        %vm1924 = vcmp.ge.f32.partialorder %v1890, 0.0
        %vm1925 = vcmp.ge.f32.partialorder %v1891, 0.0
        %vm1926 = vcmp.ge.f32.partialorder %v1892, 0.0
        %vm1927 = vcmp.ge.f32.partialorder %v1893, 0.0
        %vm1928 = vcmp.ge.f32.partialorder %v1894, 0.0
        %vm1929 = vcmp.ge.f32.partialorder %v1895, 0.0
        %vm1930 = vcmp.ge.f32.partialorder %v1896, 0.0
        %vm1931 = vcmp.ge.f32.partialorder %v1897, 0.0
        %vm1932 = vcmp.ge.f32.partialorder %v1898, 0.0
        %vm1933 = vcmp.ge.f32.partialorder %v1899, 0.0
        %vm1934 = vcmp.ge.f32.partialorder %v1900, 0.0
        %vm1935 = vcmp.ge.f32.partialorder %v1901, 0.0
        %v1936 = vmul.f32 %v1868, 0.2
        %v1937 = vmul.f32 %v1869, 0.2
        %v1938 = vmul.f32 %v1870, 0.2
        %v1939 = vmul.f32 %v1871, 0.2
        %v1940 = vmul.f32 %v1872, 0.2
        %v1941 = vmul.f32 %v1873, 0.2
        %v1942 = vmul.f32 %v1874, 0.2
        %v1943 = vmul.f32 %v1875, 0.2
        %v1944 = vmul.f32 %v1876, 0.2
        %v1945 = vmul.f32 %v1877, 0.2
        %v1946 = vmul.f32 %v1878, 0.2
        %v1947 = vmul.f32 %v1879, 0.2
        %v1948 = vmul.f32 %v1880, 0.2
        %v1949 = vmul.f32 %v1881, 0.2
        %v1950 = vmul.f32 %v1882, 0.2
        %v1951 = vmul.f32 %v1883, 0.2
        %v1952 = vmul.f32 %v1884, 0.2
        %v1953 = vmul.f32 %v1885, 0.2
        %v1954 = vmul.f32 %v1886, 0.2
        %v1955 = vmul.f32 %v1887, 0.2
        %v1956 = vmul.f32 %v1888, 0.2
        %v1957 = vmul.f32 %v1889, 0.2
        %v1958 = vmul.f32 %v1890, 0.2
        %v1959 = vmul.f32 %v1891, 0.2
        %v1960 = vmul.f32 %v1892, 0.2
        %v1961 = vmul.f32 %v1893, 0.2
        %v1962 = vmul.f32 %v1894, 0.2
        %v1963 = vmul.f32 %v1895, 0.2
        %v1964 = vmul.f32 %v1896, 0.2
        %v1965 = vmul.f32 %v1897, 0.2
        %v1966 = vmul.f32 %v1898, 0.2
        %v1967 = vmul.f32 %v1899, 0.2
        %v1968 = vmul.f32 %v1900, 0.2
        %v1969 = vmul.f32 %v1901, 0.2
        %v1970 = vsel %vm1902, %v1868, %v1936
        %v1971 = vsel %vm1903, %v1869, %v1937
        %v1972 = vsel %vm1904, %v1870, %v1938
        %v1973 = vsel %vm1905, %v1871, %v1939
        %v1974 = vsel %vm1906, %v1872, %v1940
        %v1975 = vsel %vm1907, %v1873, %v1941
        %v1976 = vsel %vm1908, %v1874, %v1942
        %v1977 = vsel %vm1909, %v1875, %v1943
        %v1978 = vsel %vm1910, %v1876, %v1944
        %v1979 = vsel %vm1911, %v1877, %v1945
        %v1980 = vsel %vm1912, %v1878, %v1946
        %v1981 = vsel %vm1913, %v1879, %v1947
        %v1982 = vsel %vm1914, %v1880, %v1948
        %v1983 = vsel %vm1915, %v1881, %v1949
        %v1984 = vsel %vm1916, %v1882, %v1950
        %v1985 = vsel %vm1917, %v1883, %v1951
        %v1986 = vsel %vm1918, %v1884, %v1952
        %v1987 = vsel %vm1919, %v1885, %v1953
        %v1988 = vsel %vm1920, %v1886, %v1954
        %v1989 = vsel %vm1921, %v1887, %v1955
        %v1990 = vsel %vm1922, %v1888, %v1956
        %v1991 = vsel %vm1923, %v1889, %v1957
        %v1992 = vsel %vm1924, %v1890, %v1958
        %v1993 = vsel %vm1925, %v1891, %v1959
        %v1994 = vsel %vm1926, %v1892, %v1960
        %v1995 = vsel %vm1927, %v1893, %v1961
        %v1996 = vsel %vm1928, %v1894, %v1962
        %v1997 = vsel %vm1929, %v1895, %v1963
        %v1998 = vsel %vm1930, %v1896, %v1964
        %v1999 = vsel %vm1931, %v1897, %v1965
        %v2000 = vsel %vm1932, %v1898, %v1966
        %v2001 = vsel %vm1933, %v1899, %v1967
        %v2002 = vsel %vm1934, %v1900, %v1968
        %v2003 = vsel %vm1935, %v1901, %v1969
        %v2004 = vpack.c.bf16 %v1971, %v1970
        %v2005 = vpack.c.bf16 %v1973, %v1972
        %v2006 = vpack.c.bf16 %v1975, %v1974
        %v2007 = vpack.c.bf16 %v1977, %v1976
        %v2008 = vpack.c.bf16 %v1979, %v1978
        %v2009 = vpack.c.bf16 %v1981, %v1980
        %v2010 = vpack.c.bf16 %v1983, %v1982
        %v2011 = vpack.c.bf16 %v1985, %v1984
        %v2012 = vpack.c.bf16 %v1987, %v1986
        %v2013 = vpack.c.bf16 %v1989, %v1988
        %v2014 = vpack.c.bf16 %v1991, %v1990
        %v2015 = vpack.c.bf16 %v1993, %v1992
        %v2016 = vpack.c.bf16 %v1995, %v1994
        %v2017 = vpack.c.bf16 %v1997, %v1996
        %v2018 = vpack.c.bf16 %v1999, %v1998
        %v2019 = vpack.c.bf16 %v2001, %v2000
        %v2020 = vpack.c.bf16 %v2003, %v2002
        %v2038 = vunpack.c.l.b16 %v2004
        %v2039 = vunpack.c.h.b16 %v2004
        %v2040 = vunpack.c.l.b16 %v2005
        %v2041 = vunpack.c.h.b16 %v2005
        %v2042 = vunpack.c.l.b16 %v2006
        %v2043 = vunpack.c.h.b16 %v2006
        %v2044 = vunpack.c.l.b16 %v2007
        %v2045 = vunpack.c.h.b16 %v2007
        %v2046 = vunpack.c.l.b16 %v2008
        %v2047 = vunpack.c.h.b16 %v2008
        %v2048 = vunpack.c.l.b16 %v2009
        %v2049 = vunpack.c.h.b16 %v2009
        %v2050 = vunpack.c.l.b16 %v2010
        %v2051 = vunpack.c.h.b16 %v2010
        %v2052 = vunpack.c.l.b16 %v2011
        %v2053 = vunpack.c.h.b16 %v2011
        %v2054 = vunpack.c.l.b16 %v2012
        %v2055 = vunpack.c.h.b16 %v2012
        %v2056 = vunpack.c.l.b16 %v2013
        %v2057 = vunpack.c.h.b16 %v2013
        %v2058 = vunpack.c.l.b16 %v2014
        %v2059 = vunpack.c.h.b16 %v2014
        %v2060 = vunpack.c.l.b16 %v2015
        %v2061 = vunpack.c.h.b16 %v2015
        %v2062 = vunpack.c.l.b16 %v2016
        %v2063 = vunpack.c.h.b16 %v2016
        %v2064 = vunpack.c.l.b16 %v2017
        %v2065 = vunpack.c.h.b16 %v2017
        %v2066 = vunpack.c.l.b16 %v2018
        %v2067 = vunpack.c.h.b16 %v2018
        %v2068 = vunpack.c.l.b16 %v2019
        %v2069 = vunpack.c.h.b16 %v2019
        %v2070 = vunpack.c.l.b16 %v2020
        %v2071 = vunpack.c.h.b16 %v2020
        %v2072 = vpack.c.b16 %v2038, %v2038
        %v2073 = vpack.c.b16 %v2039, %v2039
        %v2074 = vpack.c.b16 %v2040, %v2040
        %v2075 = vpack.c.b16 %v2041, %v2041
        %v2076 = vpack.c.b16 %v2042, %v2042
        %v2077 = vpack.c.b16 %v2043, %v2043
        %v2078 = vpack.c.b16 %v2044, %v2044
        %v2079 = vpack.c.b16 %v2045, %v2045
        %v2080 = vpack.c.b16 %v2046, %v2046
        %v2081 = vpack.c.b16 %v2047, %v2047
        %v2082 = vpack.c.b16 %v2048, %v2048
        %v2083 = vpack.c.b16 %v2049, %v2049
        %v2084 = vpack.c.b16 %v2050, %v2050
        %v2085 = vpack.c.b16 %v2051, %v2051
        %v2086 = vpack.c.b16 %v2052, %v2052
        %v2087 = vpack.c.b16 %v2053, %v2053
        %v2088 = vpack.c.b16 %v2054, %v2054
        %v2089 = vpack.c.b16 %v2055, %v2055
        %v2090 = vpack.c.b16 %v2056, %v2056
        %v2091 = vpack.c.b16 %v2057, %v2057
        %v2092 = vpack.c.b16 %v2058, %v2058
        %v2093 = vpack.c.b16 %v2059, %v2059
        %v2094 = vpack.c.b16 %v2060, %v2060
        %v2095 = vpack.c.b16 %v2061, %v2061
        %v2096 = vpack.c.b16 %v2062, %v2062
        %v2097 = vpack.c.b16 %v2063, %v2063
        %v2098 = vpack.c.b16 %v2064, %v2064
        %v2099 = vpack.c.b16 %v2065, %v2065
        %v2100 = vpack.c.b16 %v2066, %v2066
        %v2101 = vpack.c.b16 %v2067, %v2067
        %v2102 = vpack.c.b16 %v2068, %v2068
        %v2103 = vpack.c.b16 %v2069, %v2069
        %v2104 = vpack.c.b16 %v2070, %v2070
        %v2105 = vpack.c.b16 %v2071, %v2071
        %2140 = vst [vmem:[%s215] sm:$0xf] %v2072
        %2141 = vst [vmem:[%s215 + $0x4] sm:$0xf] %v2073
        %2142 = vst [vmem:[%s215 + $0x8] sm:$0xf] %v2074
        %2143 = vst [vmem:[%s215 + $0xc] sm:$0xf] %v2075
        %2144 = vst [vmem:[%s215 + $0x10] sm:$0xf] %v2076
        %2145 = vst [vmem:[%s215 + $0x14] sm:$0xf] %v2077
        %2146 = vst [vmem:[%s215 + $0x18] sm:$0xf] %v2078
        %2147 = vst [vmem:[%s215 + $0x1c] sm:$0xf] %v2079
        %2148 = vst [vmem:[%s215 + $0x20] sm:$0xf] %v2080
        %2149 = vst [vmem:[%s215 + $0x24] sm:$0xf] %v2081
        %2150 = vst [vmem:[%s215 + $0x28] sm:$0xf] %v2082
        %2151 = vst [vmem:[%s215 + $0x2c] sm:$0xf] %v2083
        %2152 = vst [vmem:[%s215 + $0x30] sm:$0xf] %v2084
        %2153 = vst [vmem:[%s215 + $0x34] sm:$0xf] %v2085
        %2154 = vst [vmem:[%s215 + $0x38] sm:$0xf] %v2086
        %2155 = vst [vmem:[%s215 + $0x3c] sm:$0xf] %v2087
        %2156 = vst [vmem:[%s215 + $0x40] sm:$0xf] %v2088
        %2157 = vst [vmem:[%s215 + $0x44] sm:$0xf] %v2089
        %2158 = vst [vmem:[%s215 + $0x48] sm:$0xf] %v2090
        %2159 = vst [vmem:[%s215 + $0x4c] sm:$0xf] %v2091
        %2160 = vst [vmem:[%s215 + $0x50] sm:$0xf] %v2092
        %2161 = vst [vmem:[%s215 + $0x54] sm:$0xf] %v2093
        %2162 = vst [vmem:[%s215 + $0x58] sm:$0xf] %v2094
        %2163 = vst [vmem:[%s215 + $0x5c] sm:$0xf] %v2095
        %2164 = vst [vmem:[%s215 + $0x60] sm:$0xf] %v2096
        %2165 = vst [vmem:[%s215 + $0x64] sm:$0xf] %v2097
        %2166 = vst [vmem:[%s215 + $0x68] sm:$0xf] %v2098
        %2167 = vst [vmem:[%s215 + $0x6c] sm:$0xf] %v2099
        %2168 = vst [vmem:[%s215 + $0x70] sm:$0xf] %v2100
        %2169 = vst [vmem:[%s215 + $0x74] sm:$0xf] %v2101
        %2170 = vst [vmem:[%s215 + $0x78] sm:$0xf] %v2102
        %2171 = vst [vmem:[%s215 + $0x7c] sm:$0xf] %v2103
        %2172 = vst [vmem:[%s215 + $0x80] sm:$0xf] %v2104
        %vm2173 = vcmask 1043456
        %vm2174 = vsmask.f32 3328
        %vm2175 = vmand %vm2173, %vm2174
        %v2176 = vld [vmem:[%s215 + $0x84] sm:$0xf]
        %v2177 = vsel %vm2175, %v2105, %v2176
        %2178 = vst [vmem:[%s215 + $0x84] sm:$0xf] %v2177
        %s2179 = sand.u32 %s97, 1
        %s2180 = scalar_lea.sflag [#allocation4], %s2179
        %s2181 = sand.u32 %s97, 1
        %s2182 = smul.addr %s2181, 136
        %s2183 = scalar_lea.vmem [#allocation8], %s2182
        // Predicated region
        $region45: #{autoencoder_loss.8} parent=31 // pred_check
          %p2184 = pneg %p107
        $region46: #{autoencoder_loss.8} parent=31 // pred_check_branch
          %2186 = sbr.rel (%p2184) target = $region48
        $region47: #{autoencoder_loss.8} parent=31 // pred_region
          %s2188 = ssub.s32 2176, 2176
          %2189 = vsyncadd %s2180, %s2188
          %s2190 = smul.addr %s21, 34
          %s2191 = smul.addr %s2190, 64
          %s2192 = scalar_lea.hbm %s3, %s2191
          %s2193 = sshll.u32 %s2183, 4
          %s2194 = int_to_ptr.vmem [resolvable:$true] %s2193
          %2199 = dma.vmem_to_hbm [thread:$0]  %s2194, 2176, %s2192, %s2180, 64, 64, 4
        $region48: #{autoencoder_loss.8} parent=31 // pred_fallthru
          _
      $region32: #{autoencoder_loss.8} parent=5 // pred_fallthru
        _
      %p2200 = scmp.le.s32.totalorder 2, %s16
      // Predicated region
      $region49: #{autoencoder_loss.8} parent=5 // pred_check
        %p2201 = pneg %p2200
      $region50: #{autoencoder_loss.8} parent=5 // pred_check_branch
        %2203 = sbr.rel (%p2201) target = $region52
      $region51: #{autoencoder_loss.8} parent=5 // pred_region
        %s2204 = ssub.s32 %s16, 2
        // Predicated region
        $region53: #{autoencoder_loss.8} parent=51 // pred_check
          %p2205 = pneg %p113
        $region54: #{autoencoder_loss.8} parent=51 // pred_check_branch
          %2207 = sbr.rel (%p2205) target = $region56
        $region55: #{autoencoder_loss.8} parent=51 // pred_region
          %s2208 = sand.u32 %s98, 1
          %s2209 = scalar_lea.sflag [#allocation4], %s2208
          %s2210 = sand.u32 %s98, 1
          %s2211 = smul.addr %s2210, 136
          %s2212 = scalar_lea.vmem [#allocation8], %s2211
          %2213 = dma.done %s2209, 2176
        $region56: #{autoencoder_loss.8} parent=51 // pred_fallthru
          _
      $region52: #{autoencoder_loss.8} parent=5 // pred_fallthru
        _
    $region6: #{autoencoder_loss.8} parent=1 // loop_footer
      %s20 = sadd.s32 1, %s16
    $region7: #{autoencoder_loss.8} parent=1 // loop_footer_branch
      %15 = sbr.rel target = $region3
    $region8: #{autoencoder_loss.8} parent=1 // loop_exit
      _
    %2214 = vsyncpa [#allocation3], 1
    %s2215 = scalar_lea.sflag [#allocation3], 1
    %2216 = vsyncpa %s2215, 1
    %2217 = vsyncpa [#allocation6], 1
    %2218 = vsyncpa [#allocation4], 1
    %s2219 = scalar_lea.sflag [#allocation4], 1
    %2220 = vsyncpa %s2219, 1

// kernel: autoencoder_loss.9
$region0: #{autoencoder_loss.9}
  #allocation0 [shape = 'u32[]', space=smem, size = 0x4, offset = 0x4, fixed_abs, tag = 'smem constant byte address 0x4 - core index']
  #allocation1 [shape = 'u32[144,128]{1,0:T(1,128)}', space=vmem, size = 0x12000, scoped, tag = 'internal scratch']
  %s0 = inlined_call_operand.hbm [shape: bf16[4,81,32], index: 0, kind: input, shape index: {}]
  %s1 = inlined_call_operand.hbm [shape: bf16[4,32,128], index: 1, kind: input, shape index: {}]
  %s2 = inlined_call_operand.hbm [shape: f32[4,71,128], index: 2, kind: output, shape index: {0}]
  %s3 = inlined_call_operand.hbm [shape: f32[4,2,128], index: 3, kind: output, shape index: {1}]
  %4 = xla_tuple %s2, %s3
  %s5 = sld [smem:[#allocation0]]
  $region57: #{autoencoder_loss.9} parent=0
    _
  %s7 = ssub.s32 1, %s5
  %s8 = scalar_select 0, %s7, %s5
  $region1: #{autoencoder_loss.9} parent=0
    #allocation2 [shape = 'u8[45056]{0}', space=vmem, size = 0xb000, scoped, tag = 'input window, operand 0']
    #allocation3 [shape = 's32[2]{0}', space=sflag, size = 0x8, scoped, tag = 'scoped memory for autoencoder_loss.9']
    #allocation4 [shape = 's32[2]{0}', space=sflag, size = 0x8, scoped, tag = 'scoped memory for autoencoder_loss.9']
    #allocation5 [shape = 'u8[32768]{0}', space=vmem, size = 0x8000, scoped, tag = 'input window, operand 1, single buffered']
    #allocation6 [shape = 's32[1]{0}', space=sflag, size = 0x4, scoped, tag = 'scoped memory for autoencoder_loss.9']
    #allocation7 [shape = 'u8[73728]{0}', space=vmem, size = 0x12000, scoped, tag = 'output window, operand 0']
    #allocation8 [shape = 'u8[2048]{0}', space=vmem, size = 0x800, scoped, tag = 'output window, operand 1']
    #allocation9 [shape = 's32[2]{0}', space=sflag, size = 0x8, scoped, tag = 'scoped memory for autoencoder_loss.9']
    %9 = vsyncpa [#allocation3], 0
    %s10 = scalar_lea.sflag [#allocation3], 1
    %11 = vsyncpa %s10, 0
    %12 = vsyncpa [#allocation6], 0
    %13 = vsyncpa [#allocation4], 0
    %s14 = scalar_lea.sflag [#allocation4], 1
    %15 = vsyncpa %s14, 0
    %16 = vsyncpa [#allocation9], 0
    %s17 = scalar_lea.sflag [#allocation9], 1
    %18 = vsyncpa %s17, 0
    loop: start=0, step=1, limit=6
    $region2: #{autoencoder_loss.9} parent=1 // loop_pre_header
      _
    $region3: #{autoencoder_loss.9} parent=1 // loop_header
      %s20 = sphi 0, %s24
      %p21 = scmp.ge.s32.totalorder %s20, 6
      %s30 = sphi 0, %s32
      %s33 = sphi 0, %s30
      %s34 = sphi 0, %s33
      %s50 = sphi 0, %s34
      %s54 = sphi 0, %s54
      %s56 = sphi 0, %s54
      %s57 = sphi 0, %s56
      %s71 = sphi 0, %s57
      %s77 = sphi 0, %s79
      %s80 = sphi 0, %s77
      %s81 = sphi 0, %s80
      %s97 = sphi 0, %s81
      %s103 = sphi 0, %s105
      %s106 = sphi 0, %s103
      %s107 = sphi 0, %s106
      %s123 = sphi 0, %s107
    $region4: #{autoencoder_loss.9} parent=1 // loop_header_branch
      %23 = sbr.rel (%p21) target = $region8
    $region5: #{autoencoder_loss.9} parent=1 // loop_body
      %s25 = ssub.s32 %s20, 1
      %s26 = ssub.s32 %s20, 2
      %s27 = sadd.s32 %s20, 1
      %s28 = ssub.s32 %s20, %s27
      %p29 = scmp.eq.s32.totalorder %s28, 0
      %s31 = sadd.s32 %s30, 1
      %s32 = scalar_select %p29, %s30, %s31
      %p35 = pneg %p29
      %p36 = scmp.eq.s32.totalorder %s20, 3
      %p37 = por %p35, %p36
      %p38 = scmp.ne.s32.totalorder %s30, %s33
      %p39 = scmp.eq.s32.totalorder %s20, 0
      %p40 = por %p38, %p39
      %p41 = scmp.ne.s32.totalorder %s30, %s33
      %p42 = scmp.eq.s32.totalorder %s25, 3
      %p43 = por %p41, %p42
      %p44 = scmp.ne.s32.totalorder %s33, %s34
      %p45 = scmp.eq.s32.totalorder %s25, 0
      %p46 = por %p44, %p45
      %p47 = scmp.ne.s32.totalorder %s33, %s34
      %p48 = scmp.eq.s32.totalorder %s26, 3
      %p49 = por %p47, %p48
      %p51 = scmp.ne.s32.totalorder %s34, %s50
      %p52 = scmp.eq.s32.totalorder %s26, 0
      %p53 = por %p51, %p52
      %s55 = sadd.s32 %s54, 1
      %p58 = scmp.eq.s32.totalorder %s20, 3
      %p59 = scmp.ne.s32.totalorder %s54, %s56
      %p60 = scmp.eq.s32.totalorder %s20, 0
      %p61 = por %p59, %p60
      %p62 = scmp.ne.s32.totalorder %s54, %s56
      %p63 = scmp.eq.s32.totalorder %s25, 3
      %p64 = por %p62, %p63
      %p65 = scmp.ne.s32.totalorder %s56, %s57
      %p66 = scmp.eq.s32.totalorder %s25, 0
      %p67 = por %p65, %p66
      %p68 = scmp.ne.s32.totalorder %s56, %s57
      %p69 = scmp.eq.s32.totalorder %s26, 3
      %p70 = por %p68, %p69
      %p72 = scmp.ne.s32.totalorder %s57, %s71
      %p73 = scmp.eq.s32.totalorder %s26, 0
      %p74 = por %p72, %p73
      %s75 = ssub.s32 %s20, %s27
      %p76 = scmp.eq.s32.totalorder %s75, 0
      %s78 = sadd.s32 %s77, 1
      %s79 = scalar_select %p76, %s77, %s78
      %p82 = pneg %p76
      %p83 = scmp.eq.s32.totalorder %s20, 3
      %p84 = por %p82, %p83
      %p85 = scmp.ne.s32.totalorder %s77, %s80
      %p86 = scmp.eq.s32.totalorder %s20, 0
      %p87 = por %p85, %p86
      %p88 = scmp.ne.s32.totalorder %s77, %s80
      %p89 = scmp.eq.s32.totalorder %s25, 3
      %p90 = por %p88, %p89
      %p91 = scmp.ne.s32.totalorder %s80, %s81
      %p92 = scmp.eq.s32.totalorder %s25, 0
      %p93 = por %p91, %p92
      %p94 = scmp.ne.s32.totalorder %s80, %s81
      %p95 = scmp.eq.s32.totalorder %s26, 3
      %p96 = por %p94, %p95
      %p98 = scmp.ne.s32.totalorder %s81, %s97
      %p99 = scmp.eq.s32.totalorder %s26, 0
      %p100 = por %p98, %p99
      %s101 = ssub.s32 %s20, %s27
      %p102 = scmp.eq.s32.totalorder %s101, 0
      %s104 = sadd.s32 %s103, 1
      %s105 = scalar_select %p102, %s103, %s104
      %p108 = pneg %p102
      %p109 = scmp.eq.s32.totalorder %s20, 3
      %p110 = por %p108, %p109
      %p111 = scmp.ne.s32.totalorder %s103, %s106
      %p112 = scmp.eq.s32.totalorder %s20, 0
      %p113 = por %p111, %p112
      %p114 = scmp.ne.s32.totalorder %s103, %s106
      %p115 = scmp.eq.s32.totalorder %s25, 3
      %p116 = por %p114, %p115
      %p117 = scmp.ne.s32.totalorder %s106, %s107
      %p118 = scmp.eq.s32.totalorder %s25, 0
      %p119 = por %p117, %p118
      %p120 = scmp.ne.s32.totalorder %s106, %s107
      %p121 = scmp.eq.s32.totalorder %s26, 3
      %p122 = por %p120, %p121
      %p124 = scmp.ne.s32.totalorder %s107, %s123
      %p125 = scmp.eq.s32.totalorder %s26, 0
      %p126 = por %p124, %p125
      %p127 = scmp.le.s32.totalorder 1, %s20
      %p128 = scmp.lt.s32.totalorder %s20, 5
      %p129 = pnand %p127, %p128
      %p130 = pneg %p129
      // Predicated region
      $region9: #{autoencoder_loss.9} parent=5 // pred_check
        _
      $region10: #{autoencoder_loss.9} parent=5 // pred_check_branch
        %132 = sbr.rel (%p129) target = $region12
      $region11: #{autoencoder_loss.9} parent=5 // pred_region
        %s133 = ssub.s32 %s20, 1
        // Predicated region
        $region13: #{autoencoder_loss.9} parent=11 // pred_check
          %p134 = pneg %p67
        $region14: #{autoencoder_loss.9} parent=11 // pred_check_branch
          %136 = sbr.rel (%p134) target = $region16
        $region15: #{autoencoder_loss.9} parent=11 // pred_region
          %s138 = ssub.s32 1024, 1024
          %139 = vsyncadd [#allocation6], %s138
          %s140 = sshll.u32 [#allocation5], 4
          %s141 = int_to_ptr.vmem [resolvable:$true] %s140
          %146 = dma.hbm_to_vmem [thread:$0]  %s1, 1024, %s141, [#allocation6], 64, 64, 4
        $region16: #{autoencoder_loss.9} parent=11 // pred_fallthru
          _
      $region12: #{autoencoder_loss.9} parent=5 // pred_fallthru
        _
      %p147 = scmp.lt.s32.totalorder %s20, 4
      // Predicated region
      $region17: #{autoencoder_loss.9} parent=5 // pred_check
        %p148 = pneg %p147
      $region18: #{autoencoder_loss.9} parent=5 // pred_check_branch
        %150 = sbr.rel (%p148) target = $region20
      $region19: #{autoencoder_loss.9} parent=5 // pred_region
        // Predicated region
        $region21: #{autoencoder_loss.9} parent=19 // pred_check
          %p151 = pneg %p40
        $region22: #{autoencoder_loss.9} parent=19 // pred_check_branch
          %153 = sbr.rel (%p151) target = $region24
        $region23: #{autoencoder_loss.9} parent=19 // pred_region
          %s154 = sand.u32 %s30, 1
          %s155 = scalar_lea.sflag [#allocation3], %s154
          %s156 = sand.u32 %s30, 1
          %s157 = smul.addr %s156, 44
          %s158 = scalar_lea.vmem [#allocation2], %s157
          %s160 = ssub.s32 704, 704
          %161 = vsyncadd %s155, %s160
          %s162 = smul.addr %s20, 11
          %s163 = smul.addr %s162, 64
          %s164 = scalar_lea.hbm %s0, %s163
          %s165 = sshll.u32 %s158, 4
          %s166 = int_to_ptr.vmem [resolvable:$true] %s165
          %171 = dma.hbm_to_vmem [thread:$0]  %s164, 704, %s166, %s155, 64, 64, 4
        $region24: #{autoencoder_loss.9} parent=19 // pred_fallthru
          _
      $region20: #{autoencoder_loss.9} parent=5 // pred_fallthru
        _
      %p172 = scmp.le.s32.totalorder 1, %s20
      %p173 = scmp.lt.s32.totalorder %s20, 5
      %p174 = pnand %p172, %p173
      %p175 = pneg %p174
      // Predicated region
      $region25: #{autoencoder_loss.9} parent=5 // pred_check
        _
      $region26: #{autoencoder_loss.9} parent=5 // pred_check_branch
        %177 = sbr.rel (%p174) target = $region28
      $region27: #{autoencoder_loss.9} parent=5 // pred_region
        %s178 = ssub.s32 %s20, 1
        %s179 = sand.u32 %s33, 1
        %s180 = scalar_lea.sflag [#allocation3], %s179
        %s181 = sand.u32 %s33, 1
        %s182 = smul.addr %s181, 44
        %s183 = scalar_lea.vmem [#allocation2], %s182
        // Predicated region
        $region29: #{autoencoder_loss.9} parent=27 // pred_check
          %p184 = pneg %p46
        $region30: #{autoencoder_loss.9} parent=27 // pred_check_branch
          %186 = sbr.rel (%p184) target = $region32
        $region31: #{autoencoder_loss.9} parent=27 // pred_region
          %187 = dma.done %s180, 704
        $region32: #{autoencoder_loss.9} parent=27 // pred_fallthru
          _
        // Predicated region
        $region33: #{autoencoder_loss.9} parent=27 // pred_check
          %p188 = pneg %p67
        $region34: #{autoencoder_loss.9} parent=27 // pred_check_branch
          %190 = sbr.rel (%p188) target = $region36
        $region35: #{autoencoder_loss.9} parent=27 // pred_region
          %191 = dma.done [#allocation6], 1024
        $region36: #{autoencoder_loss.9} parent=27 // pred_fallthru
          _
        %s192 = sand.u32 %s33, 1
        %s193 = scalar_lea.sflag [#allocation3], %s192
        %s194 = sand.u32 %s33, 1
        %s195 = smul.addr %s194, 44
        %s196 = scalar_lea.vmem [#allocation2], %s195
        %p197 = pneg %p46
        %p198 = pneg %p43
        %p199 = pneg %p67
        %p200 = pneg %p64
        %p201 = pneg %p93
        %p202 = pneg %p90
        %s203 = sand.u32 %s80, 1
        %s204 = scalar_lea.sflag [#allocation4], %s203
        %s205 = sand.u32 %s80, 1
        %s206 = smul.addr %s205, 72
        %s207 = scalar_lea.vmem [#allocation7], %s206
        %p208 = pneg %p119
        %p209 = pneg %p116
        %s210 = sand.u32 %s106, 1
        %s211 = scalar_lea.sflag [#allocation9], %s210
        %s212 = sand.u32 %s106, 1
        %s213 = smul.addr %s212, 2
        %s214 = scalar_lea.vmem [#allocation8], %s213
        %v216 = vld [vmem:[%s183] sm:$0xf]
        %v217 = vld [vmem:[%s183 + $0x4] sm:$0xf]
        %v218 = vld [vmem:[%s183 + $0x8] sm:$0xf]
        %v219 = vld [vmem:[%s183 + $0xc] sm:$0xf]
        %v220 = vld [vmem:[%s183 + $0x10] sm:$0xf]
        %v221 = vld [vmem:[%s183 + $0x14] sm:$0xf]
        %v222 = vld [vmem:[%s183 + $0x18] sm:$0xf]
        %v223 = vld [vmem:[%s183 + $0x1c] sm:$0xf]
        %v224 = vld [vmem:[%s183 + $0x20] sm:$0xf]
        %v225 = vld [vmem:[#allocation5] sm:$0xf]
        %v226 = vld [vmem:[#allocation5 + $0x4] sm:$0xf]
        %v227 = vld [vmem:[#allocation5 + $0x8] sm:$0xf]
        %v228 = vld [vmem:[#allocation5 + $0xc] sm:$0xf]
        %s229 = scalar_lea.vmem [#allocation5], 16
        %v230 = vld [vmem:[%s229] sm:$0xf]
        %v231 = vld [vmem:[%s229 + $0x4] sm:$0xf]
        %v232 = vld [vmem:[%s229 + $0x8] sm:$0xf]
        %v233 = vld [vmem:[%s229 + $0xc] sm:$0xf]
        %v243 = vunpack.c.l.b16 %v216
        %v244 = vunpack.c.l.b16 %v217
        %v245 = vunpack.c.l.b16 %v218
        %v246 = vunpack.c.l.b16 %v219
        %v247 = vunpack.c.l.b16 %v220
        %v248 = vunpack.c.l.b16 %v221
        %v249 = vunpack.c.l.b16 %v222
        %v250 = vunpack.c.l.b16 %v223
        %v251 = vunpack.c.l.b16 %v224
        %v252 = vpack.c.b16 %v244, %v243
        %v253 = vpack.c.b16 %v246, %v245
        %v254 = vpack.c.b16 %v248, %v247
        %v255 = vpack.c.b16 %v250, %v249
        %v256 = vpack.c.b16 %v251, %v251
        %vm257 = vsmask.f32 7424
        %v259 = vshrl.u32 %v252, 16
        %v261 = vshll.u32 %v252, 16
        %v263 = vrot.slane %v261, 1
        %v264 = vor.u32 %v259, %v263
        %v266 = vshll.u32 %v253, 16
        %v268 = vrot.slane %v266, 1
        %v269 = vsel %vm257, %v264, %v268
        %v270 = vshrl.u32 %v253, 16
        %v272 = vor.u32 %v270, %v268
        %v274 = vshll.u32 %v254, 16
        %v276 = vrot.slane %v274, 1
        %v277 = vsel %vm257, %v272, %v276
        %v278 = vshrl.u32 %v254, 16
        %v280 = vor.u32 %v278, %v276
        %v282 = vshll.u32 %v255, 16
        %v284 = vrot.slane %v282, 1
        %v285 = vsel %vm257, %v280, %v284
        %v286 = vshrl.u32 %v255, 16
        %v288 = vor.u32 %v286, %v284
        %v290 = vshll.u32 %v256, 16
        %v292 = vrot.slane %v290, 1
        %v293 = vsel %vm257, %v288, %v292
        %v294 = vshrl.u32 %v256, 16
        %v296 = vor.u32 %v294, %v292
        %v301 = vunpack.c.l.b16 %v230
        %v302 = vunpack.c.l.b16 %v231
        %v303 = vunpack.c.l.b16 %v232
        %v304 = vunpack.c.l.b16 %v233
        %v305 = vpack.c.b16 %v302, %v301
        %v306 = vpack.c.b16 %v304, %v303
        %vm309 = vcmask 261120
        %v311 = vsel %vm309, %v269, 0
        %v314 = vsel %vm309, %v277, 0
        %v317 = vsel %vm309, %v285, 0
        %v320 = vsel %vm309, %v293, 0
        %v323 = vsel %vm309, %v296, 0
        %325 = vmatprep.subr.bf16.mxu0 0
        %326 = vmatpush1.bf16.msra.mxu0 %v305
        %327 = vmatprep.subr.bf16.mxu0 0
        %328 = vmatpush1.bf16.msra.mxu0 %v306
        %329 = vmatprep.subr.bf16.mxu0 0
        %330 = vmatpush1.bf16.msra.mxu0 0
        %331 = vmatprep.subr.bf16.mxu0 0
        %332 = vmatpush1.bf16.msra.mxu0 0
        %333 = vmatprep.subr.bf16.mxu0 0
        %334 = vmatpush1.bf16.msra.mxu0 0
        %335 = vmatprep.subr.bf16.mxu0 0
        %336 = vmatpush1.bf16.msra.mxu0 0
        %337 = vmatprep.subr.bf16.mxu0 0
        %338 = vmatpush1.bf16.msra.mxu0 0
        %339 = vmatprep.subr.bf16.mxu0 0
        %340 = vmatpush1.bf16.msra.mxu0 0
        %341 = vmatprep.subr.bf16.mxu0 0
        %342 = vmatpush1.bf16.msra.mxu0 0
        %343 = vmatprep.subr.bf16.mxu0 0
        %344 = vmatpush1.bf16.msra.mxu0 0
        %345 = vmatprep.subr.bf16.mxu0 0
        %346 = vmatpush1.bf16.msra.mxu0 0
        %347 = vmatprep.subr.bf16.mxu0 0
        %348 = vmatpush1.bf16.msra.mxu0 0
        %349 = vmatprep.subr.bf16.mxu0 0
        %350 = vmatpush1.bf16.msra.mxu0 0
        %351 = vmatprep.subr.bf16.mxu0 0
        %352 = vmatpush1.bf16.msra.mxu0 0
        %353 = vmatprep.subr.bf16.mxu0 0
        %354 = vmatpush1.bf16.msra.mxu0 0
        %355 = vmatprep.subr.bf16.mxu0 0
        %356 = vmatpush1.bf16.msra.mxu0 0
        %357 = vmatprep.mubr.bf16.mxu0 0
        %358 = vmatmul.mubr.bf16.gmra.mrb[0].mxu0 %v311
        %v359 = vpop.f32.mrb[0].mxu0
        %v360 = vadd.f32 0.0, %v359
        %v361 = vpop.f32.mrb[0].mxu0
        %v362 = vpop.f32.mrb[0].mxu0
        %v363 = vadd.f32 0.0, %v362
        %v364 = vpop.f32.mrb[0].mxu0
        %365 = vmatprep.mubr.bf16.mxu0 0
        %366 = vmatmul.mubr.bf16.gmra.mrb[0].mxu0 %v314
        %v367 = vpop.f32.mrb[0].mxu0
        %v368 = vadd.f32 0.0, %v367
        %v369 = vpop.f32.mrb[0].mxu0
        %v370 = vpop.f32.mrb[0].mxu0
        %v371 = vadd.f32 0.0, %v370
        %v372 = vpop.f32.mrb[0].mxu0
        %373 = vmatprep.mubr.bf16.mxu0 0
        %374 = vmatmul.mubr.bf16.gmra.mrb[0].mxu0 %v317
        %v375 = vpop.f32.mrb[0].mxu0
        %v376 = vadd.f32 0.0, %v375
        %v377 = vpop.f32.mrb[0].mxu0
        %v378 = vpop.f32.mrb[0].mxu0
        %v379 = vadd.f32 0.0, %v378
        %v380 = vpop.f32.mrb[0].mxu0
        %381 = vmatprep.mubr.bf16.mxu0 0
        %382 = vmatmul.mubr.bf16.gmra.mrb[0].mxu0 %v320
        %v383 = vpop.f32.mrb[0].mxu0
        %v384 = vadd.f32 0.0, %v383
        %v385 = vpop.f32.mrb[0].mxu0
        %v386 = vpop.f32.mrb[0].mxu0
        %v387 = vadd.f32 0.0, %v386
        %v388 = vpop.f32.mrb[0].mxu0
        %389 = vmatprep.mubr.bf16.mxu0 0
        %390 = vmatmul.mubr.bf16.gmra.mrb[0].mxu0 %v323
        %v391 = vpop.f32.mrb[0].mxu0
        %v392 = vadd.f32 0.0, %v391
        %v393 = vpop.f32.mrb[0].mxu0
        %v394 = vpop.f32.mrb[0].mxu0
        %v395 = vpop.f32.mrb[0].mxu0
        %396 = vdwg.mxu0
        %v401 = vunpack.c.l.b16 %v225
        %v402 = vunpack.c.l.b16 %v226
        %v403 = vunpack.c.l.b16 %v227
        %v404 = vunpack.c.l.b16 %v228
        %v405 = vpack.c.b16 %v402, %v401
        %v406 = vpack.c.b16 %v404, %v403
        %v409 = vsel %vm309, %v252, 0
        %v411 = vsel %vm309, %v253, 0
        %v413 = vsel %vm309, %v254, 0
        %v415 = vsel %vm309, %v255, 0
        %v417 = vsel %vm309, %v256, 0
        %419 = vmatprep.subr.bf16.mxu0 0
        %420 = vmatpush1.bf16.msra.mxu0 %v405
        %421 = vmatprep.subr.bf16.mxu0 0
        %422 = vmatpush1.bf16.msra.mxu0 %v406
        %423 = vmatprep.subr.bf16.mxu0 0
        %424 = vmatpush1.bf16.msra.mxu0 0
        %425 = vmatprep.subr.bf16.mxu0 0
        %426 = vmatpush1.bf16.msra.mxu0 0
        %427 = vmatprep.subr.bf16.mxu0 0
        %428 = vmatpush1.bf16.msra.mxu0 0
        %429 = vmatprep.subr.bf16.mxu0 0
        %430 = vmatpush1.bf16.msra.mxu0 0
        %431 = vmatprep.subr.bf16.mxu0 0
        %432 = vmatpush1.bf16.msra.mxu0 0
        %433 = vmatprep.subr.bf16.mxu0 0
        %434 = vmatpush1.bf16.msra.mxu0 0
        %435 = vmatprep.subr.bf16.mxu0 0
        %436 = vmatpush1.bf16.msra.mxu0 0
        %437 = vmatprep.subr.bf16.mxu0 0
        %438 = vmatpush1.bf16.msra.mxu0 0
        %439 = vmatprep.subr.bf16.mxu0 0
        %440 = vmatpush1.bf16.msra.mxu0 0
        %441 = vmatprep.subr.bf16.mxu0 0
        %442 = vmatpush1.bf16.msra.mxu0 0
        %443 = vmatprep.subr.bf16.mxu0 0
        %444 = vmatpush1.bf16.msra.mxu0 0
        %445 = vmatprep.subr.bf16.mxu0 0
        %446 = vmatpush1.bf16.msra.mxu0 0
        %447 = vmatprep.subr.bf16.mxu0 0
        %448 = vmatpush1.bf16.msra.mxu0 0
        %449 = vmatprep.subr.bf16.mxu0 0
        %450 = vmatpush1.bf16.msra.mxu0 0
        %451 = vmatprep.mubr.bf16.mxu0 0
        %452 = vmatmul.mubr.bf16.gmra.mrb[0].mxu0 %v409
        %v453 = vpop.f32.mrb[0].mxu0
        %v454 = vadd.f32 %v360, %v453
        %v455 = vpop.f32.mrb[0].mxu0
        %v456 = vpop.f32.mrb[0].mxu0
        %v457 = vadd.f32 %v363, %v456
        %v458 = vpop.f32.mrb[0].mxu0
        %459 = vmatprep.mubr.bf16.mxu0 0
        %460 = vmatmul.mubr.bf16.gmra.mrb[0].mxu0 %v411
        %v461 = vpop.f32.mrb[0].mxu0
        %v462 = vadd.f32 %v368, %v461
        %v463 = vpop.f32.mrb[0].mxu0
        %v464 = vpop.f32.mrb[0].mxu0
        %v465 = vadd.f32 %v371, %v464
        %v466 = vpop.f32.mrb[0].mxu0
        %467 = vmatprep.mubr.bf16.mxu0 0
        %468 = vmatmul.mubr.bf16.gmra.mrb[0].mxu0 %v413
        %v469 = vpop.f32.mrb[0].mxu0
        %v470 = vadd.f32 %v376, %v469
        %v471 = vpop.f32.mrb[0].mxu0
        %v472 = vpop.f32.mrb[0].mxu0
        %v473 = vadd.f32 %v379, %v472
        %v474 = vpop.f32.mrb[0].mxu0
        %475 = vmatprep.mubr.bf16.mxu0 0
        %476 = vmatmul.mubr.bf16.gmra.mrb[0].mxu0 %v415
        %v477 = vpop.f32.mrb[0].mxu0
        %v478 = vadd.f32 %v384, %v477
        %v479 = vpop.f32.mrb[0].mxu0
        %v480 = vpop.f32.mrb[0].mxu0
        %v481 = vadd.f32 %v387, %v480
        %v482 = vpop.f32.mrb[0].mxu0
        %483 = vmatprep.mubr.bf16.mxu0 0
        %484 = vmatmul.mubr.bf16.gmra.mrb[0].mxu0 %v417
        %v485 = vpop.f32.mrb[0].mxu0
        %v486 = vadd.f32 %v392, %v485
        %v487 = vpop.f32.mrb[0].mxu0
        %v488 = vpop.f32.mrb[0].mxu0
        %v489 = vpop.f32.mrb[0].mxu0
        %490 = vdwg.mxu0
        %v491 = vld [vmem:[%s183 + $0x4] sm:$0xf]
        %v492 = vld [vmem:[%s183 + $0x8] sm:$0xf]
        %v493 = vld [vmem:[%s183 + $0xc] sm:$0xf]
        %v494 = vld [vmem:[%s183 + $0x10] sm:$0xf]
        %v495 = vld [vmem:[%s183 + $0x14] sm:$0xf]
        %v496 = vld [vmem:[%s183 + $0x18] sm:$0xf]
        %v497 = vld [vmem:[%s183 + $0x1c] sm:$0xf]
        %v498 = vld [vmem:[%s183 + $0x20] sm:$0xf]
        %v499 = vld [vmem:[%s183 + $0x24] sm:$0xf]
        %s500 = scalar_lea.vmem [#allocation5], 32
        %v501 = vld [vmem:[%s500] sm:$0xf]
        %v502 = vld [vmem:[%s500 + $0x4] sm:$0xf]
        %v503 = vld [vmem:[%s500 + $0x8] sm:$0xf]
        %v504 = vld [vmem:[%s500 + $0xc] sm:$0xf]
        %v514 = vunpack.c.l.b16 %v491
        %v515 = vunpack.c.l.b16 %v492
        %v516 = vunpack.c.l.b16 %v493
        %v517 = vunpack.c.l.b16 %v494
        %v518 = vunpack.c.l.b16 %v495
        %v519 = vunpack.c.l.b16 %v496
        %v520 = vunpack.c.l.b16 %v497
        %v521 = vunpack.c.l.b16 %v498
        %v522 = vunpack.c.l.b16 %v499
        %v523 = vpack.c.b16 %v515, %v514
        %v524 = vpack.c.b16 %v517, %v516
        %v525 = vpack.c.b16 %v519, %v518
        %v526 = vpack.c.b16 %v521, %v520
        %v527 = vpack.c.b16 %v522, %v522
        %v529 = vshrl.u32 %v523, 16
        %v531 = vshll.u32 %v523, 16
        %v533 = vrot.slane %v531, 1
        %v534 = vor.u32 %v529, %v533
        %v536 = vshll.u32 %v524, 16
        %v538 = vrot.slane %v536, 1
        %v539 = vsel %vm257, %v534, %v538
        %v540 = vshrl.u32 %v524, 16
        %v542 = vor.u32 %v540, %v538
        %v544 = vshll.u32 %v525, 16
        %v546 = vrot.slane %v544, 1
        %v547 = vsel %vm257, %v542, %v546
        %v548 = vshrl.u32 %v525, 16
        %v550 = vor.u32 %v548, %v546
        %v552 = vshll.u32 %v526, 16
        %v554 = vrot.slane %v552, 1
        %v555 = vsel %vm257, %v550, %v554
        %v556 = vshrl.u32 %v526, 16
        %v558 = vor.u32 %v556, %v554
        %v560 = vshll.u32 %v527, 16
        %v562 = vrot.slane %v560, 1
        %v563 = vsel %vm257, %v558, %v562
        %v564 = vshrl.u32 %v527, 16
        %v566 = vor.u32 %v564, %v562
        %v571 = vunpack.c.l.b16 %v501
        %v572 = vunpack.c.l.b16 %v502
        %v573 = vunpack.c.l.b16 %v503
        %v574 = vunpack.c.l.b16 %v504
        %v575 = vpack.c.b16 %v572, %v571
        %v576 = vpack.c.b16 %v574, %v573
        %v580 = vsel %vm309, %v539, 0
        %v583 = vsel %vm309, %v547, 0
        %v586 = vsel %vm309, %v555, 0
        %v589 = vsel %vm309, %v563, 0
        %v592 = vsel %vm309, %v566, 0
        %594 = vmatprep.subr.bf16.mxu0 0
        %595 = vmatpush1.bf16.msra.mxu0 %v575
        %596 = vmatprep.subr.bf16.mxu0 0
        %597 = vmatpush1.bf16.msra.mxu0 %v576
        %598 = vmatprep.subr.bf16.mxu0 0
        %599 = vmatpush1.bf16.msra.mxu0 0
        %600 = vmatprep.subr.bf16.mxu0 0
        %601 = vmatpush1.bf16.msra.mxu0 0
        %602 = vmatprep.subr.bf16.mxu0 0
        %603 = vmatpush1.bf16.msra.mxu0 0
        %604 = vmatprep.subr.bf16.mxu0 0
        %605 = vmatpush1.bf16.msra.mxu0 0
        %606 = vmatprep.subr.bf16.mxu0 0
        %607 = vmatpush1.bf16.msra.mxu0 0
        %608 = vmatprep.subr.bf16.mxu0 0
        %609 = vmatpush1.bf16.msra.mxu0 0
        %610 = vmatprep.subr.bf16.mxu0 0
        %611 = vmatpush1.bf16.msra.mxu0 0
        %612 = vmatprep.subr.bf16.mxu0 0
        %613 = vmatpush1.bf16.msra.mxu0 0
        %614 = vmatprep.subr.bf16.mxu0 0
        %615 = vmatpush1.bf16.msra.mxu0 0
        %616 = vmatprep.subr.bf16.mxu0 0
        %617 = vmatpush1.bf16.msra.mxu0 0
        %618 = vmatprep.subr.bf16.mxu0 0
        %619 = vmatpush1.bf16.msra.mxu0 0
        %620 = vmatprep.subr.bf16.mxu0 0
        %621 = vmatpush1.bf16.msra.mxu0 0
        %622 = vmatprep.subr.bf16.mxu0 0
        %623 = vmatpush1.bf16.msra.mxu0 0
        %624 = vmatprep.subr.bf16.mxu0 0
        %625 = vmatpush1.bf16.msra.mxu0 0
        %626 = vmatprep.mubr.bf16.mxu0 0
        %627 = vmatmul.mubr.bf16.gmra.mrb[0].mxu0 %v580
        %v628 = vpop.f32.mrb[0].mxu0
        %v629 = vadd.f32 0.0, %v628
        %v630 = vpop.f32.mrb[0].mxu0
        %v631 = vpop.f32.mrb[0].mxu0
        %v632 = vadd.f32 0.0, %v631
        %v633 = vpop.f32.mrb[0].mxu0
        %634 = vmatprep.mubr.bf16.mxu0 0
        %635 = vmatmul.mubr.bf16.gmra.mrb[0].mxu0 %v583
        %v636 = vpop.f32.mrb[0].mxu0
        %v637 = vadd.f32 0.0, %v636
        %v638 = vpop.f32.mrb[0].mxu0
        %v639 = vpop.f32.mrb[0].mxu0
        %v640 = vadd.f32 0.0, %v639
        %v641 = vpop.f32.mrb[0].mxu0
        %642 = vmatprep.mubr.bf16.mxu0 0
        %643 = vmatmul.mubr.bf16.gmra.mrb[0].mxu0 %v586
        %v644 = vpop.f32.mrb[0].mxu0
        %v645 = vadd.f32 0.0, %v644
        %v646 = vpop.f32.mrb[0].mxu0
        %v647 = vpop.f32.mrb[0].mxu0
        %v648 = vadd.f32 0.0, %v647
        %v649 = vpop.f32.mrb[0].mxu0
        %650 = vmatprep.mubr.bf16.mxu0 0
        %651 = vmatmul.mubr.bf16.gmra.mrb[0].mxu0 %v589
        %v652 = vpop.f32.mrb[0].mxu0
        %v653 = vadd.f32 0.0, %v652
        %v654 = vpop.f32.mrb[0].mxu0
        %v655 = vpop.f32.mrb[0].mxu0
        %v656 = vadd.f32 0.0, %v655
        %v657 = vpop.f32.mrb[0].mxu0
        %658 = vmatprep.mubr.bf16.mxu0 0
        %659 = vmatmul.mubr.bf16.gmra.mrb[0].mxu0 %v592
        %v660 = vpop.f32.mrb[0].mxu0
        %v661 = vadd.f32 0.0, %v660
        %v662 = vpop.f32.mrb[0].mxu0
        %v663 = vpop.f32.mrb[0].mxu0
        %v664 = vpop.f32.mrb[0].mxu0
        %665 = vdwg.mxu0
        %v666 = vadd.f32 %v454, %v629
        %v667 = vadd.f32 %v457, %v632
        %v668 = vadd.f32 %v462, %v637
        %v669 = vadd.f32 %v465, %v640
        %v670 = vadd.f32 %v470, %v645
        %v671 = vadd.f32 %v473, %v648
        %v672 = vadd.f32 %v478, %v653
        %v673 = vadd.f32 %v481, %v656
        %v674 = vadd.f32 %v486, %v661
        %v675 = vld [vmem:[%s183 + $0x4] sm:$0xe]
        %v676 = vld [vmem:[%s183 + $0x8] sm:$0xf]
        %v677 = vld [vmem:[%s183 + $0xc] sm:$0xf]
        %v678 = vld [vmem:[%s183 + $0x10] sm:$0xf]
        %v679 = vld [vmem:[%s183 + $0x14] sm:$0xf]
        %v680 = vld [vmem:[%s183 + $0x18] sm:$0xf]
        %v681 = vld [vmem:[%s183 + $0x1c] sm:$0xf]
        %v682 = vld [vmem:[%s183 + $0x20] sm:$0xf]
        %v683 = vld [vmem:[%s183 + $0x24] sm:$0xf]
        %v684 = vld [vmem:[%s183 + $0x28] sm:$0x1]
        %s685 = scalar_lea.vmem [#allocation5], 48
        %v686 = vld [vmem:[%s685] sm:$0xf]
        %v687 = vld [vmem:[%s685 + $0x4] sm:$0xf]
        %v688 = vld [vmem:[%s685 + $0x8] sm:$0xf]
        %v689 = vld [vmem:[%s685 + $0xc] sm:$0xf]
        %v700 = vunpack.c.l.b16 %v675
        %v701 = vunpack.c.l.b16 %v676
        %v702 = vunpack.c.l.b16 %v677
        %v703 = vunpack.c.l.b16 %v678
        %v704 = vunpack.c.l.b16 %v679
        %v705 = vunpack.c.l.b16 %v680
        %v706 = vunpack.c.l.b16 %v681
        %v707 = vunpack.c.l.b16 %v682
        %v708 = vunpack.c.l.b16 %v683
        %v709 = vunpack.c.l.b16 %v684
        %v710 = vpack.c.b16 %v701, %v700
        %v711 = vpack.c.b16 %v703, %v702
        %v712 = vpack.c.b16 %v705, %v704
        %v713 = vpack.c.b16 %v707, %v706
        %v714 = vpack.c.b16 %v709, %v708
        %vm715 = vcmask 1046528
        %v716 = vrot.slane %v710, 1
        %v717 = vrot.slane %v711, 1
        %v718 = vsel %vm715, %v716, %v717
        %v719 = vrot.slane %v712, 1
        %v720 = vsel %vm715, %v717, %v719
        %v721 = vrot.slane %v713, 1
        %v722 = vsel %vm715, %v719, %v721
        %v723 = vrot.slane %v714, 1
        %v724 = vsel %vm715, %v721, %v723
        %v729 = vunpack.c.l.b16 %v686
        %v730 = vunpack.c.l.b16 %v687
        %v731 = vunpack.c.l.b16 %v688
        %v732 = vunpack.c.l.b16 %v689
        %v733 = vpack.c.b16 %v730, %v729
        %v734 = vpack.c.b16 %v732, %v731
        %v738 = vsel %vm309, %v718, 0
        %v741 = vsel %vm309, %v720, 0
        %v744 = vsel %vm309, %v722, 0
        %v747 = vsel %vm309, %v724, 0
        %v750 = vsel %vm309, %v723, 0
        %752 = vmatprep.subr.bf16.mxu0 0
        %753 = vmatpush1.bf16.msra.mxu0 %v733
        %754 = vmatprep.subr.bf16.mxu0 0
        %755 = vmatpush1.bf16.msra.mxu0 %v734
        %756 = vmatprep.subr.bf16.mxu0 0
        %757 = vmatpush1.bf16.msra.mxu0 0
        %758 = vmatprep.subr.bf16.mxu0 0
        %759 = vmatpush1.bf16.msra.mxu0 0
        %760 = vmatprep.subr.bf16.mxu0 0
        %761 = vmatpush1.bf16.msra.mxu0 0
        %762 = vmatprep.subr.bf16.mxu0 0
        %763 = vmatpush1.bf16.msra.mxu0 0
        %764 = vmatprep.subr.bf16.mxu0 0
        %765 = vmatpush1.bf16.msra.mxu0 0
        %766 = vmatprep.subr.bf16.mxu0 0
        %767 = vmatpush1.bf16.msra.mxu0 0
        %768 = vmatprep.subr.bf16.mxu0 0
        %769 = vmatpush1.bf16.msra.mxu0 0
        %770 = vmatprep.subr.bf16.mxu0 0
        %771 = vmatpush1.bf16.msra.mxu0 0
        %772 = vmatprep.subr.bf16.mxu0 0
        %773 = vmatpush1.bf16.msra.mxu0 0
        %774 = vmatprep.subr.bf16.mxu0 0
        %775 = vmatpush1.bf16.msra.mxu0 0
        %776 = vmatprep.subr.bf16.mxu0 0
        %777 = vmatpush1.bf16.msra.mxu0 0
        %778 = vmatprep.subr.bf16.mxu0 0
        %779 = vmatpush1.bf16.msra.mxu0 0
        %780 = vmatprep.subr.bf16.mxu0 0
        %781 = vmatpush1.bf16.msra.mxu0 0
        %782 = vmatprep.subr.bf16.mxu0 0
        %783 = vmatpush1.bf16.msra.mxu0 0
        %784 = vmatprep.mubr.bf16.mxu0 0
        %785 = vmatmul.mubr.bf16.gmra.mrb[0].mxu0 %v738
        %v786 = vpop.f32.mrb[0].mxu0
        %v787 = vadd.f32 0.0, %v786
        %v788 = vpop.f32.mrb[0].mxu0
        %v789 = vpop.f32.mrb[0].mxu0
        %v790 = vadd.f32 0.0, %v789
        %v791 = vpop.f32.mrb[0].mxu0
        %792 = vmatprep.mubr.bf16.mxu0 0
        %793 = vmatmul.mubr.bf16.gmra.mrb[0].mxu0 %v741
        %v794 = vpop.f32.mrb[0].mxu0
        %v795 = vadd.f32 0.0, %v794
        %v796 = vpop.f32.mrb[0].mxu0
        %v797 = vpop.f32.mrb[0].mxu0
        %v798 = vadd.f32 0.0, %v797
        %v799 = vpop.f32.mrb[0].mxu0
        %800 = vmatprep.mubr.bf16.mxu0 0
        %801 = vmatmul.mubr.bf16.gmra.mrb[0].mxu0 %v744
        %v802 = vpop.f32.mrb[0].mxu0
        %v803 = vadd.f32 0.0, %v802
        %v804 = vpop.f32.mrb[0].mxu0
        %v805 = vpop.f32.mrb[0].mxu0
        %v806 = vadd.f32 0.0, %v805
        %v807 = vpop.f32.mrb[0].mxu0
        %808 = vmatprep.mubr.bf16.mxu0 0
        %809 = vmatmul.mubr.bf16.gmra.mrb[0].mxu0 %v747
        %v810 = vpop.f32.mrb[0].mxu0
        %v811 = vadd.f32 0.0, %v810
        %v812 = vpop.f32.mrb[0].mxu0
        %v813 = vpop.f32.mrb[0].mxu0
        %v814 = vadd.f32 0.0, %v813
        %v815 = vpop.f32.mrb[0].mxu0
        %816 = vmatprep.mubr.bf16.mxu0 0
        %817 = vmatmul.mubr.bf16.gmra.mrb[0].mxu0 %v750
        %v818 = vpop.f32.mrb[0].mxu0
        %v819 = vadd.f32 0.0, %v818
        %v820 = vpop.f32.mrb[0].mxu0
        %v821 = vpop.f32.mrb[0].mxu0
        %v822 = vpop.f32.mrb[0].mxu0
        %823 = vdwg.mxu0
        %v824 = vadd.f32 %v666, %v787
        %v825 = vadd.f32 %v667, %v790
        %v826 = vadd.f32 %v668, %v795
        %v827 = vadd.f32 %v669, %v798
        %v828 = vadd.f32 %v670, %v803
        %v829 = vadd.f32 %v671, %v806
        %v830 = vadd.f32 %v672, %v811
        %v831 = vadd.f32 %v673, %v814
        %v832 = vadd.f32 %v674, %v819
        %833 = vst [vmem:[%s207] sm:$0xff] %v824
        %834 = vst [vmem:[%s207 + $0x8] sm:$0xff] %v825
        %835 = vst [vmem:[%s207 + $0x10] sm:$0xff] %v826
        %836 = vst [vmem:[%s207 + $0x18] sm:$0xff] %v827
        %837 = vst [vmem:[%s207 + $0x20] sm:$0xff] %v828
        %838 = vst [vmem:[%s207 + $0x28] sm:$0xff] %v829
        %839 = vst [vmem:[%s207 + $0x30] sm:$0xff] %v830
        %840 = vst [vmem:[%s207 + $0x38] sm:$0xff] %v831
        %841 = vst [vmem:[%s207 + $0x40] sm:$0x7f] %v832
        %v842 = vlaneseq
        %v843 = vshrl.u32 %v842, 7
        %v844 = vadd.s32 %v843, 8
        %v845 = vadd.s32 %v843, 16
        %v846 = vadd.s32 %v843, 24
        %v847 = vadd.s32 %v843, 32
        %v848 = vadd.s32 %v843, 40
        %v849 = vadd.s32 %v843, 48
        %v850 = vadd.s32 %v843, 56
        %v851 = vadd.s32 %v843, 64
        %vm852 = vcmp.lt.s32.totalorder %v843, 0
        %v853 = vsub.s32 0, %v843
        %v854 = vsel %vm852, %v853, %v843
        %v855 = vmul.u32.u64.compose %v854, 3817748708
        %v856 = vextract.low.u32 %v855
        %v857 = vextract.high.u32 %v855
        %v858 = vshrl.u32 %v857, 3
        %v859 = vmul.u32 %v858, 9
        %v860 = vsub.s32 %v854, %v859
        %v861 = vsub.s32 0, %v860
        %v862 = vsel %vm852, %v861, %v860
        %vm863 = vcmp.lt.s32.totalorder %v844, 0
        %v864 = vsub.s32 0, %v844
        %v865 = vsel %vm863, %v864, %v844
        %v866 = vmul.u32.u64.compose %v865, 3817748708
        %v867 = vextract.low.u32 %v866
        %v868 = vextract.high.u32 %v866
        %v869 = vshrl.u32 %v868, 3
        %v870 = vmul.u32 %v869, 9
        %v871 = vsub.s32 %v865, %v870
        %v872 = vsub.s32 0, %v871
        %v873 = vsel %vm863, %v872, %v871
        %vm874 = vcmp.lt.s32.totalorder %v845, 0
        %v875 = vsub.s32 0, %v845
        %v876 = vsel %vm874, %v875, %v845
        %v877 = vmul.u32.u64.compose %v876, 3817748708
        %v878 = vextract.low.u32 %v877
        %v879 = vextract.high.u32 %v877
        %v880 = vshrl.u32 %v879, 3
        %v881 = vmul.u32 %v880, 9
        %v882 = vsub.s32 %v876, %v881
        %v883 = vsub.s32 0, %v882
        %v884 = vsel %vm874, %v883, %v882
        %vm885 = vcmp.lt.s32.totalorder %v846, 0
        %v886 = vsub.s32 0, %v846
        %v887 = vsel %vm885, %v886, %v846
        %v888 = vmul.u32.u64.compose %v887, 3817748708
        %v889 = vextract.low.u32 %v888
        %v890 = vextract.high.u32 %v888
        %v891 = vshrl.u32 %v890, 3
        %v892 = vmul.u32 %v891, 9
        %v893 = vsub.s32 %v887, %v892
        %v894 = vsub.s32 0, %v893
        %v895 = vsel %vm885, %v894, %v893
        %vm896 = vcmp.lt.s32.totalorder %v847, 0
        %v897 = vsub.s32 0, %v847
        %v898 = vsel %vm896, %v897, %v847
        %v899 = vmul.u32.u64.compose %v898, 3817748708
        %v900 = vextract.low.u32 %v899
        %v901 = vextract.high.u32 %v899
        %v902 = vshrl.u32 %v901, 3
        %v903 = vmul.u32 %v902, 9
        %v904 = vsub.s32 %v898, %v903
        %v905 = vsub.s32 0, %v904
        %v906 = vsel %vm896, %v905, %v904
        %vm907 = vcmp.lt.s32.totalorder %v848, 0
        %v908 = vsub.s32 0, %v848
        %v909 = vsel %vm907, %v908, %v848
        %v910 = vmul.u32.u64.compose %v909, 3817748708
        %v911 = vextract.low.u32 %v910
        %v912 = vextract.high.u32 %v910
        %v913 = vshrl.u32 %v912, 3
        %v914 = vmul.u32 %v913, 9
        %v915 = vsub.s32 %v909, %v914
        %v916 = vsub.s32 0, %v915
        %v917 = vsel %vm907, %v916, %v915
        %vm918 = vcmp.lt.s32.totalorder %v849, 0
        %v919 = vsub.s32 0, %v849
        %v920 = vsel %vm918, %v919, %v849
        %v921 = vmul.u32.u64.compose %v920, 3817748708
        %v922 = vextract.low.u32 %v921
        %v923 = vextract.high.u32 %v921
        %v924 = vshrl.u32 %v923, 3
        %v925 = vmul.u32 %v924, 9
        %v926 = vsub.s32 %v920, %v925
        %v927 = vsub.s32 0, %v926
        %v928 = vsel %vm918, %v927, %v926
        %vm929 = vcmp.lt.s32.totalorder %v850, 0
        %v930 = vsub.s32 0, %v850
        %v931 = vsel %vm929, %v930, %v850
        %v932 = vmul.u32.u64.compose %v931, 3817748708
        %v933 = vextract.low.u32 %v932
        %v934 = vextract.high.u32 %v932
        %v935 = vshrl.u32 %v934, 3
        %v936 = vmul.u32 %v935, 9
        %v937 = vsub.s32 %v931, %v936
        %v938 = vsub.s32 0, %v937
        %v939 = vsel %vm929, %v938, %v937
        %vm940 = vcmp.lt.s32.totalorder %v851, 0
        %v941 = vsub.s32 0, %v851
        %v942 = vsel %vm940, %v941, %v851
        %v943 = vmul.u32.u64.compose %v942, 3817748708
        %v944 = vextract.low.u32 %v943
        %v945 = vextract.high.u32 %v943
        %v946 = vshrl.u32 %v945, 3
        %v947 = vmul.u32 %v946, 9
        %v948 = vsub.s32 %v942, %v947
        %v949 = vsub.s32 0, %v948
        %v950 = vsel %vm940, %v949, %v948
        %vm951 = vcmp.ne.s32.totalorder %v862, 0
        %vm952 = vcmp.ne.s32.totalorder %v873, 0
        %vm953 = vcmp.ne.s32.totalorder %v884, 0
        %vm954 = vcmp.ne.s32.totalorder %v895, 0
        %vm955 = vcmp.ne.s32.totalorder %v906, 0
        %vm956 = vcmp.ne.s32.totalorder %v917, 0
        %vm957 = vcmp.ne.s32.totalorder %v928, 0
        %vm958 = vcmp.ne.s32.totalorder %v939, 0
        %vm959 = vcmp.ne.s32.totalorder %v950, 0
        %vm960 = vcmp.lt.s32.totalorder %v862, 0
        %vm961 = vcmp.lt.s32.totalorder %v873, 0
        %vm962 = vcmp.lt.s32.totalorder %v884, 0
        %vm963 = vcmp.lt.s32.totalorder %v895, 0
        %vm964 = vcmp.lt.s32.totalorder %v906, 0
        %vm965 = vcmp.lt.s32.totalorder %v917, 0
        %vm966 = vcmp.lt.s32.totalorder %v928, 0
        %vm967 = vcmp.lt.s32.totalorder %v939, 0
        %vm968 = vcmp.lt.s32.totalorder %v950, 0
        %vm969 = vmand %vm960, %vm951
        %vm970 = vmand %vm961, %vm952
        %vm971 = vmand %vm962, %vm953
        %vm972 = vmand %vm963, %vm954
        %vm973 = vmand %vm964, %vm955
        %vm974 = vmand %vm965, %vm956
        %vm975 = vmand %vm966, %vm957
        %vm976 = vmand %vm967, %vm958
        %vm977 = vmand %vm968, %vm959
        %v978 = vadd.s32 %v862, 9
        %v979 = vadd.s32 %v873, 9
        %v980 = vadd.s32 %v884, 9
        %v981 = vadd.s32 %v895, 9
        %v982 = vadd.s32 %v906, 9
        %v983 = vadd.s32 %v917, 9
        %v984 = vadd.s32 %v928, 9
        %v985 = vadd.s32 %v939, 9
        %v986 = vadd.s32 %v950, 9
        %v987 = vsel %vm969, %v978, %v862
        %v988 = vsel %vm970, %v979, %v873
        %v989 = vsel %vm971, %v980, %v884
        %v990 = vsel %vm972, %v981, %v895
        %v991 = vsel %vm973, %v982, %v906
        %v992 = vsel %vm974, %v983, %v917
        %v993 = vsel %vm975, %v984, %v928
        %v994 = vsel %vm976, %v985, %v939
        %v995 = vsel %vm977, %v986, %v950
        %vm996 = vcmp.lt.s32.totalorder %v987, 8
        %vm997 = vcmp.lt.s32.totalorder %v988, 8
        %vm998 = vcmp.lt.s32.totalorder %v989, 8
        %vm999 = vcmp.lt.s32.totalorder %v990, 8
        %vm1000 = vcmp.lt.s32.totalorder %v991, 8
        %vm1001 = vcmp.lt.s32.totalorder %v992, 8
        %vm1002 = vcmp.lt.s32.totalorder %v993, 8
        %vm1003 = vcmp.lt.s32.totalorder %v994, 8
        %vm1004 = vcmp.lt.s32.totalorder %v995, 8
        %v1005 = vsel %vm996, %v824, 0.0
        %v1006 = vsel %vm997, %v825, 0.0
        %v1007 = vsel %vm998, %v826, 0.0
        %v1008 = vsel %vm999, %v827, 0.0
        %v1009 = vsel %vm1000, %v828, 0.0
        %v1010 = vsel %vm1001, %v829, 0.0
        %v1011 = vsel %vm1002, %v830, 0.0
        %v1012 = vsel %vm1003, %v831, 0.0
        %v1013 = vsel %vm1004, %v832, 0.0
        %v1014 = vadd.f32 %v1005, %v1006
        %v1015 = vadd.f32 %v1014, %v1007
        %v1016 = vadd.f32 %v1015, %v1008
        %v1017 = vadd.f32 %v1016, %v1009
        %v1018 = vadd.f32 %v1017, %v1010
        %v1019 = vadd.f32 %v1018, %v1011
        %v1020 = vadd.f32 %v1019, %v1012
        %vm1021 = vcmask 1046528
        %v1022 = vsel %vm1021, %v1013, 0.0
        %v1023 = vadd.f32 %v1020, %v1022
        %v1024 = vrot.slane %v1023, 4
        %v1025 = vadd.f32 %v1023, %v1024
        %v1026 = vrot.slane %v1025, 2
        %v1027 = vadd.f32 %v1025, %v1026
        %v1028 = vrot.slane %v1027, 1
        %v1029 = vadd.f32 %v1027, %v1028
        %v1030 = vmul.f32 %v1005, %v1005
        %v1031 = vmul.f32 %v1006, %v1006
        %v1032 = vmul.f32 %v1007, %v1007
        %v1033 = vmul.f32 %v1008, %v1008
        %v1034 = vmul.f32 %v1009, %v1009
        %v1035 = vmul.f32 %v1010, %v1010
        %v1036 = vmul.f32 %v1011, %v1011
        %v1037 = vmul.f32 %v1012, %v1012
        %v1038 = vmul.f32 %v1013, %v1013
        %v1039 = vadd.f32 %v1030, %v1031
        %v1040 = vadd.f32 %v1039, %v1032
        %v1041 = vadd.f32 %v1040, %v1033
        %v1042 = vadd.f32 %v1041, %v1034
        %v1043 = vadd.f32 %v1042, %v1035
        %v1044 = vadd.f32 %v1043, %v1036
        %v1045 = vadd.f32 %v1044, %v1037
        %v1046 = vsel %vm1021, %v1038, 0.0
        %v1047 = vadd.f32 %v1045, %v1046
        %v1048 = vrot.slane %v1047, 4
        %v1049 = vadd.f32 %v1047, %v1048
        %v1050 = vrot.slane %v1049, 2
        %v1051 = vadd.f32 %v1049, %v1050
        %v1052 = vrot.slane %v1051, 1
        %v1053 = vadd.f32 %v1051, %v1052
        %vm1054 = vcmask 1040384
        %v1055 = vsel %vm1054, %v1029, %v1053
        %1056 = vst [vmem:[%s214] sm:$0x3] %v1055
        %s1057 = sand.u32 %s80, 1
        %s1058 = scalar_lea.sflag [#allocation4], %s1057
        %s1059 = sand.u32 %s80, 1
        %s1060 = smul.addr %s1059, 72
        %s1061 = scalar_lea.vmem [#allocation7], %s1060
        %s1062 = sand.u32 %s106, 1
        %s1063 = scalar_lea.sflag [#allocation9], %s1062
        %s1064 = sand.u32 %s106, 1
        %s1065 = smul.addr %s1064, 2
        %s1066 = scalar_lea.vmem [#allocation8], %s1065
        // Predicated region
        $region37: #{autoencoder_loss.9} parent=27 // pred_check
          %p1067 = pneg %p90
        $region38: #{autoencoder_loss.9} parent=27 // pred_check_branch
          %1069 = sbr.rel (%p1067) target = $region40
        $region39: #{autoencoder_loss.9} parent=27 // pred_region
          %s1071 = ssub.s32 1152, 1152
          %1072 = vsyncadd %s1058, %s1071
          %s1073 = smul.addr %s25, 9
          %s1074 = smul.addr %s1073, 128
          %s1075 = scalar_lea.hbm %s2, %s1074
          %s1076 = sshll.u32 %s1061, 4
          %s1077 = int_to_ptr.vmem [resolvable:$true] %s1076
          %1082 = dma.vmem_to_hbm [thread:$0]  %s1077, 1152, %s1075, %s1058, 128, 128, 8
        $region40: #{autoencoder_loss.9} parent=27 // pred_fallthru
          _
        // Predicated region
        $region41: #{autoencoder_loss.9} parent=27 // pred_check
          %p1083 = pneg %p116
        $region42: #{autoencoder_loss.9} parent=27 // pred_check_branch
          %1085 = sbr.rel (%p1083) target = $region44
        $region43: #{autoencoder_loss.9} parent=27 // pred_region
          %s1087 = ssub.s32 32, 32
          %1088 = vsyncadd %s1063, %s1087
          %s1089 = smul.addr %s25, 32
          %s1090 = scalar_lea.hbm %s3, %s1089
          %s1092 = sshll.u32 %s1066, 4
          %s1093 = int_to_ptr.vmem [resolvable:$true] %s1092
          %1095 = dma.vmem_to_hbm [thread:$0]  %s1093, 32, %s1090, %s1063
        $region44: #{autoencoder_loss.9} parent=27 // pred_fallthru
          _
      $region28: #{autoencoder_loss.9} parent=5 // pred_fallthru
        _
      %p1096 = scmp.le.s32.totalorder 2, %s20
      // Predicated region
      $region45: #{autoencoder_loss.9} parent=5 // pred_check
        %p1097 = pneg %p1096
      $region46: #{autoencoder_loss.9} parent=5 // pred_check_branch
        %1099 = sbr.rel (%p1097) target = $region48
      $region47: #{autoencoder_loss.9} parent=5 // pred_region
        %s1100 = ssub.s32 %s20, 2
        // Predicated region
        $region49: #{autoencoder_loss.9} parent=47 // pred_check
          %p1101 = pneg %p96
        $region50: #{autoencoder_loss.9} parent=47 // pred_check_branch
          %1103 = sbr.rel (%p1101) target = $region52
        $region51: #{autoencoder_loss.9} parent=47 // pred_region
          %s1104 = sand.u32 %s81, 1
          %s1105 = scalar_lea.sflag [#allocation4], %s1104
          %s1106 = sand.u32 %s81, 1
          %s1107 = smul.addr %s1106, 72
          %s1108 = scalar_lea.vmem [#allocation7], %s1107
          %1109 = dma.done %s1105, 1152
        $region52: #{autoencoder_loss.9} parent=47 // pred_fallthru
          _
        // Predicated region
        $region53: #{autoencoder_loss.9} parent=47 // pred_check
          %p1110 = pneg %p122
        $region54: #{autoencoder_loss.9} parent=47 // pred_check_branch
          %1112 = sbr.rel (%p1110) target = $region56
        $region55: #{autoencoder_loss.9} parent=47 // pred_region
          %s1113 = sand.u32 %s107, 1
          %s1114 = scalar_lea.sflag [#allocation9], %s1113
          %s1115 = sand.u32 %s107, 1
          %s1116 = smul.addr %s1115, 2
          %s1117 = scalar_lea.vmem [#allocation8], %s1116
          %1118 = dma.done %s1114, 32
        $region56: #{autoencoder_loss.9} parent=47 // pred_fallthru
          _
      $region48: #{autoencoder_loss.9} parent=5 // pred_fallthru
        _
    $region6: #{autoencoder_loss.9} parent=1 // loop_footer
      %s24 = sadd.s32 1, %s20
    $region7: #{autoencoder_loss.9} parent=1 // loop_footer_branch
      %19 = sbr.rel target = $region3
    $region8: #{autoencoder_loss.9} parent=1 // loop_exit
      _
    %1119 = vsyncpa [#allocation3], 1
    %s1120 = scalar_lea.sflag [#allocation3], 1
    %1121 = vsyncpa %s1120, 1
    %1122 = vsyncpa [#allocation6], 1
    %1123 = vsyncpa [#allocation4], 1
    %s1124 = scalar_lea.sflag [#allocation4], 1
    %1125 = vsyncpa %s1124, 1
    %1126 = vsyncpa [#allocation9], 1
    %s1127 = scalar_lea.sflag [#allocation9], 1
    %1128 = vsyncpa %s1127, 1

// kernel: autoencoder_loss.10
$region0: #{autoencoder_loss.10}
  #allocation0 [shape = 'u32[]', space=smem, size = 0x4, offset = 0x4, fixed_abs, tag = 'smem constant byte address 0x4 - core index']
  #allocation1 [shape = 'u32[144,128]{1,0:T(1,128)}', space=vmem, size = 0x12000, scoped, tag = 'internal scratch']
  %s0 = inlined_call_operand.hbm [shape: bf16[4,25,64], index: 0, kind: input, shape index: {}]
  %s1 = inlined_call_operand.hbm [shape: bf16[4,64,128], index: 1, kind: input, shape index: {}]
  %s2 = inlined_call_operand.hbm [shape: f32[4,19,128], index: 2, kind: output, shape index: {0}]
  %s3 = inlined_call_operand.hbm [shape: f32[4,2,128], index: 3, kind: output, shape index: {1}]
  %4 = xla_tuple %s2, %s3
  %s5 = sld [smem:[#allocation0]]
  $region57: #{autoencoder_loss.10} parent=0
    _
  %s7 = ssub.s32 1, %s5
  %s8 = scalar_select 0, %s7, %s5
  $region1: #{autoencoder_loss.10} parent=0
    #allocation2 [shape = 'u8[16384]{0}', space=vmem, size = 0x4000, scoped, tag = 'input window, operand 0']
    #allocation3 [shape = 's32[2]{0}', space=sflag, size = 0x8, scoped, tag = 'scoped memory for autoencoder_loss.10']
    #allocation4 [shape = 's32[2]{0}', space=sflag, size = 0x8, scoped, tag = 'scoped memory for autoencoder_loss.10']
    #allocation5 [shape = 'u8[65536]{0}', space=vmem, size = 0x10000, scoped, tag = 'input window, operand 1, single buffered']
    #allocation6 [shape = 's32[1]{0}', space=sflag, size = 0x4, scoped, tag = 'scoped memory for autoencoder_loss.10']
    #allocation7 [shape = 'u8[24576]{0}', space=vmem, size = 0x6000, scoped, tag = 'output window, operand 0']
    #allocation8 [shape = 'u8[2048]{0}', space=vmem, size = 0x800, scoped, tag = 'output window, operand 1']
    #allocation9 [shape = 's32[2]{0}', space=sflag, size = 0x8, scoped, tag = 'scoped memory for autoencoder_loss.10']
    %9 = vsyncpa [#allocation3], 0
    %s10 = scalar_lea.sflag [#allocation3], 1
    %11 = vsyncpa %s10, 0
    %12 = vsyncpa [#allocation6], 0
    %13 = vsyncpa [#allocation4], 0
    %s14 = scalar_lea.sflag [#allocation4], 1
    %15 = vsyncpa %s14, 0
    %16 = vsyncpa [#allocation9], 0
    %s17 = scalar_lea.sflag [#allocation9], 1
    %18 = vsyncpa %s17, 0
    loop: start=0, step=1, limit=6
    $region2: #{autoencoder_loss.10} parent=1 // loop_pre_header
      _
    $region3: #{autoencoder_loss.10} parent=1 // loop_header
      %s20 = sphi 0, %s24
      %p21 = scmp.ge.s32.totalorder %s20, 6
      %s30 = sphi 0, %s32
      %s33 = sphi 0, %s30
      %s34 = sphi 0, %s33
      %s50 = sphi 0, %s34
      %s54 = sphi 0, %s54
      %s56 = sphi 0, %s54
      %s57 = sphi 0, %s56
      %s71 = sphi 0, %s57
      %s77 = sphi 0, %s79
      %s80 = sphi 0, %s77
      %s81 = sphi 0, %s80
      %s97 = sphi 0, %s81
      %s103 = sphi 0, %s105
      %s106 = sphi 0, %s103
      %s107 = sphi 0, %s106
      %s123 = sphi 0, %s107
    $region4: #{autoencoder_loss.10} parent=1 // loop_header_branch
      %23 = sbr.rel (%p21) target = $region8
    $region5: #{autoencoder_loss.10} parent=1 // loop_body
      %s25 = ssub.s32 %s20, 1
      %s26 = ssub.s32 %s20, 2
      %s27 = sadd.s32 %s20, 1
      %s28 = ssub.s32 %s20, %s27
      %p29 = scmp.eq.s32.totalorder %s28, 0
      %s31 = sadd.s32 %s30, 1
      %s32 = scalar_select %p29, %s30, %s31
      %p35 = pneg %p29
      %p36 = scmp.eq.s32.totalorder %s20, 3
      %p37 = por %p35, %p36
      %p38 = scmp.ne.s32.totalorder %s30, %s33
      %p39 = scmp.eq.s32.totalorder %s20, 0
      %p40 = por %p38, %p39
      %p41 = scmp.ne.s32.totalorder %s30, %s33
      %p42 = scmp.eq.s32.totalorder %s25, 3
      %p43 = por %p41, %p42
      %p44 = scmp.ne.s32.totalorder %s33, %s34
      %p45 = scmp.eq.s32.totalorder %s25, 0
      %p46 = por %p44, %p45
      %p47 = scmp.ne.s32.totalorder %s33, %s34
      %p48 = scmp.eq.s32.totalorder %s26, 3
      %p49 = por %p47, %p48
      %p51 = scmp.ne.s32.totalorder %s34, %s50
      %p52 = scmp.eq.s32.totalorder %s26, 0
      %p53 = por %p51, %p52
      %s55 = sadd.s32 %s54, 1
      %p58 = scmp.eq.s32.totalorder %s20, 3
      %p59 = scmp.ne.s32.totalorder %s54, %s56
      %p60 = scmp.eq.s32.totalorder %s20, 0
      %p61 = por %p59, %p60
      %p62 = scmp.ne.s32.totalorder %s54, %s56
      %p63 = scmp.eq.s32.totalorder %s25, 3
      %p64 = por %p62, %p63
      %p65 = scmp.ne.s32.totalorder %s56, %s57
      %p66 = scmp.eq.s32.totalorder %s25, 0
      %p67 = por %p65, %p66
      %p68 = scmp.ne.s32.totalorder %s56, %s57
      %p69 = scmp.eq.s32.totalorder %s26, 3
      %p70 = por %p68, %p69
      %p72 = scmp.ne.s32.totalorder %s57, %s71
      %p73 = scmp.eq.s32.totalorder %s26, 0
      %p74 = por %p72, %p73
      %s75 = ssub.s32 %s20, %s27
      %p76 = scmp.eq.s32.totalorder %s75, 0
      %s78 = sadd.s32 %s77, 1
      %s79 = scalar_select %p76, %s77, %s78
      %p82 = pneg %p76
      %p83 = scmp.eq.s32.totalorder %s20, 3
      %p84 = por %p82, %p83
      %p85 = scmp.ne.s32.totalorder %s77, %s80
      %p86 = scmp.eq.s32.totalorder %s20, 0
      %p87 = por %p85, %p86
      %p88 = scmp.ne.s32.totalorder %s77, %s80
      %p89 = scmp.eq.s32.totalorder %s25, 3
      %p90 = por %p88, %p89
      %p91 = scmp.ne.s32.totalorder %s80, %s81
      %p92 = scmp.eq.s32.totalorder %s25, 0
      %p93 = por %p91, %p92
      %p94 = scmp.ne.s32.totalorder %s80, %s81
      %p95 = scmp.eq.s32.totalorder %s26, 3
      %p96 = por %p94, %p95
      %p98 = scmp.ne.s32.totalorder %s81, %s97
      %p99 = scmp.eq.s32.totalorder %s26, 0
      %p100 = por %p98, %p99
      %s101 = ssub.s32 %s20, %s27
      %p102 = scmp.eq.s32.totalorder %s101, 0
      %s104 = sadd.s32 %s103, 1
      %s105 = scalar_select %p102, %s103, %s104
      %p108 = pneg %p102
      %p109 = scmp.eq.s32.totalorder %s20, 3
      %p110 = por %p108, %p109
      %p111 = scmp.ne.s32.totalorder %s103, %s106
      %p112 = scmp.eq.s32.totalorder %s20, 0
      %p113 = por %p111, %p112
      %p114 = scmp.ne.s32.totalorder %s103, %s106
      %p115 = scmp.eq.s32.totalorder %s25, 3
      %p116 = por %p114, %p115
      %p117 = scmp.ne.s32.totalorder %s106, %s107
      %p118 = scmp.eq.s32.totalorder %s25, 0
      %p119 = por %p117, %p118
      %p120 = scmp.ne.s32.totalorder %s106, %s107
      %p121 = scmp.eq.s32.totalorder %s26, 3
      %p122 = por %p120, %p121
      %p124 = scmp.ne.s32.totalorder %s107, %s123
      %p125 = scmp.eq.s32.totalorder %s26, 0
      %p126 = por %p124, %p125
      %p127 = scmp.le.s32.totalorder 1, %s20
      %p128 = scmp.lt.s32.totalorder %s20, 5
      %p129 = pnand %p127, %p128
      %p130 = pneg %p129
      // Predicated region
      $region9: #{autoencoder_loss.10} parent=5 // pred_check
        _
      $region10: #{autoencoder_loss.10} parent=5 // pred_check_branch
        %132 = sbr.rel (%p129) target = $region12
      $region11: #{autoencoder_loss.10} parent=5 // pred_region
        %s133 = ssub.s32 %s20, 1
        // Predicated region
        $region13: #{autoencoder_loss.10} parent=11 // pred_check
          %p134 = pneg %p67
        $region14: #{autoencoder_loss.10} parent=11 // pred_check_branch
          %136 = sbr.rel (%p134) target = $region16
        $region15: #{autoencoder_loss.10} parent=11 // pred_region
          %s138 = ssub.s32 2048, 2048
          %139 = vsyncadd [#allocation6], %s138
          %s140 = sshll.u32 [#allocation5], 4
          %s141 = int_to_ptr.vmem [resolvable:$true] %s140
          %146 = dma.hbm_to_vmem [thread:$0]  %s1, 2048, %s141, [#allocation6], 64, 64, 4
        $region16: #{autoencoder_loss.10} parent=11 // pred_fallthru
          _
      $region12: #{autoencoder_loss.10} parent=5 // pred_fallthru
        _
      %p147 = scmp.lt.s32.totalorder %s20, 4
      // Predicated region
      $region17: #{autoencoder_loss.10} parent=5 // pred_check
        %p148 = pneg %p147
      $region18: #{autoencoder_loss.10} parent=5 // pred_check_branch
        %150 = sbr.rel (%p148) target = $region20
      $region19: #{autoencoder_loss.10} parent=5 // pred_region
        // Predicated region
        $region21: #{autoencoder_loss.10} parent=19 // pred_check
          %p151 = pneg %p40
        $region22: #{autoencoder_loss.10} parent=19 // pred_check_branch
          %153 = sbr.rel (%p151) target = $region24
        $region23: #{autoencoder_loss.10} parent=19 // pred_region
          %s154 = sand.u32 %s30, 1
          %s155 = scalar_lea.sflag [#allocation3], %s154
          %s156 = sand.u32 %s30, 1
          %s157 = smul.addr %s156, 16
          %s158 = scalar_lea.vmem [#allocation2], %s157
          %s160 = ssub.s32 256, 256
          %161 = vsyncadd %s155, %s160
          %s162 = smul.addr %s20, 4
          %s163 = smul.addr %s162, 64
          %s164 = scalar_lea.hbm %s0, %s163
          %s165 = sshll.u32 %s158, 4
          %s166 = int_to_ptr.vmem [resolvable:$true] %s165
          %171 = dma.hbm_to_vmem [thread:$0]  %s164, 256, %s166, %s155, 64, 64, 4
        $region24: #{autoencoder_loss.10} parent=19 // pred_fallthru
          _
      $region20: #{autoencoder_loss.10} parent=5 // pred_fallthru
        _
      %p172 = scmp.le.s32.totalorder 1, %s20
      %p173 = scmp.lt.s32.totalorder %s20, 5
      %p174 = pnand %p172, %p173
      %p175 = pneg %p174
      // Predicated region
      $region25: #{autoencoder_loss.10} parent=5 // pred_check
        _
      $region26: #{autoencoder_loss.10} parent=5 // pred_check_branch
        %177 = sbr.rel (%p174) target = $region28
      $region27: #{autoencoder_loss.10} parent=5 // pred_region
        %s178 = ssub.s32 %s20, 1
        %s179 = sand.u32 %s33, 1
        %s180 = scalar_lea.sflag [#allocation3], %s179
        %s181 = sand.u32 %s33, 1
        %s182 = smul.addr %s181, 16
        %s183 = scalar_lea.vmem [#allocation2], %s182
        // Predicated region
        $region29: #{autoencoder_loss.10} parent=27 // pred_check
          %p184 = pneg %p46
        $region30: #{autoencoder_loss.10} parent=27 // pred_check_branch
          %186 = sbr.rel (%p184) target = $region32
        $region31: #{autoencoder_loss.10} parent=27 // pred_region
          %187 = dma.done %s180, 256
        $region32: #{autoencoder_loss.10} parent=27 // pred_fallthru
          _
        // Predicated region
        $region33: #{autoencoder_loss.10} parent=27 // pred_check
          %p188 = pneg %p67
        $region34: #{autoencoder_loss.10} parent=27 // pred_check_branch
          %190 = sbr.rel (%p188) target = $region36
        $region35: #{autoencoder_loss.10} parent=27 // pred_region
          %191 = dma.done [#allocation6], 2048
        $region36: #{autoencoder_loss.10} parent=27 // pred_fallthru
          _
        %s192 = sand.u32 %s33, 1
        %s193 = scalar_lea.sflag [#allocation3], %s192
        %s194 = sand.u32 %s33, 1
        %s195 = smul.addr %s194, 16
        %s196 = scalar_lea.vmem [#allocation2], %s195
        %p197 = pneg %p46
        %p198 = pneg %p43
        %p199 = pneg %p67
        %p200 = pneg %p64
        %p201 = pneg %p93
        %p202 = pneg %p90
        %s203 = sand.u32 %s80, 1
        %s204 = scalar_lea.sflag [#allocation4], %s203
        %s205 = sand.u32 %s80, 1
        %s206 = smul.addr %s205, 24
        %s207 = scalar_lea.vmem [#allocation7], %s206
        %p208 = pneg %p119
        %p209 = pneg %p116
        %s210 = sand.u32 %s106, 1
        %s211 = scalar_lea.sflag [#allocation9], %s210
        %s212 = sand.u32 %s106, 1
        %s213 = smul.addr %s212, 2
        %s214 = scalar_lea.vmem [#allocation8], %s213
        %v216 = vld [vmem:[%s183] sm:$0xf]
        %v217 = vld [vmem:[%s183 + $0x4] sm:$0xf]
        %v218 = vld [vmem:[%s183 + $0x8] sm:$0x3]
        %v219 = vld [vmem:[#allocation5] sm:$0xf]
        %v220 = vld [vmem:[#allocation5 + $0x4] sm:$0xf]
        %v221 = vld [vmem:[#allocation5 + $0x8] sm:$0xf]
        %v222 = vld [vmem:[#allocation5 + $0xc] sm:$0xf]
        %v223 = vld [vmem:[#allocation5 + $0x10] sm:$0xf]
        %v224 = vld [vmem:[#allocation5 + $0x14] sm:$0xf]
        %v225 = vld [vmem:[#allocation5 + $0x18] sm:$0xf]
        %v226 = vld [vmem:[#allocation5 + $0x1c] sm:$0xf]
        %s227 = scalar_lea.vmem [#allocation5], 32
        %v228 = vld [vmem:[%s227] sm:$0xf]
        %v229 = vld [vmem:[%s227 + $0x4] sm:$0xf]
        %v230 = vld [vmem:[%s227 + $0x8] sm:$0xf]
        %v231 = vld [vmem:[%s227 + $0xc] sm:$0xf]
        %v232 = vld [vmem:[%s227 + $0x10] sm:$0xf]
        %v233 = vld [vmem:[%s227 + $0x14] sm:$0xf]
        %v234 = vld [vmem:[%s227 + $0x18] sm:$0xf]
        %v235 = vld [vmem:[%s227 + $0x1c] sm:$0xf]
        %v239 = vunpack.c.l.b16 %v216
        %v240 = vunpack.c.l.b16 %v217
        %v241 = vunpack.c.l.b16 %v218
        %v242 = vpack.c.b16 %v240, %v239
        %v243 = vpack.c.b16 %v241, %v241
        %vm244 = vsmask.f32 7424
        %v246 = vshrl.u32 %v242, 16
        %v248 = vshll.u32 %v242, 16
        %v250 = vrot.slane %v248, 1
        %v251 = vor.u32 %v246, %v250
        %v253 = vshll.u32 %v243, 16
        %v255 = vrot.slane %v253, 1
        %v256 = vsel %vm244, %v251, %v255
        %v257 = vshrl.u32 %v243, 16
        %v259 = vor.u32 %v257, %v255
        %v268 = vunpack.c.l.b16 %v228
        %v269 = vunpack.c.l.b16 %v229
        %v270 = vunpack.c.l.b16 %v230
        %v271 = vunpack.c.l.b16 %v231
        %v272 = vunpack.c.l.b16 %v232
        %v273 = vunpack.c.l.b16 %v233
        %v274 = vunpack.c.l.b16 %v234
        %v275 = vunpack.c.l.b16 %v235
        %v276 = vpack.c.b16 %v269, %v268
        %v277 = vpack.c.b16 %v271, %v270
        %v278 = vpack.c.b16 %v273, %v272
        %v279 = vpack.c.b16 %v275, %v274
        %vm284 = vcmask 523264
        %v286 = vsel %vm284, %v256, 0
        %v289 = vsel %vm284, %v259, 0
        %291 = vmatprep.subr.bf16.mxu0 0
        %292 = vmatpush1.bf16.msra.mxu0 %v276
        %293 = vmatprep.subr.bf16.mxu0 0
        %294 = vmatpush1.bf16.msra.mxu0 %v277
        %295 = vmatprep.subr.bf16.mxu0 0
        %296 = vmatpush1.bf16.msra.mxu0 %v278
        %297 = vmatprep.subr.bf16.mxu0 0
        %298 = vmatpush1.bf16.msra.mxu0 %v279
        %299 = vmatprep.subr.bf16.mxu0 0
        %300 = vmatpush1.bf16.msra.mxu0 0
        %301 = vmatprep.subr.bf16.mxu0 0
        %302 = vmatpush1.bf16.msra.mxu0 0
        %303 = vmatprep.subr.bf16.mxu0 0
        %304 = vmatpush1.bf16.msra.mxu0 0
        %305 = vmatprep.subr.bf16.mxu0 0
        %306 = vmatpush1.bf16.msra.mxu0 0
        %307 = vmatprep.subr.bf16.mxu0 0
        %308 = vmatpush1.bf16.msra.mxu0 0
        %309 = vmatprep.subr.bf16.mxu0 0
        %310 = vmatpush1.bf16.msra.mxu0 0
        %311 = vmatprep.subr.bf16.mxu0 0
        %312 = vmatpush1.bf16.msra.mxu0 0
        %313 = vmatprep.subr.bf16.mxu0 0
        %314 = vmatpush1.bf16.msra.mxu0 0
        %315 = vmatprep.subr.bf16.mxu0 0
        %316 = vmatpush1.bf16.msra.mxu0 0
        %317 = vmatprep.subr.bf16.mxu0 0
        %318 = vmatpush1.bf16.msra.mxu0 0
        %319 = vmatprep.subr.bf16.mxu0 0
        %320 = vmatpush1.bf16.msra.mxu0 0
        %321 = vmatprep.subr.bf16.mxu0 0
        %322 = vmatpush1.bf16.msra.mxu0 0
        %323 = vmatprep.mubr.bf16.mxu0 0
        %324 = vmatmul.mubr.bf16.gmra.mrb[0].mxu0 %v286
        %v325 = vpop.f32.mrb[0].mxu0
        %v326 = vadd.f32 0.0, %v325
        %v327 = vpop.f32.mrb[0].mxu0
        %v328 = vpop.f32.mrb[0].mxu0
        %v329 = vadd.f32 0.0, %v328
        %v330 = vpop.f32.mrb[0].mxu0
        %331 = vmatprep.mubr.bf16.mxu0 0
        %332 = vmatmul.mubr.bf16.gmra.mrb[0].mxu0 %v289
        %v333 = vpop.f32.mrb[0].mxu0
        %v334 = vadd.f32 0.0, %v333
        %v335 = vpop.f32.mrb[0].mxu0
        %v336 = vpop.f32.mrb[0].mxu0
        %v337 = vpop.f32.mrb[0].mxu0
        %338 = vdwg.mxu0
        %v347 = vunpack.c.l.b16 %v219
        %v348 = vunpack.c.l.b16 %v220
        %v349 = vunpack.c.l.b16 %v221
        %v350 = vunpack.c.l.b16 %v222
        %v351 = vunpack.c.l.b16 %v223
        %v352 = vunpack.c.l.b16 %v224
        %v353 = vunpack.c.l.b16 %v225
        %v354 = vunpack.c.l.b16 %v226
        %v355 = vpack.c.b16 %v348, %v347
        %v356 = vpack.c.b16 %v350, %v349
        %v357 = vpack.c.b16 %v352, %v351
        %v358 = vpack.c.b16 %v354, %v353
        %v363 = vsel %vm284, %v242, 0
        %v365 = vsel %vm284, %v243, 0
        %367 = vmatprep.subr.bf16.mxu0 0
        %368 = vmatpush1.bf16.msra.mxu0 %v355
        %369 = vmatprep.subr.bf16.mxu0 0
        %370 = vmatpush1.bf16.msra.mxu0 %v356
        %371 = vmatprep.subr.bf16.mxu0 0
        %372 = vmatpush1.bf16.msra.mxu0 %v357
        %373 = vmatprep.subr.bf16.mxu0 0
        %374 = vmatpush1.bf16.msra.mxu0 %v358
        %375 = vmatprep.subr.bf16.mxu0 0
        %376 = vmatpush1.bf16.msra.mxu0 0
        %377 = vmatprep.subr.bf16.mxu0 0
        %378 = vmatpush1.bf16.msra.mxu0 0
        %379 = vmatprep.subr.bf16.mxu0 0
        %380 = vmatpush1.bf16.msra.mxu0 0
        %381 = vmatprep.subr.bf16.mxu0 0
        %382 = vmatpush1.bf16.msra.mxu0 0
        %383 = vmatprep.subr.bf16.mxu0 0
        %384 = vmatpush1.bf16.msra.mxu0 0
        %385 = vmatprep.subr.bf16.mxu0 0
        %386 = vmatpush1.bf16.msra.mxu0 0
        %387 = vmatprep.subr.bf16.mxu0 0
        %388 = vmatpush1.bf16.msra.mxu0 0
        %389 = vmatprep.subr.bf16.mxu0 0
        %390 = vmatpush1.bf16.msra.mxu0 0
        %391 = vmatprep.subr.bf16.mxu0 0
        %392 = vmatpush1.bf16.msra.mxu0 0
        %393 = vmatprep.subr.bf16.mxu0 0
        %394 = vmatpush1.bf16.msra.mxu0 0
        %395 = vmatprep.subr.bf16.mxu0 0
        %396 = vmatpush1.bf16.msra.mxu0 0
        %397 = vmatprep.subr.bf16.mxu0 0
        %398 = vmatpush1.bf16.msra.mxu0 0
        %399 = vmatprep.mubr.bf16.mxu0 0
        %400 = vmatmul.mubr.bf16.gmra.mrb[0].mxu0 %v363
        %v401 = vpop.f32.mrb[0].mxu0
        %v402 = vadd.f32 %v326, %v401
        %v403 = vpop.f32.mrb[0].mxu0
        %v404 = vpop.f32.mrb[0].mxu0
        %v405 = vadd.f32 %v329, %v404
        %v406 = vpop.f32.mrb[0].mxu0
        %407 = vmatprep.mubr.bf16.mxu0 0
        %408 = vmatmul.mubr.bf16.gmra.mrb[0].mxu0 %v365
        %v409 = vpop.f32.mrb[0].mxu0
        %v410 = vadd.f32 %v334, %v409
        %v411 = vpop.f32.mrb[0].mxu0
        %v412 = vpop.f32.mrb[0].mxu0
        %v413 = vpop.f32.mrb[0].mxu0
        %414 = vdwg.mxu0
        %v415 = vld [vmem:[%s183] sm:$0xc]
        %v416 = vld [vmem:[%s183 + $0x8] sm:$0xf]
        %s417 = scalar_lea.vmem [#allocation5], 64
        %v418 = vld [vmem:[%s417] sm:$0xf]
        %v419 = vld [vmem:[%s417 + $0x4] sm:$0xf]
        %v420 = vld [vmem:[%s417 + $0x8] sm:$0xf]
        %v421 = vld [vmem:[%s417 + $0xc] sm:$0xf]
        %v422 = vld [vmem:[%s417 + $0x10] sm:$0xf]
        %v423 = vld [vmem:[%s417 + $0x14] sm:$0xf]
        %v424 = vld [vmem:[%s417 + $0x18] sm:$0xf]
        %v425 = vld [vmem:[%s417 + $0x1c] sm:$0xf]
        %v428 = vunpack.c.l.b16 %v415
        %v429 = vunpack.c.l.b16 %v416
        %v430 = vpack.c.b16 %v240, %v428
        %v431 = vpack.c.b16 %v429, %v429
        %vm432 = vsmask.f32 5376
        %v434 = vshrl.u32 %v430, 16
        %v436 = vrot.slane %v434, 2
        %v437 = vshll.u32 %v430, 16
        %v439 = vrot.slane %v437, 3
        %v440 = vor.u32 %v436, %v439
        %v442 = vshrl.u32 %v431, 16
        %v444 = vrot.slane %v442, 2
        %v445 = vshll.u32 %v431, 16
        %v447 = vrot.slane %v445, 3
        %v448 = vor.u32 %v444, %v447
        %v449 = vsel %vm432, %v440, %v448
        %v458 = vunpack.c.l.b16 %v418
        %v459 = vunpack.c.l.b16 %v419
        %v460 = vunpack.c.l.b16 %v420
        %v461 = vunpack.c.l.b16 %v421
        %v462 = vunpack.c.l.b16 %v422
        %v463 = vunpack.c.l.b16 %v423
        %v464 = vunpack.c.l.b16 %v424
        %v465 = vunpack.c.l.b16 %v425
        %v466 = vpack.c.b16 %v459, %v458
        %v467 = vpack.c.b16 %v461, %v460
        %v468 = vpack.c.b16 %v463, %v462
        %v469 = vpack.c.b16 %v465, %v464
        %v475 = vsel %vm284, %v449, 0
        %v478 = vsel %vm284, %v448, 0
        %480 = vmatprep.subr.bf16.mxu0 0
        %481 = vmatpush1.bf16.msra.mxu0 %v466
        %482 = vmatprep.subr.bf16.mxu0 0
        %483 = vmatpush1.bf16.msra.mxu0 %v467
        %484 = vmatprep.subr.bf16.mxu0 0
        %485 = vmatpush1.bf16.msra.mxu0 %v468
        %486 = vmatprep.subr.bf16.mxu0 0
        %487 = vmatpush1.bf16.msra.mxu0 %v469
        %488 = vmatprep.subr.bf16.mxu0 0
        %489 = vmatpush1.bf16.msra.mxu0 0
        %490 = vmatprep.subr.bf16.mxu0 0
        %491 = vmatpush1.bf16.msra.mxu0 0
        %492 = vmatprep.subr.bf16.mxu0 0
        %493 = vmatpush1.bf16.msra.mxu0 0
        %494 = vmatprep.subr.bf16.mxu0 0
        %495 = vmatpush1.bf16.msra.mxu0 0
        %496 = vmatprep.subr.bf16.mxu0 0
        %497 = vmatpush1.bf16.msra.mxu0 0
        %498 = vmatprep.subr.bf16.mxu0 0
        %499 = vmatpush1.bf16.msra.mxu0 0
        %500 = vmatprep.subr.bf16.mxu0 0
        %501 = vmatpush1.bf16.msra.mxu0 0
        %502 = vmatprep.subr.bf16.mxu0 0
        %503 = vmatpush1.bf16.msra.mxu0 0
        %504 = vmatprep.subr.bf16.mxu0 0
        %505 = vmatpush1.bf16.msra.mxu0 0
        %506 = vmatprep.subr.bf16.mxu0 0
        %507 = vmatpush1.bf16.msra.mxu0 0
        %508 = vmatprep.subr.bf16.mxu0 0
        %509 = vmatpush1.bf16.msra.mxu0 0
        %510 = vmatprep.subr.bf16.mxu0 0
        %511 = vmatpush1.bf16.msra.mxu0 0
        %512 = vmatprep.mubr.bf16.mxu0 0
        %513 = vmatmul.mubr.bf16.gmra.mrb[0].mxu0 %v475
        %v514 = vpop.f32.mrb[0].mxu0
        %v515 = vadd.f32 0.0, %v514
        %v516 = vpop.f32.mrb[0].mxu0
        %v517 = vpop.f32.mrb[0].mxu0
        %v518 = vadd.f32 0.0, %v517
        %v519 = vpop.f32.mrb[0].mxu0
        %520 = vmatprep.mubr.bf16.mxu0 0
        %521 = vmatmul.mubr.bf16.gmra.mrb[0].mxu0 %v478
        %v522 = vpop.f32.mrb[0].mxu0
        %v523 = vadd.f32 0.0, %v522
        %v524 = vpop.f32.mrb[0].mxu0
        %v525 = vpop.f32.mrb[0].mxu0
        %v526 = vpop.f32.mrb[0].mxu0
        %527 = vdwg.mxu0
        %v528 = vadd.f32 %v402, %v515
        %v529 = vadd.f32 %v405, %v518
        %v530 = vadd.f32 %v410, %v523
        %v531 = vld [vmem:[%s183] sm:$0x8]
        %v532 = vld [vmem:[%s183 + $0x4] sm:$0xf]
        %v533 = vld [vmem:[%s183 + $0x8] sm:$0xf]
        %v534 = vld [vmem:[%s183 + $0xc] sm:$0x1]
        %s535 = scalar_lea.vmem [#allocation5], 96
        %v536 = vld [vmem:[%s535] sm:$0xf]
        %v537 = vld [vmem:[%s535 + $0x4] sm:$0xf]
        %v538 = vld [vmem:[%s535 + $0x8] sm:$0xf]
        %v539 = vld [vmem:[%s535 + $0xc] sm:$0xf]
        %v540 = vld [vmem:[%s535 + $0x10] sm:$0xf]
        %v541 = vld [vmem:[%s535 + $0x14] sm:$0xf]
        %v542 = vld [vmem:[%s535 + $0x18] sm:$0xf]
        %v543 = vld [vmem:[%s535 + $0x1c] sm:$0xf]
        %v548 = vunpack.c.l.b16 %v531
        %v549 = vunpack.c.l.b16 %v532
        %v550 = vunpack.c.l.b16 %v533
        %v551 = vunpack.c.l.b16 %v534
        %v552 = vpack.c.b16 %v549, %v548
        %v553 = vpack.c.b16 %v551, %v550
        %vm554 = vcmask 1044480
        %v555 = vrot.slane %v552, 3
        %v556 = vrot.slane %v553, 3
        %v557 = vsel %vm554, %v555, %v556
        %v566 = vunpack.c.l.b16 %v536
        %v567 = vunpack.c.l.b16 %v537
        %v568 = vunpack.c.l.b16 %v538
        %v569 = vunpack.c.l.b16 %v539
        %v570 = vunpack.c.l.b16 %v540
        %v571 = vunpack.c.l.b16 %v541
        %v572 = vunpack.c.l.b16 %v542
        %v573 = vunpack.c.l.b16 %v543
        %v574 = vpack.c.b16 %v567, %v566
        %v575 = vpack.c.b16 %v569, %v568
        %v576 = vpack.c.b16 %v571, %v570
        %v577 = vpack.c.b16 %v573, %v572
        %v583 = vsel %vm284, %v557, 0
        %v586 = vsel %vm284, %v556, 0
        %588 = vmatprep.subr.bf16.mxu0 0
        %589 = vmatpush1.bf16.msra.mxu0 %v574
        %590 = vmatprep.subr.bf16.mxu0 0
        %591 = vmatpush1.bf16.msra.mxu0 %v575
        %592 = vmatprep.subr.bf16.mxu0 0
        %593 = vmatpush1.bf16.msra.mxu0 %v576
        %594 = vmatprep.subr.bf16.mxu0 0
        %595 = vmatpush1.bf16.msra.mxu0 %v577
        %596 = vmatprep.subr.bf16.mxu0 0
        %597 = vmatpush1.bf16.msra.mxu0 0
        %598 = vmatprep.subr.bf16.mxu0 0
        %599 = vmatpush1.bf16.msra.mxu0 0
        %600 = vmatprep.subr.bf16.mxu0 0
        %601 = vmatpush1.bf16.msra.mxu0 0
        %602 = vmatprep.subr.bf16.mxu0 0
        %603 = vmatpush1.bf16.msra.mxu0 0
        %604 = vmatprep.subr.bf16.mxu0 0
        %605 = vmatpush1.bf16.msra.mxu0 0
        %606 = vmatprep.subr.bf16.mxu0 0
        %607 = vmatpush1.bf16.msra.mxu0 0
        %608 = vmatprep.subr.bf16.mxu0 0
        %609 = vmatpush1.bf16.msra.mxu0 0
        %610 = vmatprep.subr.bf16.mxu0 0
        %611 = vmatpush1.bf16.msra.mxu0 0
        %612 = vmatprep.subr.bf16.mxu0 0
        %613 = vmatpush1.bf16.msra.mxu0 0
        %614 = vmatprep.subr.bf16.mxu0 0
        %615 = vmatpush1.bf16.msra.mxu0 0
        %616 = vmatprep.subr.bf16.mxu0 0
        %617 = vmatpush1.bf16.msra.mxu0 0
        %618 = vmatprep.subr.bf16.mxu0 0
        %619 = vmatpush1.bf16.msra.mxu0 0
        %620 = vmatprep.mubr.bf16.mxu0 0
        %621 = vmatmul.mubr.bf16.gmra.mrb[0].mxu0 %v583
        %v622 = vpop.f32.mrb[0].mxu0
        %v623 = vadd.f32 0.0, %v622
        %v624 = vpop.f32.mrb[0].mxu0
        %v625 = vpop.f32.mrb[0].mxu0
        %v626 = vadd.f32 0.0, %v625
        %v627 = vpop.f32.mrb[0].mxu0
        %628 = vmatprep.mubr.bf16.mxu0 0
        %629 = vmatmul.mubr.bf16.gmra.mrb[0].mxu0 %v586
        %v630 = vpop.f32.mrb[0].mxu0
        %v631 = vadd.f32 0.0, %v630
        %v632 = vpop.f32.mrb[0].mxu0
        %v633 = vpop.f32.mrb[0].mxu0
        %v634 = vpop.f32.mrb[0].mxu0
        %635 = vdwg.mxu0
        %v636 = vadd.f32 %v528, %v623
        %v637 = vadd.f32 %v529, %v626
        %v638 = vadd.f32 %v530, %v631
        %639 = vst [vmem:[%s207] sm:$0xff] %v636
        %640 = vst [vmem:[%s207 + $0x8] sm:$0xff] %v637
        %641 = vst [vmem:[%s207 + $0x10] sm:$0x7] %v638
        %v642 = vlaneseq
        %v643 = vshrl.u32 %v642, 7
        %v644 = vadd.s32 %v643, 8
        %v645 = vadd.s32 %v643, 16
        %vm646 = vcmp.lt.s32.totalorder %v643, 0
        %v647 = vsub.s32 0, %v643
        %v648 = vsel %vm646, %v647, %v643
        %v649 = vmul.u32.u64.compose %v648, 3435973837
        %v650 = vextract.low.u32 %v649
        %v651 = vextract.high.u32 %v649
        %v652 = vshrl.u32 %v651, 2
        %v653 = vmul.u32 %v652, 5
        %v654 = vsub.s32 %v648, %v653
        %v655 = vsub.s32 0, %v654
        %v656 = vsel %vm646, %v655, %v654
        %vm657 = vcmp.lt.s32.totalorder %v644, 0
        %v658 = vsub.s32 0, %v644
        %v659 = vsel %vm657, %v658, %v644
        %v660 = vmul.u32.u64.compose %v659, 3435973837
        %v661 = vextract.low.u32 %v660
        %v662 = vextract.high.u32 %v660
        %v663 = vshrl.u32 %v662, 2
        %v664 = vmul.u32 %v663, 5
        %v665 = vsub.s32 %v659, %v664
        %v666 = vsub.s32 0, %v665
        %v667 = vsel %vm657, %v666, %v665
        %vm668 = vcmp.lt.s32.totalorder %v645, 0
        %v669 = vsub.s32 0, %v645
        %v670 = vsel %vm668, %v669, %v645
        %v671 = vmul.u32.u64.compose %v670, 3435973837
        %v672 = vextract.low.u32 %v671
        %v673 = vextract.high.u32 %v671
        %v674 = vshrl.u32 %v673, 2
        %v675 = vmul.u32 %v674, 5
        %v676 = vsub.s32 %v670, %v675
        %v677 = vsub.s32 0, %v676
        %v678 = vsel %vm668, %v677, %v676
        %vm679 = vcmp.ne.s32.totalorder %v656, 0
        %vm680 = vcmp.ne.s32.totalorder %v667, 0
        %vm681 = vcmp.ne.s32.totalorder %v678, 0
        %vm682 = vcmp.lt.s32.totalorder %v656, 0
        %vm683 = vcmp.lt.s32.totalorder %v667, 0
        %vm684 = vcmp.lt.s32.totalorder %v678, 0
        %vm685 = vmand %vm682, %vm679
        %vm686 = vmand %vm683, %vm680
        %vm687 = vmand %vm684, %vm681
        %v688 = vadd.s32 %v656, 5
        %v689 = vadd.s32 %v667, 5
        %v690 = vadd.s32 %v678, 5
        %v691 = vsel %vm685, %v688, %v656
        %v692 = vsel %vm686, %v689, %v667
        %v693 = vsel %vm687, %v690, %v678
        %vm694 = vcmp.lt.s32.totalorder %v691, 4
        %vm695 = vcmp.lt.s32.totalorder %v692, 4
        %vm696 = vcmp.lt.s32.totalorder %v693, 4
        %v697 = vsel %vm694, %v636, 0.0
        %v698 = vsel %vm695, %v637, 0.0
        %v699 = vsel %vm696, %v638, 0.0
        %v700 = vadd.f32 %v697, %v698
        %vm701 = vcmask 1042432
        %v702 = vsel %vm701, %v699, 0.0
        %v703 = vadd.f32 %v700, %v702
        %v704 = vrot.slane %v703, 4
        %v705 = vadd.f32 %v703, %v704
        %v706 = vrot.slane %v705, 2
        %v707 = vadd.f32 %v705, %v706
        %v708 = vrot.slane %v707, 1
        %v709 = vadd.f32 %v707, %v708
        %v710 = vmul.f32 %v697, %v697
        %v711 = vmul.f32 %v698, %v698
        %v712 = vmul.f32 %v699, %v699
        %v713 = vadd.f32 %v710, %v711
        %v714 = vsel %vm701, %v712, 0.0
        %v715 = vadd.f32 %v713, %v714
        %v716 = vrot.slane %v715, 4
        %v717 = vadd.f32 %v715, %v716
        %v718 = vrot.slane %v717, 2
        %v719 = vadd.f32 %v717, %v718
        %v720 = vrot.slane %v719, 1
        %v721 = vadd.f32 %v719, %v720
        %vm722 = vcmask 1040384
        %v723 = vsel %vm722, %v709, %v721
        %724 = vst [vmem:[%s214] sm:$0x3] %v723
        %s725 = sand.u32 %s80, 1
        %s726 = scalar_lea.sflag [#allocation4], %s725
        %s727 = sand.u32 %s80, 1
        %s728 = smul.addr %s727, 24
        %s729 = scalar_lea.vmem [#allocation7], %s728
        %s730 = sand.u32 %s106, 1
        %s731 = scalar_lea.sflag [#allocation9], %s730
        %s732 = sand.u32 %s106, 1
        %s733 = smul.addr %s732, 2
        %s734 = scalar_lea.vmem [#allocation8], %s733
        // Predicated region
        $region37: #{autoencoder_loss.10} parent=27 // pred_check
          %p735 = pneg %p90
        $region38: #{autoencoder_loss.10} parent=27 // pred_check_branch
          %737 = sbr.rel (%p735) target = $region40
        $region39: #{autoencoder_loss.10} parent=27 // pred_region
          %s739 = ssub.s32 384, 384
          %740 = vsyncadd %s726, %s739
          %s741 = smul.addr %s25, 3
          %s742 = smul.addr %s741, 128
          %s743 = scalar_lea.hbm %s2, %s742
          %s744 = sshll.u32 %s729, 4
          %s745 = int_to_ptr.vmem [resolvable:$true] %s744
          %750 = dma.vmem_to_hbm [thread:$0]  %s745, 384, %s743, %s726, 128, 128, 8
        $region40: #{autoencoder_loss.10} parent=27 // pred_fallthru
          _
        // Predicated region
        $region41: #{autoencoder_loss.10} parent=27 // pred_check
          %p751 = pneg %p116
        $region42: #{autoencoder_loss.10} parent=27 // pred_check_branch
          %753 = sbr.rel (%p751) target = $region44
        $region43: #{autoencoder_loss.10} parent=27 // pred_region
          %s755 = ssub.s32 32, 32
          %756 = vsyncadd %s731, %s755
          %s757 = smul.addr %s25, 32
          %s758 = scalar_lea.hbm %s3, %s757
          %s760 = sshll.u32 %s734, 4
          %s761 = int_to_ptr.vmem [resolvable:$true] %s760
          %763 = dma.vmem_to_hbm [thread:$0]  %s761, 32, %s758, %s731
        $region44: #{autoencoder_loss.10} parent=27 // pred_fallthru
          _
      $region28: #{autoencoder_loss.10} parent=5 // pred_fallthru
        _
      %p764 = scmp.le.s32.totalorder 2, %s20
      // Predicated region
      $region45: #{autoencoder_loss.10} parent=5 // pred_check
        %p765 = pneg %p764
      $region46: #{autoencoder_loss.10} parent=5 // pred_check_branch
        %767 = sbr.rel (%p765) target = $region48
      $region47: #{autoencoder_loss.10} parent=5 // pred_region
        %s768 = ssub.s32 %s20, 2
        // Predicated region
        $region49: #{autoencoder_loss.10} parent=47 // pred_check
          %p769 = pneg %p96
        $region50: #{autoencoder_loss.10} parent=47 // pred_check_branch
          %771 = sbr.rel (%p769) target = $region52
        $region51: #{autoencoder_loss.10} parent=47 // pred_region
          %s772 = sand.u32 %s81, 1
          %s773 = scalar_lea.sflag [#allocation4], %s772
          %s774 = sand.u32 %s81, 1
          %s775 = smul.addr %s774, 24
          %s776 = scalar_lea.vmem [#allocation7], %s775
          %777 = dma.done %s773, 384
        $region52: #{autoencoder_loss.10} parent=47 // pred_fallthru
          _
        // Predicated region
        $region53: #{autoencoder_loss.10} parent=47 // pred_check
          %p778 = pneg %p122
        $region54: #{autoencoder_loss.10} parent=47 // pred_check_branch
          %780 = sbr.rel (%p778) target = $region56
        $region55: #{autoencoder_loss.10} parent=47 // pred_region
          %s781 = sand.u32 %s107, 1
          %s782 = scalar_lea.sflag [#allocation9], %s781
          %s783 = sand.u32 %s107, 1
          %s784 = smul.addr %s783, 2
          %s785 = scalar_lea.vmem [#allocation8], %s784
          %786 = dma.done %s782, 32
        $region56: #{autoencoder_loss.10} parent=47 // pred_fallthru
          _
      $region48: #{autoencoder_loss.10} parent=5 // pred_fallthru
        _
    $region6: #{autoencoder_loss.10} parent=1 // loop_footer
      %s24 = sadd.s32 1, %s20
    $region7: #{autoencoder_loss.10} parent=1 // loop_footer_branch
      %19 = sbr.rel target = $region3
    $region8: #{autoencoder_loss.10} parent=1 // loop_exit
      _
    %787 = vsyncpa [#allocation3], 1
    %s788 = scalar_lea.sflag [#allocation3], 1
    %789 = vsyncpa %s788, 1
    %790 = vsyncpa [#allocation6], 1
    %791 = vsyncpa [#allocation4], 1
    %s792 = scalar_lea.sflag [#allocation4], 1
    %793 = vsyncpa %s792, 1
    %794 = vsyncpa [#allocation9], 1
    %s795 = scalar_lea.sflag [#allocation9], 1
    %796 = vsyncpa %s795, 1

// kernel: autoencoder_loss.11
$region0: #{autoencoder_loss.11}
  #allocation0 [shape = 'u32[]', space=smem, size = 0x4, offset = 0x4, fixed_abs, tag = 'smem constant byte address 0x4 - core index']
  #allocation1 [shape = 'u32[144,128]{1,0:T(1,128)}', space=vmem, size = 0x12000, scoped, tag = 'internal scratch']
  %s0 = inlined_call_operand.hbm [shape: bf16[4,36,32], index: 0, kind: input, shape index: {}]
  %s1 = inlined_call_operand.hbm [shape: bf16[16,32,128], index: 1, kind: input, shape index: {}]
  %s2 = inlined_call_operand.hbm [shape: f32[4,15,128], index: 2, kind: output, shape index: {0}]
  %s3 = inlined_call_operand.hbm [shape: f32[4,2,128], index: 3, kind: output, shape index: {1}]
  %4 = xla_tuple %s2, %s3
  %s5 = sld [smem:[#allocation0]]
  $region57: #{autoencoder_loss.11} parent=0
    _
  %s7 = ssub.s32 1, %s5
  %s8 = scalar_select 0, %s7, %s5
  $region1: #{autoencoder_loss.11} parent=0
    #allocation2 [shape = 'u8[20480]{0}', space=vmem, size = 0x5000, scoped, tag = 'input window, operand 0']
    #allocation3 [shape = 's32[2]{0}', space=sflag, size = 0x8, scoped, tag = 'scoped memory for autoencoder_loss.11']
    #allocation4 [shape = 's32[2]{0}', space=sflag, size = 0x8, scoped, tag = 'scoped memory for autoencoder_loss.11']
    #allocation5 [shape = 'u8[131072]{0}', space=vmem, size = 0x20000, scoped, tag = 'input window, operand 1, single buffered']
    #allocation6 [shape = 's32[1]{0}', space=sflag, size = 0x4, scoped, tag = 'scoped memory for autoencoder_loss.11']
    #allocation7 [shape = 'u8[16384]{0}', space=vmem, size = 0x4000, scoped, tag = 'output window, operand 0']
    #allocation8 [shape = 'u8[2048]{0}', space=vmem, size = 0x800, scoped, tag = 'output window, operand 1']
    #allocation9 [shape = 's32[2]{0}', space=sflag, size = 0x8, scoped, tag = 'scoped memory for autoencoder_loss.11']
    %9 = vsyncpa [#allocation3], 0
    %s10 = scalar_lea.sflag [#allocation3], 1
    %11 = vsyncpa %s10, 0
    %12 = vsyncpa [#allocation6], 0
    %13 = vsyncpa [#allocation4], 0
    %s14 = scalar_lea.sflag [#allocation4], 1
    %15 = vsyncpa %s14, 0
    %16 = vsyncpa [#allocation9], 0
    %s17 = scalar_lea.sflag [#allocation9], 1
    %18 = vsyncpa %s17, 0
    loop: start=0, step=1, limit=6
    $region2: #{autoencoder_loss.11} parent=1 // loop_pre_header
      _
    $region3: #{autoencoder_loss.11} parent=1 // loop_header
      %s20 = sphi 0, %s24
      %p21 = scmp.ge.s32.totalorder %s20, 6
      %s30 = sphi 0, %s32
      %s33 = sphi 0, %s30
      %s34 = sphi 0, %s33
      %s50 = sphi 0, %s34
      %s54 = sphi 0, %s54
      %s56 = sphi 0, %s54
      %s57 = sphi 0, %s56
      %s71 = sphi 0, %s57
      %s77 = sphi 0, %s79
      %s80 = sphi 0, %s77
      %s81 = sphi 0, %s80
      %s97 = sphi 0, %s81
      %s103 = sphi 0, %s105
      %s106 = sphi 0, %s103
      %s107 = sphi 0, %s106
      %s123 = sphi 0, %s107
    $region4: #{autoencoder_loss.11} parent=1 // loop_header_branch
      %23 = sbr.rel (%p21) target = $region8
    $region5: #{autoencoder_loss.11} parent=1 // loop_body
      %s25 = ssub.s32 %s20, 1
      %s26 = ssub.s32 %s20, 2
      %s27 = sadd.s32 %s20, 1
      %s28 = ssub.s32 %s20, %s27
      %p29 = scmp.eq.s32.totalorder %s28, 0
      %s31 = sadd.s32 %s30, 1
      %s32 = scalar_select %p29, %s30, %s31
      %p35 = pneg %p29
      %p36 = scmp.eq.s32.totalorder %s20, 3
      %p37 = por %p35, %p36
      %p38 = scmp.ne.s32.totalorder %s30, %s33
      %p39 = scmp.eq.s32.totalorder %s20, 0
      %p40 = por %p38, %p39
      %p41 = scmp.ne.s32.totalorder %s30, %s33
      %p42 = scmp.eq.s32.totalorder %s25, 3
      %p43 = por %p41, %p42
      %p44 = scmp.ne.s32.totalorder %s33, %s34
      %p45 = scmp.eq.s32.totalorder %s25, 0
      %p46 = por %p44, %p45
      %p47 = scmp.ne.s32.totalorder %s33, %s34
      %p48 = scmp.eq.s32.totalorder %s26, 3
      %p49 = por %p47, %p48
      %p51 = scmp.ne.s32.totalorder %s34, %s50
      %p52 = scmp.eq.s32.totalorder %s26, 0
      %p53 = por %p51, %p52
      %s55 = sadd.s32 %s54, 1
      %p58 = scmp.eq.s32.totalorder %s20, 3
      %p59 = scmp.ne.s32.totalorder %s54, %s56
      %p60 = scmp.eq.s32.totalorder %s20, 0
      %p61 = por %p59, %p60
      %p62 = scmp.ne.s32.totalorder %s54, %s56
      %p63 = scmp.eq.s32.totalorder %s25, 3
      %p64 = por %p62, %p63
      %p65 = scmp.ne.s32.totalorder %s56, %s57
      %p66 = scmp.eq.s32.totalorder %s25, 0
      %p67 = por %p65, %p66
      %p68 = scmp.ne.s32.totalorder %s56, %s57
      %p69 = scmp.eq.s32.totalorder %s26, 3
      %p70 = por %p68, %p69
      %p72 = scmp.ne.s32.totalorder %s57, %s71
      %p73 = scmp.eq.s32.totalorder %s26, 0
      %p74 = por %p72, %p73
      %s75 = ssub.s32 %s20, %s27
      %p76 = scmp.eq.s32.totalorder %s75, 0
      %s78 = sadd.s32 %s77, 1
      %s79 = scalar_select %p76, %s77, %s78
      %p82 = pneg %p76
      %p83 = scmp.eq.s32.totalorder %s20, 3
      %p84 = por %p82, %p83
      %p85 = scmp.ne.s32.totalorder %s77, %s80
      %p86 = scmp.eq.s32.totalorder %s20, 0
      %p87 = por %p85, %p86
      %p88 = scmp.ne.s32.totalorder %s77, %s80
      %p89 = scmp.eq.s32.totalorder %s25, 3
      %p90 = por %p88, %p89
      %p91 = scmp.ne.s32.totalorder %s80, %s81
      %p92 = scmp.eq.s32.totalorder %s25, 0
      %p93 = por %p91, %p92
      %p94 = scmp.ne.s32.totalorder %s80, %s81
      %p95 = scmp.eq.s32.totalorder %s26, 3
      %p96 = por %p94, %p95
      %p98 = scmp.ne.s32.totalorder %s81, %s97
      %p99 = scmp.eq.s32.totalorder %s26, 0
      %p100 = por %p98, %p99
      %s101 = ssub.s32 %s20, %s27
      %p102 = scmp.eq.s32.totalorder %s101, 0
      %s104 = sadd.s32 %s103, 1
      %s105 = scalar_select %p102, %s103, %s104
      %p108 = pneg %p102
      %p109 = scmp.eq.s32.totalorder %s20, 3
      %p110 = por %p108, %p109
      %p111 = scmp.ne.s32.totalorder %s103, %s106
      %p112 = scmp.eq.s32.totalorder %s20, 0
      %p113 = por %p111, %p112
      %p114 = scmp.ne.s32.totalorder %s103, %s106
      %p115 = scmp.eq.s32.totalorder %s25, 3
      %p116 = por %p114, %p115
      %p117 = scmp.ne.s32.totalorder %s106, %s107
      %p118 = scmp.eq.s32.totalorder %s25, 0
      %p119 = por %p117, %p118
      %p120 = scmp.ne.s32.totalorder %s106, %s107
      %p121 = scmp.eq.s32.totalorder %s26, 3
      %p122 = por %p120, %p121
      %p124 = scmp.ne.s32.totalorder %s107, %s123
      %p125 = scmp.eq.s32.totalorder %s26, 0
      %p126 = por %p124, %p125
      %p127 = scmp.le.s32.totalorder 1, %s20
      %p128 = scmp.lt.s32.totalorder %s20, 5
      %p129 = pnand %p127, %p128
      %p130 = pneg %p129
      // Predicated region
      $region9: #{autoencoder_loss.11} parent=5 // pred_check
        _
      $region10: #{autoencoder_loss.11} parent=5 // pred_check_branch
        %132 = sbr.rel (%p129) target = $region12
      $region11: #{autoencoder_loss.11} parent=5 // pred_region
        %s133 = ssub.s32 %s20, 1
        // Predicated region
        $region13: #{autoencoder_loss.11} parent=11 // pred_check
          %p134 = pneg %p67
        $region14: #{autoencoder_loss.11} parent=11 // pred_check_branch
          %136 = sbr.rel (%p134) target = $region16
        $region15: #{autoencoder_loss.11} parent=11 // pred_region
          %s138 = ssub.s32 4096, 4096
          %139 = vsyncadd [#allocation6], %s138
          %s140 = sshll.u32 [#allocation5], 4
          %s141 = int_to_ptr.vmem [resolvable:$true] %s140
          %146 = dma.hbm_to_vmem [thread:$0]  %s1, 4096, %s141, [#allocation6], 64, 64, 4
        $region16: #{autoencoder_loss.11} parent=11 // pred_fallthru
          _
      $region12: #{autoencoder_loss.11} parent=5 // pred_fallthru
        _
      %p147 = scmp.lt.s32.totalorder %s20, 4
      // Predicated region
      $region17: #{autoencoder_loss.11} parent=5 // pred_check
        %p148 = pneg %p147
      $region18: #{autoencoder_loss.11} parent=5 // pred_check_branch
        %150 = sbr.rel (%p148) target = $region20
      $region19: #{autoencoder_loss.11} parent=5 // pred_region
        // Predicated region
        $region21: #{autoencoder_loss.11} parent=19 // pred_check
          %p151 = pneg %p40
        $region22: #{autoencoder_loss.11} parent=19 // pred_check_branch
          %153 = sbr.rel (%p151) target = $region24
        $region23: #{autoencoder_loss.11} parent=19 // pred_region
          %s154 = sand.u32 %s30, 1
          %s155 = scalar_lea.sflag [#allocation3], %s154
          %s156 = sand.u32 %s30, 1
          %s157 = smul.addr %s156, 20
          %s158 = scalar_lea.vmem [#allocation2], %s157
          %s160 = ssub.s32 320, 320
          %161 = vsyncadd %s155, %s160
          %s162 = smul.addr %s20, 5
          %s163 = smul.addr %s162, 64
          %s164 = scalar_lea.hbm %s0, %s163
          %s165 = sshll.u32 %s158, 4
          %s166 = int_to_ptr.vmem [resolvable:$true] %s165
          %171 = dma.hbm_to_vmem [thread:$0]  %s164, 320, %s166, %s155, 64, 64, 4
        $region24: #{autoencoder_loss.11} parent=19 // pred_fallthru
          _
      $region20: #{autoencoder_loss.11} parent=5 // pred_fallthru
        _
      %p172 = scmp.le.s32.totalorder 1, %s20
      %p173 = scmp.lt.s32.totalorder %s20, 5
      %p174 = pnand %p172, %p173
      %p175 = pneg %p174
      // Predicated region
      $region25: #{autoencoder_loss.11} parent=5 // pred_check
        _
      $region26: #{autoencoder_loss.11} parent=5 // pred_check_branch
        %177 = sbr.rel (%p174) target = $region28
      $region27: #{autoencoder_loss.11} parent=5 // pred_region
        %s178 = ssub.s32 %s20, 1
        %s179 = sand.u32 %s33, 1
        %s180 = scalar_lea.sflag [#allocation3], %s179
        %s181 = sand.u32 %s33, 1
        %s182 = smul.addr %s181, 20
        %s183 = scalar_lea.vmem [#allocation2], %s182
        // Predicated region
        $region29: #{autoencoder_loss.11} parent=27 // pred_check
          %p184 = pneg %p46
        $region30: #{autoencoder_loss.11} parent=27 // pred_check_branch
          %186 = sbr.rel (%p184) target = $region32
        $region31: #{autoencoder_loss.11} parent=27 // pred_region
          %187 = dma.done %s180, 320
        $region32: #{autoencoder_loss.11} parent=27 // pred_fallthru
          _
        // Predicated region
        $region33: #{autoencoder_loss.11} parent=27 // pred_check
          %p188 = pneg %p67
        $region34: #{autoencoder_loss.11} parent=27 // pred_check_branch
          %190 = sbr.rel (%p188) target = $region36
        $region35: #{autoencoder_loss.11} parent=27 // pred_region
          %191 = dma.done [#allocation6], 4096
        $region36: #{autoencoder_loss.11} parent=27 // pred_fallthru
          _
        %s192 = sand.u32 %s33, 1
        %s193 = scalar_lea.sflag [#allocation3], %s192
        %s194 = sand.u32 %s33, 1
        %s195 = smul.addr %s194, 20
        %s196 = scalar_lea.vmem [#allocation2], %s195
        %p197 = pneg %p46
        %p198 = pneg %p43
        %p199 = pneg %p67
        %p200 = pneg %p64
        %p201 = pneg %p93
        %p202 = pneg %p90
        %s203 = sand.u32 %s80, 1
        %s204 = scalar_lea.sflag [#allocation4], %s203
        %s205 = sand.u32 %s80, 1
        %s206 = smul.addr %s205, 16
        %s207 = scalar_lea.vmem [#allocation7], %s206
        %p208 = pneg %p119
        %p209 = pneg %p116
        %s210 = sand.u32 %s106, 1
        %s211 = scalar_lea.sflag [#allocation9], %s210
        %s212 = sand.u32 %s106, 1
        %s213 = smul.addr %s212, 2
        %s214 = scalar_lea.vmem [#allocation8], %s213
        %v216 = vld [vmem:[%s183] sm:$0xf]
        %v217 = vld [vmem:[%s183 + $0x4] sm:$0xf]
        %v218 = vld [vmem:[#allocation5] sm:$0xf]
        %v219 = vld [vmem:[#allocation5 + $0x4] sm:$0xf]
        %v220 = vld [vmem:[#allocation5 + $0x8] sm:$0xf]
        %v221 = vld [vmem:[#allocation5 + $0xc] sm:$0xf]
        %s222 = scalar_lea.vmem [#allocation5], 16
        %v223 = vld [vmem:[%s222] sm:$0xf]
        %v224 = vld [vmem:[%s222 + $0x4] sm:$0xf]
        %v225 = vld [vmem:[%s222 + $0x8] sm:$0xf]
        %v226 = vld [vmem:[%s222 + $0xc] sm:$0xf]
        %v229 = vunpack.c.l.b16 %v216
        %v230 = vunpack.c.l.b16 %v217
        %v231 = vpack.c.b16 %v230, %v229
        %v233 = vshrl.u32 %v231, 16
        %v235 = vshll.u32 %v231, 16
        %v237 = vrot.slane %v235, 1
        %v238 = vor.u32 %v233, %v237
        %v243 = vunpack.c.l.b16 %v223
        %v244 = vunpack.c.l.b16 %v224
        %v245 = vunpack.c.l.b16 %v225
        %v246 = vunpack.c.l.b16 %v226
        %v247 = vpack.c.b16 %v244, %v243
        %v248 = vpack.c.b16 %v246, %v245
        %vm251 = vcmask 261120
        %v253 = vsel %vm251, %v238, 0
        %255 = vmatprep.subr.bf16.mxu0 0
        %256 = vmatpush1.bf16.msra.mxu0 %v247
        %257 = vmatprep.subr.bf16.mxu0 0
        %258 = vmatpush1.bf16.msra.mxu0 %v248
        %259 = vmatprep.subr.bf16.mxu0 0
        %260 = vmatpush1.bf16.msra.mxu0 0
        %261 = vmatprep.subr.bf16.mxu0 0
        %262 = vmatpush1.bf16.msra.mxu0 0
        %263 = vmatprep.subr.bf16.mxu0 0
        %264 = vmatpush1.bf16.msra.mxu0 0
        %265 = vmatprep.subr.bf16.mxu0 0
        %266 = vmatpush1.bf16.msra.mxu0 0
        %267 = vmatprep.subr.bf16.mxu0 0
        %268 = vmatpush1.bf16.msra.mxu0 0
        %269 = vmatprep.subr.bf16.mxu0 0
        %270 = vmatpush1.bf16.msra.mxu0 0
        %271 = vmatprep.subr.bf16.mxu0 0
        %272 = vmatpush1.bf16.msra.mxu0 0
        %273 = vmatprep.subr.bf16.mxu0 0
        %274 = vmatpush1.bf16.msra.mxu0 0
        %275 = vmatprep.subr.bf16.mxu0 0
        %276 = vmatpush1.bf16.msra.mxu0 0
        %277 = vmatprep.subr.bf16.mxu0 0
        %278 = vmatpush1.bf16.msra.mxu0 0
        %279 = vmatprep.subr.bf16.mxu0 0
        %280 = vmatpush1.bf16.msra.mxu0 0
        %281 = vmatprep.subr.bf16.mxu0 0
        %282 = vmatpush1.bf16.msra.mxu0 0
        %283 = vmatprep.subr.bf16.mxu0 0
        %284 = vmatpush1.bf16.msra.mxu0 0
        %285 = vmatprep.subr.bf16.mxu0 0
        %286 = vmatpush1.bf16.msra.mxu0 0
        %287 = vmatprep.mubr.bf16.mxu0 0
        %288 = vmatmul.mubr.bf16.gmra.mrb[0].mxu0 %v253
        %v289 = vpop.f32.mrb[0].mxu0
        %v290 = vadd.f32 0.0, %v289
        %v291 = vpop.f32.mrb[0].mxu0
        %v292 = vpop.f32.mrb[0].mxu0
        %v293 = vadd.f32 0.0, %v292
        %v294 = vpop.f32.mrb[0].mxu0
        %295 = vdwg.mxu0
        %v300 = vunpack.c.l.b16 %v218
        %v301 = vunpack.c.l.b16 %v219
        %v302 = vunpack.c.l.b16 %v220
        %v303 = vunpack.c.l.b16 %v221
        %v304 = vpack.c.b16 %v301, %v300
        %v305 = vpack.c.b16 %v303, %v302
        %v308 = vsel %vm251, %v231, 0
        %310 = vmatprep.subr.bf16.mxu0 0
        %311 = vmatpush1.bf16.msra.mxu0 %v304
        %312 = vmatprep.subr.bf16.mxu0 0
        %313 = vmatpush1.bf16.msra.mxu0 %v305
        %314 = vmatprep.subr.bf16.mxu0 0
        %315 = vmatpush1.bf16.msra.mxu0 0
        %316 = vmatprep.subr.bf16.mxu0 0
        %317 = vmatpush1.bf16.msra.mxu0 0
        %318 = vmatprep.subr.bf16.mxu0 0
        %319 = vmatpush1.bf16.msra.mxu0 0
        %320 = vmatprep.subr.bf16.mxu0 0
        %321 = vmatpush1.bf16.msra.mxu0 0
        %322 = vmatprep.subr.bf16.mxu0 0
        %323 = vmatpush1.bf16.msra.mxu0 0
        %324 = vmatprep.subr.bf16.mxu0 0
        %325 = vmatpush1.bf16.msra.mxu0 0
        %326 = vmatprep.subr.bf16.mxu0 0
        %327 = vmatpush1.bf16.msra.mxu0 0
        %328 = vmatprep.subr.bf16.mxu0 0
        %329 = vmatpush1.bf16.msra.mxu0 0
        %330 = vmatprep.subr.bf16.mxu0 0
        %331 = vmatpush1.bf16.msra.mxu0 0
        %332 = vmatprep.subr.bf16.mxu0 0
        %333 = vmatpush1.bf16.msra.mxu0 0
        %334 = vmatprep.subr.bf16.mxu0 0
        %335 = vmatpush1.bf16.msra.mxu0 0
        %336 = vmatprep.subr.bf16.mxu0 0
        %337 = vmatpush1.bf16.msra.mxu0 0
        %338 = vmatprep.subr.bf16.mxu0 0
        %339 = vmatpush1.bf16.msra.mxu0 0
        %340 = vmatprep.subr.bf16.mxu0 0
        %341 = vmatpush1.bf16.msra.mxu0 0
        %342 = vmatprep.mubr.bf16.mxu0 0
        %343 = vmatmul.mubr.bf16.gmra.mrb[0].mxu0 %v308
        %v344 = vpop.f32.mrb[0].mxu0
        %v345 = vadd.f32 %v290, %v344
        %v346 = vpop.f32.mrb[0].mxu0
        %v347 = vpop.f32.mrb[0].mxu0
        %v348 = vadd.f32 %v293, %v347
        %v349 = vpop.f32.mrb[0].mxu0
        %350 = vdwg.mxu0
        %v351 = vld [vmem:[%s183] sm:$0xe]
        %v352 = vld [vmem:[%s183 + $0x4] sm:$0xf]
        %v353 = vld [vmem:[%s183 + $0x8] sm:$0x1]
        %s354 = scalar_lea.vmem [#allocation5], 32
        %v355 = vld [vmem:[%s354] sm:$0xf]
        %v356 = vld [vmem:[%s354 + $0x4] sm:$0xf]
        %v357 = vld [vmem:[%s354 + $0x8] sm:$0xf]
        %v358 = vld [vmem:[%s354 + $0xc] sm:$0xf]
        %v362 = vunpack.c.l.b16 %v351
        %v363 = vunpack.c.l.b16 %v352
        %v364 = vunpack.c.l.b16 %v353
        %v365 = vpack.c.b16 %v363, %v362
        %v366 = vpack.c.b16 %v364, %v364
        %vm367 = vcmask 1046528
        %v368 = vrot.slane %v365, 1
        %v369 = vrot.slane %v366, 1
        %v370 = vsel %vm367, %v368, %v369
        %v375 = vunpack.c.l.b16 %v355
        %v376 = vunpack.c.l.b16 %v356
        %v377 = vunpack.c.l.b16 %v357
        %v378 = vunpack.c.l.b16 %v358
        %v379 = vpack.c.b16 %v376, %v375
        %v380 = vpack.c.b16 %v378, %v377
        %v384 = vsel %vm251, %v370, 0
        %386 = vmatprep.subr.bf16.mxu0 0
        %387 = vmatpush1.bf16.msra.mxu0 %v379
        %388 = vmatprep.subr.bf16.mxu0 0
        %389 = vmatpush1.bf16.msra.mxu0 %v380
        %390 = vmatprep.subr.bf16.mxu0 0
        %391 = vmatpush1.bf16.msra.mxu0 0
        %392 = vmatprep.subr.bf16.mxu0 0
        %393 = vmatpush1.bf16.msra.mxu0 0
        %394 = vmatprep.subr.bf16.mxu0 0
        %395 = vmatpush1.bf16.msra.mxu0 0
        %396 = vmatprep.subr.bf16.mxu0 0
        %397 = vmatpush1.bf16.msra.mxu0 0
        %398 = vmatprep.subr.bf16.mxu0 0
        %399 = vmatpush1.bf16.msra.mxu0 0
        %400 = vmatprep.subr.bf16.mxu0 0
        %401 = vmatpush1.bf16.msra.mxu0 0
        %402 = vmatprep.subr.bf16.mxu0 0
        %403 = vmatpush1.bf16.msra.mxu0 0
        %404 = vmatprep.subr.bf16.mxu0 0
        %405 = vmatpush1.bf16.msra.mxu0 0
        %406 = vmatprep.subr.bf16.mxu0 0
        %407 = vmatpush1.bf16.msra.mxu0 0
        %408 = vmatprep.subr.bf16.mxu0 0
        %409 = vmatpush1.bf16.msra.mxu0 0
        %410 = vmatprep.subr.bf16.mxu0 0
        %411 = vmatpush1.bf16.msra.mxu0 0
        %412 = vmatprep.subr.bf16.mxu0 0
        %413 = vmatpush1.bf16.msra.mxu0 0
        %414 = vmatprep.subr.bf16.mxu0 0
        %415 = vmatpush1.bf16.msra.mxu0 0
        %416 = vmatprep.subr.bf16.mxu0 0
        %417 = vmatpush1.bf16.msra.mxu0 0
        %418 = vmatprep.mubr.bf16.mxu0 0
        %419 = vmatmul.mubr.bf16.gmra.mrb[0].mxu0 %v384
        %v420 = vpop.f32.mrb[0].mxu0
        %v421 = vadd.f32 0.0, %v420
        %v422 = vpop.f32.mrb[0].mxu0
        %v423 = vpop.f32.mrb[0].mxu0
        %v424 = vadd.f32 0.0, %v423
        %v425 = vpop.f32.mrb[0].mxu0
        %426 = vdwg.mxu0
        %v427 = vadd.f32 %v345, %v421
        %v428 = vadd.f32 %v348, %v424
        %s429 = scalar_lea.vmem [#allocation5], 48
        %v430 = vld [vmem:[%s429] sm:$0xf]
        %v431 = vld [vmem:[%s429 + $0x4] sm:$0xf]
        %v432 = vld [vmem:[%s429 + $0x8] sm:$0xf]
        %v433 = vld [vmem:[%s429 + $0xc] sm:$0xf]
        %vm434 = vsmask.f32 6400
        %v436 = vshrl.u32 %v365, 16
        %v438 = vrot.slane %v436, 1
        %v439 = vshll.u32 %v365, 16
        %v441 = vrot.slane %v439, 2
        %v442 = vor.u32 %v438, %v441
        %v444 = vshrl.u32 %v366, 16
        %v446 = vrot.slane %v444, 1
        %v447 = vshll.u32 %v366, 16
        %v449 = vrot.slane %v447, 2
        %v450 = vor.u32 %v446, %v449
        %v451 = vsel %vm434, %v442, %v450
        %v456 = vunpack.c.l.b16 %v430
        %v457 = vunpack.c.l.b16 %v431
        %v458 = vunpack.c.l.b16 %v432
        %v459 = vunpack.c.l.b16 %v433
        %v460 = vpack.c.b16 %v457, %v456
        %v461 = vpack.c.b16 %v459, %v458
        %v465 = vsel %vm251, %v451, 0
        %467 = vmatprep.subr.bf16.mxu0 0
        %468 = vmatpush1.bf16.msra.mxu0 %v460
        %469 = vmatprep.subr.bf16.mxu0 0
        %470 = vmatpush1.bf16.msra.mxu0 %v461
        %471 = vmatprep.subr.bf16.mxu0 0
        %472 = vmatpush1.bf16.msra.mxu0 0
        %473 = vmatprep.subr.bf16.mxu0 0
        %474 = vmatpush1.bf16.msra.mxu0 0
        %475 = vmatprep.subr.bf16.mxu0 0
        %476 = vmatpush1.bf16.msra.mxu0 0
        %477 = vmatprep.subr.bf16.mxu0 0
        %478 = vmatpush1.bf16.msra.mxu0 0
        %479 = vmatprep.subr.bf16.mxu0 0
        %480 = vmatpush1.bf16.msra.mxu0 0
        %481 = vmatprep.subr.bf16.mxu0 0
        %482 = vmatpush1.bf16.msra.mxu0 0
        %483 = vmatprep.subr.bf16.mxu0 0
        %484 = vmatpush1.bf16.msra.mxu0 0
        %485 = vmatprep.subr.bf16.mxu0 0
        %486 = vmatpush1.bf16.msra.mxu0 0
        %487 = vmatprep.subr.bf16.mxu0 0
        %488 = vmatpush1.bf16.msra.mxu0 0
        %489 = vmatprep.subr.bf16.mxu0 0
        %490 = vmatpush1.bf16.msra.mxu0 0
        %491 = vmatprep.subr.bf16.mxu0 0
        %492 = vmatpush1.bf16.msra.mxu0 0
        %493 = vmatprep.subr.bf16.mxu0 0
        %494 = vmatpush1.bf16.msra.mxu0 0
        %495 = vmatprep.subr.bf16.mxu0 0
        %496 = vmatpush1.bf16.msra.mxu0 0
        %497 = vmatprep.subr.bf16.mxu0 0
        %498 = vmatpush1.bf16.msra.mxu0 0
        %499 = vmatprep.mubr.bf16.mxu0 0
        %500 = vmatmul.mubr.bf16.gmra.mrb[0].mxu0 %v465
        %v501 = vpop.f32.mrb[0].mxu0
        %v502 = vadd.f32 0.0, %v501
        %v503 = vpop.f32.mrb[0].mxu0
        %v504 = vpop.f32.mrb[0].mxu0
        %v505 = vadd.f32 0.0, %v504
        %v506 = vpop.f32.mrb[0].mxu0
        %507 = vdwg.mxu0
        %v508 = vadd.f32 %v427, %v502
        %v509 = vadd.f32 %v428, %v505
        %v510 = vld [vmem:[%s183] sm:$0x8]
        %v511 = vld [vmem:[%s183 + $0x8] sm:$0x7]
        %s512 = scalar_lea.vmem [#allocation5], 64
        %v513 = vld [vmem:[%s512] sm:$0xf]
        %v514 = vld [vmem:[%s512 + $0x4] sm:$0xf]
        %v515 = vld [vmem:[%s512 + $0x8] sm:$0xf]
        %v516 = vld [vmem:[%s512 + $0xc] sm:$0xf]
        %v519 = vunpack.c.l.b16 %v510
        %v520 = vunpack.c.l.b16 %v511
        %v521 = vpack.c.b16 %v363, %v519
        %v522 = vpack.c.b16 %v520, %v520
        %vm523 = vcmask 1044480
        %v524 = vrot.slane %v521, 3
        %v525 = vrot.slane %v522, 3
        %v526 = vsel %vm523, %v524, %v525
        %v531 = vunpack.c.l.b16 %v513
        %v532 = vunpack.c.l.b16 %v514
        %v533 = vunpack.c.l.b16 %v515
        %v534 = vunpack.c.l.b16 %v516
        %v535 = vpack.c.b16 %v532, %v531
        %v536 = vpack.c.b16 %v534, %v533
        %v540 = vsel %vm251, %v526, 0
        %542 = vmatprep.subr.bf16.mxu0 0
        %543 = vmatpush1.bf16.msra.mxu0 %v535
        %544 = vmatprep.subr.bf16.mxu0 0
        %545 = vmatpush1.bf16.msra.mxu0 %v536
        %546 = vmatprep.subr.bf16.mxu0 0
        %547 = vmatpush1.bf16.msra.mxu0 0
        %548 = vmatprep.subr.bf16.mxu0 0
        %549 = vmatpush1.bf16.msra.mxu0 0
        %550 = vmatprep.subr.bf16.mxu0 0
        %551 = vmatpush1.bf16.msra.mxu0 0
        %552 = vmatprep.subr.bf16.mxu0 0
        %553 = vmatpush1.bf16.msra.mxu0 0
        %554 = vmatprep.subr.bf16.mxu0 0
        %555 = vmatpush1.bf16.msra.mxu0 0
        %556 = vmatprep.subr.bf16.mxu0 0
        %557 = vmatpush1.bf16.msra.mxu0 0
        %558 = vmatprep.subr.bf16.mxu0 0
        %559 = vmatpush1.bf16.msra.mxu0 0
        %560 = vmatprep.subr.bf16.mxu0 0
        %561 = vmatpush1.bf16.msra.mxu0 0
        %562 = vmatprep.subr.bf16.mxu0 0
        %563 = vmatpush1.bf16.msra.mxu0 0
        %564 = vmatprep.subr.bf16.mxu0 0
        %565 = vmatpush1.bf16.msra.mxu0 0
        %566 = vmatprep.subr.bf16.mxu0 0
        %567 = vmatpush1.bf16.msra.mxu0 0
        %568 = vmatprep.subr.bf16.mxu0 0
        %569 = vmatpush1.bf16.msra.mxu0 0
        %570 = vmatprep.subr.bf16.mxu0 0
        %571 = vmatpush1.bf16.msra.mxu0 0
        %572 = vmatprep.subr.bf16.mxu0 0
        %573 = vmatpush1.bf16.msra.mxu0 0
        %574 = vmatprep.mubr.bf16.mxu0 0
        %575 = vmatmul.mubr.bf16.gmra.mrb[0].mxu0 %v540
        %v576 = vpop.f32.mrb[0].mxu0
        %v577 = vadd.f32 0.0, %v576
        %v578 = vpop.f32.mrb[0].mxu0
        %v579 = vpop.f32.mrb[0].mxu0
        %v580 = vadd.f32 0.0, %v579
        %v581 = vpop.f32.mrb[0].mxu0
        %582 = vdwg.mxu0
        %v583 = vadd.f32 %v508, %v577
        %v584 = vadd.f32 %v509, %v580
        %s585 = scalar_lea.vmem [#allocation5], 80
        %v586 = vld [vmem:[%s585] sm:$0xf]
        %v587 = vld [vmem:[%s585 + $0x4] sm:$0xf]
        %v588 = vld [vmem:[%s585 + $0x8] sm:$0xf]
        %v589 = vld [vmem:[%s585 + $0xc] sm:$0xf]
        %vm590 = vsmask.f32 4352
        %v592 = vshrl.u32 %v521, 16
        %v594 = vrot.slane %v592, 3
        %v595 = vshll.u32 %v521, 16
        %v597 = vrot.slane %v595, 4
        %v598 = vor.u32 %v594, %v597
        %v600 = vshrl.u32 %v522, 16
        %v602 = vrot.slane %v600, 3
        %v603 = vshll.u32 %v522, 16
        %v605 = vrot.slane %v603, 4
        %v606 = vor.u32 %v602, %v605
        %v607 = vsel %vm590, %v598, %v606
        %v612 = vunpack.c.l.b16 %v586
        %v613 = vunpack.c.l.b16 %v587
        %v614 = vunpack.c.l.b16 %v588
        %v615 = vunpack.c.l.b16 %v589
        %v616 = vpack.c.b16 %v613, %v612
        %v617 = vpack.c.b16 %v615, %v614
        %v621 = vsel %vm251, %v607, 0
        %623 = vmatprep.subr.bf16.mxu0 0
        %624 = vmatpush1.bf16.msra.mxu0 %v616
        %625 = vmatprep.subr.bf16.mxu0 0
        %626 = vmatpush1.bf16.msra.mxu0 %v617
        %627 = vmatprep.subr.bf16.mxu0 0
        %628 = vmatpush1.bf16.msra.mxu0 0
        %629 = vmatprep.subr.bf16.mxu0 0
        %630 = vmatpush1.bf16.msra.mxu0 0
        %631 = vmatprep.subr.bf16.mxu0 0
        %632 = vmatpush1.bf16.msra.mxu0 0
        %633 = vmatprep.subr.bf16.mxu0 0
        %634 = vmatpush1.bf16.msra.mxu0 0
        %635 = vmatprep.subr.bf16.mxu0 0
        %636 = vmatpush1.bf16.msra.mxu0 0
        %637 = vmatprep.subr.bf16.mxu0 0
        %638 = vmatpush1.bf16.msra.mxu0 0
        %639 = vmatprep.subr.bf16.mxu0 0
        %640 = vmatpush1.bf16.msra.mxu0 0
        %641 = vmatprep.subr.bf16.mxu0 0
        %642 = vmatpush1.bf16.msra.mxu0 0
        %643 = vmatprep.subr.bf16.mxu0 0
        %644 = vmatpush1.bf16.msra.mxu0 0
        %645 = vmatprep.subr.bf16.mxu0 0
        %646 = vmatpush1.bf16.msra.mxu0 0
        %647 = vmatprep.subr.bf16.mxu0 0
        %648 = vmatpush1.bf16.msra.mxu0 0
        %649 = vmatprep.subr.bf16.mxu0 0
        %650 = vmatpush1.bf16.msra.mxu0 0
        %651 = vmatprep.subr.bf16.mxu0 0
        %652 = vmatpush1.bf16.msra.mxu0 0
        %653 = vmatprep.subr.bf16.mxu0 0
        %654 = vmatpush1.bf16.msra.mxu0 0
        %655 = vmatprep.mubr.bf16.mxu0 0
        %656 = vmatmul.mubr.bf16.gmra.mrb[0].mxu0 %v621
        %v657 = vpop.f32.mrb[0].mxu0
        %v658 = vadd.f32 0.0, %v657
        %v659 = vpop.f32.mrb[0].mxu0
        %v660 = vpop.f32.mrb[0].mxu0
        %v661 = vadd.f32 0.0, %v660
        %v662 = vpop.f32.mrb[0].mxu0
        %663 = vdwg.mxu0
        %v664 = vadd.f32 %v583, %v658
        %v665 = vadd.f32 %v584, %v661
        %v666 = vld [vmem:[%s183 + $0x8] sm:$0xf]
        %s667 = scalar_lea.vmem [#allocation5], 96
        %v668 = vld [vmem:[%s667] sm:$0xf]
        %v669 = vld [vmem:[%s667 + $0x4] sm:$0xf]
        %v670 = vld [vmem:[%s667 + $0x8] sm:$0xf]
        %v671 = vld [vmem:[%s667 + $0xc] sm:$0xf]
        %v673 = vunpack.c.l.b16 %v666
        %v674 = vpack.c.b16 %v673, %v363
        %v679 = vunpack.c.l.b16 %v668
        %v680 = vunpack.c.l.b16 %v669
        %v681 = vunpack.c.l.b16 %v670
        %v682 = vunpack.c.l.b16 %v671
        %v683 = vpack.c.b16 %v680, %v679
        %v684 = vpack.c.b16 %v682, %v681
        %v688 = vsel %vm251, %v674, 0
        %690 = vmatprep.subr.bf16.mxu0 0
        %691 = vmatpush1.bf16.msra.mxu0 %v683
        %692 = vmatprep.subr.bf16.mxu0 0
        %693 = vmatpush1.bf16.msra.mxu0 %v684
        %694 = vmatprep.subr.bf16.mxu0 0
        %695 = vmatpush1.bf16.msra.mxu0 0
        %696 = vmatprep.subr.bf16.mxu0 0
        %697 = vmatpush1.bf16.msra.mxu0 0
        %698 = vmatprep.subr.bf16.mxu0 0
        %699 = vmatpush1.bf16.msra.mxu0 0
        %700 = vmatprep.subr.bf16.mxu0 0
        %701 = vmatpush1.bf16.msra.mxu0 0
        %702 = vmatprep.subr.bf16.mxu0 0
        %703 = vmatpush1.bf16.msra.mxu0 0
        %704 = vmatprep.subr.bf16.mxu0 0
        %705 = vmatpush1.bf16.msra.mxu0 0
        %706 = vmatprep.subr.bf16.mxu0 0
        %707 = vmatpush1.bf16.msra.mxu0 0
        %708 = vmatprep.subr.bf16.mxu0 0
        %709 = vmatpush1.bf16.msra.mxu0 0
        %710 = vmatprep.subr.bf16.mxu0 0
        %711 = vmatpush1.bf16.msra.mxu0 0
        %712 = vmatprep.subr.bf16.mxu0 0
        %713 = vmatpush1.bf16.msra.mxu0 0
        %714 = vmatprep.subr.bf16.mxu0 0
        %715 = vmatpush1.bf16.msra.mxu0 0
        %716 = vmatprep.subr.bf16.mxu0 0
        %717 = vmatpush1.bf16.msra.mxu0 0
        %718 = vmatprep.subr.bf16.mxu0 0
        %719 = vmatpush1.bf16.msra.mxu0 0
        %720 = vmatprep.subr.bf16.mxu0 0
        %721 = vmatpush1.bf16.msra.mxu0 0
        %722 = vmatprep.mubr.bf16.mxu0 0
        %723 = vmatmul.mubr.bf16.gmra.mrb[0].mxu0 %v688
        %v724 = vpop.f32.mrb[0].mxu0
        %v725 = vadd.f32 0.0, %v724
        %v726 = vpop.f32.mrb[0].mxu0
        %v727 = vpop.f32.mrb[0].mxu0
        %v728 = vadd.f32 0.0, %v727
        %v729 = vpop.f32.mrb[0].mxu0
        %730 = vdwg.mxu0
        %v731 = vadd.f32 %v664, %v725
        %v732 = vadd.f32 %v665, %v728
        %s733 = scalar_lea.vmem [#allocation5], 112
        %v734 = vld [vmem:[%s733] sm:$0xf]
        %v735 = vld [vmem:[%s733 + $0x4] sm:$0xf]
        %v736 = vld [vmem:[%s733 + $0x8] sm:$0xf]
        %v737 = vld [vmem:[%s733 + $0xc] sm:$0xf]
        %v738 = vshrl.u32 %v674, 16
        %v740 = vshll.u32 %v674, 16
        %v742 = vrot.slane %v740, 1
        %v743 = vor.u32 %v738, %v742
        %v748 = vunpack.c.l.b16 %v734
        %v749 = vunpack.c.l.b16 %v735
        %v750 = vunpack.c.l.b16 %v736
        %v751 = vunpack.c.l.b16 %v737
        %v752 = vpack.c.b16 %v749, %v748
        %v753 = vpack.c.b16 %v751, %v750
        %v757 = vsel %vm251, %v743, 0
        %759 = vmatprep.subr.bf16.mxu0 0
        %760 = vmatpush1.bf16.msra.mxu0 %v752
        %761 = vmatprep.subr.bf16.mxu0 0
        %762 = vmatpush1.bf16.msra.mxu0 %v753
        %763 = vmatprep.subr.bf16.mxu0 0
        %764 = vmatpush1.bf16.msra.mxu0 0
        %765 = vmatprep.subr.bf16.mxu0 0
        %766 = vmatpush1.bf16.msra.mxu0 0
        %767 = vmatprep.subr.bf16.mxu0 0
        %768 = vmatpush1.bf16.msra.mxu0 0
        %769 = vmatprep.subr.bf16.mxu0 0
        %770 = vmatpush1.bf16.msra.mxu0 0
        %771 = vmatprep.subr.bf16.mxu0 0
        %772 = vmatpush1.bf16.msra.mxu0 0
        %773 = vmatprep.subr.bf16.mxu0 0
        %774 = vmatpush1.bf16.msra.mxu0 0
        %775 = vmatprep.subr.bf16.mxu0 0
        %776 = vmatpush1.bf16.msra.mxu0 0
        %777 = vmatprep.subr.bf16.mxu0 0
        %778 = vmatpush1.bf16.msra.mxu0 0
        %779 = vmatprep.subr.bf16.mxu0 0
        %780 = vmatpush1.bf16.msra.mxu0 0
        %781 = vmatprep.subr.bf16.mxu0 0
        %782 = vmatpush1.bf16.msra.mxu0 0
        %783 = vmatprep.subr.bf16.mxu0 0
        %784 = vmatpush1.bf16.msra.mxu0 0
        %785 = vmatprep.subr.bf16.mxu0 0
        %786 = vmatpush1.bf16.msra.mxu0 0
        %787 = vmatprep.subr.bf16.mxu0 0
        %788 = vmatpush1.bf16.msra.mxu0 0
        %789 = vmatprep.subr.bf16.mxu0 0
        %790 = vmatpush1.bf16.msra.mxu0 0
        %791 = vmatprep.mubr.bf16.mxu0 0
        %792 = vmatmul.mubr.bf16.gmra.mrb[0].mxu0 %v757
        %v793 = vpop.f32.mrb[0].mxu0
        %v794 = vadd.f32 0.0, %v793
        %v795 = vpop.f32.mrb[0].mxu0
        %v796 = vpop.f32.mrb[0].mxu0
        %v797 = vadd.f32 0.0, %v796
        %v798 = vpop.f32.mrb[0].mxu0
        %799 = vdwg.mxu0
        %v800 = vadd.f32 %v731, %v794
        %v801 = vadd.f32 %v732, %v797
        %v802 = vld [vmem:[%s183 + $0x4] sm:$0xc]
        %v803 = vld [vmem:[%s183 + $0x8] sm:$0xf]
        %v804 = vld [vmem:[%s183 + $0xc] sm:$0x3]
        %s805 = scalar_lea.vmem [#allocation5], 128
        %v806 = vld [vmem:[%s805] sm:$0xf]
        %v807 = vld [vmem:[%s805 + $0x4] sm:$0xf]
        %v808 = vld [vmem:[%s805 + $0x8] sm:$0xf]
        %v809 = vld [vmem:[%s805 + $0xc] sm:$0xf]
        %v813 = vunpack.c.l.b16 %v802
        %v814 = vunpack.c.l.b16 %v803
        %v815 = vunpack.c.l.b16 %v804
        %v816 = vpack.c.b16 %v814, %v813
        %v817 = vpack.c.b16 %v815, %v815
        %vm818 = vcmask 1045504
        %v819 = vrot.slane %v816, 2
        %v820 = vrot.slane %v817, 2
        %v821 = vsel %vm818, %v819, %v820
        %v826 = vunpack.c.l.b16 %v806
        %v827 = vunpack.c.l.b16 %v807
        %v828 = vunpack.c.l.b16 %v808
        %v829 = vunpack.c.l.b16 %v809
        %v830 = vpack.c.b16 %v827, %v826
        %v831 = vpack.c.b16 %v829, %v828
        %v835 = vsel %vm251, %v821, 0
        %837 = vmatprep.subr.bf16.mxu0 0
        %838 = vmatpush1.bf16.msra.mxu0 %v830
        %839 = vmatprep.subr.bf16.mxu0 0
        %840 = vmatpush1.bf16.msra.mxu0 %v831
        %841 = vmatprep.subr.bf16.mxu0 0
        %842 = vmatpush1.bf16.msra.mxu0 0
        %843 = vmatprep.subr.bf16.mxu0 0
        %844 = vmatpush1.bf16.msra.mxu0 0
        %845 = vmatprep.subr.bf16.mxu0 0
        %846 = vmatpush1.bf16.msra.mxu0 0
        %847 = vmatprep.subr.bf16.mxu0 0
        %848 = vmatpush1.bf16.msra.mxu0 0
        %849 = vmatprep.subr.bf16.mxu0 0
        %850 = vmatpush1.bf16.msra.mxu0 0
        %851 = vmatprep.subr.bf16.mxu0 0
        %852 = vmatpush1.bf16.msra.mxu0 0
        %853 = vmatprep.subr.bf16.mxu0 0
        %854 = vmatpush1.bf16.msra.mxu0 0
        %855 = vmatprep.subr.bf16.mxu0 0
        %856 = vmatpush1.bf16.msra.mxu0 0
        %857 = vmatprep.subr.bf16.mxu0 0
        %858 = vmatpush1.bf16.msra.mxu0 0
        %859 = vmatprep.subr.bf16.mxu0 0
        %860 = vmatpush1.bf16.msra.mxu0 0
        %861 = vmatprep.subr.bf16.mxu0 0
        %862 = vmatpush1.bf16.msra.mxu0 0
        %863 = vmatprep.subr.bf16.mxu0 0
        %864 = vmatpush1.bf16.msra.mxu0 0
        %865 = vmatprep.subr.bf16.mxu0 0
        %866 = vmatpush1.bf16.msra.mxu0 0
        %867 = vmatprep.subr.bf16.mxu0 0
        %868 = vmatpush1.bf16.msra.mxu0 0
        %869 = vmatprep.mubr.bf16.mxu0 0
        %870 = vmatmul.mubr.bf16.gmra.mrb[0].mxu0 %v835
        %v871 = vpop.f32.mrb[0].mxu0
        %v872 = vadd.f32 0.0, %v871
        %v873 = vpop.f32.mrb[0].mxu0
        %v874 = vpop.f32.mrb[0].mxu0
        %v875 = vadd.f32 0.0, %v874
        %v876 = vpop.f32.mrb[0].mxu0
        %877 = vdwg.mxu0
        %v878 = vadd.f32 %v800, %v872
        %v879 = vadd.f32 %v801, %v875
        %s880 = scalar_lea.vmem [#allocation5], 144
        %v881 = vld [vmem:[%s880] sm:$0xf]
        %v882 = vld [vmem:[%s880 + $0x4] sm:$0xf]
        %v883 = vld [vmem:[%s880 + $0x8] sm:$0xf]
        %v884 = vld [vmem:[%s880 + $0xc] sm:$0xf]
        %vm885 = vsmask.f32 5376
        %v887 = vshrl.u32 %v816, 16
        %v889 = vrot.slane %v887, 2
        %v890 = vshll.u32 %v816, 16
        %v892 = vrot.slane %v890, 3
        %v893 = vor.u32 %v889, %v892
        %v895 = vshrl.u32 %v817, 16
        %v897 = vrot.slane %v895, 2
        %v898 = vshll.u32 %v817, 16
        %v900 = vrot.slane %v898, 3
        %v901 = vor.u32 %v897, %v900
        %v902 = vsel %vm885, %v893, %v901
        %v907 = vunpack.c.l.b16 %v881
        %v908 = vunpack.c.l.b16 %v882
        %v909 = vunpack.c.l.b16 %v883
        %v910 = vunpack.c.l.b16 %v884
        %v911 = vpack.c.b16 %v908, %v907
        %v912 = vpack.c.b16 %v910, %v909
        %v916 = vsel %vm251, %v902, 0
        %918 = vmatprep.subr.bf16.mxu0 0
        %919 = vmatpush1.bf16.msra.mxu0 %v911
        %920 = vmatprep.subr.bf16.mxu0 0
        %921 = vmatpush1.bf16.msra.mxu0 %v912
        %922 = vmatprep.subr.bf16.mxu0 0
        %923 = vmatpush1.bf16.msra.mxu0 0
        %924 = vmatprep.subr.bf16.mxu0 0
        %925 = vmatpush1.bf16.msra.mxu0 0
        %926 = vmatprep.subr.bf16.mxu0 0
        %927 = vmatpush1.bf16.msra.mxu0 0
        %928 = vmatprep.subr.bf16.mxu0 0
        %929 = vmatpush1.bf16.msra.mxu0 0
        %930 = vmatprep.subr.bf16.mxu0 0
        %931 = vmatpush1.bf16.msra.mxu0 0
        %932 = vmatprep.subr.bf16.mxu0 0
        %933 = vmatpush1.bf16.msra.mxu0 0
        %934 = vmatprep.subr.bf16.mxu0 0
        %935 = vmatpush1.bf16.msra.mxu0 0
        %936 = vmatprep.subr.bf16.mxu0 0
        %937 = vmatpush1.bf16.msra.mxu0 0
        %938 = vmatprep.subr.bf16.mxu0 0
        %939 = vmatpush1.bf16.msra.mxu0 0
        %940 = vmatprep.subr.bf16.mxu0 0
        %941 = vmatpush1.bf16.msra.mxu0 0
        %942 = vmatprep.subr.bf16.mxu0 0
        %943 = vmatpush1.bf16.msra.mxu0 0
        %944 = vmatprep.subr.bf16.mxu0 0
        %945 = vmatpush1.bf16.msra.mxu0 0
        %946 = vmatprep.subr.bf16.mxu0 0
        %947 = vmatpush1.bf16.msra.mxu0 0
        %948 = vmatprep.subr.bf16.mxu0 0
        %949 = vmatpush1.bf16.msra.mxu0 0
        %950 = vmatprep.mubr.bf16.mxu0 0
        %951 = vmatmul.mubr.bf16.gmra.mrb[0].mxu0 %v916
        %v952 = vpop.f32.mrb[0].mxu0
        %v953 = vadd.f32 0.0, %v952
        %v954 = vpop.f32.mrb[0].mxu0
        %v955 = vpop.f32.mrb[0].mxu0
        %v956 = vadd.f32 0.0, %v955
        %v957 = vpop.f32.mrb[0].mxu0
        %958 = vdwg.mxu0
        %v959 = vadd.f32 %v878, %v953
        %v960 = vadd.f32 %v879, %v956
        %v961 = vld [vmem:[%s183 + $0x4] sm:$0x8]
        %v962 = vld [vmem:[%s183 + $0xc] sm:$0x7]
        %s963 = scalar_lea.vmem [#allocation5], 160
        %v964 = vld [vmem:[%s963] sm:$0xf]
        %v965 = vld [vmem:[%s963 + $0x4] sm:$0xf]
        %v966 = vld [vmem:[%s963 + $0x8] sm:$0xf]
        %v967 = vld [vmem:[%s963 + $0xc] sm:$0xf]
        %v970 = vunpack.c.l.b16 %v961
        %v971 = vunpack.c.l.b16 %v962
        %v972 = vpack.c.b16 %v814, %v970
        %v973 = vpack.c.b16 %v971, %v971
        %v974 = vrot.slane %v972, 3
        %v975 = vrot.slane %v973, 3
        %v976 = vsel %vm523, %v974, %v975
        %v981 = vunpack.c.l.b16 %v964
        %v982 = vunpack.c.l.b16 %v965
        %v983 = vunpack.c.l.b16 %v966
        %v984 = vunpack.c.l.b16 %v967
        %v985 = vpack.c.b16 %v982, %v981
        %v986 = vpack.c.b16 %v984, %v983
        %v990 = vsel %vm251, %v976, 0
        %992 = vmatprep.subr.bf16.mxu0 0
        %993 = vmatpush1.bf16.msra.mxu0 %v985
        %994 = vmatprep.subr.bf16.mxu0 0
        %995 = vmatpush1.bf16.msra.mxu0 %v986
        %996 = vmatprep.subr.bf16.mxu0 0
        %997 = vmatpush1.bf16.msra.mxu0 0
        %998 = vmatprep.subr.bf16.mxu0 0
        %999 = vmatpush1.bf16.msra.mxu0 0
        %1000 = vmatprep.subr.bf16.mxu0 0
        %1001 = vmatpush1.bf16.msra.mxu0 0
        %1002 = vmatprep.subr.bf16.mxu0 0
        %1003 = vmatpush1.bf16.msra.mxu0 0
        %1004 = vmatprep.subr.bf16.mxu0 0
        %1005 = vmatpush1.bf16.msra.mxu0 0
        %1006 = vmatprep.subr.bf16.mxu0 0
        %1007 = vmatpush1.bf16.msra.mxu0 0
        %1008 = vmatprep.subr.bf16.mxu0 0
        %1009 = vmatpush1.bf16.msra.mxu0 0
        %1010 = vmatprep.subr.bf16.mxu0 0
        %1011 = vmatpush1.bf16.msra.mxu0 0
        %1012 = vmatprep.subr.bf16.mxu0 0
        %1013 = vmatpush1.bf16.msra.mxu0 0
        %1014 = vmatprep.subr.bf16.mxu0 0
        %1015 = vmatpush1.bf16.msra.mxu0 0
        %1016 = vmatprep.subr.bf16.mxu0 0
        %1017 = vmatpush1.bf16.msra.mxu0 0
        %1018 = vmatprep.subr.bf16.mxu0 0
        %1019 = vmatpush1.bf16.msra.mxu0 0
        %1020 = vmatprep.subr.bf16.mxu0 0
        %1021 = vmatpush1.bf16.msra.mxu0 0
        %1022 = vmatprep.subr.bf16.mxu0 0
        %1023 = vmatpush1.bf16.msra.mxu0 0
        %1024 = vmatprep.mubr.bf16.mxu0 0
        %1025 = vmatmul.mubr.bf16.gmra.mrb[0].mxu0 %v990
        %v1026 = vpop.f32.mrb[0].mxu0
        %v1027 = vadd.f32 0.0, %v1026
        %v1028 = vpop.f32.mrb[0].mxu0
        %v1029 = vpop.f32.mrb[0].mxu0
        %v1030 = vadd.f32 0.0, %v1029
        %v1031 = vpop.f32.mrb[0].mxu0
        %1032 = vdwg.mxu0
        %v1033 = vadd.f32 %v959, %v1027
        %v1034 = vadd.f32 %v960, %v1030
        %s1035 = scalar_lea.vmem [#allocation5], 176
        %v1036 = vld [vmem:[%s1035] sm:$0xf]
        %v1037 = vld [vmem:[%s1035 + $0x4] sm:$0xf]
        %v1038 = vld [vmem:[%s1035 + $0x8] sm:$0xf]
        %v1039 = vld [vmem:[%s1035 + $0xc] sm:$0xf]
        %v1041 = vshrl.u32 %v972, 16
        %v1043 = vrot.slane %v1041, 3
        %v1044 = vshll.u32 %v972, 16
        %v1046 = vrot.slane %v1044, 4
        %v1047 = vor.u32 %v1043, %v1046
        %v1049 = vshrl.u32 %v973, 16
        %v1051 = vrot.slane %v1049, 3
        %v1052 = vshll.u32 %v973, 16
        %v1054 = vrot.slane %v1052, 4
        %v1055 = vor.u32 %v1051, %v1054
        %v1056 = vsel %vm590, %v1047, %v1055
        %v1061 = vunpack.c.l.b16 %v1036
        %v1062 = vunpack.c.l.b16 %v1037
        %v1063 = vunpack.c.l.b16 %v1038
        %v1064 = vunpack.c.l.b16 %v1039
        %v1065 = vpack.c.b16 %v1062, %v1061
        %v1066 = vpack.c.b16 %v1064, %v1063
        %v1070 = vsel %vm251, %v1056, 0
        %1072 = vmatprep.subr.bf16.mxu0 0
        %1073 = vmatpush1.bf16.msra.mxu0 %v1065
        %1074 = vmatprep.subr.bf16.mxu0 0
        %1075 = vmatpush1.bf16.msra.mxu0 %v1066
        %1076 = vmatprep.subr.bf16.mxu0 0
        %1077 = vmatpush1.bf16.msra.mxu0 0
        %1078 = vmatprep.subr.bf16.mxu0 0
        %1079 = vmatpush1.bf16.msra.mxu0 0
        %1080 = vmatprep.subr.bf16.mxu0 0
        %1081 = vmatpush1.bf16.msra.mxu0 0
        %1082 = vmatprep.subr.bf16.mxu0 0
        %1083 = vmatpush1.bf16.msra.mxu0 0
        %1084 = vmatprep.subr.bf16.mxu0 0
        %1085 = vmatpush1.bf16.msra.mxu0 0
        %1086 = vmatprep.subr.bf16.mxu0 0
        %1087 = vmatpush1.bf16.msra.mxu0 0
        %1088 = vmatprep.subr.bf16.mxu0 0
        %1089 = vmatpush1.bf16.msra.mxu0 0
        %1090 = vmatprep.subr.bf16.mxu0 0
        %1091 = vmatpush1.bf16.msra.mxu0 0
        %1092 = vmatprep.subr.bf16.mxu0 0
        %1093 = vmatpush1.bf16.msra.mxu0 0
        %1094 = vmatprep.subr.bf16.mxu0 0
        %1095 = vmatpush1.bf16.msra.mxu0 0
        %1096 = vmatprep.subr.bf16.mxu0 0
        %1097 = vmatpush1.bf16.msra.mxu0 0
        %1098 = vmatprep.subr.bf16.mxu0 0
        %1099 = vmatpush1.bf16.msra.mxu0 0
        %1100 = vmatprep.subr.bf16.mxu0 0
        %1101 = vmatpush1.bf16.msra.mxu0 0
        %1102 = vmatprep.subr.bf16.mxu0 0
        %1103 = vmatpush1.bf16.msra.mxu0 0
        %1104 = vmatprep.mubr.bf16.mxu0 0
        %1105 = vmatmul.mubr.bf16.gmra.mrb[0].mxu0 %v1070
        %v1106 = vpop.f32.mrb[0].mxu0
        %v1107 = vadd.f32 0.0, %v1106
        %v1108 = vpop.f32.mrb[0].mxu0
        %v1109 = vpop.f32.mrb[0].mxu0
        %v1110 = vadd.f32 0.0, %v1109
        %v1111 = vpop.f32.mrb[0].mxu0
        %1112 = vdwg.mxu0
        %v1113 = vadd.f32 %v1033, %v1107
        %v1114 = vadd.f32 %v1034, %v1110
        %v1115 = vld [vmem:[%s183 + $0x8] sm:$0xe]
        %v1116 = vld [vmem:[%s183 + $0xc] sm:$0xf]
        %v1117 = vld [vmem:[%s183 + $0x10] sm:$0x1]
        %s1118 = scalar_lea.vmem [#allocation5], 192
        %v1119 = vld [vmem:[%s1118] sm:$0xf]
        %v1120 = vld [vmem:[%s1118 + $0x4] sm:$0xf]
        %v1121 = vld [vmem:[%s1118 + $0x8] sm:$0xf]
        %v1122 = vld [vmem:[%s1118 + $0xc] sm:$0xf]
        %v1126 = vunpack.c.l.b16 %v1115
        %v1127 = vunpack.c.l.b16 %v1116
        %v1128 = vunpack.c.l.b16 %v1117
        %v1129 = vpack.c.b16 %v1127, %v1126
        %v1130 = vpack.c.b16 %v1128, %v1128
        %v1131 = vrot.slane %v1129, 1
        %v1132 = vrot.slane %v1130, 1
        %v1133 = vsel %vm367, %v1131, %v1132
        %v1138 = vunpack.c.l.b16 %v1119
        %v1139 = vunpack.c.l.b16 %v1120
        %v1140 = vunpack.c.l.b16 %v1121
        %v1141 = vunpack.c.l.b16 %v1122
        %v1142 = vpack.c.b16 %v1139, %v1138
        %v1143 = vpack.c.b16 %v1141, %v1140
        %v1147 = vsel %vm251, %v1133, 0
        %1149 = vmatprep.subr.bf16.mxu0 0
        %1150 = vmatpush1.bf16.msra.mxu0 %v1142
        %1151 = vmatprep.subr.bf16.mxu0 0
        %1152 = vmatpush1.bf16.msra.mxu0 %v1143
        %1153 = vmatprep.subr.bf16.mxu0 0
        %1154 = vmatpush1.bf16.msra.mxu0 0
        %1155 = vmatprep.subr.bf16.mxu0 0
        %1156 = vmatpush1.bf16.msra.mxu0 0
        %1157 = vmatprep.subr.bf16.mxu0 0
        %1158 = vmatpush1.bf16.msra.mxu0 0
        %1159 = vmatprep.subr.bf16.mxu0 0
        %1160 = vmatpush1.bf16.msra.mxu0 0
        %1161 = vmatprep.subr.bf16.mxu0 0
        %1162 = vmatpush1.bf16.msra.mxu0 0
        %1163 = vmatprep.subr.bf16.mxu0 0
        %1164 = vmatpush1.bf16.msra.mxu0 0
        %1165 = vmatprep.subr.bf16.mxu0 0
        %1166 = vmatpush1.bf16.msra.mxu0 0
        %1167 = vmatprep.subr.bf16.mxu0 0
        %1168 = vmatpush1.bf16.msra.mxu0 0
        %1169 = vmatprep.subr.bf16.mxu0 0
        %1170 = vmatpush1.bf16.msra.mxu0 0
        %1171 = vmatprep.subr.bf16.mxu0 0
        %1172 = vmatpush1.bf16.msra.mxu0 0
        %1173 = vmatprep.subr.bf16.mxu0 0
        %1174 = vmatpush1.bf16.msra.mxu0 0
        %1175 = vmatprep.subr.bf16.mxu0 0
        %1176 = vmatpush1.bf16.msra.mxu0 0
        %1177 = vmatprep.subr.bf16.mxu0 0
        %1178 = vmatpush1.bf16.msra.mxu0 0
        %1179 = vmatprep.subr.bf16.mxu0 0
        %1180 = vmatpush1.bf16.msra.mxu0 0
        %1181 = vmatprep.mubr.bf16.mxu0 0
        %1182 = vmatmul.mubr.bf16.gmra.mrb[0].mxu0 %v1147
        %v1183 = vpop.f32.mrb[0].mxu0
        %v1184 = vadd.f32 0.0, %v1183
        %v1185 = vpop.f32.mrb[0].mxu0
        %v1186 = vpop.f32.mrb[0].mxu0
        %v1187 = vadd.f32 0.0, %v1186
        %v1188 = vpop.f32.mrb[0].mxu0
        %1189 = vdwg.mxu0
        %v1190 = vadd.f32 %v1113, %v1184
        %v1191 = vadd.f32 %v1114, %v1187
        %s1192 = scalar_lea.vmem [#allocation5], 208
        %v1193 = vld [vmem:[%s1192] sm:$0xf]
        %v1194 = vld [vmem:[%s1192 + $0x4] sm:$0xf]
        %v1195 = vld [vmem:[%s1192 + $0x8] sm:$0xf]
        %v1196 = vld [vmem:[%s1192 + $0xc] sm:$0xf]
        %v1198 = vshrl.u32 %v1129, 16
        %v1200 = vrot.slane %v1198, 1
        %v1201 = vshll.u32 %v1129, 16
        %v1203 = vrot.slane %v1201, 2
        %v1204 = vor.u32 %v1200, %v1203
        %v1206 = vshrl.u32 %v1130, 16
        %v1208 = vrot.slane %v1206, 1
        %v1209 = vshll.u32 %v1130, 16
        %v1211 = vrot.slane %v1209, 2
        %v1212 = vor.u32 %v1208, %v1211
        %v1213 = vsel %vm434, %v1204, %v1212
        %v1218 = vunpack.c.l.b16 %v1193
        %v1219 = vunpack.c.l.b16 %v1194
        %v1220 = vunpack.c.l.b16 %v1195
        %v1221 = vunpack.c.l.b16 %v1196
        %v1222 = vpack.c.b16 %v1219, %v1218
        %v1223 = vpack.c.b16 %v1221, %v1220
        %v1227 = vsel %vm251, %v1213, 0
        %1229 = vmatprep.subr.bf16.mxu0 0
        %1230 = vmatpush1.bf16.msra.mxu0 %v1222
        %1231 = vmatprep.subr.bf16.mxu0 0
        %1232 = vmatpush1.bf16.msra.mxu0 %v1223
        %1233 = vmatprep.subr.bf16.mxu0 0
        %1234 = vmatpush1.bf16.msra.mxu0 0
        %1235 = vmatprep.subr.bf16.mxu0 0
        %1236 = vmatpush1.bf16.msra.mxu0 0
        %1237 = vmatprep.subr.bf16.mxu0 0
        %1238 = vmatpush1.bf16.msra.mxu0 0
        %1239 = vmatprep.subr.bf16.mxu0 0
        %1240 = vmatpush1.bf16.msra.mxu0 0
        %1241 = vmatprep.subr.bf16.mxu0 0
        %1242 = vmatpush1.bf16.msra.mxu0 0
        %1243 = vmatprep.subr.bf16.mxu0 0
        %1244 = vmatpush1.bf16.msra.mxu0 0
        %1245 = vmatprep.subr.bf16.mxu0 0
        %1246 = vmatpush1.bf16.msra.mxu0 0
        %1247 = vmatprep.subr.bf16.mxu0 0
        %1248 = vmatpush1.bf16.msra.mxu0 0
        %1249 = vmatprep.subr.bf16.mxu0 0
        %1250 = vmatpush1.bf16.msra.mxu0 0
        %1251 = vmatprep.subr.bf16.mxu0 0
        %1252 = vmatpush1.bf16.msra.mxu0 0
        %1253 = vmatprep.subr.bf16.mxu0 0
        %1254 = vmatpush1.bf16.msra.mxu0 0
        %1255 = vmatprep.subr.bf16.mxu0 0
        %1256 = vmatpush1.bf16.msra.mxu0 0
        %1257 = vmatprep.subr.bf16.mxu0 0
        %1258 = vmatpush1.bf16.msra.mxu0 0
        %1259 = vmatprep.subr.bf16.mxu0 0
        %1260 = vmatpush1.bf16.msra.mxu0 0
        %1261 = vmatprep.mubr.bf16.mxu0 0
        %1262 = vmatmul.mubr.bf16.gmra.mrb[0].mxu0 %v1227
        %v1263 = vpop.f32.mrb[0].mxu0
        %v1264 = vadd.f32 0.0, %v1263
        %v1265 = vpop.f32.mrb[0].mxu0
        %v1266 = vpop.f32.mrb[0].mxu0
        %v1267 = vadd.f32 0.0, %v1266
        %v1268 = vpop.f32.mrb[0].mxu0
        %1269 = vdwg.mxu0
        %v1270 = vadd.f32 %v1190, %v1264
        %v1271 = vadd.f32 %v1191, %v1267
        %v1272 = vld [vmem:[%s183 + $0x8] sm:$0xc]
        %v1273 = vld [vmem:[%s183 + $0x10] sm:$0x3]
        %s1274 = scalar_lea.vmem [#allocation5], 224
        %v1275 = vld [vmem:[%s1274] sm:$0xf]
        %v1276 = vld [vmem:[%s1274 + $0x4] sm:$0xf]
        %v1277 = vld [vmem:[%s1274 + $0x8] sm:$0xf]
        %v1278 = vld [vmem:[%s1274 + $0xc] sm:$0xf]
        %v1281 = vunpack.c.l.b16 %v1272
        %v1282 = vunpack.c.l.b16 %v1273
        %v1283 = vpack.c.b16 %v1127, %v1281
        %v1284 = vpack.c.b16 %v1282, %v1282
        %v1285 = vrot.slane %v1283, 2
        %v1286 = vrot.slane %v1284, 2
        %v1287 = vsel %vm818, %v1285, %v1286
        %v1292 = vunpack.c.l.b16 %v1275
        %v1293 = vunpack.c.l.b16 %v1276
        %v1294 = vunpack.c.l.b16 %v1277
        %v1295 = vunpack.c.l.b16 %v1278
        %v1296 = vpack.c.b16 %v1293, %v1292
        %v1297 = vpack.c.b16 %v1295, %v1294
        %v1301 = vsel %vm251, %v1287, 0
        %1303 = vmatprep.subr.bf16.mxu0 0
        %1304 = vmatpush1.bf16.msra.mxu0 %v1296
        %1305 = vmatprep.subr.bf16.mxu0 0
        %1306 = vmatpush1.bf16.msra.mxu0 %v1297
        %1307 = vmatprep.subr.bf16.mxu0 0
        %1308 = vmatpush1.bf16.msra.mxu0 0
        %1309 = vmatprep.subr.bf16.mxu0 0
        %1310 = vmatpush1.bf16.msra.mxu0 0
        %1311 = vmatprep.subr.bf16.mxu0 0
        %1312 = vmatpush1.bf16.msra.mxu0 0
        %1313 = vmatprep.subr.bf16.mxu0 0
        %1314 = vmatpush1.bf16.msra.mxu0 0
        %1315 = vmatprep.subr.bf16.mxu0 0
        %1316 = vmatpush1.bf16.msra.mxu0 0
        %1317 = vmatprep.subr.bf16.mxu0 0
        %1318 = vmatpush1.bf16.msra.mxu0 0
        %1319 = vmatprep.subr.bf16.mxu0 0
        %1320 = vmatpush1.bf16.msra.mxu0 0
        %1321 = vmatprep.subr.bf16.mxu0 0
        %1322 = vmatpush1.bf16.msra.mxu0 0
        %1323 = vmatprep.subr.bf16.mxu0 0
        %1324 = vmatpush1.bf16.msra.mxu0 0
        %1325 = vmatprep.subr.bf16.mxu0 0
        %1326 = vmatpush1.bf16.msra.mxu0 0
        %1327 = vmatprep.subr.bf16.mxu0 0
        %1328 = vmatpush1.bf16.msra.mxu0 0
        %1329 = vmatprep.subr.bf16.mxu0 0
        %1330 = vmatpush1.bf16.msra.mxu0 0
        %1331 = vmatprep.subr.bf16.mxu0 0
        %1332 = vmatpush1.bf16.msra.mxu0 0
        %1333 = vmatprep.subr.bf16.mxu0 0
        %1334 = vmatpush1.bf16.msra.mxu0 0
        %1335 = vmatprep.mubr.bf16.mxu0 0
        %1336 = vmatmul.mubr.bf16.gmra.mrb[0].mxu0 %v1301
        %v1337 = vpop.f32.mrb[0].mxu0
        %v1338 = vadd.f32 0.0, %v1337
        %v1339 = vpop.f32.mrb[0].mxu0
        %v1340 = vpop.f32.mrb[0].mxu0
        %v1341 = vadd.f32 0.0, %v1340
        %v1342 = vpop.f32.mrb[0].mxu0
        %1343 = vdwg.mxu0
        %v1344 = vadd.f32 %v1270, %v1338
        %v1345 = vadd.f32 %v1271, %v1341
        %s1346 = scalar_lea.vmem [#allocation5], 240
        %v1347 = vld [vmem:[%s1346] sm:$0xf]
        %v1348 = vld [vmem:[%s1346 + $0x4] sm:$0xf]
        %v1349 = vld [vmem:[%s1346 + $0x8] sm:$0xf]
        %v1350 = vld [vmem:[%s1346 + $0xc] sm:$0xf]
        %v1352 = vshrl.u32 %v1283, 16
        %v1354 = vrot.slane %v1352, 2
        %v1355 = vshll.u32 %v1283, 16
        %v1357 = vrot.slane %v1355, 3
        %v1358 = vor.u32 %v1354, %v1357
        %v1360 = vshrl.u32 %v1284, 16
        %v1362 = vrot.slane %v1360, 2
        %v1363 = vshll.u32 %v1284, 16
        %v1365 = vrot.slane %v1363, 3
        %v1366 = vor.u32 %v1362, %v1365
        %v1367 = vsel %vm885, %v1358, %v1366
        %v1372 = vunpack.c.l.b16 %v1347
        %v1373 = vunpack.c.l.b16 %v1348
        %v1374 = vunpack.c.l.b16 %v1349
        %v1375 = vunpack.c.l.b16 %v1350
        %v1376 = vpack.c.b16 %v1373, %v1372
        %v1377 = vpack.c.b16 %v1375, %v1374
        %v1381 = vsel %vm251, %v1367, 0
        %1383 = vmatprep.subr.bf16.mxu0 0
        %1384 = vmatpush1.bf16.msra.mxu0 %v1376
        %1385 = vmatprep.subr.bf16.mxu0 0
        %1386 = vmatpush1.bf16.msra.mxu0 %v1377
        %1387 = vmatprep.subr.bf16.mxu0 0
        %1388 = vmatpush1.bf16.msra.mxu0 0
        %1389 = vmatprep.subr.bf16.mxu0 0
        %1390 = vmatpush1.bf16.msra.mxu0 0
        %1391 = vmatprep.subr.bf16.mxu0 0
        %1392 = vmatpush1.bf16.msra.mxu0 0
        %1393 = vmatprep.subr.bf16.mxu0 0
        %1394 = vmatpush1.bf16.msra.mxu0 0
        %1395 = vmatprep.subr.bf16.mxu0 0
        %1396 = vmatpush1.bf16.msra.mxu0 0
        %1397 = vmatprep.subr.bf16.mxu0 0
        %1398 = vmatpush1.bf16.msra.mxu0 0
        %1399 = vmatprep.subr.bf16.mxu0 0
        %1400 = vmatpush1.bf16.msra.mxu0 0
        %1401 = vmatprep.subr.bf16.mxu0 0
        %1402 = vmatpush1.bf16.msra.mxu0 0
        %1403 = vmatprep.subr.bf16.mxu0 0
        %1404 = vmatpush1.bf16.msra.mxu0 0
        %1405 = vmatprep.subr.bf16.mxu0 0
        %1406 = vmatpush1.bf16.msra.mxu0 0
        %1407 = vmatprep.subr.bf16.mxu0 0
        %1408 = vmatpush1.bf16.msra.mxu0 0
        %1409 = vmatprep.subr.bf16.mxu0 0
        %1410 = vmatpush1.bf16.msra.mxu0 0
        %1411 = vmatprep.subr.bf16.mxu0 0
        %1412 = vmatpush1.bf16.msra.mxu0 0
        %1413 = vmatprep.subr.bf16.mxu0 0
        %1414 = vmatpush1.bf16.msra.mxu0 0
        %1415 = vmatprep.mubr.bf16.mxu0 0
        %1416 = vmatmul.mubr.bf16.gmra.mrb[0].mxu0 %v1381
        %v1417 = vpop.f32.mrb[0].mxu0
        %v1418 = vadd.f32 0.0, %v1417
        %v1419 = vpop.f32.mrb[0].mxu0
        %v1420 = vpop.f32.mrb[0].mxu0
        %v1421 = vadd.f32 0.0, %v1420
        %v1422 = vpop.f32.mrb[0].mxu0
        %1423 = vdwg.mxu0
        %v1424 = vadd.f32 %v1344, %v1418
        %v1425 = vadd.f32 %v1345, %v1421
        %1426 = vst [vmem:[%s207] sm:$0xff] %v1424
        %1427 = vst [vmem:[%s207 + $0x8] sm:$0x7f] %v1425
        %v1428 = vlaneseq
        %v1429 = vshrl.u32 %v1428, 7
        %v1430 = vadd.s32 %v1429, 8
        %vm1431 = vcmp.lt.s32.totalorder %v1429, 0
        %v1432 = vsub.s32 0, %v1429
        %v1433 = vsel %vm1431, %v1432, %v1429
        %v1434 = vmul.u32.u64.compose %v1433, 2863311531
        %v1435 = vextract.low.u32 %v1434
        %v1436 = vextract.high.u32 %v1434
        %v1437 = vshrl.u32 %v1436, 2
        %v1438 = vmul.u32 %v1437, 6
        %v1439 = vsub.s32 %v1433, %v1438
        %v1440 = vsub.s32 0, %v1439
        %v1441 = vsel %vm1431, %v1440, %v1439
        %vm1442 = vcmp.lt.s32.totalorder %v1430, 0
        %v1443 = vsub.s32 0, %v1430
        %v1444 = vsel %vm1442, %v1443, %v1430
        %v1445 = vmul.u32.u64.compose %v1444, 2863311531
        %v1446 = vextract.low.u32 %v1445
        %v1447 = vextract.high.u32 %v1445
        %v1448 = vshrl.u32 %v1447, 2
        %v1449 = vmul.u32 %v1448, 6
        %v1450 = vsub.s32 %v1444, %v1449
        %v1451 = vsub.s32 0, %v1450
        %v1452 = vsel %vm1442, %v1451, %v1450
        %vm1453 = vcmp.ne.s32.totalorder %v1441, 0
        %vm1454 = vcmp.ne.s32.totalorder %v1452, 0
        %vm1455 = vcmp.lt.s32.totalorder %v1441, 0
        %vm1456 = vcmp.lt.s32.totalorder %v1452, 0
        %vm1457 = vmand %vm1455, %vm1453
        %vm1458 = vmand %vm1456, %vm1454
        %v1459 = vadd.s32 %v1441, 6
        %v1460 = vadd.s32 %v1452, 6
        %v1461 = vsel %vm1457, %v1459, %v1441
        %v1462 = vsel %vm1458, %v1460, %v1452
        %vm1463 = vcmp.lt.s32.totalorder %v1461, 3
        %vm1464 = vcmp.lt.s32.totalorder %v1462, 3
        %v1465 = vsel %vm1463, %v1424, 0.0
        %v1466 = vsel %vm1464, %v1425, 0.0
        %vm1467 = vcmask 1046528
        %v1468 = vsel %vm1467, %v1466, 0.0
        %v1469 = vadd.f32 %v1465, %v1468
        %v1470 = vrot.slane %v1469, 4
        %v1471 = vadd.f32 %v1469, %v1470
        %v1472 = vrot.slane %v1471, 2
        %v1473 = vadd.f32 %v1471, %v1472
        %v1474 = vrot.slane %v1473, 1
        %v1475 = vadd.f32 %v1473, %v1474
        %v1476 = vmul.f32 %v1465, %v1465
        %v1477 = vmul.f32 %v1466, %v1466
        %v1478 = vsel %vm1467, %v1477, 0.0
        %v1479 = vadd.f32 %v1476, %v1478
        %v1480 = vrot.slane %v1479, 4
        %v1481 = vadd.f32 %v1479, %v1480
        %v1482 = vrot.slane %v1481, 2
        %v1483 = vadd.f32 %v1481, %v1482
        %v1484 = vrot.slane %v1483, 1
        %v1485 = vadd.f32 %v1483, %v1484
        %vm1486 = vcmask 1040384
        %v1487 = vsel %vm1486, %v1475, %v1485
        %1488 = vst [vmem:[%s214] sm:$0x3] %v1487
        %s1489 = sand.u32 %s80, 1
        %s1490 = scalar_lea.sflag [#allocation4], %s1489
        %s1491 = sand.u32 %s80, 1
        %s1492 = smul.addr %s1491, 16
        %s1493 = scalar_lea.vmem [#allocation7], %s1492
        %s1494 = sand.u32 %s106, 1
        %s1495 = scalar_lea.sflag [#allocation9], %s1494
        %s1496 = sand.u32 %s106, 1
        %s1497 = smul.addr %s1496, 2
        %s1498 = scalar_lea.vmem [#allocation8], %s1497
        // Predicated region
        $region37: #{autoencoder_loss.11} parent=27 // pred_check
          %p1499 = pneg %p90
        $region38: #{autoencoder_loss.11} parent=27 // pred_check_branch
          %1501 = sbr.rel (%p1499) target = $region40
        $region39: #{autoencoder_loss.11} parent=27 // pred_region
          %s1503 = ssub.s32 256, 256
          %1504 = vsyncadd %s1490, %s1503
          %s1505 = smul.addr %s25, 2
          %s1506 = smul.addr %s1505, 128
          %s1507 = scalar_lea.hbm %s2, %s1506
          %s1508 = sshll.u32 %s1493, 4
          %s1509 = int_to_ptr.vmem [resolvable:$true] %s1508
          %1514 = dma.vmem_to_hbm [thread:$0]  %s1509, 256, %s1507, %s1490, 128, 128, 8
        $region40: #{autoencoder_loss.11} parent=27 // pred_fallthru
          _
        // Predicated region
        $region41: #{autoencoder_loss.11} parent=27 // pred_check
          %p1515 = pneg %p116
        $region42: #{autoencoder_loss.11} parent=27 // pred_check_branch
          %1517 = sbr.rel (%p1515) target = $region44
        $region43: #{autoencoder_loss.11} parent=27 // pred_region
          %s1519 = ssub.s32 32, 32
          %1520 = vsyncadd %s1495, %s1519
          %s1521 = smul.addr %s25, 32
          %s1522 = scalar_lea.hbm %s3, %s1521
          %s1524 = sshll.u32 %s1498, 4
          %s1525 = int_to_ptr.vmem [resolvable:$true] %s1524
          %1527 = dma.vmem_to_hbm [thread:$0]  %s1525, 32, %s1522, %s1495
        $region44: #{autoencoder_loss.11} parent=27 // pred_fallthru
          _
      $region28: #{autoencoder_loss.11} parent=5 // pred_fallthru
        _
      %p1528 = scmp.le.s32.totalorder 2, %s20
      // Predicated region
      $region45: #{autoencoder_loss.11} parent=5 // pred_check
        %p1529 = pneg %p1528
      $region46: #{autoencoder_loss.11} parent=5 // pred_check_branch
        %1531 = sbr.rel (%p1529) target = $region48
      $region47: #{autoencoder_loss.11} parent=5 // pred_region
        %s1532 = ssub.s32 %s20, 2
        // Predicated region
        $region49: #{autoencoder_loss.11} parent=47 // pred_check
          %p1533 = pneg %p96
        $region50: #{autoencoder_loss.11} parent=47 // pred_check_branch
          %1535 = sbr.rel (%p1533) target = $region52
        $region51: #{autoencoder_loss.11} parent=47 // pred_region
          %s1536 = sand.u32 %s81, 1
          %s1537 = scalar_lea.sflag [#allocation4], %s1536
          %s1538 = sand.u32 %s81, 1
          %s1539 = smul.addr %s1538, 16
          %s1540 = scalar_lea.vmem [#allocation7], %s1539
          %1541 = dma.done %s1537, 256
        $region52: #{autoencoder_loss.11} parent=47 // pred_fallthru
          _
        // Predicated region
        $region53: #{autoencoder_loss.11} parent=47 // pred_check
          %p1542 = pneg %p122
        $region54: #{autoencoder_loss.11} parent=47 // pred_check_branch
          %1544 = sbr.rel (%p1542) target = $region56
        $region55: #{autoencoder_loss.11} parent=47 // pred_region
          %s1545 = sand.u32 %s107, 1
          %s1546 = scalar_lea.sflag [#allocation9], %s1545
          %s1547 = sand.u32 %s107, 1
          %s1548 = smul.addr %s1547, 2
          %s1549 = scalar_lea.vmem [#allocation8], %s1548
          %1550 = dma.done %s1546, 32
        $region56: #{autoencoder_loss.11} parent=47 // pred_fallthru
          _
      $region48: #{autoencoder_loss.11} parent=5 // pred_fallthru
        _
    $region6: #{autoencoder_loss.11} parent=1 // loop_footer
      %s24 = sadd.s32 1, %s20
    $region7: #{autoencoder_loss.11} parent=1 // loop_footer_branch
      %19 = sbr.rel target = $region3
    $region8: #{autoencoder_loss.11} parent=1 // loop_exit
      _
    %1551 = vsyncpa [#allocation3], 1
    %s1552 = scalar_lea.sflag [#allocation3], 1
    %1553 = vsyncpa %s1552, 1
    %1554 = vsyncpa [#allocation6], 1
    %1555 = vsyncpa [#allocation4], 1
    %s1556 = scalar_lea.sflag [#allocation4], 1
    %1557 = vsyncpa %s1556, 1
    %1558 = vsyncpa [#allocation9], 1
    %s1559 = scalar_lea.sflag [#allocation9], 1
    %1560 = vsyncpa %s1559, 1

// kernel: autoencoder_loss.7
$region0: #{autoencoder_loss.7}
  #allocation0 [shape = 'u32[]', space=smem, size = 0x4, offset = 0x4, fixed_abs, tag = 'smem constant byte address 0x4 - core index']
  #allocation1 [shape = 'u32[144,128]{1,0:T(1,128)}', space=vmem, size = 0x12000, scoped, tag = 'internal scratch']
  #allocation2 [shape = 'f32[1,128]{1,0:T(1,128)}', space=vmem, size = 0x200, scoped, tag = 'scratch operand']
  %s0 = inlined_call_operand.hbm [shape: f32[2,48,128], index: 0, kind: input, shape index: {}]
  %s1 = inlined_call_operand.hbm [shape: f32[2,48,128], index: 1, kind: input, shape index: {}]
  %s2 = inlined_call_operand.hbm [shape: f32[2,1,128], index: 2, kind: output, shape index: {}]
  %s3 = sld [smem:[#allocation0]]
  $region57: #{autoencoder_loss.7} parent=0
    _
  %s5 = ssub.s32 1, %s3
  %s6 = scalar_select 0, %s5, %s3
  $region1: #{autoencoder_loss.7} parent=0
    #allocation3 [shape = 'u8[49152]{0}', space=vmem, size = 0xc000, scoped, tag = 'input window, operand 0']
    #allocation4 [shape = 's32[2]{0}', space=sflag, size = 0x8, scoped, tag = 'scoped memory for autoencoder_loss.7']
    #allocation5 [shape = 's32[2]{0}', space=sflag, size = 0x8, scoped, tag = 'scoped memory for autoencoder_loss.7']
    #allocation6 [shape = 'u8[49152]{0}', space=vmem, size = 0xc000, scoped, tag = 'input window, operand 1']
    #allocation7 [shape = 's32[2]{0}', space=sflag, size = 0x8, scoped, tag = 'scoped memory for autoencoder_loss.7']
    #allocation8 [shape = 'u8[1024]{0}', space=vmem, size = 0x400, scoped, tag = 'output window, operand 0']
    %7 = vsyncpa [#allocation4], 0
    %s8 = scalar_lea.sflag [#allocation4], 1
    %9 = vsyncpa %s8, 0
    %10 = vsyncpa [#allocation7], 0
    %s11 = scalar_lea.sflag [#allocation7], 1
    %12 = vsyncpa %s11, 0
    %13 = vsyncpa [#allocation5], 0
    %s14 = scalar_lea.sflag [#allocation5], 1
    %15 = vsyncpa %s14, 0
    loop: start=0, step=1, limit=4
    $region2: #{autoencoder_loss.7} parent=1 // loop_pre_header
      _
    $region3: #{autoencoder_loss.7} parent=1 // loop_header
      %s17 = sphi 0, %s21
      %p18 = scmp.ge.s32.totalorder %s17, 4
      %s24 = sphi 0, %s36
      %s25 = sphi 0, %s32
      %s26 = sphi 0, %s24
      %s27 = sphi 0, %s25
      %s28 = sphi 0, %s26
      %s29 = sphi 0, %s27
      %s41 = sphi 0, %s43
      %s44 = sphi 0, %s41
      %s45 = sphi 0, %s44
      %s61 = sphi 0, %s45
      %s69 = sphi 0, %s71
      %s72 = sphi 0, %s69
      %s73 = sphi 0, %s72
      %s89 = sphi 0, %s73
      %s95 = sphi 0, %s97
      %s98 = sphi 0, %s95
      %s99 = sphi 0, %s98
      %s115 = sphi 0, %s99
    $region4: #{autoencoder_loss.7} parent=1 // loop_header_branch
      %20 = sbr.rel (%p18) target = $region8
    $region5: #{autoencoder_loss.7} parent=1 // loop_body
      %s22 = ssub.s32 %s17, 1
      %s23 = ssub.s32 %s17, 2
      %s30 = sadd.s32 1, %s25
      %p31 = scmp.ge.s32.totalorder %s30, 1
      %s32 = scalar_select %p31, 0, %s30
      %s33 = sadd.s32 1, %s24
      %s34 = scalar_select %p31, %s33, %s24
      %p35 = scmp.ge.s32.totalorder %s34, 2
      %s36 = scalar_select %p35, 0, %s34
      %s37 = ssub.s32 %s24, %s36
      %s38 = ssub.s32 %s25, %s32
      %s39 = sor.u32 %s37, %s38
      %p40 = scmp.eq.s32.totalorder %s39, 0
      %s42 = sadd.s32 %s41, 1
      %s43 = scalar_select %p40, %s41, %s42
      %p46 = pneg %p40
      %p47 = scmp.eq.s32.totalorder %s17, 1
      %p48 = por %p46, %p47
      %p49 = scmp.ne.s32.totalorder %s41, %s44
      %p50 = scmp.eq.s32.totalorder %s17, 0
      %p51 = por %p49, %p50
      %p52 = scmp.ne.s32.totalorder %s41, %s44
      %p53 = scmp.eq.s32.totalorder %s22, 1
      %p54 = por %p52, %p53
      %p55 = scmp.ne.s32.totalorder %s44, %s45
      %p56 = scmp.eq.s32.totalorder %s22, 0
      %p57 = por %p55, %p56
      %p58 = scmp.ne.s32.totalorder %s44, %s45
      %p59 = scmp.eq.s32.totalorder %s23, 1
      %p60 = por %p58, %p59
      %p62 = scmp.ne.s32.totalorder %s45, %s61
      %p63 = scmp.eq.s32.totalorder %s23, 0
      %p64 = por %p62, %p63
      %s65 = ssub.s32 %s24, %s36
      %s66 = ssub.s32 %s25, %s32
      %s67 = sor.u32 %s65, %s66
      %p68 = scmp.eq.s32.totalorder %s67, 0
      %s70 = sadd.s32 %s69, 1
      %s71 = scalar_select %p68, %s69, %s70
      %p74 = pneg %p68
      %p75 = scmp.eq.s32.totalorder %s17, 1
      %p76 = por %p74, %p75
      %p77 = scmp.ne.s32.totalorder %s69, %s72
      %p78 = scmp.eq.s32.totalorder %s17, 0
      %p79 = por %p77, %p78
      %p80 = scmp.ne.s32.totalorder %s69, %s72
      %p81 = scmp.eq.s32.totalorder %s22, 1
      %p82 = por %p80, %p81
      %p83 = scmp.ne.s32.totalorder %s72, %s73
      %p84 = scmp.eq.s32.totalorder %s22, 0
      %p85 = por %p83, %p84
      %p86 = scmp.ne.s32.totalorder %s72, %s73
      %p87 = scmp.eq.s32.totalorder %s23, 1
      %p88 = por %p86, %p87
      %p90 = scmp.ne.s32.totalorder %s73, %s89
      %p91 = scmp.eq.s32.totalorder %s23, 0
      %p92 = por %p90, %p91
      %s93 = ssub.s32 %s24, %s36
      %p94 = scmp.eq.s32.totalorder %s93, 0
      %s96 = sadd.s32 %s95, 1
      %s97 = scalar_select %p94, %s95, %s96
      %p100 = pneg %p94
      %p101 = scmp.eq.s32.totalorder %s17, 1
      %p102 = por %p100, %p101
      %p103 = scmp.ne.s32.totalorder %s95, %s98
      %p104 = scmp.eq.s32.totalorder %s17, 0
      %p105 = por %p103, %p104
      %p106 = scmp.ne.s32.totalorder %s95, %s98
      %p107 = scmp.eq.s32.totalorder %s22, 1
      %p108 = por %p106, %p107
      %p109 = scmp.ne.s32.totalorder %s98, %s99
      %p110 = scmp.eq.s32.totalorder %s22, 0
      %p111 = por %p109, %p110
      %p112 = scmp.ne.s32.totalorder %s98, %s99
      %p113 = scmp.eq.s32.totalorder %s23, 1
      %p114 = por %p112, %p113
      %p116 = scmp.ne.s32.totalorder %s99, %s115
      %p117 = scmp.eq.s32.totalorder %s23, 0
      %p118 = por %p116, %p117
      %p119 = scmp.le.s32.totalorder 1, %s17
      %p120 = scmp.lt.s32.totalorder %s17, 3
      %p121 = pnand %p119, %p120
      %p122 = pneg %p121
      // Predicated region
      $region9: #{autoencoder_loss.7} parent=5 // pred_check
        _
      $region10: #{autoencoder_loss.7} parent=5 // pred_check_branch
        %124 = sbr.rel (%p121) target = $region12
      $region11: #{autoencoder_loss.7} parent=5 // pred_region
        %s125 = ssub.s32 %s17, 1
      $region12: #{autoencoder_loss.7} parent=5 // pred_fallthru
        _
      %p126 = scmp.lt.s32.totalorder %s17, 2
      // Predicated region
      $region13: #{autoencoder_loss.7} parent=5 // pred_check
        %p127 = pneg %p126
      $region14: #{autoencoder_loss.7} parent=5 // pred_check_branch
        %129 = sbr.rel (%p127) target = $region16
      $region15: #{autoencoder_loss.7} parent=5 // pred_region
        // Predicated region
        $region17: #{autoencoder_loss.7} parent=15 // pred_check
          %p130 = pneg %p51
        $region18: #{autoencoder_loss.7} parent=15 // pred_check_branch
          %132 = sbr.rel (%p130) target = $region20
        $region19: #{autoencoder_loss.7} parent=15 // pred_region
          %s133 = sand.u32 %s41, 1
          %s134 = scalar_lea.sflag [#allocation4], %s133
          %s135 = sand.u32 %s41, 1
          %s136 = smul.addr %s135, 48
          %s137 = scalar_lea.vmem [#allocation3], %s136
          %s138 = smul.u32 6, %s25
          %s140 = ssub.s32 768, 768
          %141 = vsyncadd %s134, %s140
          %s142 = smul.addr %s24, 6
          %s143 = sadd.s32 %s138, %s142
          %s144 = smul.addr %s143, 128
          %s145 = scalar_lea.hbm %s0, %s144
          %s146 = sshll.u32 %s137, 4
          %s147 = int_to_ptr.vmem [resolvable:$true] %s146
          %152 = dma.hbm_to_vmem [thread:$0]  %s145, 768, %s147, %s134, 128, 128, 8
        $region20: #{autoencoder_loss.7} parent=15 // pred_fallthru
          _
        // Predicated region
        $region21: #{autoencoder_loss.7} parent=15 // pred_check
          %p153 = pneg %p79
        $region22: #{autoencoder_loss.7} parent=15 // pred_check_branch
          %155 = sbr.rel (%p153) target = $region24
        $region23: #{autoencoder_loss.7} parent=15 // pred_region
          %s156 = sand.u32 %s69, 1
          %s157 = scalar_lea.sflag [#allocation7], %s156
          %s158 = sand.u32 %s69, 1
          %s159 = smul.addr %s158, 48
          %s160 = scalar_lea.vmem [#allocation6], %s159
          %s161 = smul.u32 6, %s25
          %s163 = ssub.s32 768, 768
          %164 = vsyncadd %s157, %s163
          %s165 = smul.addr %s24, 6
          %s166 = sadd.s32 %s161, %s165
          %s167 = smul.addr %s166, 128
          %s168 = scalar_lea.hbm %s1, %s167
          %s169 = sshll.u32 %s160, 4
          %s170 = int_to_ptr.vmem [resolvable:$true] %s169
          %175 = dma.hbm_to_vmem [thread:$0]  %s168, 768, %s170, %s157, 128, 128, 8
        $region24: #{autoencoder_loss.7} parent=15 // pred_fallthru
          _
      $region16: #{autoencoder_loss.7} parent=5 // pred_fallthru
        _
      %p176 = scmp.le.s32.totalorder 1, %s17
      %p177 = scmp.lt.s32.totalorder %s17, 3
      %p178 = pnand %p176, %p177
      %p179 = pneg %p178
      // Predicated region
      $region25: #{autoencoder_loss.7} parent=5 // pred_check
        _
      $region26: #{autoencoder_loss.7} parent=5 // pred_check_branch
        %181 = sbr.rel (%p178) target = $region28
      $region27: #{autoencoder_loss.7} parent=5 // pred_region
        %s182 = ssub.s32 %s17, 1
        %s183 = sand.u32 %s44, 1
        %s184 = scalar_lea.sflag [#allocation4], %s183
        %s185 = sand.u32 %s44, 1
        %s186 = smul.addr %s185, 48
        %s187 = scalar_lea.vmem [#allocation3], %s186
        // Predicated region
        $region29: #{autoencoder_loss.7} parent=27 // pred_check
          %p188 = pneg %p57
        $region30: #{autoencoder_loss.7} parent=27 // pred_check_branch
          %190 = sbr.rel (%p188) target = $region32
        $region31: #{autoencoder_loss.7} parent=27 // pred_region
          %191 = dma.done %s184, 768
        $region32: #{autoencoder_loss.7} parent=27 // pred_fallthru
          _
        %s192 = sand.u32 %s72, 1
        %s193 = scalar_lea.sflag [#allocation7], %s192
        %s194 = sand.u32 %s72, 1
        %s195 = smul.addr %s194, 48
        %s196 = scalar_lea.vmem [#allocation6], %s195
        // Predicated region
        $region33: #{autoencoder_loss.7} parent=27 // pred_check
          %p197 = pneg %p85
        $region34: #{autoencoder_loss.7} parent=27 // pred_check_branch
          %199 = sbr.rel (%p197) target = $region36
        $region35: #{autoencoder_loss.7} parent=27 // pred_region
          %200 = dma.done %s193, 768
        $region36: #{autoencoder_loss.7} parent=27 // pred_fallthru
          _
        %s201 = sand.u32 %s44, 1
        %s202 = scalar_lea.sflag [#allocation4], %s201
        %s203 = sand.u32 %s44, 1
        %s204 = smul.addr %s203, 48
        %s205 = scalar_lea.vmem [#allocation3], %s204
        %p206 = pneg %p57
        %p207 = pneg %p54
        %s208 = sand.u32 %s72, 1
        %s209 = scalar_lea.sflag [#allocation7], %s208
        %s210 = sand.u32 %s72, 1
        %s211 = smul.addr %s210, 48
        %s212 = scalar_lea.vmem [#allocation6], %s211
        %p213 = pneg %p85
        %p214 = pneg %p82
        %p215 = pneg %p111
        %p216 = pneg %p108
        %s217 = sand.u32 %s98, 1
        %s218 = scalar_lea.sflag [#allocation5], %s217
        %s219 = sand.u32 %s98, 1
        %s220 = scalar_lea.vmem [#allocation8], %s219
        %s221 = smul.u32 6, %s27
        %s222 = smul.u32 6, %s27
        %p223 = scmp.eq.s32.totalorder %s27, 0
        // Predicated region
        $region37: #{autoencoder_loss.7} parent=27 // pred_check
          %p224 = pneg %p223
        $region38: #{autoencoder_loss.7} parent=27 // pred_check_branch
          %226 = sbr.rel (%p224) target = $region40
        $region39: #{autoencoder_loss.7} parent=27 // pred_region
          %227 = vst [vmem:[#allocation2] sm:$0x1] 0.0
        $region40: #{autoencoder_loss.7} parent=27 // pred_fallthru
          _
        %v228 = vld [vmem:[#allocation2] sm:$0x1]
        %v229 = vld [vmem:[%s187] sm:$0xff]
        %v230 = vld [vmem:[%s187 + $0x8] sm:$0xff]
        %v231 = vld [vmem:[%s187 + $0x10] sm:$0xff]
        %v232 = vld [vmem:[%s187 + $0x18] sm:$0xff]
        %v233 = vld [vmem:[%s187 + $0x20] sm:$0xff]
        %v234 = vld [vmem:[%s187 + $0x28] sm:$0xff]
        %v235 = vld [vmem:[%s196] sm:$0xff]
        %v236 = vld [vmem:[%s196 + $0x8] sm:$0xff]
        %v237 = vld [vmem:[%s196 + $0x10] sm:$0xff]
        %v238 = vld [vmem:[%s196 + $0x18] sm:$0xff]
        %v239 = vld [vmem:[%s196 + $0x20] sm:$0xff]
        %v240 = vld [vmem:[%s196 + $0x28] sm:$0xff]
        %v241 = vsub.f32 %v229, %v235
        %v242 = vsub.f32 %v230, %v236
        %v243 = vsub.f32 %v231, %v237
        %v244 = vsub.f32 %v232, %v238
        %v245 = vsub.f32 %v233, %v239
        %v246 = vsub.f32 %v234, %v240
        %v247 = vand.u32 2147483647, %v241
        %v248 = vand.u32 2147483647, %v242
        %v249 = vand.u32 2147483647, %v243
        %v250 = vand.u32 2147483647, %v244
        %v251 = vand.u32 2147483647, %v245
        %v252 = vand.u32 2147483647, %v246
        %v253 = vadd.f32 %v247, %v248
        %v254 = vadd.f32 %v253, %v249
        %v255 = vadd.f32 %v254, %v250
        %v256 = vadd.f32 %v255, %v251
        %v257 = vadd.f32 %v256, %v252
        %v258 = vrot.slane %v257, 4
        %v259 = vadd.f32 %v257, %v258
        %v260 = vrot.slane %v259, 2
        %v261 = vadd.f32 %v259, %v260
        %v262 = vrot.slane %v261, 1
        %v263 = vadd.f32 %v261, %v262
        %v264 = vadd.f32 %v228, %v263
        %265 = vst [vmem:[#allocation2] sm:$0x1] %v264
        // Predicated region
        $region41: #{autoencoder_loss.7} parent=27 // pred_check
          %p266 = pneg %p223
        $region42: #{autoencoder_loss.7} parent=27 // pred_check_branch
          %268 = sbr.rel (%p266) target = $region44
        $region43: #{autoencoder_loss.7} parent=27 // pred_region
          %v269 = vld [vmem:[#allocation2] sm:$0x1]
          %270 = vst [vmem:[%s220] sm:$0x1] %v269
        $region44: #{autoencoder_loss.7} parent=27 // pred_fallthru
          _
        %s271 = sand.u32 %s98, 1
        %s272 = scalar_lea.sflag [#allocation5], %s271
        %s273 = sand.u32 %s98, 1
        %s274 = scalar_lea.vmem [#allocation8], %s273
        // Predicated region
        $region45: #{autoencoder_loss.7} parent=27 // pred_check
          %p275 = pneg %p108
        $region46: #{autoencoder_loss.7} parent=27 // pred_check_branch
          %277 = sbr.rel (%p275) target = $region48
        $region47: #{autoencoder_loss.7} parent=27 // pred_region
          %s279 = ssub.s32 16, 16
          %280 = vsyncadd %s272, %s279
          %s281 = smul.addr %s26, 16
          %s282 = scalar_lea.hbm %s2, %s281
          %s284 = sshll.u32 %s274, 4
          %s285 = int_to_ptr.vmem [resolvable:$true] %s284
          %287 = dma.vmem_to_hbm [thread:$0]  %s285, 16, %s282, %s272
        $region48: #{autoencoder_loss.7} parent=27 // pred_fallthru
          _
      $region28: #{autoencoder_loss.7} parent=5 // pred_fallthru
        _
      %p288 = scmp.le.s32.totalorder 2, %s17
      // Predicated region
      $region49: #{autoencoder_loss.7} parent=5 // pred_check
        %p289 = pneg %p288
      $region50: #{autoencoder_loss.7} parent=5 // pred_check_branch
        %291 = sbr.rel (%p289) target = $region52
      $region51: #{autoencoder_loss.7} parent=5 // pred_region
        %s292 = ssub.s32 %s17, 2
        // Predicated region
        $region53: #{autoencoder_loss.7} parent=51 // pred_check
          %p293 = pneg %p114
        $region54: #{autoencoder_loss.7} parent=51 // pred_check_branch
          %295 = sbr.rel (%p293) target = $region56
        $region55: #{autoencoder_loss.7} parent=51 // pred_region
          %s296 = sand.u32 %s99, 1
          %s297 = scalar_lea.sflag [#allocation5], %s296
          %s298 = sand.u32 %s99, 1
          %s299 = scalar_lea.vmem [#allocation8], %s298
          %300 = dma.done %s297, 16
        $region56: #{autoencoder_loss.7} parent=51 // pred_fallthru
          _
      $region52: #{autoencoder_loss.7} parent=5 // pred_fallthru
        _
    $region6: #{autoencoder_loss.7} parent=1 // loop_footer
      %s21 = sadd.s32 1, %s17
    $region7: #{autoencoder_loss.7} parent=1 // loop_footer_branch
      %16 = sbr.rel target = $region3
    $region8: #{autoencoder_loss.7} parent=1 // loop_exit
      _
    %301 = vsyncpa [#allocation4], 1
    %s302 = scalar_lea.sflag [#allocation4], 1
    %303 = vsyncpa %s302, 1
    %304 = vsyncpa [#allocation7], 1
    %s305 = scalar_lea.sflag [#allocation7], 1
    %306 = vsyncpa %s305, 1
    %307 = vsyncpa [#allocation5], 1
    %s308 = scalar_lea.sflag [#allocation5], 1
    %309 = vsyncpa %s308, 1

// kernel: autoencoder_loss.12
$region0: #{autoencoder_loss.12}
  #allocation0 [shape = 'u32[]', space=smem, size = 0x4, offset = 0x4, fixed_abs, tag = 'smem constant byte address 0x4 - core index']
  #allocation1 [shape = 'u32[144,128]{1,0:T(1,128)}', space=vmem, size = 0x12000, scoped, tag = 'internal scratch']
  %s0 = inlined_call_operand.hbm [shape: bf16[4,25,64], index: 0, kind: input, shape index: {}]
  %s1 = inlined_call_operand.hbm [shape: bf16[16,64,128], index: 1, kind: input, shape index: {}]
  %s2 = inlined_call_operand.hbm [shape: f32[4,1,128], index: 2, kind: output, shape index: {}]
  %s3 = sld [smem:[#allocation0]]
  $region49: #{autoencoder_loss.12} parent=0
    _
  %s5 = ssub.s32 1, %s3
  %s6 = scalar_select 0, %s5, %s3
  $region1: #{autoencoder_loss.12} parent=0
    #allocation2 [shape = 'u8[16384]{0}', space=vmem, size = 0x4000, scoped, tag = 'input window, operand 0']
    #allocation3 [shape = 's32[2]{0}', space=sflag, size = 0x8, scoped, tag = 'scoped memory for autoencoder_loss.12']
    #allocation4 [shape = 's32[2]{0}', space=sflag, size = 0x8, scoped, tag = 'scoped memory for autoencoder_loss.12']
    #allocation5 [shape = 'u8[262144]{0}', space=vmem, size = 0x40000, scoped, tag = 'input window, operand 1, single buffered']
    #allocation6 [shape = 's32[1]{0}', space=sflag, size = 0x4, scoped, tag = 'scoped memory for autoencoder_loss.12']
    #allocation7 [shape = 'u8[1024]{0}', space=vmem, size = 0x400, scoped, tag = 'output window, operand 0']
    %7 = vsyncpa [#allocation3], 0
    %s8 = scalar_lea.sflag [#allocation3], 1
    %9 = vsyncpa %s8, 0
    %10 = vsyncpa [#allocation6], 0
    %11 = vsyncpa [#allocation4], 0
    %s12 = scalar_lea.sflag [#allocation4], 1
    %13 = vsyncpa %s12, 0
    loop: start=0, step=1, limit=6
    $region2: #{autoencoder_loss.12} parent=1 // loop_pre_header
      _
    $region3: #{autoencoder_loss.12} parent=1 // loop_header
      %s15 = sphi 0, %s19
      %p16 = scmp.ge.s32.totalorder %s15, 6
      %s25 = sphi 0, %s27
      %s28 = sphi 0, %s25
      %s29 = sphi 0, %s28
      %s45 = sphi 0, %s29
      %s49 = sphi 0, %s49
      %s51 = sphi 0, %s49
      %s52 = sphi 0, %s51
      %s66 = sphi 0, %s52
      %s72 = sphi 0, %s74
      %s75 = sphi 0, %s72
      %s76 = sphi 0, %s75
      %s92 = sphi 0, %s76
    $region4: #{autoencoder_loss.12} parent=1 // loop_header_branch
      %18 = sbr.rel (%p16) target = $region8
    $region5: #{autoencoder_loss.12} parent=1 // loop_body
      %s20 = ssub.s32 %s15, 1
      %s21 = ssub.s32 %s15, 2
      %s22 = sadd.s32 %s15, 1
      %s23 = ssub.s32 %s15, %s22
      %p24 = scmp.eq.s32.totalorder %s23, 0
      %s26 = sadd.s32 %s25, 1
      %s27 = scalar_select %p24, %s25, %s26
      %p30 = pneg %p24
      %p31 = scmp.eq.s32.totalorder %s15, 3
      %p32 = por %p30, %p31
      %p33 = scmp.ne.s32.totalorder %s25, %s28
      %p34 = scmp.eq.s32.totalorder %s15, 0
      %p35 = por %p33, %p34
      %p36 = scmp.ne.s32.totalorder %s25, %s28
      %p37 = scmp.eq.s32.totalorder %s20, 3
      %p38 = por %p36, %p37
      %p39 = scmp.ne.s32.totalorder %s28, %s29
      %p40 = scmp.eq.s32.totalorder %s20, 0
      %p41 = por %p39, %p40
      %p42 = scmp.ne.s32.totalorder %s28, %s29
      %p43 = scmp.eq.s32.totalorder %s21, 3
      %p44 = por %p42, %p43
      %p46 = scmp.ne.s32.totalorder %s29, %s45
      %p47 = scmp.eq.s32.totalorder %s21, 0
      %p48 = por %p46, %p47
      %s50 = sadd.s32 %s49, 1
      %p53 = scmp.eq.s32.totalorder %s15, 3
      %p54 = scmp.ne.s32.totalorder %s49, %s51
      %p55 = scmp.eq.s32.totalorder %s15, 0
      %p56 = por %p54, %p55
      %p57 = scmp.ne.s32.totalorder %s49, %s51
      %p58 = scmp.eq.s32.totalorder %s20, 3
      %p59 = por %p57, %p58
      %p60 = scmp.ne.s32.totalorder %s51, %s52
      %p61 = scmp.eq.s32.totalorder %s20, 0
      %p62 = por %p60, %p61
      %p63 = scmp.ne.s32.totalorder %s51, %s52
      %p64 = scmp.eq.s32.totalorder %s21, 3
      %p65 = por %p63, %p64
      %p67 = scmp.ne.s32.totalorder %s52, %s66
      %p68 = scmp.eq.s32.totalorder %s21, 0
      %p69 = por %p67, %p68
      %s70 = ssub.s32 %s15, %s22
      %p71 = scmp.eq.s32.totalorder %s70, 0
      %s73 = sadd.s32 %s72, 1
      %s74 = scalar_select %p71, %s72, %s73
      %p77 = pneg %p71
      %p78 = scmp.eq.s32.totalorder %s15, 3
      %p79 = por %p77, %p78
      %p80 = scmp.ne.s32.totalorder %s72, %s75
      %p81 = scmp.eq.s32.totalorder %s15, 0
      %p82 = por %p80, %p81
      %p83 = scmp.ne.s32.totalorder %s72, %s75
      %p84 = scmp.eq.s32.totalorder %s20, 3
      %p85 = por %p83, %p84
      %p86 = scmp.ne.s32.totalorder %s75, %s76
      %p87 = scmp.eq.s32.totalorder %s20, 0
      %p88 = por %p86, %p87
      %p89 = scmp.ne.s32.totalorder %s75, %s76
      %p90 = scmp.eq.s32.totalorder %s21, 3
      %p91 = por %p89, %p90
      %p93 = scmp.ne.s32.totalorder %s76, %s92
      %p94 = scmp.eq.s32.totalorder %s21, 0
      %p95 = por %p93, %p94
      %p96 = scmp.le.s32.totalorder 1, %s15
      %p97 = scmp.lt.s32.totalorder %s15, 5
      %p98 = pnand %p96, %p97
      %p99 = pneg %p98
      // Predicated region
      $region9: #{autoencoder_loss.12} parent=5 // pred_check
        _
      $region10: #{autoencoder_loss.12} parent=5 // pred_check_branch
        %101 = sbr.rel (%p98) target = $region12
      $region11: #{autoencoder_loss.12} parent=5 // pred_region
        %s102 = ssub.s32 %s15, 1
        // Predicated region
        $region13: #{autoencoder_loss.12} parent=11 // pred_check
          %p103 = pneg %p62
        $region14: #{autoencoder_loss.12} parent=11 // pred_check_branch
          %105 = sbr.rel (%p103) target = $region16
        $region15: #{autoencoder_loss.12} parent=11 // pred_region
          %s107 = ssub.s32 8192, 8192
          %108 = vsyncadd [#allocation6], %s107
          %s109 = sshll.u32 [#allocation5], 4
          %s110 = int_to_ptr.vmem [resolvable:$true] %s109
          %115 = dma.hbm_to_vmem [thread:$0]  %s1, 8192, %s110, [#allocation6], 64, 64, 4
        $region16: #{autoencoder_loss.12} parent=11 // pred_fallthru
          _
      $region12: #{autoencoder_loss.12} parent=5 // pred_fallthru
        _
      %p116 = scmp.lt.s32.totalorder %s15, 4
      // Predicated region
      $region17: #{autoencoder_loss.12} parent=5 // pred_check
        %p117 = pneg %p116
      $region18: #{autoencoder_loss.12} parent=5 // pred_check_branch
        %119 = sbr.rel (%p117) target = $region20
      $region19: #{autoencoder_loss.12} parent=5 // pred_region
        // Predicated region
        $region21: #{autoencoder_loss.12} parent=19 // pred_check
          %p120 = pneg %p35
        $region22: #{autoencoder_loss.12} parent=19 // pred_check_branch
          %122 = sbr.rel (%p120) target = $region24
        $region23: #{autoencoder_loss.12} parent=19 // pred_region
          %s123 = sand.u32 %s25, 1
          %s124 = scalar_lea.sflag [#allocation3], %s123
          %s125 = sand.u32 %s25, 1
          %s126 = smul.addr %s125, 16
          %s127 = scalar_lea.vmem [#allocation2], %s126
          %s129 = ssub.s32 256, 256
          %130 = vsyncadd %s124, %s129
          %s131 = smul.addr %s15, 4
          %s132 = smul.addr %s131, 64
          %s133 = scalar_lea.hbm %s0, %s132
          %s134 = sshll.u32 %s127, 4
          %s135 = int_to_ptr.vmem [resolvable:$true] %s134
          %140 = dma.hbm_to_vmem [thread:$0]  %s133, 256, %s135, %s124, 64, 64, 4
        $region24: #{autoencoder_loss.12} parent=19 // pred_fallthru
          _
      $region20: #{autoencoder_loss.12} parent=5 // pred_fallthru
        _
      %p141 = scmp.le.s32.totalorder 1, %s15
      %p142 = scmp.lt.s32.totalorder %s15, 5
      %p143 = pnand %p141, %p142
      %p144 = pneg %p143
      // Predicated region
      $region25: #{autoencoder_loss.12} parent=5 // pred_check
        _
      $region26: #{autoencoder_loss.12} parent=5 // pred_check_branch
        %146 = sbr.rel (%p143) target = $region28
      $region27: #{autoencoder_loss.12} parent=5 // pred_region
        %s147 = ssub.s32 %s15, 1
        %s148 = sand.u32 %s28, 1
        %s149 = scalar_lea.sflag [#allocation3], %s148
        %s150 = sand.u32 %s28, 1
        %s151 = smul.addr %s150, 16
        %s152 = scalar_lea.vmem [#allocation2], %s151
        // Predicated region
        $region29: #{autoencoder_loss.12} parent=27 // pred_check
          %p153 = pneg %p41
        $region30: #{autoencoder_loss.12} parent=27 // pred_check_branch
          %155 = sbr.rel (%p153) target = $region32
        $region31: #{autoencoder_loss.12} parent=27 // pred_region
          %156 = dma.done %s149, 256
        $region32: #{autoencoder_loss.12} parent=27 // pred_fallthru
          _
        // Predicated region
        $region33: #{autoencoder_loss.12} parent=27 // pred_check
          %p157 = pneg %p62
        $region34: #{autoencoder_loss.12} parent=27 // pred_check_branch
          %159 = sbr.rel (%p157) target = $region36
        $region35: #{autoencoder_loss.12} parent=27 // pred_region
          %160 = dma.done [#allocation6], 8192
        $region36: #{autoencoder_loss.12} parent=27 // pred_fallthru
          _
        %s161 = sand.u32 %s28, 1
        %s162 = scalar_lea.sflag [#allocation3], %s161
        %s163 = sand.u32 %s28, 1
        %s164 = smul.addr %s163, 16
        %s165 = scalar_lea.vmem [#allocation2], %s164
        %p166 = pneg %p41
        %p167 = pneg %p38
        %p168 = pneg %p62
        %p169 = pneg %p59
        %p170 = pneg %p88
        %p171 = pneg %p85
        %s172 = sand.u32 %s75, 1
        %s173 = scalar_lea.sflag [#allocation4], %s172
        %s174 = sand.u32 %s75, 1
        %s175 = scalar_lea.vmem [#allocation7], %s174
        %v177 = vld [vmem:[%s152] sm:$0xf]
        %v178 = vld [vmem:[#allocation5] sm:$0xf]
        %v179 = vld [vmem:[#allocation5 + $0x4] sm:$0xf]
        %v180 = vld [vmem:[#allocation5 + $0x8] sm:$0xf]
        %v181 = vld [vmem:[#allocation5 + $0xc] sm:$0xf]
        %v182 = vld [vmem:[#allocation5 + $0x10] sm:$0xf]
        %v183 = vld [vmem:[#allocation5 + $0x14] sm:$0xf]
        %v184 = vld [vmem:[#allocation5 + $0x18] sm:$0xf]
        %v185 = vld [vmem:[#allocation5 + $0x1c] sm:$0xf]
        %s186 = scalar_lea.vmem [#allocation5], 32
        %v187 = vld [vmem:[%s186] sm:$0xf]
        %v188 = vld [vmem:[%s186 + $0x4] sm:$0xf]
        %v189 = vld [vmem:[%s186 + $0x8] sm:$0xf]
        %v190 = vld [vmem:[%s186 + $0xc] sm:$0xf]
        %v191 = vld [vmem:[%s186 + $0x10] sm:$0xf]
        %v192 = vld [vmem:[%s186 + $0x14] sm:$0xf]
        %v193 = vld [vmem:[%s186 + $0x18] sm:$0xf]
        %v194 = vld [vmem:[%s186 + $0x1c] sm:$0xf]
        %v196 = vunpack.c.l.b16 %v177
        %v197 = vpack.c.b16 %v196, %v196
        %v199 = vshrl.u32 %v197, 16
        %v201 = vshll.u32 %v197, 16
        %v203 = vrot.slane %v201, 1
        %v204 = vor.u32 %v199, %v203
        %v213 = vunpack.c.l.b16 %v187
        %v214 = vunpack.c.l.b16 %v188
        %v215 = vunpack.c.l.b16 %v189
        %v216 = vunpack.c.l.b16 %v190
        %v217 = vunpack.c.l.b16 %v191
        %v218 = vunpack.c.l.b16 %v192
        %v219 = vunpack.c.l.b16 %v193
        %v220 = vunpack.c.l.b16 %v194
        %v221 = vpack.c.b16 %v214, %v213
        %v222 = vpack.c.b16 %v216, %v215
        %v223 = vpack.c.b16 %v218, %v217
        %v224 = vpack.c.b16 %v220, %v219
        %vm229 = vcmask 523264
        %v231 = vsel %vm229, %v204, 0
        %233 = vmatprep.subr.bf16.mxu0 0
        %234 = vmatpush1.bf16.msra.mxu0 %v221
        %235 = vmatprep.subr.bf16.mxu0 0
        %236 = vmatpush1.bf16.msra.mxu0 %v222
        %237 = vmatprep.subr.bf16.mxu0 0
        %238 = vmatpush1.bf16.msra.mxu0 %v223
        %239 = vmatprep.subr.bf16.mxu0 0
        %240 = vmatpush1.bf16.msra.mxu0 %v224
        %241 = vmatprep.subr.bf16.mxu0 0
        %242 = vmatpush1.bf16.msra.mxu0 0
        %243 = vmatprep.subr.bf16.mxu0 0
        %244 = vmatpush1.bf16.msra.mxu0 0
        %245 = vmatprep.subr.bf16.mxu0 0
        %246 = vmatpush1.bf16.msra.mxu0 0
        %247 = vmatprep.subr.bf16.mxu0 0
        %248 = vmatpush1.bf16.msra.mxu0 0
        %249 = vmatprep.subr.bf16.mxu0 0
        %250 = vmatpush1.bf16.msra.mxu0 0
        %251 = vmatprep.subr.bf16.mxu0 0
        %252 = vmatpush1.bf16.msra.mxu0 0
        %253 = vmatprep.subr.bf16.mxu0 0
        %254 = vmatpush1.bf16.msra.mxu0 0
        %255 = vmatprep.subr.bf16.mxu0 0
        %256 = vmatpush1.bf16.msra.mxu0 0
        %257 = vmatprep.subr.bf16.mxu0 0
        %258 = vmatpush1.bf16.msra.mxu0 0
        %259 = vmatprep.subr.bf16.mxu0 0
        %260 = vmatpush1.bf16.msra.mxu0 0
        %261 = vmatprep.subr.bf16.mxu0 0
        %262 = vmatpush1.bf16.msra.mxu0 0
        %263 = vmatprep.subr.bf16.mxu0 0
        %264 = vmatpush1.bf16.msra.mxu0 0
        %265 = vmatprep.mubr.bf16.mxu0 0
        %266 = vmatmul.mubr.bf16.gmra.mrb[0].mxu0 %v231
        %v267 = vpop.f32.mrb[0].mxu0
        %v268 = vadd.f32 0.0, %v267
        %v269 = vpop.f32.mrb[0].mxu0
        %v270 = vpop.f32.mrb[0].mxu0
        %v271 = vpop.f32.mrb[0].mxu0
        %272 = vdwg.mxu0
        %v281 = vunpack.c.l.b16 %v178
        %v282 = vunpack.c.l.b16 %v179
        %v283 = vunpack.c.l.b16 %v180
        %v284 = vunpack.c.l.b16 %v181
        %v285 = vunpack.c.l.b16 %v182
        %v286 = vunpack.c.l.b16 %v183
        %v287 = vunpack.c.l.b16 %v184
        %v288 = vunpack.c.l.b16 %v185
        %v289 = vpack.c.b16 %v282, %v281
        %v290 = vpack.c.b16 %v284, %v283
        %v291 = vpack.c.b16 %v286, %v285
        %v292 = vpack.c.b16 %v288, %v287
        %v298 = vsel %vm229, %v177, 0
        %300 = vmatprep.subr.bf16.mxu0 0
        %301 = vmatpush1.bf16.msra.mxu0 %v289
        %302 = vmatprep.subr.bf16.mxu0 0
        %303 = vmatpush1.bf16.msra.mxu0 %v290
        %304 = vmatprep.subr.bf16.mxu0 0
        %305 = vmatpush1.bf16.msra.mxu0 %v291
        %306 = vmatprep.subr.bf16.mxu0 0
        %307 = vmatpush1.bf16.msra.mxu0 %v292
        %308 = vmatprep.subr.bf16.mxu0 0
        %309 = vmatpush1.bf16.msra.mxu0 0
        %310 = vmatprep.subr.bf16.mxu0 0
        %311 = vmatpush1.bf16.msra.mxu0 0
        %312 = vmatprep.subr.bf16.mxu0 0
        %313 = vmatpush1.bf16.msra.mxu0 0
        %314 = vmatprep.subr.bf16.mxu0 0
        %315 = vmatpush1.bf16.msra.mxu0 0
        %316 = vmatprep.subr.bf16.mxu0 0
        %317 = vmatpush1.bf16.msra.mxu0 0
        %318 = vmatprep.subr.bf16.mxu0 0
        %319 = vmatpush1.bf16.msra.mxu0 0
        %320 = vmatprep.subr.bf16.mxu0 0
        %321 = vmatpush1.bf16.msra.mxu0 0
        %322 = vmatprep.subr.bf16.mxu0 0
        %323 = vmatpush1.bf16.msra.mxu0 0
        %324 = vmatprep.subr.bf16.mxu0 0
        %325 = vmatpush1.bf16.msra.mxu0 0
        %326 = vmatprep.subr.bf16.mxu0 0
        %327 = vmatpush1.bf16.msra.mxu0 0
        %328 = vmatprep.subr.bf16.mxu0 0
        %329 = vmatpush1.bf16.msra.mxu0 0
        %330 = vmatprep.subr.bf16.mxu0 0
        %331 = vmatpush1.bf16.msra.mxu0 0
        %332 = vmatprep.mubr.bf16.mxu0 0
        %333 = vmatmul.mubr.bf16.gmra.mrb[0].mxu0 %v298
        %v334 = vpop.f32.mrb[0].mxu0
        %v335 = vadd.f32 %v268, %v334
        %v336 = vpop.f32.mrb[0].mxu0
        %v337 = vpop.f32.mrb[0].mxu0
        %v338 = vpop.f32.mrb[0].mxu0
        %339 = vdwg.mxu0
        %v340 = vld [vmem:[%s152] sm:$0xe]
        %v341 = vld [vmem:[%s152 + $0x4] sm:$0x1]
        %s342 = scalar_lea.vmem [#allocation5], 64
        %v343 = vld [vmem:[%s342] sm:$0xf]
        %v344 = vld [vmem:[%s342 + $0x4] sm:$0xf]
        %v345 = vld [vmem:[%s342 + $0x8] sm:$0xf]
        %v346 = vld [vmem:[%s342 + $0xc] sm:$0xf]
        %v347 = vld [vmem:[%s342 + $0x10] sm:$0xf]
        %v348 = vld [vmem:[%s342 + $0x14] sm:$0xf]
        %v349 = vld [vmem:[%s342 + $0x18] sm:$0xf]
        %v350 = vld [vmem:[%s342 + $0x1c] sm:$0xf]
        %v353 = vunpack.c.l.b16 %v340
        %v354 = vunpack.c.l.b16 %v341
        %v355 = vpack.c.b16 %v354, %v353
        %v356 = vrot.slane %v355, 1
        %v365 = vunpack.c.l.b16 %v343
        %v366 = vunpack.c.l.b16 %v344
        %v367 = vunpack.c.l.b16 %v345
        %v368 = vunpack.c.l.b16 %v346
        %v369 = vunpack.c.l.b16 %v347
        %v370 = vunpack.c.l.b16 %v348
        %v371 = vunpack.c.l.b16 %v349
        %v372 = vunpack.c.l.b16 %v350
        %v373 = vpack.c.b16 %v366, %v365
        %v374 = vpack.c.b16 %v368, %v367
        %v375 = vpack.c.b16 %v370, %v369
        %v376 = vpack.c.b16 %v372, %v371
        %v382 = vsel %vm229, %v356, 0
        %384 = vmatprep.subr.bf16.mxu0 0
        %385 = vmatpush1.bf16.msra.mxu0 %v373
        %386 = vmatprep.subr.bf16.mxu0 0
        %387 = vmatpush1.bf16.msra.mxu0 %v374
        %388 = vmatprep.subr.bf16.mxu0 0
        %389 = vmatpush1.bf16.msra.mxu0 %v375
        %390 = vmatprep.subr.bf16.mxu0 0
        %391 = vmatpush1.bf16.msra.mxu0 %v376
        %392 = vmatprep.subr.bf16.mxu0 0
        %393 = vmatpush1.bf16.msra.mxu0 0
        %394 = vmatprep.subr.bf16.mxu0 0
        %395 = vmatpush1.bf16.msra.mxu0 0
        %396 = vmatprep.subr.bf16.mxu0 0
        %397 = vmatpush1.bf16.msra.mxu0 0
        %398 = vmatprep.subr.bf16.mxu0 0
        %399 = vmatpush1.bf16.msra.mxu0 0
        %400 = vmatprep.subr.bf16.mxu0 0
        %401 = vmatpush1.bf16.msra.mxu0 0
        %402 = vmatprep.subr.bf16.mxu0 0
        %403 = vmatpush1.bf16.msra.mxu0 0
        %404 = vmatprep.subr.bf16.mxu0 0
        %405 = vmatpush1.bf16.msra.mxu0 0
        %406 = vmatprep.subr.bf16.mxu0 0
        %407 = vmatpush1.bf16.msra.mxu0 0
        %408 = vmatprep.subr.bf16.mxu0 0
        %409 = vmatpush1.bf16.msra.mxu0 0
        %410 = vmatprep.subr.bf16.mxu0 0
        %411 = vmatpush1.bf16.msra.mxu0 0
        %412 = vmatprep.subr.bf16.mxu0 0
        %413 = vmatpush1.bf16.msra.mxu0 0
        %414 = vmatprep.subr.bf16.mxu0 0
        %415 = vmatpush1.bf16.msra.mxu0 0
        %416 = vmatprep.mubr.bf16.mxu0 0
        %417 = vmatmul.mubr.bf16.gmra.mrb[0].mxu0 %v382
        %v418 = vpop.f32.mrb[0].mxu0
        %v419 = vadd.f32 0.0, %v418
        %v420 = vpop.f32.mrb[0].mxu0
        %v421 = vpop.f32.mrb[0].mxu0
        %v422 = vpop.f32.mrb[0].mxu0
        %423 = vdwg.mxu0
        %v424 = vadd.f32 %v335, %v419
        %s425 = scalar_lea.vmem [#allocation5], 96
        %v426 = vld [vmem:[%s425] sm:$0xf]
        %v427 = vld [vmem:[%s425 + $0x4] sm:$0xf]
        %v428 = vld [vmem:[%s425 + $0x8] sm:$0xf]
        %v429 = vld [vmem:[%s425 + $0xc] sm:$0xf]
        %v430 = vld [vmem:[%s425 + $0x10] sm:$0xf]
        %v431 = vld [vmem:[%s425 + $0x14] sm:$0xf]
        %v432 = vld [vmem:[%s425 + $0x18] sm:$0xf]
        %v433 = vld [vmem:[%s425 + $0x1c] sm:$0xf]
        %v435 = vshrl.u32 %v355, 16
        %v437 = vrot.slane %v435, 1
        %v438 = vshll.u32 %v355, 16
        %v440 = vrot.slane %v438, 2
        %v441 = vor.u32 %v437, %v440
        %v450 = vunpack.c.l.b16 %v426
        %v451 = vunpack.c.l.b16 %v427
        %v452 = vunpack.c.l.b16 %v428
        %v453 = vunpack.c.l.b16 %v429
        %v454 = vunpack.c.l.b16 %v430
        %v455 = vunpack.c.l.b16 %v431
        %v456 = vunpack.c.l.b16 %v432
        %v457 = vunpack.c.l.b16 %v433
        %v458 = vpack.c.b16 %v451, %v450
        %v459 = vpack.c.b16 %v453, %v452
        %v460 = vpack.c.b16 %v455, %v454
        %v461 = vpack.c.b16 %v457, %v456
        %v467 = vsel %vm229, %v441, 0
        %469 = vmatprep.subr.bf16.mxu0 0
        %470 = vmatpush1.bf16.msra.mxu0 %v458
        %471 = vmatprep.subr.bf16.mxu0 0
        %472 = vmatpush1.bf16.msra.mxu0 %v459
        %473 = vmatprep.subr.bf16.mxu0 0
        %474 = vmatpush1.bf16.msra.mxu0 %v460
        %475 = vmatprep.subr.bf16.mxu0 0
        %476 = vmatpush1.bf16.msra.mxu0 %v461
        %477 = vmatprep.subr.bf16.mxu0 0
        %478 = vmatpush1.bf16.msra.mxu0 0
        %479 = vmatprep.subr.bf16.mxu0 0
        %480 = vmatpush1.bf16.msra.mxu0 0
        %481 = vmatprep.subr.bf16.mxu0 0
        %482 = vmatpush1.bf16.msra.mxu0 0
        %483 = vmatprep.subr.bf16.mxu0 0
        %484 = vmatpush1.bf16.msra.mxu0 0
        %485 = vmatprep.subr.bf16.mxu0 0
        %486 = vmatpush1.bf16.msra.mxu0 0
        %487 = vmatprep.subr.bf16.mxu0 0
        %488 = vmatpush1.bf16.msra.mxu0 0
        %489 = vmatprep.subr.bf16.mxu0 0
        %490 = vmatpush1.bf16.msra.mxu0 0
        %491 = vmatprep.subr.bf16.mxu0 0
        %492 = vmatpush1.bf16.msra.mxu0 0
        %493 = vmatprep.subr.bf16.mxu0 0
        %494 = vmatpush1.bf16.msra.mxu0 0
        %495 = vmatprep.subr.bf16.mxu0 0
        %496 = vmatpush1.bf16.msra.mxu0 0
        %497 = vmatprep.subr.bf16.mxu0 0
        %498 = vmatpush1.bf16.msra.mxu0 0
        %499 = vmatprep.subr.bf16.mxu0 0
        %500 = vmatpush1.bf16.msra.mxu0 0
        %501 = vmatprep.mubr.bf16.mxu0 0
        %502 = vmatmul.mubr.bf16.gmra.mrb[0].mxu0 %v467
        %v503 = vpop.f32.mrb[0].mxu0
        %v504 = vadd.f32 0.0, %v503
        %v505 = vpop.f32.mrb[0].mxu0
        %v506 = vpop.f32.mrb[0].mxu0
        %v507 = vpop.f32.mrb[0].mxu0
        %508 = vdwg.mxu0
        %v509 = vadd.f32 %v424, %v504
        %v510 = vld [vmem:[%s152] sm:$0xc]
        %v511 = vld [vmem:[%s152 + $0x4] sm:$0x3]
        %s512 = scalar_lea.vmem [#allocation5], 128
        %v513 = vld [vmem:[%s512] sm:$0xf]
        %v514 = vld [vmem:[%s512 + $0x4] sm:$0xf]
        %v515 = vld [vmem:[%s512 + $0x8] sm:$0xf]
        %v516 = vld [vmem:[%s512 + $0xc] sm:$0xf]
        %v517 = vld [vmem:[%s512 + $0x10] sm:$0xf]
        %v518 = vld [vmem:[%s512 + $0x14] sm:$0xf]
        %v519 = vld [vmem:[%s512 + $0x18] sm:$0xf]
        %v520 = vld [vmem:[%s512 + $0x1c] sm:$0xf]
        %v523 = vunpack.c.l.b16 %v510
        %v524 = vunpack.c.l.b16 %v511
        %v525 = vpack.c.b16 %v524, %v523
        %v527 = vshrl.u32 %v525, 16
        %v529 = vrot.slane %v527, 2
        %v530 = vshll.u32 %v525, 16
        %v532 = vrot.slane %v530, 3
        %v533 = vor.u32 %v529, %v532
        %v542 = vunpack.c.l.b16 %v513
        %v543 = vunpack.c.l.b16 %v514
        %v544 = vunpack.c.l.b16 %v515
        %v545 = vunpack.c.l.b16 %v516
        %v546 = vunpack.c.l.b16 %v517
        %v547 = vunpack.c.l.b16 %v518
        %v548 = vunpack.c.l.b16 %v519
        %v549 = vunpack.c.l.b16 %v520
        %v550 = vpack.c.b16 %v543, %v542
        %v551 = vpack.c.b16 %v545, %v544
        %v552 = vpack.c.b16 %v547, %v546
        %v553 = vpack.c.b16 %v549, %v548
        %v559 = vsel %vm229, %v533, 0
        %561 = vmatprep.subr.bf16.mxu0 0
        %562 = vmatpush1.bf16.msra.mxu0 %v550
        %563 = vmatprep.subr.bf16.mxu0 0
        %564 = vmatpush1.bf16.msra.mxu0 %v551
        %565 = vmatprep.subr.bf16.mxu0 0
        %566 = vmatpush1.bf16.msra.mxu0 %v552
        %567 = vmatprep.subr.bf16.mxu0 0
        %568 = vmatpush1.bf16.msra.mxu0 %v553
        %569 = vmatprep.subr.bf16.mxu0 0
        %570 = vmatpush1.bf16.msra.mxu0 0
        %571 = vmatprep.subr.bf16.mxu0 0
        %572 = vmatpush1.bf16.msra.mxu0 0
        %573 = vmatprep.subr.bf16.mxu0 0
        %574 = vmatpush1.bf16.msra.mxu0 0
        %575 = vmatprep.subr.bf16.mxu0 0
        %576 = vmatpush1.bf16.msra.mxu0 0
        %577 = vmatprep.subr.bf16.mxu0 0
        %578 = vmatpush1.bf16.msra.mxu0 0
        %579 = vmatprep.subr.bf16.mxu0 0
        %580 = vmatpush1.bf16.msra.mxu0 0
        %581 = vmatprep.subr.bf16.mxu0 0
        %582 = vmatpush1.bf16.msra.mxu0 0
        %583 = vmatprep.subr.bf16.mxu0 0
        %584 = vmatpush1.bf16.msra.mxu0 0
        %585 = vmatprep.subr.bf16.mxu0 0
        %586 = vmatpush1.bf16.msra.mxu0 0
        %587 = vmatprep.subr.bf16.mxu0 0
        %588 = vmatpush1.bf16.msra.mxu0 0
        %589 = vmatprep.subr.bf16.mxu0 0
        %590 = vmatpush1.bf16.msra.mxu0 0
        %591 = vmatprep.subr.bf16.mxu0 0
        %592 = vmatpush1.bf16.msra.mxu0 0
        %593 = vmatprep.mubr.bf16.mxu0 0
        %594 = vmatmul.mubr.bf16.gmra.mrb[0].mxu0 %v559
        %v595 = vpop.f32.mrb[0].mxu0
        %v596 = vadd.f32 0.0, %v595
        %v597 = vpop.f32.mrb[0].mxu0
        %v598 = vpop.f32.mrb[0].mxu0
        %v599 = vpop.f32.mrb[0].mxu0
        %600 = vdwg.mxu0
        %v601 = vadd.f32 %v509, %v596
        %v602 = vld [vmem:[%s152] sm:$0x8]
        %v603 = vld [vmem:[%s152 + $0x4] sm:$0x7]
        %s604 = scalar_lea.vmem [#allocation5], 160
        %v605 = vld [vmem:[%s604] sm:$0xf]
        %v606 = vld [vmem:[%s604 + $0x4] sm:$0xf]
        %v607 = vld [vmem:[%s604 + $0x8] sm:$0xf]
        %v608 = vld [vmem:[%s604 + $0xc] sm:$0xf]
        %v609 = vld [vmem:[%s604 + $0x10] sm:$0xf]
        %v610 = vld [vmem:[%s604 + $0x14] sm:$0xf]
        %v611 = vld [vmem:[%s604 + $0x18] sm:$0xf]
        %v612 = vld [vmem:[%s604 + $0x1c] sm:$0xf]
        %v615 = vunpack.c.l.b16 %v602
        %v616 = vunpack.c.l.b16 %v603
        %v617 = vpack.c.b16 %v616, %v615
        %v618 = vrot.slane %v617, 3
        %v627 = vunpack.c.l.b16 %v605
        %v628 = vunpack.c.l.b16 %v606
        %v629 = vunpack.c.l.b16 %v607
        %v630 = vunpack.c.l.b16 %v608
        %v631 = vunpack.c.l.b16 %v609
        %v632 = vunpack.c.l.b16 %v610
        %v633 = vunpack.c.l.b16 %v611
        %v634 = vunpack.c.l.b16 %v612
        %v635 = vpack.c.b16 %v628, %v627
        %v636 = vpack.c.b16 %v630, %v629
        %v637 = vpack.c.b16 %v632, %v631
        %v638 = vpack.c.b16 %v634, %v633
        %v644 = vsel %vm229, %v618, 0
        %646 = vmatprep.subr.bf16.mxu0 0
        %647 = vmatpush1.bf16.msra.mxu0 %v635
        %648 = vmatprep.subr.bf16.mxu0 0
        %649 = vmatpush1.bf16.msra.mxu0 %v636
        %650 = vmatprep.subr.bf16.mxu0 0
        %651 = vmatpush1.bf16.msra.mxu0 %v637
        %652 = vmatprep.subr.bf16.mxu0 0
        %653 = vmatpush1.bf16.msra.mxu0 %v638
        %654 = vmatprep.subr.bf16.mxu0 0
        %655 = vmatpush1.bf16.msra.mxu0 0
        %656 = vmatprep.subr.bf16.mxu0 0
        %657 = vmatpush1.bf16.msra.mxu0 0
        %658 = vmatprep.subr.bf16.mxu0 0
        %659 = vmatpush1.bf16.msra.mxu0 0
        %660 = vmatprep.subr.bf16.mxu0 0
        %661 = vmatpush1.bf16.msra.mxu0 0
        %662 = vmatprep.subr.bf16.mxu0 0
        %663 = vmatpush1.bf16.msra.mxu0 0
        %664 = vmatprep.subr.bf16.mxu0 0
        %665 = vmatpush1.bf16.msra.mxu0 0
        %666 = vmatprep.subr.bf16.mxu0 0
        %667 = vmatpush1.bf16.msra.mxu0 0
        %668 = vmatprep.subr.bf16.mxu0 0
        %669 = vmatpush1.bf16.msra.mxu0 0
        %670 = vmatprep.subr.bf16.mxu0 0
        %671 = vmatpush1.bf16.msra.mxu0 0
        %672 = vmatprep.subr.bf16.mxu0 0
        %673 = vmatpush1.bf16.msra.mxu0 0
        %674 = vmatprep.subr.bf16.mxu0 0
        %675 = vmatpush1.bf16.msra.mxu0 0
        %676 = vmatprep.subr.bf16.mxu0 0
        %677 = vmatpush1.bf16.msra.mxu0 0
        %678 = vmatprep.mubr.bf16.mxu0 0
        %679 = vmatmul.mubr.bf16.gmra.mrb[0].mxu0 %v644
        %v680 = vpop.f32.mrb[0].mxu0
        %v681 = vadd.f32 0.0, %v680
        %v682 = vpop.f32.mrb[0].mxu0
        %v683 = vpop.f32.mrb[0].mxu0
        %v684 = vpop.f32.mrb[0].mxu0
        %685 = vdwg.mxu0
        %v686 = vadd.f32 %v601, %v681
        %s687 = scalar_lea.vmem [#allocation5], 192
        %v688 = vld [vmem:[%s687] sm:$0xf]
        %v689 = vld [vmem:[%s687 + $0x4] sm:$0xf]
        %v690 = vld [vmem:[%s687 + $0x8] sm:$0xf]
        %v691 = vld [vmem:[%s687 + $0xc] sm:$0xf]
        %v692 = vld [vmem:[%s687 + $0x10] sm:$0xf]
        %v693 = vld [vmem:[%s687 + $0x14] sm:$0xf]
        %v694 = vld [vmem:[%s687 + $0x18] sm:$0xf]
        %v695 = vld [vmem:[%s687 + $0x1c] sm:$0xf]
        %v697 = vshrl.u32 %v617, 16
        %v699 = vrot.slane %v697, 3
        %v700 = vshll.u32 %v617, 16
        %v702 = vrot.slane %v700, 4
        %v703 = vor.u32 %v699, %v702
        %v712 = vunpack.c.l.b16 %v688
        %v713 = vunpack.c.l.b16 %v689
        %v714 = vunpack.c.l.b16 %v690
        %v715 = vunpack.c.l.b16 %v691
        %v716 = vunpack.c.l.b16 %v692
        %v717 = vunpack.c.l.b16 %v693
        %v718 = vunpack.c.l.b16 %v694
        %v719 = vunpack.c.l.b16 %v695
        %v720 = vpack.c.b16 %v713, %v712
        %v721 = vpack.c.b16 %v715, %v714
        %v722 = vpack.c.b16 %v717, %v716
        %v723 = vpack.c.b16 %v719, %v718
        %v729 = vsel %vm229, %v703, 0
        %731 = vmatprep.subr.bf16.mxu0 0
        %732 = vmatpush1.bf16.msra.mxu0 %v720
        %733 = vmatprep.subr.bf16.mxu0 0
        %734 = vmatpush1.bf16.msra.mxu0 %v721
        %735 = vmatprep.subr.bf16.mxu0 0
        %736 = vmatpush1.bf16.msra.mxu0 %v722
        %737 = vmatprep.subr.bf16.mxu0 0
        %738 = vmatpush1.bf16.msra.mxu0 %v723
        %739 = vmatprep.subr.bf16.mxu0 0
        %740 = vmatpush1.bf16.msra.mxu0 0
        %741 = vmatprep.subr.bf16.mxu0 0
        %742 = vmatpush1.bf16.msra.mxu0 0
        %743 = vmatprep.subr.bf16.mxu0 0
        %744 = vmatpush1.bf16.msra.mxu0 0
        %745 = vmatprep.subr.bf16.mxu0 0
        %746 = vmatpush1.bf16.msra.mxu0 0
        %747 = vmatprep.subr.bf16.mxu0 0
        %748 = vmatpush1.bf16.msra.mxu0 0
        %749 = vmatprep.subr.bf16.mxu0 0
        %750 = vmatpush1.bf16.msra.mxu0 0
        %751 = vmatprep.subr.bf16.mxu0 0
        %752 = vmatpush1.bf16.msra.mxu0 0
        %753 = vmatprep.subr.bf16.mxu0 0
        %754 = vmatpush1.bf16.msra.mxu0 0
        %755 = vmatprep.subr.bf16.mxu0 0
        %756 = vmatpush1.bf16.msra.mxu0 0
        %757 = vmatprep.subr.bf16.mxu0 0
        %758 = vmatpush1.bf16.msra.mxu0 0
        %759 = vmatprep.subr.bf16.mxu0 0
        %760 = vmatpush1.bf16.msra.mxu0 0
        %761 = vmatprep.subr.bf16.mxu0 0
        %762 = vmatpush1.bf16.msra.mxu0 0
        %763 = vmatprep.mubr.bf16.mxu0 0
        %764 = vmatmul.mubr.bf16.gmra.mrb[0].mxu0 %v729
        %v765 = vpop.f32.mrb[0].mxu0
        %v766 = vadd.f32 0.0, %v765
        %v767 = vpop.f32.mrb[0].mxu0
        %v768 = vpop.f32.mrb[0].mxu0
        %v769 = vpop.f32.mrb[0].mxu0
        %770 = vdwg.mxu0
        %v771 = vadd.f32 %v686, %v766
        %v772 = vld [vmem:[%s152 + $0x4] sm:$0xf]
        %s773 = scalar_lea.vmem [#allocation5], 224
        %v774 = vld [vmem:[%s773] sm:$0xf]
        %v775 = vld [vmem:[%s773 + $0x4] sm:$0xf]
        %v776 = vld [vmem:[%s773 + $0x8] sm:$0xf]
        %v777 = vld [vmem:[%s773 + $0xc] sm:$0xf]
        %v778 = vld [vmem:[%s773 + $0x10] sm:$0xf]
        %v779 = vld [vmem:[%s773 + $0x14] sm:$0xf]
        %v780 = vld [vmem:[%s773 + $0x18] sm:$0xf]
        %v781 = vld [vmem:[%s773 + $0x1c] sm:$0xf]
        %v790 = vunpack.c.l.b16 %v774
        %v791 = vunpack.c.l.b16 %v775
        %v792 = vunpack.c.l.b16 %v776
        %v793 = vunpack.c.l.b16 %v777
        %v794 = vunpack.c.l.b16 %v778
        %v795 = vunpack.c.l.b16 %v779
        %v796 = vunpack.c.l.b16 %v780
        %v797 = vunpack.c.l.b16 %v781
        %v798 = vpack.c.b16 %v791, %v790
        %v799 = vpack.c.b16 %v793, %v792
        %v800 = vpack.c.b16 %v795, %v794
        %v801 = vpack.c.b16 %v797, %v796
        %v807 = vsel %vm229, %v772, 0
        %809 = vmatprep.subr.bf16.mxu0 0
        %810 = vmatpush1.bf16.msra.mxu0 %v798
        %811 = vmatprep.subr.bf16.mxu0 0
        %812 = vmatpush1.bf16.msra.mxu0 %v799
        %813 = vmatprep.subr.bf16.mxu0 0
        %814 = vmatpush1.bf16.msra.mxu0 %v800
        %815 = vmatprep.subr.bf16.mxu0 0
        %816 = vmatpush1.bf16.msra.mxu0 %v801
        %817 = vmatprep.subr.bf16.mxu0 0
        %818 = vmatpush1.bf16.msra.mxu0 0
        %819 = vmatprep.subr.bf16.mxu0 0
        %820 = vmatpush1.bf16.msra.mxu0 0
        %821 = vmatprep.subr.bf16.mxu0 0
        %822 = vmatpush1.bf16.msra.mxu0 0
        %823 = vmatprep.subr.bf16.mxu0 0
        %824 = vmatpush1.bf16.msra.mxu0 0
        %825 = vmatprep.subr.bf16.mxu0 0
        %826 = vmatpush1.bf16.msra.mxu0 0
        %827 = vmatprep.subr.bf16.mxu0 0
        %828 = vmatpush1.bf16.msra.mxu0 0
        %829 = vmatprep.subr.bf16.mxu0 0
        %830 = vmatpush1.bf16.msra.mxu0 0
        %831 = vmatprep.subr.bf16.mxu0 0
        %832 = vmatpush1.bf16.msra.mxu0 0
        %833 = vmatprep.subr.bf16.mxu0 0
        %834 = vmatpush1.bf16.msra.mxu0 0
        %835 = vmatprep.subr.bf16.mxu0 0
        %836 = vmatpush1.bf16.msra.mxu0 0
        %837 = vmatprep.subr.bf16.mxu0 0
        %838 = vmatpush1.bf16.msra.mxu0 0
        %839 = vmatprep.subr.bf16.mxu0 0
        %840 = vmatpush1.bf16.msra.mxu0 0
        %841 = vmatprep.mubr.bf16.mxu0 0
        %842 = vmatmul.mubr.bf16.gmra.mrb[0].mxu0 %v807
        %v843 = vpop.f32.mrb[0].mxu0
        %v844 = vadd.f32 0.0, %v843
        %v845 = vpop.f32.mrb[0].mxu0
        %v846 = vpop.f32.mrb[0].mxu0
        %v847 = vpop.f32.mrb[0].mxu0
        %848 = vdwg.mxu0
        %v849 = vadd.f32 %v771, %v844
        %v850 = vld [vmem:[%s152 + $0x4] sm:$0xe]
        %v851 = vld [vmem:[%s152 + $0x8] sm:$0x1]
        %s852 = scalar_lea.vmem [#allocation5], 256
        %v853 = vld [vmem:[%s852] sm:$0xf]
        %v854 = vld [vmem:[%s852 + $0x4] sm:$0xf]
        %v855 = vld [vmem:[%s852 + $0x8] sm:$0xf]
        %v856 = vld [vmem:[%s852 + $0xc] sm:$0xf]
        %v857 = vld [vmem:[%s852 + $0x10] sm:$0xf]
        %v858 = vld [vmem:[%s852 + $0x14] sm:$0xf]
        %v859 = vld [vmem:[%s852 + $0x18] sm:$0xf]
        %v860 = vld [vmem:[%s852 + $0x1c] sm:$0xf]
        %v863 = vunpack.c.l.b16 %v850
        %v864 = vunpack.c.l.b16 %v851
        %v865 = vpack.c.b16 %v864, %v863
        %v866 = vrot.slane %v865, 1
        %v875 = vunpack.c.l.b16 %v853
        %v876 = vunpack.c.l.b16 %v854
        %v877 = vunpack.c.l.b16 %v855
        %v878 = vunpack.c.l.b16 %v856
        %v879 = vunpack.c.l.b16 %v857
        %v880 = vunpack.c.l.b16 %v858
        %v881 = vunpack.c.l.b16 %v859
        %v882 = vunpack.c.l.b16 %v860
        %v883 = vpack.c.b16 %v876, %v875
        %v884 = vpack.c.b16 %v878, %v877
        %v885 = vpack.c.b16 %v880, %v879
        %v886 = vpack.c.b16 %v882, %v881
        %v892 = vsel %vm229, %v866, 0
        %894 = vmatprep.subr.bf16.mxu0 0
        %895 = vmatpush1.bf16.msra.mxu0 %v883
        %896 = vmatprep.subr.bf16.mxu0 0
        %897 = vmatpush1.bf16.msra.mxu0 %v884
        %898 = vmatprep.subr.bf16.mxu0 0
        %899 = vmatpush1.bf16.msra.mxu0 %v885
        %900 = vmatprep.subr.bf16.mxu0 0
        %901 = vmatpush1.bf16.msra.mxu0 %v886
        %902 = vmatprep.subr.bf16.mxu0 0
        %903 = vmatpush1.bf16.msra.mxu0 0
        %904 = vmatprep.subr.bf16.mxu0 0
        %905 = vmatpush1.bf16.msra.mxu0 0
        %906 = vmatprep.subr.bf16.mxu0 0
        %907 = vmatpush1.bf16.msra.mxu0 0
        %908 = vmatprep.subr.bf16.mxu0 0
        %909 = vmatpush1.bf16.msra.mxu0 0
        %910 = vmatprep.subr.bf16.mxu0 0
        %911 = vmatpush1.bf16.msra.mxu0 0
        %912 = vmatprep.subr.bf16.mxu0 0
        %913 = vmatpush1.bf16.msra.mxu0 0
        %914 = vmatprep.subr.bf16.mxu0 0
        %915 = vmatpush1.bf16.msra.mxu0 0
        %916 = vmatprep.subr.bf16.mxu0 0
        %917 = vmatpush1.bf16.msra.mxu0 0
        %918 = vmatprep.subr.bf16.mxu0 0
        %919 = vmatpush1.bf16.msra.mxu0 0
        %920 = vmatprep.subr.bf16.mxu0 0
        %921 = vmatpush1.bf16.msra.mxu0 0
        %922 = vmatprep.subr.bf16.mxu0 0
        %923 = vmatpush1.bf16.msra.mxu0 0
        %924 = vmatprep.subr.bf16.mxu0 0
        %925 = vmatpush1.bf16.msra.mxu0 0
        %926 = vmatprep.mubr.bf16.mxu0 0
        %927 = vmatmul.mubr.bf16.gmra.mrb[0].mxu0 %v892
        %v928 = vpop.f32.mrb[0].mxu0
        %v929 = vadd.f32 0.0, %v928
        %v930 = vpop.f32.mrb[0].mxu0
        %v931 = vpop.f32.mrb[0].mxu0
        %v932 = vpop.f32.mrb[0].mxu0
        %933 = vdwg.mxu0
        %v934 = vadd.f32 %v849, %v929
        %s935 = scalar_lea.vmem [#allocation5], 288
        %v936 = vld [vmem:[%s935] sm:$0xf]
        %v937 = vld [vmem:[%s935 + $0x4] sm:$0xf]
        %v938 = vld [vmem:[%s935 + $0x8] sm:$0xf]
        %v939 = vld [vmem:[%s935 + $0xc] sm:$0xf]
        %v940 = vld [vmem:[%s935 + $0x10] sm:$0xf]
        %v941 = vld [vmem:[%s935 + $0x14] sm:$0xf]
        %v942 = vld [vmem:[%s935 + $0x18] sm:$0xf]
        %v943 = vld [vmem:[%s935 + $0x1c] sm:$0xf]
        %v945 = vshrl.u32 %v865, 16
        %v947 = vrot.slane %v945, 1
        %v948 = vshll.u32 %v865, 16
        %v950 = vrot.slane %v948, 2
        %v951 = vor.u32 %v947, %v950
        %v960 = vunpack.c.l.b16 %v936
        %v961 = vunpack.c.l.b16 %v937
        %v962 = vunpack.c.l.b16 %v938
        %v963 = vunpack.c.l.b16 %v939
        %v964 = vunpack.c.l.b16 %v940
        %v965 = vunpack.c.l.b16 %v941
        %v966 = vunpack.c.l.b16 %v942
        %v967 = vunpack.c.l.b16 %v943
        %v968 = vpack.c.b16 %v961, %v960
        %v969 = vpack.c.b16 %v963, %v962
        %v970 = vpack.c.b16 %v965, %v964
        %v971 = vpack.c.b16 %v967, %v966
        %v977 = vsel %vm229, %v951, 0
        %979 = vmatprep.subr.bf16.mxu0 0
        %980 = vmatpush1.bf16.msra.mxu0 %v968
        %981 = vmatprep.subr.bf16.mxu0 0
        %982 = vmatpush1.bf16.msra.mxu0 %v969
        %983 = vmatprep.subr.bf16.mxu0 0
        %984 = vmatpush1.bf16.msra.mxu0 %v970
        %985 = vmatprep.subr.bf16.mxu0 0
        %986 = vmatpush1.bf16.msra.mxu0 %v971
        %987 = vmatprep.subr.bf16.mxu0 0
        %988 = vmatpush1.bf16.msra.mxu0 0
        %989 = vmatprep.subr.bf16.mxu0 0
        %990 = vmatpush1.bf16.msra.mxu0 0
        %991 = vmatprep.subr.bf16.mxu0 0
        %992 = vmatpush1.bf16.msra.mxu0 0
        %993 = vmatprep.subr.bf16.mxu0 0
        %994 = vmatpush1.bf16.msra.mxu0 0
        %995 = vmatprep.subr.bf16.mxu0 0
        %996 = vmatpush1.bf16.msra.mxu0 0
        %997 = vmatprep.subr.bf16.mxu0 0
        %998 = vmatpush1.bf16.msra.mxu0 0
        %999 = vmatprep.subr.bf16.mxu0 0
        %1000 = vmatpush1.bf16.msra.mxu0 0
        %1001 = vmatprep.subr.bf16.mxu0 0
        %1002 = vmatpush1.bf16.msra.mxu0 0
        %1003 = vmatprep.subr.bf16.mxu0 0
        %1004 = vmatpush1.bf16.msra.mxu0 0
        %1005 = vmatprep.subr.bf16.mxu0 0
        %1006 = vmatpush1.bf16.msra.mxu0 0
        %1007 = vmatprep.subr.bf16.mxu0 0
        %1008 = vmatpush1.bf16.msra.mxu0 0
        %1009 = vmatprep.subr.bf16.mxu0 0
        %1010 = vmatpush1.bf16.msra.mxu0 0
        %1011 = vmatprep.mubr.bf16.mxu0 0
        %1012 = vmatmul.mubr.bf16.gmra.mrb[0].mxu0 %v977
        %v1013 = vpop.f32.mrb[0].mxu0
        %v1014 = vadd.f32 0.0, %v1013
        %v1015 = vpop.f32.mrb[0].mxu0
        %v1016 = vpop.f32.mrb[0].mxu0
        %v1017 = vpop.f32.mrb[0].mxu0
        %1018 = vdwg.mxu0
        %v1019 = vadd.f32 %v934, %v1014
        %v1020 = vld [vmem:[%s152 + $0x4] sm:$0xc]
        %v1021 = vld [vmem:[%s152 + $0x8] sm:$0x3]
        %s1022 = scalar_lea.vmem [#allocation5], 320
        %v1023 = vld [vmem:[%s1022] sm:$0xf]
        %v1024 = vld [vmem:[%s1022 + $0x4] sm:$0xf]
        %v1025 = vld [vmem:[%s1022 + $0x8] sm:$0xf]
        %v1026 = vld [vmem:[%s1022 + $0xc] sm:$0xf]
        %v1027 = vld [vmem:[%s1022 + $0x10] sm:$0xf]
        %v1028 = vld [vmem:[%s1022 + $0x14] sm:$0xf]
        %v1029 = vld [vmem:[%s1022 + $0x18] sm:$0xf]
        %v1030 = vld [vmem:[%s1022 + $0x1c] sm:$0xf]
        %v1033 = vunpack.c.l.b16 %v1020
        %v1034 = vunpack.c.l.b16 %v1021
        %v1035 = vpack.c.b16 %v1034, %v1033
        %v1036 = vrot.slane %v1035, 2
        %v1045 = vunpack.c.l.b16 %v1023
        %v1046 = vunpack.c.l.b16 %v1024
        %v1047 = vunpack.c.l.b16 %v1025
        %v1048 = vunpack.c.l.b16 %v1026
        %v1049 = vunpack.c.l.b16 %v1027
        %v1050 = vunpack.c.l.b16 %v1028
        %v1051 = vunpack.c.l.b16 %v1029
        %v1052 = vunpack.c.l.b16 %v1030
        %v1053 = vpack.c.b16 %v1046, %v1045
        %v1054 = vpack.c.b16 %v1048, %v1047
        %v1055 = vpack.c.b16 %v1050, %v1049
        %v1056 = vpack.c.b16 %v1052, %v1051
        %v1062 = vsel %vm229, %v1036, 0
        %1064 = vmatprep.subr.bf16.mxu0 0
        %1065 = vmatpush1.bf16.msra.mxu0 %v1053
        %1066 = vmatprep.subr.bf16.mxu0 0
        %1067 = vmatpush1.bf16.msra.mxu0 %v1054
        %1068 = vmatprep.subr.bf16.mxu0 0
        %1069 = vmatpush1.bf16.msra.mxu0 %v1055
        %1070 = vmatprep.subr.bf16.mxu0 0
        %1071 = vmatpush1.bf16.msra.mxu0 %v1056
        %1072 = vmatprep.subr.bf16.mxu0 0
        %1073 = vmatpush1.bf16.msra.mxu0 0
        %1074 = vmatprep.subr.bf16.mxu0 0
        %1075 = vmatpush1.bf16.msra.mxu0 0
        %1076 = vmatprep.subr.bf16.mxu0 0
        %1077 = vmatpush1.bf16.msra.mxu0 0
        %1078 = vmatprep.subr.bf16.mxu0 0
        %1079 = vmatpush1.bf16.msra.mxu0 0
        %1080 = vmatprep.subr.bf16.mxu0 0
        %1081 = vmatpush1.bf16.msra.mxu0 0
        %1082 = vmatprep.subr.bf16.mxu0 0
        %1083 = vmatpush1.bf16.msra.mxu0 0
        %1084 = vmatprep.subr.bf16.mxu0 0
        %1085 = vmatpush1.bf16.msra.mxu0 0
        %1086 = vmatprep.subr.bf16.mxu0 0
        %1087 = vmatpush1.bf16.msra.mxu0 0
        %1088 = vmatprep.subr.bf16.mxu0 0
        %1089 = vmatpush1.bf16.msra.mxu0 0
        %1090 = vmatprep.subr.bf16.mxu0 0
        %1091 = vmatpush1.bf16.msra.mxu0 0
        %1092 = vmatprep.subr.bf16.mxu0 0
        %1093 = vmatpush1.bf16.msra.mxu0 0
        %1094 = vmatprep.subr.bf16.mxu0 0
        %1095 = vmatpush1.bf16.msra.mxu0 0
        %1096 = vmatprep.mubr.bf16.mxu0 0
        %1097 = vmatmul.mubr.bf16.gmra.mrb[0].mxu0 %v1062
        %v1098 = vpop.f32.mrb[0].mxu0
        %v1099 = vadd.f32 0.0, %v1098
        %v1100 = vpop.f32.mrb[0].mxu0
        %v1101 = vpop.f32.mrb[0].mxu0
        %v1102 = vpop.f32.mrb[0].mxu0
        %1103 = vdwg.mxu0
        %v1104 = vadd.f32 %v1019, %v1099
        %s1105 = scalar_lea.vmem [#allocation5], 352
        %v1106 = vld [vmem:[%s1105] sm:$0xf]
        %v1107 = vld [vmem:[%s1105 + $0x4] sm:$0xf]
        %v1108 = vld [vmem:[%s1105 + $0x8] sm:$0xf]
        %v1109 = vld [vmem:[%s1105 + $0xc] sm:$0xf]
        %v1110 = vld [vmem:[%s1105 + $0x10] sm:$0xf]
        %v1111 = vld [vmem:[%s1105 + $0x14] sm:$0xf]
        %v1112 = vld [vmem:[%s1105 + $0x18] sm:$0xf]
        %v1113 = vld [vmem:[%s1105 + $0x1c] sm:$0xf]
        %v1115 = vshrl.u32 %v1035, 16
        %v1117 = vrot.slane %v1115, 2
        %v1118 = vshll.u32 %v1035, 16
        %v1120 = vrot.slane %v1118, 3
        %v1121 = vor.u32 %v1117, %v1120
        %v1130 = vunpack.c.l.b16 %v1106
        %v1131 = vunpack.c.l.b16 %v1107
        %v1132 = vunpack.c.l.b16 %v1108
        %v1133 = vunpack.c.l.b16 %v1109
        %v1134 = vunpack.c.l.b16 %v1110
        %v1135 = vunpack.c.l.b16 %v1111
        %v1136 = vunpack.c.l.b16 %v1112
        %v1137 = vunpack.c.l.b16 %v1113
        %v1138 = vpack.c.b16 %v1131, %v1130
        %v1139 = vpack.c.b16 %v1133, %v1132
        %v1140 = vpack.c.b16 %v1135, %v1134
        %v1141 = vpack.c.b16 %v1137, %v1136
        %v1147 = vsel %vm229, %v1121, 0
        %1149 = vmatprep.subr.bf16.mxu0 0
        %1150 = vmatpush1.bf16.msra.mxu0 %v1138
        %1151 = vmatprep.subr.bf16.mxu0 0
        %1152 = vmatpush1.bf16.msra.mxu0 %v1139
        %1153 = vmatprep.subr.bf16.mxu0 0
        %1154 = vmatpush1.bf16.msra.mxu0 %v1140
        %1155 = vmatprep.subr.bf16.mxu0 0
        %1156 = vmatpush1.bf16.msra.mxu0 %v1141
        %1157 = vmatprep.subr.bf16.mxu0 0
        %1158 = vmatpush1.bf16.msra.mxu0 0
        %1159 = vmatprep.subr.bf16.mxu0 0
        %1160 = vmatpush1.bf16.msra.mxu0 0
        %1161 = vmatprep.subr.bf16.mxu0 0
        %1162 = vmatpush1.bf16.msra.mxu0 0
        %1163 = vmatprep.subr.bf16.mxu0 0
        %1164 = vmatpush1.bf16.msra.mxu0 0
        %1165 = vmatprep.subr.bf16.mxu0 0
        %1166 = vmatpush1.bf16.msra.mxu0 0
        %1167 = vmatprep.subr.bf16.mxu0 0
        %1168 = vmatpush1.bf16.msra.mxu0 0
        %1169 = vmatprep.subr.bf16.mxu0 0
        %1170 = vmatpush1.bf16.msra.mxu0 0
        %1171 = vmatprep.subr.bf16.mxu0 0
        %1172 = vmatpush1.bf16.msra.mxu0 0
        %1173 = vmatprep.subr.bf16.mxu0 0
        %1174 = vmatpush1.bf16.msra.mxu0 0
        %1175 = vmatprep.subr.bf16.mxu0 0
        %1176 = vmatpush1.bf16.msra.mxu0 0
        %1177 = vmatprep.subr.bf16.mxu0 0
        %1178 = vmatpush1.bf16.msra.mxu0 0
        %1179 = vmatprep.subr.bf16.mxu0 0
        %1180 = vmatpush1.bf16.msra.mxu0 0
        %1181 = vmatprep.mubr.bf16.mxu0 0
        %1182 = vmatmul.mubr.bf16.gmra.mrb[0].mxu0 %v1147
        %v1183 = vpop.f32.mrb[0].mxu0
        %v1184 = vadd.f32 0.0, %v1183
        %v1185 = vpop.f32.mrb[0].mxu0
        %v1186 = vpop.f32.mrb[0].mxu0
        %v1187 = vpop.f32.mrb[0].mxu0
        %1188 = vdwg.mxu0
        %v1189 = vadd.f32 %v1104, %v1184
        %v1190 = vld [vmem:[%s152 + $0x4] sm:$0x8]
        %v1191 = vld [vmem:[%s152 + $0x8] sm:$0x7]
        %s1192 = scalar_lea.vmem [#allocation5], 384
        %v1193 = vld [vmem:[%s1192] sm:$0xf]
        %v1194 = vld [vmem:[%s1192 + $0x4] sm:$0xf]
        %v1195 = vld [vmem:[%s1192 + $0x8] sm:$0xf]
        %v1196 = vld [vmem:[%s1192 + $0xc] sm:$0xf]
        %v1197 = vld [vmem:[%s1192 + $0x10] sm:$0xf]
        %v1198 = vld [vmem:[%s1192 + $0x14] sm:$0xf]
        %v1199 = vld [vmem:[%s1192 + $0x18] sm:$0xf]
        %v1200 = vld [vmem:[%s1192 + $0x1c] sm:$0xf]
        %v1203 = vunpack.c.l.b16 %v1190
        %v1204 = vunpack.c.l.b16 %v1191
        %v1205 = vpack.c.b16 %v1204, %v1203
        %v1207 = vshrl.u32 %v1205, 16
        %v1209 = vrot.slane %v1207, 3
        %v1210 = vshll.u32 %v1205, 16
        %v1212 = vrot.slane %v1210, 4
        %v1213 = vor.u32 %v1209, %v1212
        %v1222 = vunpack.c.l.b16 %v1193
        %v1223 = vunpack.c.l.b16 %v1194
        %v1224 = vunpack.c.l.b16 %v1195
        %v1225 = vunpack.c.l.b16 %v1196
        %v1226 = vunpack.c.l.b16 %v1197
        %v1227 = vunpack.c.l.b16 %v1198
        %v1228 = vunpack.c.l.b16 %v1199
        %v1229 = vunpack.c.l.b16 %v1200
        %v1230 = vpack.c.b16 %v1223, %v1222
        %v1231 = vpack.c.b16 %v1225, %v1224
        %v1232 = vpack.c.b16 %v1227, %v1226
        %v1233 = vpack.c.b16 %v1229, %v1228
        %v1239 = vsel %vm229, %v1213, 0
        %1241 = vmatprep.subr.bf16.mxu0 0
        %1242 = vmatpush1.bf16.msra.mxu0 %v1230
        %1243 = vmatprep.subr.bf16.mxu0 0
        %1244 = vmatpush1.bf16.msra.mxu0 %v1231
        %1245 = vmatprep.subr.bf16.mxu0 0
        %1246 = vmatpush1.bf16.msra.mxu0 %v1232
        %1247 = vmatprep.subr.bf16.mxu0 0
        %1248 = vmatpush1.bf16.msra.mxu0 %v1233
        %1249 = vmatprep.subr.bf16.mxu0 0
        %1250 = vmatpush1.bf16.msra.mxu0 0
        %1251 = vmatprep.subr.bf16.mxu0 0
        %1252 = vmatpush1.bf16.msra.mxu0 0
        %1253 = vmatprep.subr.bf16.mxu0 0
        %1254 = vmatpush1.bf16.msra.mxu0 0
        %1255 = vmatprep.subr.bf16.mxu0 0
        %1256 = vmatpush1.bf16.msra.mxu0 0
        %1257 = vmatprep.subr.bf16.mxu0 0
        %1258 = vmatpush1.bf16.msra.mxu0 0
        %1259 = vmatprep.subr.bf16.mxu0 0
        %1260 = vmatpush1.bf16.msra.mxu0 0
        %1261 = vmatprep.subr.bf16.mxu0 0
        %1262 = vmatpush1.bf16.msra.mxu0 0
        %1263 = vmatprep.subr.bf16.mxu0 0
        %1264 = vmatpush1.bf16.msra.mxu0 0
        %1265 = vmatprep.subr.bf16.mxu0 0
        %1266 = vmatpush1.bf16.msra.mxu0 0
        %1267 = vmatprep.subr.bf16.mxu0 0
        %1268 = vmatpush1.bf16.msra.mxu0 0
        %1269 = vmatprep.subr.bf16.mxu0 0
        %1270 = vmatpush1.bf16.msra.mxu0 0
        %1271 = vmatprep.subr.bf16.mxu0 0
        %1272 = vmatpush1.bf16.msra.mxu0 0
        %1273 = vmatprep.mubr.bf16.mxu0 0
        %1274 = vmatmul.mubr.bf16.gmra.mrb[0].mxu0 %v1239
        %v1275 = vpop.f32.mrb[0].mxu0
        %v1276 = vadd.f32 0.0, %v1275
        %v1277 = vpop.f32.mrb[0].mxu0
        %v1278 = vpop.f32.mrb[0].mxu0
        %v1279 = vpop.f32.mrb[0].mxu0
        %1280 = vdwg.mxu0
        %v1281 = vadd.f32 %v1189, %v1276
        %v1282 = vld [vmem:[%s152 + $0x8] sm:$0xf]
        %s1283 = scalar_lea.vmem [#allocation5], 416
        %v1284 = vld [vmem:[%s1283] sm:$0xf]
        %v1285 = vld [vmem:[%s1283 + $0x4] sm:$0xf]
        %v1286 = vld [vmem:[%s1283 + $0x8] sm:$0xf]
        %v1287 = vld [vmem:[%s1283 + $0xc] sm:$0xf]
        %v1288 = vld [vmem:[%s1283 + $0x10] sm:$0xf]
        %v1289 = vld [vmem:[%s1283 + $0x14] sm:$0xf]
        %v1290 = vld [vmem:[%s1283 + $0x18] sm:$0xf]
        %v1291 = vld [vmem:[%s1283 + $0x1c] sm:$0xf]
        %v1300 = vunpack.c.l.b16 %v1284
        %v1301 = vunpack.c.l.b16 %v1285
        %v1302 = vunpack.c.l.b16 %v1286
        %v1303 = vunpack.c.l.b16 %v1287
        %v1304 = vunpack.c.l.b16 %v1288
        %v1305 = vunpack.c.l.b16 %v1289
        %v1306 = vunpack.c.l.b16 %v1290
        %v1307 = vunpack.c.l.b16 %v1291
        %v1308 = vpack.c.b16 %v1301, %v1300
        %v1309 = vpack.c.b16 %v1303, %v1302
        %v1310 = vpack.c.b16 %v1305, %v1304
        %v1311 = vpack.c.b16 %v1307, %v1306
        %v1317 = vsel %vm229, %v1282, 0
        %1319 = vmatprep.subr.bf16.mxu0 0
        %1320 = vmatpush1.bf16.msra.mxu0 %v1308
        %1321 = vmatprep.subr.bf16.mxu0 0
        %1322 = vmatpush1.bf16.msra.mxu0 %v1309
        %1323 = vmatprep.subr.bf16.mxu0 0
        %1324 = vmatpush1.bf16.msra.mxu0 %v1310
        %1325 = vmatprep.subr.bf16.mxu0 0
        %1326 = vmatpush1.bf16.msra.mxu0 %v1311
        %1327 = vmatprep.subr.bf16.mxu0 0
        %1328 = vmatpush1.bf16.msra.mxu0 0
        %1329 = vmatprep.subr.bf16.mxu0 0
        %1330 = vmatpush1.bf16.msra.mxu0 0
        %1331 = vmatprep.subr.bf16.mxu0 0
        %1332 = vmatpush1.bf16.msra.mxu0 0
        %1333 = vmatprep.subr.bf16.mxu0 0
        %1334 = vmatpush1.bf16.msra.mxu0 0
        %1335 = vmatprep.subr.bf16.mxu0 0
        %1336 = vmatpush1.bf16.msra.mxu0 0
        %1337 = vmatprep.subr.bf16.mxu0 0
        %1338 = vmatpush1.bf16.msra.mxu0 0
        %1339 = vmatprep.subr.bf16.mxu0 0
        %1340 = vmatpush1.bf16.msra.mxu0 0
        %1341 = vmatprep.subr.bf16.mxu0 0
        %1342 = vmatpush1.bf16.msra.mxu0 0
        %1343 = vmatprep.subr.bf16.mxu0 0
        %1344 = vmatpush1.bf16.msra.mxu0 0
        %1345 = vmatprep.subr.bf16.mxu0 0
        %1346 = vmatpush1.bf16.msra.mxu0 0
        %1347 = vmatprep.subr.bf16.mxu0 0
        %1348 = vmatpush1.bf16.msra.mxu0 0
        %1349 = vmatprep.subr.bf16.mxu0 0
        %1350 = vmatpush1.bf16.msra.mxu0 0
        %1351 = vmatprep.mubr.bf16.mxu0 0
        %1352 = vmatmul.mubr.bf16.gmra.mrb[0].mxu0 %v1317
        %v1353 = vpop.f32.mrb[0].mxu0
        %v1354 = vadd.f32 0.0, %v1353
        %v1355 = vpop.f32.mrb[0].mxu0
        %v1356 = vpop.f32.mrb[0].mxu0
        %v1357 = vpop.f32.mrb[0].mxu0
        %1358 = vdwg.mxu0
        %v1359 = vadd.f32 %v1281, %v1354
        %s1360 = scalar_lea.vmem [#allocation5], 448
        %v1361 = vld [vmem:[%s1360] sm:$0xf]
        %v1362 = vld [vmem:[%s1360 + $0x4] sm:$0xf]
        %v1363 = vld [vmem:[%s1360 + $0x8] sm:$0xf]
        %v1364 = vld [vmem:[%s1360 + $0xc] sm:$0xf]
        %v1365 = vld [vmem:[%s1360 + $0x10] sm:$0xf]
        %v1366 = vld [vmem:[%s1360 + $0x14] sm:$0xf]
        %v1367 = vld [vmem:[%s1360 + $0x18] sm:$0xf]
        %v1368 = vld [vmem:[%s1360 + $0x1c] sm:$0xf]
        %v1370 = vunpack.c.l.b16 %v1282
        %v1371 = vpack.c.b16 %v1370, %v1370
        %v1373 = vshrl.u32 %v1371, 16
        %v1375 = vshll.u32 %v1371, 16
        %v1377 = vrot.slane %v1375, 1
        %v1378 = vor.u32 %v1373, %v1377
        %v1387 = vunpack.c.l.b16 %v1361
        %v1388 = vunpack.c.l.b16 %v1362
        %v1389 = vunpack.c.l.b16 %v1363
        %v1390 = vunpack.c.l.b16 %v1364
        %v1391 = vunpack.c.l.b16 %v1365
        %v1392 = vunpack.c.l.b16 %v1366
        %v1393 = vunpack.c.l.b16 %v1367
        %v1394 = vunpack.c.l.b16 %v1368
        %v1395 = vpack.c.b16 %v1388, %v1387
        %v1396 = vpack.c.b16 %v1390, %v1389
        %v1397 = vpack.c.b16 %v1392, %v1391
        %v1398 = vpack.c.b16 %v1394, %v1393
        %v1404 = vsel %vm229, %v1378, 0
        %1406 = vmatprep.subr.bf16.mxu0 0
        %1407 = vmatpush1.bf16.msra.mxu0 %v1395
        %1408 = vmatprep.subr.bf16.mxu0 0
        %1409 = vmatpush1.bf16.msra.mxu0 %v1396
        %1410 = vmatprep.subr.bf16.mxu0 0
        %1411 = vmatpush1.bf16.msra.mxu0 %v1397
        %1412 = vmatprep.subr.bf16.mxu0 0
        %1413 = vmatpush1.bf16.msra.mxu0 %v1398
        %1414 = vmatprep.subr.bf16.mxu0 0
        %1415 = vmatpush1.bf16.msra.mxu0 0
        %1416 = vmatprep.subr.bf16.mxu0 0
        %1417 = vmatpush1.bf16.msra.mxu0 0
        %1418 = vmatprep.subr.bf16.mxu0 0
        %1419 = vmatpush1.bf16.msra.mxu0 0
        %1420 = vmatprep.subr.bf16.mxu0 0
        %1421 = vmatpush1.bf16.msra.mxu0 0
        %1422 = vmatprep.subr.bf16.mxu0 0
        %1423 = vmatpush1.bf16.msra.mxu0 0
        %1424 = vmatprep.subr.bf16.mxu0 0
        %1425 = vmatpush1.bf16.msra.mxu0 0
        %1426 = vmatprep.subr.bf16.mxu0 0
        %1427 = vmatpush1.bf16.msra.mxu0 0
        %1428 = vmatprep.subr.bf16.mxu0 0
        %1429 = vmatpush1.bf16.msra.mxu0 0
        %1430 = vmatprep.subr.bf16.mxu0 0
        %1431 = vmatpush1.bf16.msra.mxu0 0
        %1432 = vmatprep.subr.bf16.mxu0 0
        %1433 = vmatpush1.bf16.msra.mxu0 0
        %1434 = vmatprep.subr.bf16.mxu0 0
        %1435 = vmatpush1.bf16.msra.mxu0 0
        %1436 = vmatprep.subr.bf16.mxu0 0
        %1437 = vmatpush1.bf16.msra.mxu0 0
        %1438 = vmatprep.mubr.bf16.mxu0 0
        %1439 = vmatmul.mubr.bf16.gmra.mrb[0].mxu0 %v1404
        %v1440 = vpop.f32.mrb[0].mxu0
        %v1441 = vadd.f32 0.0, %v1440
        %v1442 = vpop.f32.mrb[0].mxu0
        %v1443 = vpop.f32.mrb[0].mxu0
        %v1444 = vpop.f32.mrb[0].mxu0
        %1445 = vdwg.mxu0
        %v1446 = vadd.f32 %v1359, %v1441
        %v1447 = vld [vmem:[%s152 + $0x8] sm:$0xe]
        %v1448 = vld [vmem:[%s152 + $0xc] sm:$0x1]
        %s1449 = scalar_lea.vmem [#allocation5], 480
        %v1450 = vld [vmem:[%s1449] sm:$0xf]
        %v1451 = vld [vmem:[%s1449 + $0x4] sm:$0xf]
        %v1452 = vld [vmem:[%s1449 + $0x8] sm:$0xf]
        %v1453 = vld [vmem:[%s1449 + $0xc] sm:$0xf]
        %v1454 = vld [vmem:[%s1449 + $0x10] sm:$0xf]
        %v1455 = vld [vmem:[%s1449 + $0x14] sm:$0xf]
        %v1456 = vld [vmem:[%s1449 + $0x18] sm:$0xf]
        %v1457 = vld [vmem:[%s1449 + $0x1c] sm:$0xf]
        %v1460 = vunpack.c.l.b16 %v1447
        %v1461 = vunpack.c.l.b16 %v1448
        %v1462 = vpack.c.b16 %v1461, %v1460
        %v1463 = vrot.slane %v1462, 1
        %v1472 = vunpack.c.l.b16 %v1450
        %v1473 = vunpack.c.l.b16 %v1451
        %v1474 = vunpack.c.l.b16 %v1452
        %v1475 = vunpack.c.l.b16 %v1453
        %v1476 = vunpack.c.l.b16 %v1454
        %v1477 = vunpack.c.l.b16 %v1455
        %v1478 = vunpack.c.l.b16 %v1456
        %v1479 = vunpack.c.l.b16 %v1457
        %v1480 = vpack.c.b16 %v1473, %v1472
        %v1481 = vpack.c.b16 %v1475, %v1474
        %v1482 = vpack.c.b16 %v1477, %v1476
        %v1483 = vpack.c.b16 %v1479, %v1478
        %v1489 = vsel %vm229, %v1463, 0
        %1491 = vmatprep.subr.bf16.mxu0 0
        %1492 = vmatpush1.bf16.msra.mxu0 %v1480
        %1493 = vmatprep.subr.bf16.mxu0 0
        %1494 = vmatpush1.bf16.msra.mxu0 %v1481
        %1495 = vmatprep.subr.bf16.mxu0 0
        %1496 = vmatpush1.bf16.msra.mxu0 %v1482
        %1497 = vmatprep.subr.bf16.mxu0 0
        %1498 = vmatpush1.bf16.msra.mxu0 %v1483
        %1499 = vmatprep.subr.bf16.mxu0 0
        %1500 = vmatpush1.bf16.msra.mxu0 0
        %1501 = vmatprep.subr.bf16.mxu0 0
        %1502 = vmatpush1.bf16.msra.mxu0 0
        %1503 = vmatprep.subr.bf16.mxu0 0
        %1504 = vmatpush1.bf16.msra.mxu0 0
        %1505 = vmatprep.subr.bf16.mxu0 0
        %1506 = vmatpush1.bf16.msra.mxu0 0
        %1507 = vmatprep.subr.bf16.mxu0 0
        %1508 = vmatpush1.bf16.msra.mxu0 0
        %1509 = vmatprep.subr.bf16.mxu0 0
        %1510 = vmatpush1.bf16.msra.mxu0 0
        %1511 = vmatprep.subr.bf16.mxu0 0
        %1512 = vmatpush1.bf16.msra.mxu0 0
        %1513 = vmatprep.subr.bf16.mxu0 0
        %1514 = vmatpush1.bf16.msra.mxu0 0
        %1515 = vmatprep.subr.bf16.mxu0 0
        %1516 = vmatpush1.bf16.msra.mxu0 0
        %1517 = vmatprep.subr.bf16.mxu0 0
        %1518 = vmatpush1.bf16.msra.mxu0 0
        %1519 = vmatprep.subr.bf16.mxu0 0
        %1520 = vmatpush1.bf16.msra.mxu0 0
        %1521 = vmatprep.subr.bf16.mxu0 0
        %1522 = vmatpush1.bf16.msra.mxu0 0
        %1523 = vmatprep.mubr.bf16.mxu0 0
        %1524 = vmatmul.mubr.bf16.gmra.mrb[0].mxu0 %v1489
        %v1525 = vpop.f32.mrb[0].mxu0
        %v1526 = vadd.f32 0.0, %v1525
        %v1527 = vpop.f32.mrb[0].mxu0
        %v1528 = vpop.f32.mrb[0].mxu0
        %v1529 = vpop.f32.mrb[0].mxu0
        %1530 = vdwg.mxu0
        %v1531 = vadd.f32 %v1446, %v1526
        %vm1532 = vcmask 1046528
        %v1533 = vsel %vm1532, %v1531, 0.0
        %1534 = vadd.xlane.f32.xlu0 %v1533
        %v1535 = vpop.xlane.xlu0 %1534
        %v1536 = vlaneseq
        %v1537 = vshrl.u32 %v1536, 7
        %vm1538 = vcmp.lt.s32.totalorder %v1537, 0
        %v1539 = vsub.s32 0, %v1537
        %v1540 = vsel %vm1538, %v1539, %v1537
        %v1541 = vmul.u32.u64.compose %v1540, 3435973837
        %v1542 = vextract.low.u32 %v1541
        %v1543 = vextract.high.u32 %v1541
        %v1544 = vshrl.u32 %v1543, 2
        %v1545 = vmul.u32 %v1544, 5
        %v1546 = vsub.s32 %v1540, %v1545
        %v1547 = vsub.s32 0, %v1546
        %v1548 = vsel %vm1538, %v1547, %v1546
        %vm1549 = vcmp.ne.s32.totalorder %v1548, 0
        %vm1550 = vcmp.lt.s32.totalorder %v1548, 0
        %vm1551 = vmand %vm1550, %vm1549
        %v1552 = vadd.s32 %v1548, 5
        %v1553 = vsel %vm1551, %v1552, %v1548
        %vm1554 = vcmp.lt.s32.totalorder %v1553, 2
        %v1555 = vand.u32 2147483647, %v1535
        %v1556 = vsub.f32 0.0, %v1555
        %v1557 = vmul.f32 %v1556, 1.442695
        %v1558 = vpow.pop %v1557
        %v1559 = vadd.f32 %v1558, 1.0
        %v1560 = vlog2.pop %v1559
        %v1561 = vmul.f32 %v1560, 0.6931472
        %v1562 = vmul.f32 -0.5, %v1558
        %v1563 = vadd.f32 %v1562, 1.0
        %v1564 = vmul.f32 %v1563, %v1558
        %v1565 = vand.u32 2147483647, %v1558
        %vm1566 = vcmp.lt.f32.partialorder %v1565, 0.0004427343
        %v1567 = vsel %vm1566, %v1564, %v1561
        %p1568 = scmp.lt.s32.totalorder %s20, 2
        %v1569 = vsub.f32 0.0, %v1535
        %v1570 = vmax.f32 %v1569, 0.0
        %v1571 = vmax.f32 %v1535, 0.0
        %s1572 = scalar_select %p1568, 1, 0
        %v1573 = vstv %s1572
        %vm1574 = vcmp.eq.s32.totalorder %v1573, 1
        %v1575 = vsel %vm1574, %v1570, %v1571
        %v1576 = vadd.f32 %v1575, %v1567
        %v1577 = vsel %vm1554, %v1576, 0.0
        %vm1578 = vcmask 6144
        %v1579 = vsel %vm1578, %v1577, 0.0
        %1580 = vadd.xlane.f32.xlu0 %v1579
        %v1581 = vpop.xlane.xlu0 %1580
        %v1582 = vrot.slane %v1581, 4
        %v1583 = vadd.f32 %v1581, %v1582
        %v1584 = vrot.slane %v1583, 2
        %v1585 = vadd.f32 %v1583, %v1584
        %v1586 = vrot.slane %v1585, 1
        %v1587 = vadd.f32 %v1585, %v1586
        %s1588 = vtos %v1587
        %v1589 = vstv %s1588
        %v1590 = vadd.f32 %v1589, 0.0
        %1591 = vst [vmem:[%s175] sm:$0x1] %v1590
        %s1592 = sand.u32 %s75, 1
        %s1593 = scalar_lea.sflag [#allocation4], %s1592
        %s1594 = sand.u32 %s75, 1
        %s1595 = scalar_lea.vmem [#allocation7], %s1594
        // Predicated region
        $region37: #{autoencoder_loss.12} parent=27 // pred_check
          %p1596 = pneg %p85
        $region38: #{autoencoder_loss.12} parent=27 // pred_check_branch
          %1598 = sbr.rel (%p1596) target = $region40
        $region39: #{autoencoder_loss.12} parent=27 // pred_region
          %s1600 = ssub.s32 16, 16
          %1601 = vsyncadd %s1593, %s1600
          %s1602 = smul.addr %s20, 16
          %s1603 = scalar_lea.hbm %s2, %s1602
          %s1605 = sshll.u32 %s1595, 4
          %s1606 = int_to_ptr.vmem [resolvable:$true] %s1605
          %1608 = dma.vmem_to_hbm [thread:$0]  %s1606, 16, %s1603, %s1593
        $region40: #{autoencoder_loss.12} parent=27 // pred_fallthru
          _
      $region28: #{autoencoder_loss.12} parent=5 // pred_fallthru
        _
      %p1609 = scmp.le.s32.totalorder 2, %s15
      // Predicated region
      $region41: #{autoencoder_loss.12} parent=5 // pred_check
        %p1610 = pneg %p1609
      $region42: #{autoencoder_loss.12} parent=5 // pred_check_branch
        %1612 = sbr.rel (%p1610) target = $region44
      $region43: #{autoencoder_loss.12} parent=5 // pred_region
        %s1613 = ssub.s32 %s15, 2
        // Predicated region
        $region45: #{autoencoder_loss.12} parent=43 // pred_check
          %p1614 = pneg %p91
        $region46: #{autoencoder_loss.12} parent=43 // pred_check_branch
          %1616 = sbr.rel (%p1614) target = $region48
        $region47: #{autoencoder_loss.12} parent=43 // pred_region
          %s1617 = sand.u32 %s76, 1
          %s1618 = scalar_lea.sflag [#allocation4], %s1617
          %s1619 = sand.u32 %s76, 1
          %s1620 = scalar_lea.vmem [#allocation7], %s1619
          %1621 = dma.done %s1618, 16
        $region48: #{autoencoder_loss.12} parent=43 // pred_fallthru
          _
      $region44: #{autoencoder_loss.12} parent=5 // pred_fallthru
        _
    $region6: #{autoencoder_loss.12} parent=1 // loop_footer
      %s19 = sadd.s32 1, %s15
    $region7: #{autoencoder_loss.12} parent=1 // loop_footer_branch
      %14 = sbr.rel target = $region3
    $region8: #{autoencoder_loss.12} parent=1 // loop_exit
      _
    %1622 = vsyncpa [#allocation3], 1
    %s1623 = scalar_lea.sflag [#allocation3], 1
    %1624 = vsyncpa %s1623, 1
    %1625 = vsyncpa [#allocation6], 1
    %1626 = vsyncpa [#allocation4], 1
    %s1627 = scalar_lea.sflag [#allocation4], 1
    %1628 = vsyncpa %s1627, 1

// kernel: autoencoder_loss.13
$region0: #{autoencoder_loss.13}
  #allocation0 [shape = 'u32[]', space=smem, size = 0x4, offset = 0x4, fixed_abs, tag = 'smem constant byte address 0x4 - core index']
  #allocation1 [shape = 'u32[144,128]{1,0:T(1,128)}', space=vmem, size = 0x12000, scoped, tag = 'internal scratch']
  #allocation2 [shape = 'f32[1,128]{1,0:T(1,128)}', space=vmem, size = 0x200, scoped, tag = 'scratch operand']
  %s0 = inlined_call_operand.hbm [shape: f32[2,8,128], index: 0, kind: input, shape index: {}]
  %s1 = inlined_call_operand.hbm [shape: f32[2,8,128], index: 1, kind: input, shape index: {}]
  %s2 = inlined_call_operand.hbm [shape: f32[2,1,128], index: 2, kind: output, shape index: {}]
  %s3 = sld [smem:[#allocation0]]
  $region57: #{autoencoder_loss.13} parent=0
    _
  %s5 = ssub.s32 1, %s3
  %s6 = scalar_select 0, %s5, %s3
  $region1: #{autoencoder_loss.13} parent=0
    #allocation3 [shape = 'u8[8192]{0}', space=vmem, size = 0x2000, scoped, tag = 'input window, operand 0']
    #allocation4 [shape = 's32[2]{0}', space=sflag, size = 0x8, scoped, tag = 'scoped memory for autoencoder_loss.13']
    #allocation5 [shape = 's32[2]{0}', space=sflag, size = 0x8, scoped, tag = 'scoped memory for autoencoder_loss.13']
    #allocation6 [shape = 'u8[8192]{0}', space=vmem, size = 0x2000, scoped, tag = 'input window, operand 1']
    #allocation7 [shape = 's32[2]{0}', space=sflag, size = 0x8, scoped, tag = 'scoped memory for autoencoder_loss.13']
    #allocation8 [shape = 'u8[1024]{0}', space=vmem, size = 0x400, scoped, tag = 'output window, operand 0']
    %7 = vsyncpa [#allocation4], 0
    %s8 = scalar_lea.sflag [#allocation4], 1
    %9 = vsyncpa %s8, 0
    %10 = vsyncpa [#allocation7], 0
    %s11 = scalar_lea.sflag [#allocation7], 1
    %12 = vsyncpa %s11, 0
    %13 = vsyncpa [#allocation5], 0
    %s14 = scalar_lea.sflag [#allocation5], 1
    %15 = vsyncpa %s14, 0
    loop: start=0, step=1, limit=4
    $region2: #{autoencoder_loss.13} parent=1 // loop_pre_header
      _
    $region3: #{autoencoder_loss.13} parent=1 // loop_header
      %s17 = sphi 0, %s21
      %p18 = scmp.ge.s32.totalorder %s17, 4
      %s24 = sphi 0, %s36
      %s25 = sphi 0, %s32
      %s26 = sphi 0, %s24
      %s27 = sphi 0, %s25
      %s28 = sphi 0, %s26
      %s29 = sphi 0, %s27
      %s41 = sphi 0, %s43
      %s44 = sphi 0, %s41
      %s45 = sphi 0, %s44
      %s61 = sphi 0, %s45
      %s69 = sphi 0, %s71
      %s72 = sphi 0, %s69
      %s73 = sphi 0, %s72
      %s89 = sphi 0, %s73
      %s95 = sphi 0, %s97
      %s98 = sphi 0, %s95
      %s99 = sphi 0, %s98
      %s115 = sphi 0, %s99
    $region4: #{autoencoder_loss.13} parent=1 // loop_header_branch
      %20 = sbr.rel (%p18) target = $region8
    $region5: #{autoencoder_loss.13} parent=1 // loop_body
      %s22 = ssub.s32 %s17, 1
      %s23 = ssub.s32 %s17, 2
      %s30 = sadd.s32 1, %s25
      %p31 = scmp.ge.s32.totalorder %s30, 1
      %s32 = scalar_select %p31, 0, %s30
      %s33 = sadd.s32 1, %s24
      %s34 = scalar_select %p31, %s33, %s24
      %p35 = scmp.ge.s32.totalorder %s34, 2
      %s36 = scalar_select %p35, 0, %s34
      %s37 = ssub.s32 %s24, %s36
      %s38 = ssub.s32 %s25, %s32
      %s39 = sor.u32 %s37, %s38
      %p40 = scmp.eq.s32.totalorder %s39, 0
      %s42 = sadd.s32 %s41, 1
      %s43 = scalar_select %p40, %s41, %s42
      %p46 = pneg %p40
      %p47 = scmp.eq.s32.totalorder %s17, 1
      %p48 = por %p46, %p47
      %p49 = scmp.ne.s32.totalorder %s41, %s44
      %p50 = scmp.eq.s32.totalorder %s17, 0
      %p51 = por %p49, %p50
      %p52 = scmp.ne.s32.totalorder %s41, %s44
      %p53 = scmp.eq.s32.totalorder %s22, 1
      %p54 = por %p52, %p53
      %p55 = scmp.ne.s32.totalorder %s44, %s45
      %p56 = scmp.eq.s32.totalorder %s22, 0
      %p57 = por %p55, %p56
      %p58 = scmp.ne.s32.totalorder %s44, %s45
      %p59 = scmp.eq.s32.totalorder %s23, 1
      %p60 = por %p58, %p59
      %p62 = scmp.ne.s32.totalorder %s45, %s61
      %p63 = scmp.eq.s32.totalorder %s23, 0
      %p64 = por %p62, %p63
      %s65 = ssub.s32 %s24, %s36
      %s66 = ssub.s32 %s25, %s32
      %s67 = sor.u32 %s65, %s66
      %p68 = scmp.eq.s32.totalorder %s67, 0
      %s70 = sadd.s32 %s69, 1
      %s71 = scalar_select %p68, %s69, %s70
      %p74 = pneg %p68
      %p75 = scmp.eq.s32.totalorder %s17, 1
      %p76 = por %p74, %p75
      %p77 = scmp.ne.s32.totalorder %s69, %s72
      %p78 = scmp.eq.s32.totalorder %s17, 0
      %p79 = por %p77, %p78
      %p80 = scmp.ne.s32.totalorder %s69, %s72
      %p81 = scmp.eq.s32.totalorder %s22, 1
      %p82 = por %p80, %p81
      %p83 = scmp.ne.s32.totalorder %s72, %s73
      %p84 = scmp.eq.s32.totalorder %s22, 0
      %p85 = por %p83, %p84
      %p86 = scmp.ne.s32.totalorder %s72, %s73
      %p87 = scmp.eq.s32.totalorder %s23, 1
      %p88 = por %p86, %p87
      %p90 = scmp.ne.s32.totalorder %s73, %s89
      %p91 = scmp.eq.s32.totalorder %s23, 0
      %p92 = por %p90, %p91
      %s93 = ssub.s32 %s24, %s36
      %p94 = scmp.eq.s32.totalorder %s93, 0
      %s96 = sadd.s32 %s95, 1
      %s97 = scalar_select %p94, %s95, %s96
      %p100 = pneg %p94
      %p101 = scmp.eq.s32.totalorder %s17, 1
      %p102 = por %p100, %p101
      %p103 = scmp.ne.s32.totalorder %s95, %s98
      %p104 = scmp.eq.s32.totalorder %s17, 0
      %p105 = por %p103, %p104
      %p106 = scmp.ne.s32.totalorder %s95, %s98
      %p107 = scmp.eq.s32.totalorder %s22, 1
      %p108 = por %p106, %p107
      %p109 = scmp.ne.s32.totalorder %s98, %s99
      %p110 = scmp.eq.s32.totalorder %s22, 0
      %p111 = por %p109, %p110
      %p112 = scmp.ne.s32.totalorder %s98, %s99
      %p113 = scmp.eq.s32.totalorder %s23, 1
      %p114 = por %p112, %p113
      %p116 = scmp.ne.s32.totalorder %s99, %s115
      %p117 = scmp.eq.s32.totalorder %s23, 0
      %p118 = por %p116, %p117
      %p119 = scmp.le.s32.totalorder 1, %s17
      %p120 = scmp.lt.s32.totalorder %s17, 3
      %p121 = pnand %p119, %p120
      %p122 = pneg %p121
      // Predicated region
      $region9: #{autoencoder_loss.13} parent=5 // pred_check
        _
      $region10: #{autoencoder_loss.13} parent=5 // pred_check_branch
        %124 = sbr.rel (%p121) target = $region12
      $region11: #{autoencoder_loss.13} parent=5 // pred_region
        %s125 = ssub.s32 %s17, 1
      $region12: #{autoencoder_loss.13} parent=5 // pred_fallthru
        _
      %p126 = scmp.lt.s32.totalorder %s17, 2
      // Predicated region
      $region13: #{autoencoder_loss.13} parent=5 // pred_check
        %p127 = pneg %p126
      $region14: #{autoencoder_loss.13} parent=5 // pred_check_branch
        %129 = sbr.rel (%p127) target = $region16
      $region15: #{autoencoder_loss.13} parent=5 // pred_region
        // Predicated region
        $region17: #{autoencoder_loss.13} parent=15 // pred_check
          %p130 = pneg %p51
        $region18: #{autoencoder_loss.13} parent=15 // pred_check_branch
          %132 = sbr.rel (%p130) target = $region20
        $region19: #{autoencoder_loss.13} parent=15 // pred_region
          %s133 = sand.u32 %s41, 1
          %s134 = scalar_lea.sflag [#allocation4], %s133
          %s135 = sand.u32 %s41, 1
          %s136 = smul.addr %s135, 8
          %s137 = scalar_lea.vmem [#allocation3], %s136
          %s139 = ssub.s32 128, 128
          %140 = vsyncadd %s134, %s139
          %s141 = sadd.s32 %s25, %s24
          %s142 = smul.addr %s141, 128
          %s143 = scalar_lea.hbm %s0, %s142
          %s145 = sshll.u32 %s137, 4
          %s146 = int_to_ptr.vmem [resolvable:$true] %s145
          %148 = dma.hbm_to_vmem [thread:$0]  %s143, 128, %s146, %s134
        $region20: #{autoencoder_loss.13} parent=15 // pred_fallthru
          _
        // Predicated region
        $region21: #{autoencoder_loss.13} parent=15 // pred_check
          %p149 = pneg %p79
        $region22: #{autoencoder_loss.13} parent=15 // pred_check_branch
          %151 = sbr.rel (%p149) target = $region24
        $region23: #{autoencoder_loss.13} parent=15 // pred_region
          %s152 = sand.u32 %s69, 1
          %s153 = scalar_lea.sflag [#allocation7], %s152
          %s154 = sand.u32 %s69, 1
          %s155 = smul.addr %s154, 8
          %s156 = scalar_lea.vmem [#allocation6], %s155
          %s158 = ssub.s32 128, 128
          %159 = vsyncadd %s153, %s158
          %s160 = sadd.s32 %s25, %s24
          %s161 = smul.addr %s160, 128
          %s162 = scalar_lea.hbm %s1, %s161
          %s164 = sshll.u32 %s156, 4
          %s165 = int_to_ptr.vmem [resolvable:$true] %s164
          %167 = dma.hbm_to_vmem [thread:$0]  %s162, 128, %s165, %s153
        $region24: #{autoencoder_loss.13} parent=15 // pred_fallthru
          _
      $region16: #{autoencoder_loss.13} parent=5 // pred_fallthru
        _
      %p168 = scmp.le.s32.totalorder 1, %s17
      %p169 = scmp.lt.s32.totalorder %s17, 3
      %p170 = pnand %p168, %p169
      %p171 = pneg %p170
      // Predicated region
      $region25: #{autoencoder_loss.13} parent=5 // pred_check
        _
      $region26: #{autoencoder_loss.13} parent=5 // pred_check_branch
        %173 = sbr.rel (%p170) target = $region28
      $region27: #{autoencoder_loss.13} parent=5 // pred_region
        %s174 = ssub.s32 %s17, 1
        %s175 = sand.u32 %s44, 1
        %s176 = scalar_lea.sflag [#allocation4], %s175
        %s177 = sand.u32 %s44, 1
        %s178 = smul.addr %s177, 8
        %s179 = scalar_lea.vmem [#allocation3], %s178
        // Predicated region
        $region29: #{autoencoder_loss.13} parent=27 // pred_check
          %p180 = pneg %p57
        $region30: #{autoencoder_loss.13} parent=27 // pred_check_branch
          %182 = sbr.rel (%p180) target = $region32
        $region31: #{autoencoder_loss.13} parent=27 // pred_region
          %183 = dma.done %s176, 128
        $region32: #{autoencoder_loss.13} parent=27 // pred_fallthru
          _
        %s184 = sand.u32 %s72, 1
        %s185 = scalar_lea.sflag [#allocation7], %s184
        %s186 = sand.u32 %s72, 1
        %s187 = smul.addr %s186, 8
        %s188 = scalar_lea.vmem [#allocation6], %s187
        // Predicated region
        $region33: #{autoencoder_loss.13} parent=27 // pred_check
          %p189 = pneg %p85
        $region34: #{autoencoder_loss.13} parent=27 // pred_check_branch
          %191 = sbr.rel (%p189) target = $region36
        $region35: #{autoencoder_loss.13} parent=27 // pred_region
          %192 = dma.done %s185, 128
        $region36: #{autoencoder_loss.13} parent=27 // pred_fallthru
          _
        %s193 = sand.u32 %s44, 1
        %s194 = scalar_lea.sflag [#allocation4], %s193
        %s195 = sand.u32 %s44, 1
        %s196 = smul.addr %s195, 8
        %s197 = scalar_lea.vmem [#allocation3], %s196
        %p198 = pneg %p57
        %p199 = pneg %p54
        %s200 = sand.u32 %s72, 1
        %s201 = scalar_lea.sflag [#allocation7], %s200
        %s202 = sand.u32 %s72, 1
        %s203 = smul.addr %s202, 8
        %s204 = scalar_lea.vmem [#allocation6], %s203
        %p205 = pneg %p85
        %p206 = pneg %p82
        %p207 = pneg %p111
        %p208 = pneg %p108
        %s209 = sand.u32 %s98, 1
        %s210 = scalar_lea.sflag [#allocation5], %s209
        %s211 = sand.u32 %s98, 1
        %s212 = scalar_lea.vmem [#allocation8], %s211
        %p213 = scmp.eq.s32.totalorder %s27, 0
        // Predicated region
        $region37: #{autoencoder_loss.13} parent=27 // pred_check
          %p214 = pneg %p213
        $region38: #{autoencoder_loss.13} parent=27 // pred_check_branch
          %216 = sbr.rel (%p214) target = $region40
        $region39: #{autoencoder_loss.13} parent=27 // pred_region
          %217 = vst [vmem:[#allocation2] sm:$0x1] 0.0
        $region40: #{autoencoder_loss.13} parent=27 // pred_fallthru
          _
        %v218 = vld [vmem:[%s179] sm:$0xff]
        %v219 = vld [vmem:[%s188] sm:$0xff]
        %v220 = vadd.f32 %v219, 1.0
        %v221 = vmul.f32 %v218, %v218
        %v222 = vsub.f32 %v220, %v221
        %v223 = vmul.f32 %v219, 1.442695
        %v224 = vpow.pop %v223
        %v225 = vsub.f32 %v222, %v224
        %v226 = vmul.f32 %v225, -0.5
        %v227 = vld [vmem:[#allocation2] sm:$0x1]
        %v228 = vrot.slane %v226, 4
        %v229 = vadd.f32 %v226, %v228
        %v230 = vrot.slane %v229, 2
        %v231 = vadd.f32 %v229, %v230
        %v232 = vrot.slane %v231, 1
        %v233 = vadd.f32 %v231, %v232
        %v234 = vadd.f32 %v227, %v233
        %235 = vst [vmem:[#allocation2] sm:$0x1] %v234
        // Predicated region
        $region41: #{autoencoder_loss.13} parent=27 // pred_check
          %p236 = pneg %p213
        $region42: #{autoencoder_loss.13} parent=27 // pred_check_branch
          %238 = sbr.rel (%p236) target = $region44
        $region43: #{autoencoder_loss.13} parent=27 // pred_region
          %v239 = vld [vmem:[#allocation2] sm:$0x1]
          %240 = vst [vmem:[%s212] sm:$0x1] %v239
        $region44: #{autoencoder_loss.13} parent=27 // pred_fallthru
          _
        %s241 = sand.u32 %s98, 1
        %s242 = scalar_lea.sflag [#allocation5], %s241
        %s243 = sand.u32 %s98, 1
        %s244 = scalar_lea.vmem [#allocation8], %s243
        // Predicated region
        $region45: #{autoencoder_loss.13} parent=27 // pred_check
          %p245 = pneg %p108
        $region46: #{autoencoder_loss.13} parent=27 // pred_check_branch
          %247 = sbr.rel (%p245) target = $region48
        $region47: #{autoencoder_loss.13} parent=27 // pred_region
          %s249 = ssub.s32 16, 16
          %250 = vsyncadd %s242, %s249
          %s251 = smul.addr %s26, 16
          %s252 = scalar_lea.hbm %s2, %s251
          %s254 = sshll.u32 %s244, 4
          %s255 = int_to_ptr.vmem [resolvable:$true] %s254
          %257 = dma.vmem_to_hbm [thread:$0]  %s255, 16, %s252, %s242
        $region48: #{autoencoder_loss.13} parent=27 // pred_fallthru
          _
      $region28: #{autoencoder_loss.13} parent=5 // pred_fallthru
        _
      %p258 = scmp.le.s32.totalorder 2, %s17
      // Predicated region
      $region49: #{autoencoder_loss.13} parent=5 // pred_check
        %p259 = pneg %p258
      $region50: #{autoencoder_loss.13} parent=5 // pred_check_branch
        %261 = sbr.rel (%p259) target = $region52
      $region51: #{autoencoder_loss.13} parent=5 // pred_region
        %s262 = ssub.s32 %s17, 2
        // Predicated region
        $region53: #{autoencoder_loss.13} parent=51 // pred_check
          %p263 = pneg %p114
        $region54: #{autoencoder_loss.13} parent=51 // pred_check_branch
          %265 = sbr.rel (%p263) target = $region56
        $region55: #{autoencoder_loss.13} parent=51 // pred_region
          %s266 = sand.u32 %s99, 1
          %s267 = scalar_lea.sflag [#allocation5], %s266
          %s268 = sand.u32 %s99, 1
          %s269 = scalar_lea.vmem [#allocation8], %s268
          %270 = dma.done %s267, 16
        $region56: #{autoencoder_loss.13} parent=51 // pred_fallthru
          _
      $region52: #{autoencoder_loss.13} parent=5 // pred_fallthru
        _
    $region6: #{autoencoder_loss.13} parent=1 // loop_footer
      %s21 = sadd.s32 1, %s17
    $region7: #{autoencoder_loss.13} parent=1 // loop_footer_branch
      %16 = sbr.rel target = $region3
    $region8: #{autoencoder_loss.13} parent=1 // loop_exit
      _
    %271 = vsyncpa [#allocation4], 1
    %s272 = scalar_lea.sflag [#allocation4], 1
    %273 = vsyncpa %s272, 1
    %274 = vsyncpa [#allocation7], 1
    %s275 = scalar_lea.sflag [#allocation7], 1
    %276 = vsyncpa %s275, 1
    %277 = vsyncpa [#allocation5], 1
    %s278 = scalar_lea.sflag [#allocation5], 1
    %279 = vsyncpa %s278, 1

</llo_original>
